<compile_context>
chip_gen: v5e
topology: v5e:2x2
jax: 0.10.0
libtpu: 0.0.40
codegen_flags: <defaults>
</compile_context>

<pallas_src>
import jax
import jax.numpy as jnp
from jax import lax
from jax.experimental import pallas as pl
from jax.experimental.pallas import tpu as pltpu


def _bottleneck3d_kernel(x_ref, s1_ref, b1_ref, w1_ref, b2_ref, w2_ref,
                         out_ref, tpad_ref):
    # x_ref:    (1, D, H, W, C)          one batch element, NDHWC
    # s1/b1:    (1, C)                   fused BN1 scale / bias
    # w1:       (C, IC)                  1x1x1 conv weight (BN2 scale folded in)
    # b2:       (1, IC)                  fused BN2 bias
    # w2:       (3, 3, 3*IC, G)          3x3x3 taps; K axis is (kw, ic) row-major
    # out_ref:  (1, D, H, W, C + G)      fused concat(x, new_features)
    # tpad_ref: (D+2, H+2, W, 3*IC)      VMEM scratch, zero-padded in D and H
    x = x_ref[0]                                           # (D, H, W, C)
    D, H, W, C = x.shape
    IC = w1_ref.shape[1]
    G = w2_ref.shape[-1]

    # --- BN1 + ReLU + 1x1x1 conv (pure matmul over channels) ---
    h1 = jnp.maximum(x * s1_ref[0] + b1_ref[0], 0.0)       # (D, H, W, C)
    t = jnp.dot(h1.reshape(D * H * W, C), w1_ref[...],
                preferred_element_type=jnp.float32)        # (D*H*W, IC)

    # --- BN2 bias + ReLU (scale already folded into w1) ---
    t = jnp.maximum(t + b2_ref[0], 0.0).reshape(D, H, W, IC)

    # --- im2col along W once: channel block kw holds t shifted by (kw-1) in W ---
    tw = jnp.pad(t, ((0, 0), (0, 0), (1, 1), (0, 0)))      # (D, H, W+2, IC)
    cols_w = jnp.concatenate(
        [tw[:, :, kw:kw + W, :] for kw in range(3)], axis=-1)   # (D, H, W, 3*IC)

    # --- single zero-initialized padded scratch (padding only in D and H) ---
    tpad_ref[...] = jnp.zeros(tpad_ref.shape, tpad_ref.dtype)
    tpad_ref[1:1 + D, 1:1 + H, :, :] = cols_w

    # --- 3x3x3 conv = 9 wide MXU matmuls (K = 3*IC), single accumulation chain ---
    acc = jnp.zeros((D * H * W, G), jnp.float32)
    for kd in range(3):
        for kh in range(3):
            blk = tpad_ref[kd:kd + D, kh:kh + H, :, :]     # (D, H, W, 3*IC)
            acc = acc + jnp.dot(blk.reshape(D * H * W, 3 * IC),
                                w2_ref[kd, kh],
                                preferred_element_type=jnp.float32)

    # --- fused concat: [x | new features], single store ---
    out_ref[0] = jnp.concatenate([x, acc.reshape(D, H, W, G)], axis=-1)


def bottleneck3d_forward(x_ncdhw, params, eps=1e-5):
    """x_ncdhw: (N, C, D, H, W) float32. Returns (N, C + growthRate, D, H, W)."""
    N, C, D, H, W = x_ncdhw.shape

    # Fold BN params into per-channel scale / bias (glue).
    s1 = params["bn1_gamma"] / jnp.sqrt(params["bn1_var"] + eps)
    b1 = params["bn1_beta"] - params["bn1_mean"] * s1
    s2 = params["bn2_gamma"] / jnp.sqrt(params["bn2_var"] + eps)
    b2 = params["bn2_beta"] - params["bn2_mean"] * s2

    IC = params["conv1_w"].shape[0]
    G = params["conv2_w"].shape[0]

    # 1x1x1 conv as a matmul; fold the BN2 scale into its columns.
    w1 = params["conv1_w"].reshape(IC, C).T * s2[None, :]              # (C, IC)
    # 3x3x3 taps -> (kd, kh, K=3*IC, G) with K ordered (kw, ic) row-major,
    # matching the in-kernel W-im2col channel order.
    w2 = jnp.transpose(params["conv2_w"], (2, 3, 4, 1, 0))             # (3,3,3,IC,G)
    w2 = w2.reshape(3, 3, 3 * IC, G)

    x_ndhwc = jnp.transpose(x_ncdhw, (0, 2, 3, 4, 1)).astype(jnp.float32)

    out_ndhwc = pl.pallas_call(
        _bottleneck3d_kernel,
        out_shape=jax.ShapeDtypeStruct((N, D, H, W, C + G), jnp.float32),
        grid_spec=pltpu.PrefetchScalarGridSpec(
            num_scalar_prefetch=0,
            grid=(N,),
            in_specs=[
                pl.BlockSpec((1, D, H, W, C), lambda n: (n, 0, 0, 0, 0)),
                pl.BlockSpec((1, C), lambda n: (0, 0)),
                pl.BlockSpec((1, C), lambda n: (0, 0)),
                pl.BlockSpec((C, IC), lambda n: (0, 0)),
                pl.BlockSpec((1, IC), lambda n: (0, 0)),
                pl.BlockSpec((3, 3, 3 * IC, G), lambda n: (0, 0, 0, 0)),
            ],
            out_specs=pl.BlockSpec((1, D, H, W, C + G),
                                   lambda n: (n, 0, 0, 0, 0)),
            scratch_shapes=[
                pltpu.VMEM((D + 2, H + 2, W, 3 * IC), jnp.float32),
            ],
        ),
        compiler_params=pltpu.CompilerParams(
            dimension_semantics=("parallel",)),
    )(x_ndhwc, s1.reshape(1, C), b1.reshape(1, C), w1, b2.reshape(1, IC), w2)

    # torch.cat((x, out), 1) is already fused into the kernel output.
    return jnp.transpose(out_ndhwc, (0, 4, 1, 2, 3))


def bottleneck3d_reference(x_ncdhw, params, eps=1e-5):
    """Pure-JAX reference (eval-mode BN), NCDHW, for verification."""
    def bn(h, gamma, beta, mean, var):
        sh = (1, -1, 1, 1, 1)
        return ((h - mean.reshape(sh)) / jnp.sqrt(var.reshape(sh) + eps)
                * gamma.reshape(sh) + beta.reshape(sh))

    dn = ("NCDHW", "OIDHW", "NCDHW")
    h = jax.nn.relu(bn(x_ncdhw, params["bn1_gamma"], params["bn1_beta"],
                       params["bn1_mean"], params["bn1_var"]))
    h = lax.conv_general_dilated(h, params["conv1_w"], (1, 1, 1), "VALID",
                                 dimension_numbers=dn,
                                 precision=lax.Precision.HIGHEST)
    h = jax.nn.relu(bn(h, params["bn2_gamma"], params["bn2_beta"],
                       params["bn2_mean"], params["bn2_var"]))
    h = lax.conv_general_dilated(h, params["conv2_w"], (1, 1, 1),
                                 ((1, 1), (1, 1), (1, 1)),
                                 dimension_numbers=dn,
                                 precision=lax.Precision.HIGHEST)
    return jnp.concatenate([x_ncdhw, h], axis=1)


def make_params(key, nChannels, growthRate):
    interChannels = 4 * growthRate
    ks = jax.random.split(key, 10)
    return {
        "bn1_gamma": jax.random.uniform(ks[0], (nChannels,), jnp.float32, 0.5, 1.5),
        "bn1_beta": 0.1 * jax.random.normal(ks[1], (nChannels,), jnp.float32),
        "bn1_mean": 0.1 * jax.random.normal(ks[2], (nChannels,), jnp.float32),
        "bn1_var": jax.random.uniform(ks[3], (nChannels,), jnp.float32, 0.5, 1.5),
        "conv1_w": 0.2 * jax.random.normal(
            ks[4], (interChannels, nChannels, 1, 1, 1), jnp.float32),
        "bn2_gamma": jax.random.uniform(ks[5], (interChannels,), jnp.float32, 0.5, 1.5),
        "bn2_beta": 0.1 * jax.random.normal(ks[6], (interChannels,), jnp.float32),
        "bn2_mean": 0.1 * jax.random.normal(ks[7], (interChannels,), jnp.float32),
        "bn2_var": jax.random.uniform(ks[8], (interChannels,), jnp.float32, 0.5, 1.5),
        "conv2_w": 0.1 * jax.random.normal(
            ks[9], (growthRate, interChannels, 3, 3, 3), jnp.float32),
    }


if __name__ == "__main__":
    nChannels, growthRate = 4, 4        # interChannels = 16
    N, D, H, W = 2, 8, 8, 8             # kernel_size = 3 (padding=1 preserves shape)

    key = jax.random.PRNGKey(0)
    kx, kp = jax.random.split(key)
    x = jax.random.normal(kx, (N, nChannels, D, H, W), jnp.float32)
    params = make_params(kp, nChannels, growthRate)

    out = jax.block_until_ready(bottleneck3d_forward(x, params))
    ref = jax.block_until_ready(bottleneck3d_reference(x, params))

    assert out.shape == (N, nChannels + growthRate, D, H, W), out.shape
    assert jnp.allclose(out, ref, rtol=1e-4, atol=5e-4), (
        float(jnp.max(jnp.abs(out - ref))))
    print("KERNEL_OK")
</pallas_src>

<mosaic_0001>
module attributes {stable_mosaic.version = 11 : i64} {
  func.func @_bottleneck3d_kernel(%arg0: i32, %arg1: memref<1x8x8x8x4xf32, #tpu.memory_space<vmem>>, %arg2: memref<1x4xf32, #tpu.memory_space<vmem>>, %arg3: memref<1x4xf32, #tpu.memory_space<vmem>>, %arg4: memref<4x16xf32, #tpu.memory_space<vmem>>, %arg5: memref<1x16xf32, #tpu.memory_space<vmem>>, %arg6: memref<3x3x48x4xf32, #tpu.memory_space<vmem>>, %arg7: memref<1x8x8x8x8xf32, #tpu.memory_space<vmem>>, %arg8: memref<10x10x8x48xf32, #tpu.memory_space<vmem>>) attributes {dimension_semantics = [#tpu.dimension_semantics<parallel>], iteration_bounds = array<i64: 2>, scalar_prefetch = 0 : i64, scratch_operands = 1 : i64, tpu.core_type = #tpu.core_type<tc>, window_params = [{transform_indices = @transform_0, window_bounds = array<i64: 1, 8, 8, 8, 4>}, {pipeline_mode = #tpu.pipeline_mode<synchronous>, transform_indices = @transform_1, window_bounds = array<i64: 1, 4>}, {pipeline_mode = #tpu.pipeline_mode<synchronous>, transform_indices = @transform_2, window_bounds = array<i64: 1, 4>}, {pipeline_mode = #tpu.pipeline_mode<synchronous>, transform_indices = @transform_3, window_bounds = array<i64: 4, 16>}, {pipeline_mode = #tpu.pipeline_mode<synchronous>, transform_indices = @transform_4, window_bounds = array<i64: 1, 16>}, {pipeline_mode = #tpu.pipeline_mode<synchronous>, transform_indices = @transform_5, window_bounds = array<i64: 3, 3, 48, 4>}, {transform_indices = @transform_6, window_bounds = array<i64: 1, 8, 8, 8, 8>}]} {
    %c0 = arith.constant 0 : index
    %c0_0 = arith.constant 0 : index
    %c0_1 = arith.constant 0 : index
    %c0_2 = arith.constant 0 : index
    %c0_3 = arith.constant 0 : index
    %0 = vector.load %arg1[%c0, %c0_0, %c0_1, %c0_2, %c0_3] : memref<1x8x8x8x4xf32, #tpu.memory_space<vmem>>, vector<1x8x8x8x4xf32>
    %1 = vector.shape_cast %0 : vector<1x8x8x8x4xf32> to vector<8x8x8x4xf32>
    %c0_4 = arith.constant 0 : index
    %c0_5 = arith.constant 0 : index
    %2 = vector.load %arg2[%c0_4, %c0_5] : memref<1x4xf32, #tpu.memory_space<vmem>>, vector<1x4xf32>
    %3 = vector.shape_cast %2 : vector<1x4xf32> to vector<4xf32>
    %4 = vector.shape_cast %3 : vector<4xf32> to vector<1x1x1x4xf32>
    %5 = vector.broadcast %4 : vector<1x1x1x4xf32> to vector<8x8x8x4xf32>
    %6 = arith.mulf %1, %5 : vector<8x8x8x4xf32>
    %c0_6 = arith.constant 0 : index
    %c0_7 = arith.constant 0 : index
    %7 = vector.load %arg3[%c0_6, %c0_7] : memref<1x4xf32, #tpu.memory_space<vmem>>, vector<1x4xf32>
    %8 = vector.shape_cast %7 : vector<1x4xf32> to vector<4xf32>
    %9 = vector.shape_cast %8 : vector<4xf32> to vector<1x1x1x4xf32>
    %10 = vector.broadcast %9 : vector<1x1x1x4xf32> to vector<8x8x8x4xf32>
    %11 = arith.addf %6, %10 : vector<8x8x8x4xf32>
    %cst = arith.constant 0.000000e+00 : f32
    %12 = vector.broadcast %cst : f32 to vector<8x8x8x4xf32>
    %13 = arith.maximumf %11, %12 : vector<8x8x8x4xf32>
    %14 = vector.shape_cast %13 : vector<8x8x8x4xf32> to vector<512x4xf32>
    %c0_8 = arith.constant 0 : index
    %c0_9 = arith.constant 0 : index
    %15 = vector.load %arg4[%c0_8, %c0_9] : memref<4x16xf32, #tpu.memory_space<vmem>>, vector<4x16xf32>
    %cst_10 = arith.constant dense<0.000000e+00> : vector<512x16xf32>
    %16 = tpu.matmul %14, %15, %cst_10 {dimension_numbers = #tpu.dot_dimension_numbers<[1], [0], [0], [1], [0, 0, 1, 1], [], []>} : vector<512x4xf32>, vector<4x16xf32>, vector<512x16xf32> -> vector<512x16xf32>
    %c0_11 = arith.constant 0 : index
    %c0_12 = arith.constant 0 : index
    %17 = vector.load %arg5[%c0_11, %c0_12] : memref<1x16xf32, #tpu.memory_space<vmem>>, vector<1x16xf32>
    %18 = vector.shape_cast %17 : vector<1x16xf32> to vector<16xf32>
    %19 = vector.shape_cast %18 : vector<16xf32> to vector<1x16xf32>
    %20 = vector.broadcast %19 : vector<1x16xf32> to vector<512x16xf32>
    %21 = arith.addf %16, %20 : vector<512x16xf32>
    %cst_13 = arith.constant 0.000000e+00 : f32
    %22 = vector.broadcast %cst_13 : f32 to vector<512x16xf32>
    %23 = arith.maximumf %21, %22 : vector<512x16xf32>
    %24 = vector.shape_cast %23 : vector<512x16xf32> to vector<8x8x8x16xf32>
    %c0_i32 = arith.constant 0 : i32
    %25 = arith.sitofp %c0_i32 : i32 to f32
    %26 = vector.broadcast %25 : f32 to vector<8x8x1x16xf32>
    %27 = tpu.concatenate %26, %24 in 2 : vector<8x8x1x16xf32>, vector<8x8x8x16xf32> -> vector<8x8x9x16xf32>
    %28 = vector.broadcast %25 : f32 to vector<8x8x1x16xf32>
    %29 = tpu.concatenate %27, %28 in 2 : vector<8x8x9x16xf32>, vector<8x8x1x16xf32> -> vector<8x8x10x16xf32>
    %30 = vector.extract_strided_slice %29 {offsets = [0, 0, 0, 0], sizes = [8, 8, 8, 16], strides = [1, 1, 1, 1]} : vector<8x8x10x16xf32> to vector<8x8x8x16xf32>
    %31 = vector.extract_strided_slice %29 {offsets = [0, 0, 1, 0], sizes = [8, 8, 8, 16], strides = [1, 1, 1, 1]} : vector<8x8x10x16xf32> to vector<8x8x8x16xf32>
    %32 = vector.extract_strided_slice %29 {offsets = [0, 0, 2, 0], sizes = [8, 8, 8, 16], strides = [1, 1, 1, 1]} : vector<8x8x10x16xf32> to vector<8x8x8x16xf32>
    %33 = tpu.concatenate %30, %31, %32 in 3 : vector<8x8x8x16xf32>, vector<8x8x8x16xf32>, vector<8x8x8x16xf32> -> vector<8x8x8x48xf32>
    %cst_14 = arith.constant 0.000000e+00 : f32
    %34 = vector.broadcast %cst_14 : f32 to vector<10x10x8x48xf32>
    %c0_15 = arith.constant 0 : index
    %c0_16 = arith.constant 0 : index
    %c0_17 = arith.constant 0 : index
    %c0_18 = arith.constant 0 : index
    %35 = vector.load %arg8[%c0_15, %c0_16, %c0_17, %c0_18] : memref<10x10x8x48xf32, #tpu.memory_space<vmem>>, vector<10x10x8x48xf32>
    tpu.vector_store %arg8[%c0_15, %c0_16, %c0_17, %c0_18], %34 {strides = array<i32>} : memref<10x10x8x48xf32, #tpu.memory_space<vmem>>, vector<10x10x8x48xf32>,
    %c1 = arith.constant 1 : index
    %c1_19 = arith.constant 1 : index
    %c0_20 = arith.constant 0 : index
    %c0_21 = arith.constant 0 : index
    %36 = vector.load %arg8[%c1, %c1_19, %c0_20, %c0_21] : memref<10x10x8x48xf32, #tpu.memory_space<vmem>>, vector<8x8x8x48xf32>
    tpu.vector_store %arg8[%c1, %c1_19, %c0_20, %c0_21], %33 {strides = array<i32>} : memref<10x10x8x48xf32, #tpu.memory_space<vmem>>, vector<8x8x8x48xf32>,
    %cst_22 = arith.constant 0.000000e+00 : f32
    %37 = vector.broadcast %cst_22 : f32 to vector<512x4xf32>
    %c0_23 = arith.constant 0 : index
    %c0_24 = arith.constant 0 : index
    %c0_25 = arith.constant 0 : index
    %c0_26 = arith.constant 0 : index
    %38 = vector.load %arg8[%c0_23, %c0_24, %c0_25, %c0_26] : memref<10x10x8x48xf32, #tpu.memory_space<vmem>>, vector<8x8x8x48xf32>
    %39 = vector.shape_cast %38 : vector<8x8x8x48xf32> to vector<512x48xf32>
    %c0_27 = arith.constant 0 : index
    %c0_28 = arith.constant 0 : index
    %c0_29 = arith.constant 0 : index
    %c0_30 = arith.constant 0 : index
    %40 = vector.load %arg6[%c0_27, %c0_28, %c0_29, %c0_30] : memref<3x3x48x4xf32, #tpu.memory_space<vmem>>, vector<1x1x48x4xf32>
    %41 = vector.shape_cast %40 : vector<1x1x48x4xf32> to vector<48x4xf32>
    %cst_31 = arith.constant dense<0.000000e+00> : vector<512x4xf32>
    %42 = tpu.matmul %39, %41, %cst_31 {dimension_numbers = #tpu.dot_dimension_numbers<[1], [0], [0], [1], [0, 0, 1, 1], [], []>} : vector<512x48xf32>, vector<48x4xf32>, vector<512x4xf32> -> vector<512x4xf32>
    %43 = arith.addf %37, %42 : vector<512x4xf32>
    %c0_32 = arith.constant 0 : index
    %c1_33 = arith.constant 1 : index
    %c0_34 = arith.constant 0 : index
    %c0_35 = arith.constant 0 : index
    %44 = vector.load %arg8[%c0_32, %c1_33, %c0_34, %c0_35] : memref<10x10x8x48xf32, #tpu.memory_space<vmem>>, vector<8x8x8x48xf32>
    %45 = vector.shape_cast %44 : vector<8x8x8x48xf32> to vector<512x48xf32>
    %c0_36 = arith.constant 0 : index
    %c1_37 = arith.constant 1 : index
    %c0_38 = arith.constant 0 : index
    %c0_39 = arith.constant 0 : index
    %46 = vector.load %arg6[%c0_36, %c1_37, %c0_38, %c0_39] : memref<3x3x48x4xf32, #tpu.memory_space<vmem>>, vector<1x1x48x4xf32>
    %47 = vector.shape_cast %46 : vector<1x1x48x4xf32> to vector<48x4xf32>
    %cst_40 = arith.constant dense<0.000000e+00> : vector<512x4xf32>
    %48 = tpu.matmul %45, %47, %cst_40 {dimension_numbers = #tpu.dot_dimension_numbers<[1], [0], [0], [1], [0, 0, 1, 1], [], []>} : vector<512x48xf32>, vector<48x4xf32>, vector<512x4xf32> -> vector<512x4xf32>
    %49 = arith.addf %43, %48 : vector<512x4xf32>
    %c0_41 = arith.constant 0 : index
    %c2 = arith.constant 2 : index
    %c0_42 = arith.constant 0 : index
    %c0_43 = arith.constant 0 : index
    %50 = vector.load %arg8[%c0_41, %c2, %c0_42, %c0_43] : memref<10x10x8x48xf32, #tpu.memory_space<vmem>>, vector<8x8x8x48xf32>
    %51 = vector.shape_cast %50 : vector<8x8x8x48xf32> to vector<512x48xf32>
    %c0_44 = arith.constant 0 : index
    %c2_45 = arith.constant 2 : index
    %c0_46 = arith.constant 0 : index
    %c0_47 = arith.constant 0 : index
    %52 = vector.load %arg6[%c0_44, %c2_45, %c0_46, %c0_47] : memref<3x3x48x4xf32, #tpu.memory_space<vmem>>, vector<1x1x48x4xf32>
    %53 = vector.shape_cast %52 : vector<1x1x48x4xf32> to vector<48x4xf32>
    %cst_48 = arith.constant dense<0.000000e+00> : vector<512x4xf32>
    %54 = tpu.matmul %51, %53, %cst_48 {dimension_numbers = #tpu.dot_dimension_numbers<[1], [0], [0], [1], [0, 0, 1, 1], [], []>} : vector<512x48xf32>, vector<48x4xf32>, vector<512x4xf32> -> vector<512x4xf32>
    %55 = arith.addf %49, %54 : vector<512x4xf32>
    %c1_49 = arith.constant 1 : index
    %c0_50 = arith.constant 0 : index
    %c0_51 = arith.constant 0 : index
    %c0_52 = arith.constant 0 : index
    %56 = vector.load %arg8[%c1_49, %c0_50, %c0_51, %c0_52] : memref<10x10x8x48xf32, #tpu.memory_space<vmem>>, vector<8x8x8x48xf32>
    %57 = vector.shape_cast %56 : vector<8x8x8x48xf32> to vector<512x48xf32>
    %c1_53 = arith.constant 1 : index
    %c0_54 = arith.constant 0 : index
    %c0_55 = arith.constant 0 : index
    %c0_56 = arith.constant 0 : index
    %58 = vector.load %arg6[%c1_53, %c0_54, %c0_55, %c0_56] : memref<3x3x48x4xf32, #tpu.memory_space<vmem>>, vector<1x1x48x4xf32>
    %59 = vector.shape_cast %58 : vector<1x1x48x4xf32> to vector<48x4xf32>
    %cst_57 = arith.constant dense<0.000000e+00> : vector<512x4xf32>
    %60 = tpu.matmul %57, %59, %cst_57 {dimension_numbers = #tpu.dot_dimension_numbers<[1], [0], [0], [1], [0, 0, 1, 1], [], []>} : vector<512x48xf32>, vector<48x4xf32>, vector<512x4xf32> -> vector<512x4xf32>
    %61 = arith.addf %55, %60 : vector<512x4xf32>
    %c1_58 = arith.constant 1 : index
    %c1_59 = arith.constant 1 : index
    %c0_60 = arith.constant 0 : index
    %c0_61 = arith.constant 0 : index
    %62 = vector.load %arg8[%c1_58, %c1_59, %c0_60, %c0_61] : memref<10x10x8x48xf32, #tpu.memory_space<vmem>>, vector<8x8x8x48xf32>
    %63 = vector.shape_cast %62 : vector<8x8x8x48xf32> to vector<512x48xf32>
    %c1_62 = arith.constant 1 : index
    %c1_63 = arith.constant 1 : index
    %c0_64 = arith.constant 0 : index
    %c0_65 = arith.constant 0 : index
    %64 = vector.load %arg6[%c1_62, %c1_63, %c0_64, %c0_65] : memref<3x3x48x4xf32, #tpu.memory_space<vmem>>, vector<1x1x48x4xf32>
    %65 = vector.shape_cast %64 : vector<1x1x48x4xf32> to vector<48x4xf32>
    %cst_66 = arith.constant dense<0.000000e+00> : vector<512x4xf32>
    %66 = tpu.matmul %63, %65, %cst_66 {dimension_numbers = #tpu.dot_dimension_numbers<[1], [0], [0], [1], [0, 0, 1, 1], [], []>} : vector<512x48xf32>, vector<48x4xf32>, vector<512x4xf32> -> vector<512x4xf32>
    %67 = arith.addf %61, %66 : vector<512x4xf32>
    %c1_67 = arith.constant 1 : index
    %c2_68 = arith.constant 2 : index
    %c0_69 = arith.constant 0 : index
    %c0_70 = arith.constant 0 : index
    %68 = vector.load %arg8[%c1_67, %c2_68, %c0_69, %c0_70] : memref<10x10x8x48xf32, #tpu.memory_space<vmem>>, vector<8x8x8x48xf32>
    %69 = vector.shape_cast %68 : vector<8x8x8x48xf32> to vector<512x48xf32>
    %c1_71 = arith.constant 1 : index
    %c2_72 = arith.constant 2 : index
    %c0_73 = arith.constant 0 : index
    %c0_74 = arith.constant 0 : index
    %70 = vector.load %arg6[%c1_71, %c2_72, %c0_73, %c0_74] : memref<3x3x48x4xf32, #tpu.memory_space<vmem>>, vector<1x1x48x4xf32>
    %71 = vector.shape_cast %70 : vector<1x1x48x4xf32> to vector<48x4xf32>
    %cst_75 = arith.constant dense<0.000000e+00> : vector<512x4xf32>
    %72 = tpu.matmul %69, %71, %cst_75 {dimension_numbers = #tpu.dot_dimension_numbers<[1], [0], [0], [1], [0, 0, 1, 1], [], []>} : vector<512x48xf32>, vector<48x4xf32>, vector<512x4xf32> -> vector<512x4xf32>
    %73 = arith.addf %67, %72 : vector<512x4xf32>
    %c2_76 = arith.constant 2 : index
    %c0_77 = arith.constant 0 : index
    %c0_78 = arith.constant 0 : index
    %c0_79 = arith.constant 0 : index
    %74 = vector.load %arg8[%c2_76, %c0_77, %c0_78, %c0_79] : memref<10x10x8x48xf32, #tpu.memory_space<vmem>>, vector<8x8x8x48xf32>
    %75 = vector.shape_cast %74 : vector<8x8x8x48xf32> to vector<512x48xf32>
    %c2_80 = arith.constant 2 : index
    %c0_81 = arith.constant 0 : index
    %c0_82 = arith.constant 0 : index
    %c0_83 = arith.constant 0 : index
    %76 = vector.load %arg6[%c2_80, %c0_81, %c0_82, %c0_83] : memref<3x3x48x4xf32, #tpu.memory_space<vmem>>, vector<1x1x48x4xf32>
    %77 = vector.shape_cast %76 : vector<1x1x48x4xf32> to vector<48x4xf32>
    %cst_84 = arith.constant dense<0.000000e+00> : vector<512x4xf32>
    %78 = tpu.matmul %75, %77, %cst_84 {dimension_numbers = #tpu.dot_dimension_numbers<[1], [0], [0], [1], [0, 0, 1, 1], [], []>} : vector<512x48xf32>, vector<48x4xf32>, vector<512x4xf32> -> vector<512x4xf32>
    %79 = arith.addf %73, %78 : vector<512x4xf32>
    %c2_85 = arith.constant 2 : index
    %c1_86 = arith.constant 1 : index
    %c0_87 = arith.constant 0 : index
    %c0_88 = arith.constant 0 : index
    %80 = vector.load %arg8[%c2_85, %c1_86, %c0_87, %c0_88] : memref<10x10x8x48xf32, #tpu.memory_space<vmem>>, vector<8x8x8x48xf32>
    %81 = vector.shape_cast %80 : vector<8x8x8x48xf32> to vector<512x48xf32>
    %c2_89 = arith.constant 2 : index
    %c1_90 = arith.constant 1 : index
    %c0_91 = arith.constant 0 : index
    %c0_92 = arith.constant 0 : index
    %82 = vector.load %arg6[%c2_89, %c1_90, %c0_91, %c0_92] : memref<3x3x48x4xf32, #tpu.memory_space<vmem>>, vector<1x1x48x4xf32>
    %83 = vector.shape_cast %82 : vector<1x1x48x4xf32> to vector<48x4xf32>
    %cst_93 = arith.constant dense<0.000000e+00> : vector<512x4xf32>
    %84 = tpu.matmul %81, %83, %cst_93 {dimension_numbers = #tpu.dot_dimension_numbers<[1], [0], [0], [1], [0, 0, 1, 1], [], []>} : vector<512x48xf32>, vector<48x4xf32>, vector<512x4xf32> -> vector<512x4xf32>
    %85 = arith.addf %79, %84 : vector<512x4xf32>
    %c2_94 = arith.constant 2 : index
    %c2_95 = arith.constant 2 : index
    %c0_96 = arith.constant 0 : index
    %c0_97 = arith.constant 0 : index
    %86 = vector.load %arg8[%c2_94, %c2_95, %c0_96, %c0_97] : memref<10x10x8x48xf32, #tpu.memory_space<vmem>>, vector<8x8x8x48xf32>
    %87 = vector.shape_cast %86 : vector<8x8x8x48xf32> to vector<512x48xf32>
    %c2_98 = arith.constant 2 : index
    %c2_99 = arith.constant 2 : index
    %c0_100 = arith.constant 0 : index
    %c0_101 = arith.constant 0 : index
    %88 = vector.load %arg6[%c2_98, %c2_99, %c0_100, %c0_101] : memref<3x3x48x4xf32, #tpu.memory_space<vmem>>, vector<1x1x48x4xf32>
    %89 = vector.shape_cast %88 : vector<1x1x48x4xf32> to vector<48x4xf32>
    %cst_102 = arith.constant dense<0.000000e+00> : vector<512x4xf32>
    %90 = tpu.matmul %87, %89, %cst_102 {dimension_numbers = #tpu.dot_dimension_numbers<[1], [0], [0], [1], [0, 0, 1, 1], [], []>} : vector<512x48xf32>, vector<48x4xf32>, vector<512x4xf32> -> vector<512x4xf32>
    %91 = arith.addf %85, %90 : vector<512x4xf32>
    %92 = vector.shape_cast %91 : vector<512x4xf32> to vector<8x8x8x4xf32>
    %93 = tpu.concatenate %1, %92 in 3 : vector<8x8x8x4xf32>, vector<8x8x8x4xf32> -> vector<8x8x8x8xf32>
    %c0_103 = arith.constant 0 : index
    %c0_104 = arith.constant 0 : index
    %c0_105 = arith.constant 0 : index
    %c0_106 = arith.constant 0 : index
    %c0_107 = arith.constant 0 : index
    %94 = vector.load %arg7[%c0_103, %c0_104, %c0_105, %c0_106, %c0_107] : memref<1x8x8x8x8xf32, #tpu.memory_space<vmem>>, vector<1x8x8x8x8xf32>
    %95 = vector.shape_cast %94 : vector<1x8x8x8x8xf32> to vector<8x8x8x8xf32>
    %96 = vector.shape_cast %93 : vector<8x8x8x8xf32> to vector<1x8x8x8x8xf32>
    tpu.vector_store %arg7[%c0_103, %c0_104, %c0_105, %c0_106, %c0_107], %96 {strides = array<i32>} : memref<1x8x8x8x8xf32, #tpu.memory_space<vmem>>, vector<1x8x8x8x8xf32>,
    return
  }
  func.func @transform_0(%arg0: i32) -> (i32, i32, i32, i32, i32) {
    %c0_i32 = arith.constant 0 : i32
    %c0_i32_0 = arith.constant 0 : i32
    %c0_i32_1 = arith.constant 0 : i32
    %c0_i32_2 = arith.constant 0 : i32
    %c0_i32_3 = arith.constant 0 : i32
    return %arg0, %c0_i32, %c0_i32_0, %c0_i32_1, %c0_i32_2 : i32, i32, i32, i32, i32
  }
  func.func @transform_1(%arg0: i32) -> (i32, i32) {
    %c0_i32 = arith.constant 0 : i32
    %c0_i32_0 = arith.constant 0 : i32
    %c0_i32_1 = arith.constant 0 : i32
    return %c0_i32, %c0_i32_0 : i32, i32
  }
  func.func @transform_2(%arg0: i32) -> (i32, i32) {
    %c0_i32 = arith.constant 0 : i32
    %c0_i32_0 = arith.constant 0 : i32
    %c0_i32_1 = arith.constant 0 : i32
    return %c0_i32, %c0_i32_0 : i32, i32
  }
  func.func @transform_3(%arg0: i32) -> (i32, i32) {
    %c0_i32 = arith.constant 0 : i32
    %c0_i32_0 = arith.constant 0 : i32
    %c0_i32_1 = arith.constant 0 : i32
    return %c0_i32, %c0_i32_0 : i32, i32
  }
  func.func @transform_4(%arg0: i32) -> (i32, i32) {
    %c0_i32 = arith.constant 0 : i32
    %c0_i32_0 = arith.constant 0 : i32
    %c0_i32_1 = arith.constant 0 : i32
    return %c0_i32, %c0_i32_0 : i32, i32
  }
  func.func @transform_5(%arg0: i32) -> (i32, i32, i32, i32) {
    %c0_i32 = arith.constant 0 : i32
    %c0_i32_0 = arith.constant 0 : i32
    %c0_i32_1 = arith.constant 0 : i32
    %c0_i32_2 = arith.constant 0 : i32
    %c0_i32_3 = arith.constant 0 : i32
    return %c0_i32, %c0_i32_0, %c0_i32_1, %c0_i32_2 : i32, i32, i32, i32
  }
  func.func @transform_6(%arg0: i32) -> (i32, i32, i32, i32, i32) {
    %c0_i32 = arith.constant 0 : i32
    %c0_i32_0 = arith.constant 0 : i32
    %c0_i32_1 = arith.constant 0 : i32
    %c0_i32_2 = arith.constant 0 : i32
    %c0_i32_3 = arith.constant 0 : i32
    return %arg0, %c0_i32, %c0_i32_0, %c0_i32_1, %c0_i32_2 : i32, i32, i32, i32, i32
  }
}

</mosaic_0001>

<llo_original>
// kernel: tpu_custom_call.1
$region0: #{tpu_custom_call.1}
  #allocation0 [shape = 'u32[]', space=smem, size = 0x4, offset = 0x4, fixed_abs, tag = 'smem constant byte address 0x4 - core index']
  #allocation1 [shape = 'u32[72,128]{1,0:T(1,128)}', space=vmem, size = 0x9000, scoped, tag = 'internal scratch']
  #allocation2 [shape = 'f32[10,10,8,48]{3,2,1,0:T(8,128)}', space=vmem, size = 0x64000, scoped, tag = 'scratch operand']
  %s0 = inlined_call_operand.vmem [shape: f32[2,8,8,8,4], index: 0, kind: input, shape index: {}]
  %s1 = inlined_call_operand.vmem [shape: f32[1,4], index: 1, kind: input, shape index: {}]
  %s2 = inlined_call_operand.vmem [shape: f32[1,4], index: 2, kind: input, shape index: {}]
  %s3 = inlined_call_operand.vmem [shape: f32[4,16], index: 3, kind: input, shape index: {}]
  %s4 = inlined_call_operand.vmem [shape: f32[1,16], index: 4, kind: input, shape index: {}]
  %s5 = inlined_call_operand.vmem [shape: f32[3,3,48,4], index: 5, kind: input, shape index: {}]
  %s6 = inlined_call_operand.hbm [shape: f32[2,8,8,8,8], index: 6, kind: output, shape index: {}]
  %s7 = sld [smem:[#allocation0]]
  $region57: #{tpu_custom_call.1} parent=0
    _
  %s9 = ssub.s32 1, %s7
  %s10 = scalar_select 0, %s9, %s7
  $region1: #{tpu_custom_call.1} parent=0
    #allocation3 [shape = 'u8[524288]{0}', space=vmem, size = 0x80000, scoped, tag = 'output window, operand 0']
    #allocation4 [shape = 's32[2]{0}', space=sflag, size = 0x8, scoped, tag = 'scoped memory for tpu_custom_call.1']
    %11 = vsyncpa [#allocation4], 0
    %s12 = scalar_lea.sflag [#allocation4], 1
    %13 = vsyncpa %s12, 0
    loop: start=0, step=1, limit=4
    $region2: #{tpu_custom_call.1} parent=1 // loop_pre_header
      _
    $region3: #{tpu_custom_call.1} parent=1 // loop_header
      %s15 = sphi 0, %s19
      %p16 = scmp.ge.s32.totalorder %s15, 4
      %s25 = sphi 0, %s27
      %s28 = sphi 0, %s25
      %s29 = sphi 0, %s28
      %s45 = sphi 0, %s29
      %s49 = sphi 0, %s49
      %s51 = sphi 0, %s49
      %s52 = sphi 0, %s51
      %s66 = sphi 0, %s52
      %s70 = sphi 0, %s70
      %s72 = sphi 0, %s70
      %s73 = sphi 0, %s72
      %s87 = sphi 0, %s73
      %s91 = sphi 0, %s91
      %s93 = sphi 0, %s91
      %s94 = sphi 0, %s93
      %s108 = sphi 0, %s94
      %s112 = sphi 0, %s112
      %s114 = sphi 0, %s112
      %s115 = sphi 0, %s114
      %s129 = sphi 0, %s115
      %s133 = sphi 0, %s133
      %s135 = sphi 0, %s133
      %s136 = sphi 0, %s135
      %s150 = sphi 0, %s136
      %s156 = sphi 0, %s158
      %s159 = sphi 0, %s156
      %s160 = sphi 0, %s159
      %s176 = sphi 0, %s160
    $region4: #{tpu_custom_call.1} parent=1 // loop_header_branch
      %18 = sbr.rel (%p16) target = $region8
    $region5: #{tpu_custom_call.1} parent=1 // loop_body
      %s20 = ssub.s32 %s15, 1
      %s21 = ssub.s32 %s15, 2
      %s22 = sadd.s32 %s15, 1
      %s23 = ssub.s32 %s15, %s22
      %p24 = scmp.eq.s32.totalorder %s23, 0
      %s26 = sadd.s32 %s25, 1
      %s27 = scalar_select %p24, %s25, %s26
      %p30 = pneg %p24
      %p31 = scmp.eq.s32.totalorder %s15, 1
      %p32 = por %p30, %p31
      %p33 = scmp.ne.s32.totalorder %s25, %s28
      %p34 = scmp.eq.s32.totalorder %s15, 0
      %p35 = por %p33, %p34
      %p36 = scmp.ne.s32.totalorder %s25, %s28
      %p37 = scmp.eq.s32.totalorder %s20, 1
      %p38 = por %p36, %p37
      %p39 = scmp.ne.s32.totalorder %s28, %s29
      %p40 = scmp.eq.s32.totalorder %s20, 0
      %p41 = por %p39, %p40
      %p42 = scmp.ne.s32.totalorder %s28, %s29
      %p43 = scmp.eq.s32.totalorder %s21, 1
      %p44 = por %p42, %p43
      %p46 = scmp.ne.s32.totalorder %s29, %s45
      %p47 = scmp.eq.s32.totalorder %s21, 0
      %p48 = por %p46, %p47
      %s50 = sadd.s32 %s49, 1
      %p53 = scmp.eq.s32.totalorder %s15, 1
      %p54 = scmp.ne.s32.totalorder %s49, %s51
      %p55 = scmp.eq.s32.totalorder %s15, 0
      %p56 = por %p54, %p55
      %p57 = scmp.ne.s32.totalorder %s49, %s51
      %p58 = scmp.eq.s32.totalorder %s20, 1
      %p59 = por %p57, %p58
      %p60 = scmp.ne.s32.totalorder %s51, %s52
      %p61 = scmp.eq.s32.totalorder %s20, 0
      %p62 = por %p60, %p61
      %p63 = scmp.ne.s32.totalorder %s51, %s52
      %p64 = scmp.eq.s32.totalorder %s21, 1
      %p65 = por %p63, %p64
      %p67 = scmp.ne.s32.totalorder %s52, %s66
      %p68 = scmp.eq.s32.totalorder %s21, 0
      %p69 = por %p67, %p68
      %s71 = sadd.s32 %s70, 1
      %p74 = scmp.eq.s32.totalorder %s15, 1
      %p75 = scmp.ne.s32.totalorder %s70, %s72
      %p76 = scmp.eq.s32.totalorder %s15, 0
      %p77 = por %p75, %p76
      %p78 = scmp.ne.s32.totalorder %s70, %s72
      %p79 = scmp.eq.s32.totalorder %s20, 1
      %p80 = por %p78, %p79
      %p81 = scmp.ne.s32.totalorder %s72, %s73
      %p82 = scmp.eq.s32.totalorder %s20, 0
      %p83 = por %p81, %p82
      %p84 = scmp.ne.s32.totalorder %s72, %s73
      %p85 = scmp.eq.s32.totalorder %s21, 1
      %p86 = por %p84, %p85
      %p88 = scmp.ne.s32.totalorder %s73, %s87
      %p89 = scmp.eq.s32.totalorder %s21, 0
      %p90 = por %p88, %p89
      %s92 = sadd.s32 %s91, 1
      %p95 = scmp.eq.s32.totalorder %s15, 1
      %p96 = scmp.ne.s32.totalorder %s91, %s93
      %p97 = scmp.eq.s32.totalorder %s15, 0
      %p98 = por %p96, %p97
      %p99 = scmp.ne.s32.totalorder %s91, %s93
      %p100 = scmp.eq.s32.totalorder %s20, 1
      %p101 = por %p99, %p100
      %p102 = scmp.ne.s32.totalorder %s93, %s94
      %p103 = scmp.eq.s32.totalorder %s20, 0
      %p104 = por %p102, %p103
      %p105 = scmp.ne.s32.totalorder %s93, %s94
      %p106 = scmp.eq.s32.totalorder %s21, 1
      %p107 = por %p105, %p106
      %p109 = scmp.ne.s32.totalorder %s94, %s108
      %p110 = scmp.eq.s32.totalorder %s21, 0
      %p111 = por %p109, %p110
      %s113 = sadd.s32 %s112, 1
      %p116 = scmp.eq.s32.totalorder %s15, 1
      %p117 = scmp.ne.s32.totalorder %s112, %s114
      %p118 = scmp.eq.s32.totalorder %s15, 0
      %p119 = por %p117, %p118
      %p120 = scmp.ne.s32.totalorder %s112, %s114
      %p121 = scmp.eq.s32.totalorder %s20, 1
      %p122 = por %p120, %p121
      %p123 = scmp.ne.s32.totalorder %s114, %s115
      %p124 = scmp.eq.s32.totalorder %s20, 0
      %p125 = por %p123, %p124
      %p126 = scmp.ne.s32.totalorder %s114, %s115
      %p127 = scmp.eq.s32.totalorder %s21, 1
      %p128 = por %p126, %p127
      %p130 = scmp.ne.s32.totalorder %s115, %s129
      %p131 = scmp.eq.s32.totalorder %s21, 0
      %p132 = por %p130, %p131
      %s134 = sadd.s32 %s133, 1
      %p137 = scmp.eq.s32.totalorder %s15, 1
      %p138 = scmp.ne.s32.totalorder %s133, %s135
      %p139 = scmp.eq.s32.totalorder %s15, 0
      %p140 = por %p138, %p139
      %p141 = scmp.ne.s32.totalorder %s133, %s135
      %p142 = scmp.eq.s32.totalorder %s20, 1
      %p143 = por %p141, %p142
      %p144 = scmp.ne.s32.totalorder %s135, %s136
      %p145 = scmp.eq.s32.totalorder %s20, 0
      %p146 = por %p144, %p145
      %p147 = scmp.ne.s32.totalorder %s135, %s136
      %p148 = scmp.eq.s32.totalorder %s21, 1
      %p149 = por %p147, %p148
      %p151 = scmp.ne.s32.totalorder %s136, %s150
      %p152 = scmp.eq.s32.totalorder %s21, 0
      %p153 = por %p151, %p152
      %s154 = ssub.s32 %s15, %s22
      %p155 = scmp.eq.s32.totalorder %s154, 0
      %s157 = sadd.s32 %s156, 1
      %s158 = scalar_select %p155, %s156, %s157
      %p161 = pneg %p155
      %p162 = scmp.eq.s32.totalorder %s15, 1
      %p163 = por %p161, %p162
      %p164 = scmp.ne.s32.totalorder %s156, %s159
      %p165 = scmp.eq.s32.totalorder %s15, 0
      %p166 = por %p164, %p165
      %p167 = scmp.ne.s32.totalorder %s156, %s159
      %p168 = scmp.eq.s32.totalorder %s20, 1
      %p169 = por %p167, %p168
      %p170 = scmp.ne.s32.totalorder %s159, %s160
      %p171 = scmp.eq.s32.totalorder %s20, 0
      %p172 = por %p170, %p171
      %p173 = scmp.ne.s32.totalorder %s159, %s160
      %p174 = scmp.eq.s32.totalorder %s21, 1
      %p175 = por %p173, %p174
      %p177 = scmp.ne.s32.totalorder %s160, %s176
      %p178 = scmp.eq.s32.totalorder %s21, 0
      %p179 = por %p177, %p178
      %p180 = scmp.le.s32.totalorder 1, %s15
      %p181 = scmp.lt.s32.totalorder %s15, 3
      %p182 = pnand %p180, %p181
      %p183 = pneg %p182
      // Predicated region
      $region9: #{tpu_custom_call.1} parent=5 // pred_check
        _
      $region10: #{tpu_custom_call.1} parent=5 // pred_check_branch
        %185 = sbr.rel (%p182) target = $region12
      $region11: #{tpu_custom_call.1} parent=5 // pred_region
        %s186 = ssub.s32 %s15, 1
        // Predicated region
        $region13: #{tpu_custom_call.1} parent=11 // pred_check
          %p187 = pneg %p62
        $region14: #{tpu_custom_call.1} parent=11 // pred_check_branch
          %189 = sbr.rel (%p187) target = $region16
        $region15: #{tpu_custom_call.1} parent=11 // pred_region
          _
        $region16: #{tpu_custom_call.1} parent=11 // pred_fallthru
          _
        // Predicated region
        $region17: #{tpu_custom_call.1} parent=11 // pred_check
          %p190 = pneg %p83
        $region18: #{tpu_custom_call.1} parent=11 // pred_check_branch
          %192 = sbr.rel (%p190) target = $region20
        $region19: #{tpu_custom_call.1} parent=11 // pred_region
          _
        $region20: #{tpu_custom_call.1} parent=11 // pred_fallthru
          _
        // Predicated region
        $region21: #{tpu_custom_call.1} parent=11 // pred_check
          %p193 = pneg %p104
        $region22: #{tpu_custom_call.1} parent=11 // pred_check_branch
          %195 = sbr.rel (%p193) target = $region24
        $region23: #{tpu_custom_call.1} parent=11 // pred_region
          _
        $region24: #{tpu_custom_call.1} parent=11 // pred_fallthru
          _
        // Predicated region
        $region25: #{tpu_custom_call.1} parent=11 // pred_check
          %p196 = pneg %p125
        $region26: #{tpu_custom_call.1} parent=11 // pred_check_branch
          %198 = sbr.rel (%p196) target = $region28
        $region27: #{tpu_custom_call.1} parent=11 // pred_region
          _
        $region28: #{tpu_custom_call.1} parent=11 // pred_fallthru
          _
        // Predicated region
        $region29: #{tpu_custom_call.1} parent=11 // pred_check
          %p199 = pneg %p146
        $region30: #{tpu_custom_call.1} parent=11 // pred_check_branch
          %201 = sbr.rel (%p199) target = $region32
        $region31: #{tpu_custom_call.1} parent=11 // pred_region
          _
        $region32: #{tpu_custom_call.1} parent=11 // pred_fallthru
          _
      $region12: #{tpu_custom_call.1} parent=5 // pred_fallthru
        _
      %p202 = scmp.lt.s32.totalorder %s15, 2
      // Predicated region
      $region33: #{tpu_custom_call.1} parent=5 // pred_check
        %p203 = pneg %p202
      $region34: #{tpu_custom_call.1} parent=5 // pred_check_branch
        %205 = sbr.rel (%p203) target = $region36
      $region35: #{tpu_custom_call.1} parent=5 // pred_region
        // Predicated region
        $region37: #{tpu_custom_call.1} parent=35 // pred_check
          %p206 = pneg %p35
        $region38: #{tpu_custom_call.1} parent=35 // pred_check_branch
          %208 = sbr.rel (%p206) target = $region40
        $region39: #{tpu_custom_call.1} parent=35 // pred_region
          %p209 = scmp.lt.s32.totalorder %s15, 1
          %s210 = scalar_select %p209, %s15, 1
          %s211 = smul.addr %s210, 64
          %s212 = smul.addr %s211, 8
          %s213 = scalar_lea.vmem %s0, %s212
        $region40: #{tpu_custom_call.1} parent=35 // pred_fallthru
          _
      $region36: #{tpu_custom_call.1} parent=5 // pred_fallthru
        _
      %p214 = scmp.le.s32.totalorder 1, %s15
      %p215 = scmp.lt.s32.totalorder %s15, 3
      %p216 = pnand %p214, %p215
      %p217 = pneg %p216
      // Predicated region
      $region41: #{tpu_custom_call.1} parent=5 // pred_check
        _
      $region42: #{tpu_custom_call.1} parent=5 // pred_check_branch
        %219 = sbr.rel (%p216) target = $region44
      $region43: #{tpu_custom_call.1} parent=5 // pred_region
        %s220 = ssub.s32 %s15, 1
        %p221 = scmp.lt.s32.totalorder %s20, 1
        %s222 = scalar_select %p221, %s20, 1
        %s223 = smul.addr %s222, 64
        %s224 = smul.addr %s223, 8
        %s225 = scalar_lea.vmem %s0, %s224
        %p226 = pneg %p41
        %p227 = pneg %p38
        %p228 = pneg %p62
        %p229 = pneg %p59
        %p230 = pneg %p83
        %p231 = pneg %p80
        %p232 = pneg %p104
        %p233 = pneg %p101
        %p234 = pneg %p125
        %p235 = pneg %p122
        %p236 = pneg %p146
        %p237 = pneg %p143
        %p238 = pneg %p172
        %p239 = pneg %p169
        %s240 = sand.u32 %s159, 1
        %s241 = scalar_lea.sflag [#allocation4], %s240
        %s242 = sand.u32 %s159, 1
        %s243 = smul.addr %s242, 512
        %s244 = scalar_lea.vmem [#allocation3], %s243
        %p245 = scmp.lt.s32.totalorder %s20, 1
        %s246 = scalar_select %p245, %s20, 1
        %s247 = smul.addr %s246, 64
        %s248 = smul.addr %s247, 8
        %s249 = scalar_lea.vmem %s0, %s248
        %v250 = vld [vmem:[%s249] sm:$0xff]
        %v251 = vld [vmem:[%s249 + $0x8] sm:$0xff]
        %v252 = vld [vmem:[%s249 + $0x10] sm:$0xff]
        %v253 = vld [vmem:[%s249 + $0x18] sm:$0xff]
        %v254 = vld [vmem:[%s249 + $0x20] sm:$0xff]
        %v255 = vld [vmem:[%s249 + $0x28] sm:$0xff]
        %v256 = vld [vmem:[%s249 + $0x30] sm:$0xff]
        %v257 = vld [vmem:[%s249 + $0x38] sm:$0xff]
        %v258 = vld [vmem:[%s249 + $0x40] sm:$0xff]
        %v259 = vld [vmem:[%s249 + $0x48] sm:$0xff]
        %v260 = vld [vmem:[%s249 + $0x50] sm:$0xff]
        %v261 = vld [vmem:[%s249 + $0x58] sm:$0xff]
        %v262 = vld [vmem:[%s249 + $0x60] sm:$0xff]
        %v263 = vld [vmem:[%s249 + $0x68] sm:$0xff]
        %v264 = vld [vmem:[%s249 + $0x70] sm:$0xff]
        %v265 = vld [vmem:[%s249 + $0x78] sm:$0xff]
        %v266 = vld [vmem:[%s249 + $0x80] sm:$0xff]
        %v267 = vld [vmem:[%s249 + $0x88] sm:$0xff]
        %v268 = vld [vmem:[%s249 + $0x90] sm:$0xff]
        %v269 = vld [vmem:[%s249 + $0x98] sm:$0xff]
        %v270 = vld [vmem:[%s249 + $0xa0] sm:$0xff]
        %v271 = vld [vmem:[%s249 + $0xa8] sm:$0xff]
        %v272 = vld [vmem:[%s249 + $0xb0] sm:$0xff]
        %v273 = vld [vmem:[%s249 + $0xb8] sm:$0xff]
        %v274 = vld [vmem:[%s249 + $0xc0] sm:$0xff]
        %v275 = vld [vmem:[%s249 + $0xc8] sm:$0xff]
        %v276 = vld [vmem:[%s249 + $0xd0] sm:$0xff]
        %v277 = vld [vmem:[%s249 + $0xd8] sm:$0xff]
        %v278 = vld [vmem:[%s249 + $0xe0] sm:$0xff]
        %v279 = vld [vmem:[%s249 + $0xe8] sm:$0xff]
        %v280 = vld [vmem:[%s249 + $0xf0] sm:$0xff]
        %v281 = vld [vmem:[%s249 + $0xf8] sm:$0xff]
        %v282 = vld [vmem:[%s249 + $0x100] sm:$0xff]
        %v283 = vld [vmem:[%s249 + $0x108] sm:$0xff]
        %v284 = vld [vmem:[%s249 + $0x110] sm:$0xff]
        %v285 = vld [vmem:[%s249 + $0x118] sm:$0xff]
        %v286 = vld [vmem:[%s249 + $0x120] sm:$0xff]
        %v287 = vld [vmem:[%s249 + $0x128] sm:$0xff]
        %v288 = vld [vmem:[%s249 + $0x130] sm:$0xff]
        %v289 = vld [vmem:[%s249 + $0x138] sm:$0xff]
        %v290 = vld [vmem:[%s249 + $0x140] sm:$0xff]
        %v291 = vld [vmem:[%s249 + $0x148] sm:$0xff]
        %v292 = vld [vmem:[%s249 + $0x150] sm:$0xff]
        %v293 = vld [vmem:[%s249 + $0x158] sm:$0xff]
        %v294 = vld [vmem:[%s249 + $0x160] sm:$0xff]
        %v295 = vld [vmem:[%s249 + $0x168] sm:$0xff]
        %v296 = vld [vmem:[%s249 + $0x170] sm:$0xff]
        %v297 = vld [vmem:[%s249 + $0x178] sm:$0xff]
        %v298 = vld [vmem:[%s249 + $0x180] sm:$0xff]
        %v299 = vld [vmem:[%s249 + $0x188] sm:$0xff]
        %v300 = vld [vmem:[%s249 + $0x190] sm:$0xff]
        %v301 = vld [vmem:[%s249 + $0x198] sm:$0xff]
        %v302 = vld [vmem:[%s249 + $0x1a0] sm:$0xff]
        %v303 = vld [vmem:[%s249 + $0x1a8] sm:$0xff]
        %v304 = vld [vmem:[%s249 + $0x1b0] sm:$0xff]
        %v305 = vld [vmem:[%s249 + $0x1b8] sm:$0xff]
        %v306 = vld [vmem:[%s249 + $0x1c0] sm:$0xff]
        %v307 = vld [vmem:[%s249 + $0x1c8] sm:$0xff]
        %v308 = vld [vmem:[%s249 + $0x1d0] sm:$0xff]
        %v309 = vld [vmem:[%s249 + $0x1d8] sm:$0xff]
        %v310 = vld [vmem:[%s249 + $0x1e0] sm:$0xff]
        %v311 = vld [vmem:[%s249 + $0x1e8] sm:$0xff]
        %v312 = vld [vmem:[%s249 + $0x1f0] sm:$0xff]
        %v313 = vld [vmem:[%s249 + $0x1f8] sm:$0xff]
        %v314 = vld [vmem:[%s1] sm:$0x1]
        %v316 = vperm.slane %v314, 0
        %v318 = vmul.f32 %v250, %v316
        %v319 = vmul.f32 %v251, %v316
        %v320 = vmul.f32 %v252, %v316
        %v321 = vmul.f32 %v253, %v316
        %v322 = vmul.f32 %v254, %v316
        %v323 = vmul.f32 %v255, %v316
        %v324 = vmul.f32 %v256, %v316
        %v325 = vmul.f32 %v257, %v316
        %v326 = vmul.f32 %v258, %v316
        %v327 = vmul.f32 %v259, %v316
        %v328 = vmul.f32 %v260, %v316
        %v329 = vmul.f32 %v261, %v316
        %v330 = vmul.f32 %v262, %v316
        %v331 = vmul.f32 %v263, %v316
        %v332 = vmul.f32 %v264, %v316
        %v333 = vmul.f32 %v265, %v316
        %v334 = vmul.f32 %v266, %v316
        %v335 = vmul.f32 %v267, %v316
        %v336 = vmul.f32 %v268, %v316
        %v337 = vmul.f32 %v269, %v316
        %v338 = vmul.f32 %v270, %v316
        %v339 = vmul.f32 %v271, %v316
        %v340 = vmul.f32 %v272, %v316
        %v341 = vmul.f32 %v273, %v316
        %v342 = vmul.f32 %v274, %v316
        %v343 = vmul.f32 %v275, %v316
        %v344 = vmul.f32 %v276, %v316
        %v345 = vmul.f32 %v277, %v316
        %v346 = vmul.f32 %v278, %v316
        %v347 = vmul.f32 %v279, %v316
        %v348 = vmul.f32 %v280, %v316
        %v349 = vmul.f32 %v281, %v316
        %v350 = vmul.f32 %v282, %v316
        %v351 = vmul.f32 %v283, %v316
        %v352 = vmul.f32 %v284, %v316
        %v353 = vmul.f32 %v285, %v316
        %v354 = vmul.f32 %v286, %v316
        %v355 = vmul.f32 %v287, %v316
        %v356 = vmul.f32 %v288, %v316
        %v357 = vmul.f32 %v289, %v316
        %v358 = vmul.f32 %v290, %v316
        %v359 = vmul.f32 %v291, %v316
        %v360 = vmul.f32 %v292, %v316
        %v361 = vmul.f32 %v293, %v316
        %v362 = vmul.f32 %v294, %v316
        %v363 = vmul.f32 %v295, %v316
        %v364 = vmul.f32 %v296, %v316
        %v365 = vmul.f32 %v297, %v316
        %v366 = vmul.f32 %v298, %v316
        %v367 = vmul.f32 %v299, %v316
        %v368 = vmul.f32 %v300, %v316
        %v369 = vmul.f32 %v301, %v316
        %v370 = vmul.f32 %v302, %v316
        %v371 = vmul.f32 %v303, %v316
        %v372 = vmul.f32 %v304, %v316
        %v373 = vmul.f32 %v305, %v316
        %v374 = vmul.f32 %v306, %v316
        %v375 = vmul.f32 %v307, %v316
        %v376 = vmul.f32 %v308, %v316
        %v377 = vmul.f32 %v309, %v316
        %v378 = vmul.f32 %v310, %v316
        %v379 = vmul.f32 %v311, %v316
        %v380 = vmul.f32 %v312, %v316
        %v381 = vmul.f32 %v313, %v316
        %v382 = vld [vmem:[%s2] sm:$0x1]
        %v384 = vperm.slane %v382, 0
        %v386 = vadd.f32 %v318, %v384
        %v387 = vadd.f32 %v319, %v384
        %v388 = vadd.f32 %v320, %v384
        %v389 = vadd.f32 %v321, %v384
        %v390 = vadd.f32 %v322, %v384
        %v391 = vadd.f32 %v323, %v384
        %v392 = vadd.f32 %v324, %v384
        %v393 = vadd.f32 %v325, %v384
        %v394 = vadd.f32 %v326, %v384
        %v395 = vadd.f32 %v327, %v384
        %v396 = vadd.f32 %v328, %v384
        %v397 = vadd.f32 %v329, %v384
        %v398 = vadd.f32 %v330, %v384
        %v399 = vadd.f32 %v331, %v384
        %v400 = vadd.f32 %v332, %v384
        %v401 = vadd.f32 %v333, %v384
        %v402 = vadd.f32 %v334, %v384
        %v403 = vadd.f32 %v335, %v384
        %v404 = vadd.f32 %v336, %v384
        %v405 = vadd.f32 %v337, %v384
        %v406 = vadd.f32 %v338, %v384
        %v407 = vadd.f32 %v339, %v384
        %v408 = vadd.f32 %v340, %v384
        %v409 = vadd.f32 %v341, %v384
        %v410 = vadd.f32 %v342, %v384
        %v411 = vadd.f32 %v343, %v384
        %v412 = vadd.f32 %v344, %v384
        %v413 = vadd.f32 %v345, %v384
        %v414 = vadd.f32 %v346, %v384
        %v415 = vadd.f32 %v347, %v384
        %v416 = vadd.f32 %v348, %v384
        %v417 = vadd.f32 %v349, %v384
        %v418 = vadd.f32 %v350, %v384
        %v419 = vadd.f32 %v351, %v384
        %v420 = vadd.f32 %v352, %v384
        %v421 = vadd.f32 %v353, %v384
        %v422 = vadd.f32 %v354, %v384
        %v423 = vadd.f32 %v355, %v384
        %v424 = vadd.f32 %v356, %v384
        %v425 = vadd.f32 %v357, %v384
        %v426 = vadd.f32 %v358, %v384
        %v427 = vadd.f32 %v359, %v384
        %v428 = vadd.f32 %v360, %v384
        %v429 = vadd.f32 %v361, %v384
        %v430 = vadd.f32 %v362, %v384
        %v431 = vadd.f32 %v363, %v384
        %v432 = vadd.f32 %v364, %v384
        %v433 = vadd.f32 %v365, %v384
        %v434 = vadd.f32 %v366, %v384
        %v435 = vadd.f32 %v367, %v384
        %v436 = vadd.f32 %v368, %v384
        %v437 = vadd.f32 %v369, %v384
        %v438 = vadd.f32 %v370, %v384
        %v439 = vadd.f32 %v371, %v384
        %v440 = vadd.f32 %v372, %v384
        %v441 = vadd.f32 %v373, %v384
        %v442 = vadd.f32 %v374, %v384
        %v443 = vadd.f32 %v375, %v384
        %v444 = vadd.f32 %v376, %v384
        %v445 = vadd.f32 %v377, %v384
        %v446 = vadd.f32 %v378, %v384
        %v447 = vadd.f32 %v379, %v384
        %v448 = vadd.f32 %v380, %v384
        %v449 = vadd.f32 %v381, %v384
        %v450 = vmax.f32 %v386, 0.0
        %v451 = vmax.f32 %v387, 0.0
        %v452 = vmax.f32 %v388, 0.0
        %v453 = vmax.f32 %v389, 0.0
        %v454 = vmax.f32 %v390, 0.0
        %v455 = vmax.f32 %v391, 0.0
        %v456 = vmax.f32 %v392, 0.0
        %v457 = vmax.f32 %v393, 0.0
        %v458 = vmax.f32 %v394, 0.0
        %v459 = vmax.f32 %v395, 0.0
        %v460 = vmax.f32 %v396, 0.0
        %v461 = vmax.f32 %v397, 0.0
        %v462 = vmax.f32 %v398, 0.0
        %v463 = vmax.f32 %v399, 0.0
        %v464 = vmax.f32 %v400, 0.0
        %v465 = vmax.f32 %v401, 0.0
        %v466 = vmax.f32 %v402, 0.0
        %v467 = vmax.f32 %v403, 0.0
        %v468 = vmax.f32 %v404, 0.0
        %v469 = vmax.f32 %v405, 0.0
        %v470 = vmax.f32 %v406, 0.0
        %v471 = vmax.f32 %v407, 0.0
        %v472 = vmax.f32 %v408, 0.0
        %v473 = vmax.f32 %v409, 0.0
        %v474 = vmax.f32 %v410, 0.0
        %v475 = vmax.f32 %v411, 0.0
        %v476 = vmax.f32 %v412, 0.0
        %v477 = vmax.f32 %v413, 0.0
        %v478 = vmax.f32 %v414, 0.0
        %v479 = vmax.f32 %v415, 0.0
        %v480 = vmax.f32 %v416, 0.0
        %v481 = vmax.f32 %v417, 0.0
        %v482 = vmax.f32 %v418, 0.0
        %v483 = vmax.f32 %v419, 0.0
        %v484 = vmax.f32 %v420, 0.0
        %v485 = vmax.f32 %v421, 0.0
        %v486 = vmax.f32 %v422, 0.0
        %v487 = vmax.f32 %v423, 0.0
        %v488 = vmax.f32 %v424, 0.0
        %v489 = vmax.f32 %v425, 0.0
        %v490 = vmax.f32 %v426, 0.0
        %v491 = vmax.f32 %v427, 0.0
        %v492 = vmax.f32 %v428, 0.0
        %v493 = vmax.f32 %v429, 0.0
        %v494 = vmax.f32 %v430, 0.0
        %v495 = vmax.f32 %v431, 0.0
        %v496 = vmax.f32 %v432, 0.0
        %v497 = vmax.f32 %v433, 0.0
        %v498 = vmax.f32 %v434, 0.0
        %v499 = vmax.f32 %v435, 0.0
        %v500 = vmax.f32 %v436, 0.0
        %v501 = vmax.f32 %v437, 0.0
        %v502 = vmax.f32 %v438, 0.0
        %v503 = vmax.f32 %v439, 0.0
        %v504 = vmax.f32 %v440, 0.0
        %v505 = vmax.f32 %v441, 0.0
        %v506 = vmax.f32 %v442, 0.0
        %v507 = vmax.f32 %v443, 0.0
        %v508 = vmax.f32 %v444, 0.0
        %v509 = vmax.f32 %v445, 0.0
        %v510 = vmax.f32 %v446, 0.0
        %v511 = vmax.f32 %v447, 0.0
        %v512 = vmax.f32 %v448, 0.0
        %v513 = vmax.f32 %v449, 0.0
        %v514 = vld [vmem:[%s3] sm:$0xf]
        %v515 = vld [vmem:[%s4] sm:$0x1]
        %v517 = vperm.slane %v515, 0
        %vm519 = vcmask 31744
        %v521 = vsel %vm519, %v450, 0
        %v524 = vsel %vm519, %v451, 0
        %v527 = vsel %vm519, %v452, 0
        %v530 = vsel %vm519, %v453, 0
        %v533 = vsel %vm519, %v454, 0
        %v536 = vsel %vm519, %v455, 0
        %v539 = vsel %vm519, %v456, 0
        %v542 = vsel %vm519, %v457, 0
        %v545 = vsel %vm519, %v458, 0
        %v548 = vsel %vm519, %v459, 0
        %v551 = vsel %vm519, %v460, 0
        %v554 = vsel %vm519, %v461, 0
        %v557 = vsel %vm519, %v462, 0
        %v560 = vsel %vm519, %v463, 0
        %v563 = vsel %vm519, %v464, 0
        %v566 = vsel %vm519, %v465, 0
        %v569 = vsel %vm519, %v466, 0
        %v572 = vsel %vm519, %v467, 0
        %v575 = vsel %vm519, %v468, 0
        %v578 = vsel %vm519, %v469, 0
        %v581 = vsel %vm519, %v470, 0
        %v584 = vsel %vm519, %v471, 0
        %v587 = vsel %vm519, %v472, 0
        %v590 = vsel %vm519, %v473, 0
        %v593 = vsel %vm519, %v474, 0
        %v596 = vsel %vm519, %v475, 0
        %v599 = vsel %vm519, %v476, 0
        %v602 = vsel %vm519, %v477, 0
        %v605 = vsel %vm519, %v478, 0
        %v608 = vsel %vm519, %v479, 0
        %v611 = vsel %vm519, %v480, 0
        %v614 = vsel %vm519, %v481, 0
        %v617 = vsel %vm519, %v482, 0
        %v620 = vsel %vm519, %v483, 0
        %v623 = vsel %vm519, %v484, 0
        %v626 = vsel %vm519, %v485, 0
        %v629 = vsel %vm519, %v486, 0
        %v632 = vsel %vm519, %v487, 0
        %v635 = vsel %vm519, %v488, 0
        %v638 = vsel %vm519, %v489, 0
        %v641 = vsel %vm519, %v490, 0
        %v644 = vsel %vm519, %v491, 0
        %v647 = vsel %vm519, %v492, 0
        %v650 = vsel %vm519, %v493, 0
        %v653 = vsel %vm519, %v494, 0
        %v656 = vsel %vm519, %v495, 0
        %v659 = vsel %vm519, %v496, 0
        %v662 = vsel %vm519, %v497, 0
        %v665 = vsel %vm519, %v498, 0
        %v668 = vsel %vm519, %v499, 0
        %v671 = vsel %vm519, %v500, 0
        %v674 = vsel %vm519, %v501, 0
        %v677 = vsel %vm519, %v502, 0
        %v680 = vsel %vm519, %v503, 0
        %v683 = vsel %vm519, %v504, 0
        %v686 = vsel %vm519, %v505, 0
        %v689 = vsel %vm519, %v506, 0
        %v692 = vsel %vm519, %v507, 0
        %v695 = vsel %vm519, %v508, 0
        %v698 = vsel %vm519, %v509, 0
        %v701 = vsel %vm519, %v510, 0
        %v704 = vsel %vm519, %v511, 0
        %v707 = vsel %vm519, %v512, 0
        %v710 = vsel %vm519, %v513, 0
        %vm712 = vcmask 1043456
        %v714 = vsel %vm712, %v514, 0
        %716 = vmatpush.msra.mxu0 0.0
        %717 = vmatpush.msra.mxu0 0.0
        %718 = vmatpush.msra.mxu0 0.0
        %719 = vmatpush.msra.mxu0 0.0
        %720 = vmatpush.msra.mxu0 0.0
        %721 = vmatpush.msra.mxu0 0.0
        %722 = vmatpush.msra.mxu0 0.0
        %723 = vmatpush.msra.mxu0 0.0
        %724 = vmatpush.msra.mxu0 0.0
        %725 = vmatpush.msra.mxu0 0.0
        %726 = vmatpush.msra.mxu0 0.0
        %727 = vmatpush.msra.mxu0 0.0
        %728 = vmatpush.msra.mxu0 0.0
        %729 = vmatpush.msra.mxu0 0.0
        %730 = vmatpush.msra.mxu0 0.0
        %731 = vmatpush.msra.mxu0 %v714
        %732 = vmatmul.f32.gmra.mxu0 %v521
        %v733 = vpop.f32.mrf.mxu0
        %v734 = vadd.f32 %v517, %v733
        %735 = vmatmul.f32.gmra.mxu0 %v524
        %v736 = vpop.f32.mrf.mxu0
        %v737 = vadd.f32 %v517, %v736
        %738 = vmatmul.f32.gmra.mxu0 %v527
        %v739 = vpop.f32.mrf.mxu0
        %v740 = vadd.f32 %v517, %v739
        %741 = vmatmul.f32.gmra.mxu0 %v530
        %v742 = vpop.f32.mrf.mxu0
        %v743 = vadd.f32 %v517, %v742
        %744 = vmatmul.f32.gmra.mxu0 %v533
        %v745 = vpop.f32.mrf.mxu0
        %v746 = vadd.f32 %v517, %v745
        %747 = vmatmul.f32.gmra.mxu0 %v536
        %v748 = vpop.f32.mrf.mxu0
        %v749 = vadd.f32 %v517, %v748
        %750 = vmatmul.f32.gmra.mxu0 %v539
        %v751 = vpop.f32.mrf.mxu0
        %v752 = vadd.f32 %v517, %v751
        %753 = vmatmul.f32.gmra.mxu0 %v542
        %v754 = vpop.f32.mrf.mxu0
        %v755 = vadd.f32 %v517, %v754
        %756 = vmatmul.f32.gmra.mxu0 %v545
        %v757 = vpop.f32.mrf.mxu0
        %v758 = vadd.f32 %v517, %v757
        %759 = vmatmul.f32.gmra.mxu0 %v548
        %v760 = vpop.f32.mrf.mxu0
        %v761 = vadd.f32 %v517, %v760
        %762 = vmatmul.f32.gmra.mxu0 %v551
        %v763 = vpop.f32.mrf.mxu0
        %v764 = vadd.f32 %v517, %v763
        %765 = vmatmul.f32.gmra.mxu0 %v554
        %v766 = vpop.f32.mrf.mxu0
        %v767 = vadd.f32 %v517, %v766
        %768 = vmatmul.f32.gmra.mxu0 %v557
        %v769 = vpop.f32.mrf.mxu0
        %v770 = vadd.f32 %v517, %v769
        %771 = vmatmul.f32.gmra.mxu0 %v560
        %v772 = vpop.f32.mrf.mxu0
        %v773 = vadd.f32 %v517, %v772
        %774 = vmatmul.f32.gmra.mxu0 %v563
        %v775 = vpop.f32.mrf.mxu0
        %v776 = vadd.f32 %v517, %v775
        %777 = vmatmul.f32.gmra.mxu0 %v566
        %v778 = vpop.f32.mrf.mxu0
        %v779 = vadd.f32 %v517, %v778
        %780 = vmatmul.f32.gmra.mxu0 %v569
        %v781 = vpop.f32.mrf.mxu0
        %v782 = vadd.f32 %v517, %v781
        %783 = vmatmul.f32.gmra.mxu0 %v572
        %v784 = vpop.f32.mrf.mxu0
        %v785 = vadd.f32 %v517, %v784
        %786 = vmatmul.f32.gmra.mxu0 %v575
        %v787 = vpop.f32.mrf.mxu0
        %v788 = vadd.f32 %v517, %v787
        %789 = vmatmul.f32.gmra.mxu0 %v578
        %v790 = vpop.f32.mrf.mxu0
        %v791 = vadd.f32 %v517, %v790
        %792 = vmatmul.f32.gmra.mxu0 %v581
        %v793 = vpop.f32.mrf.mxu0
        %v794 = vadd.f32 %v517, %v793
        %795 = vmatmul.f32.gmra.mxu0 %v584
        %v796 = vpop.f32.mrf.mxu0
        %v797 = vadd.f32 %v517, %v796
        %798 = vmatmul.f32.gmra.mxu0 %v587
        %v799 = vpop.f32.mrf.mxu0
        %v800 = vadd.f32 %v517, %v799
        %801 = vmatmul.f32.gmra.mxu0 %v590
        %v802 = vpop.f32.mrf.mxu0
        %v803 = vadd.f32 %v517, %v802
        %804 = vmatmul.f32.gmra.mxu0 %v593
        %v805 = vpop.f32.mrf.mxu0
        %v806 = vadd.f32 %v517, %v805
        %807 = vmatmul.f32.gmra.mxu0 %v596
        %v808 = vpop.f32.mrf.mxu0
        %v809 = vadd.f32 %v517, %v808
        %810 = vmatmul.f32.gmra.mxu0 %v599
        %v811 = vpop.f32.mrf.mxu0
        %v812 = vadd.f32 %v517, %v811
        %813 = vmatmul.f32.gmra.mxu0 %v602
        %v814 = vpop.f32.mrf.mxu0
        %v815 = vadd.f32 %v517, %v814
        %816 = vmatmul.f32.gmra.mxu0 %v605
        %v817 = vpop.f32.mrf.mxu0
        %v818 = vadd.f32 %v517, %v817
        %819 = vmatmul.f32.gmra.mxu0 %v608
        %v820 = vpop.f32.mrf.mxu0
        %v821 = vadd.f32 %v517, %v820
        %822 = vmatmul.f32.gmra.mxu0 %v611
        %v823 = vpop.f32.mrf.mxu0
        %v824 = vadd.f32 %v517, %v823
        %825 = vmatmul.f32.gmra.mxu0 %v614
        %v826 = vpop.f32.mrf.mxu0
        %v827 = vadd.f32 %v517, %v826
        %828 = vmatmul.f32.gmra.mxu0 %v617
        %v829 = vpop.f32.mrf.mxu0
        %v830 = vadd.f32 %v517, %v829
        %831 = vmatmul.f32.gmra.mxu0 %v620
        %v832 = vpop.f32.mrf.mxu0
        %v833 = vadd.f32 %v517, %v832
        %834 = vmatmul.f32.gmra.mxu0 %v623
        %v835 = vpop.f32.mrf.mxu0
        %v836 = vadd.f32 %v517, %v835
        %837 = vmatmul.f32.gmra.mxu0 %v626
        %v838 = vpop.f32.mrf.mxu0
        %v839 = vadd.f32 %v517, %v838
        %840 = vmatmul.f32.gmra.mxu0 %v629
        %v841 = vpop.f32.mrf.mxu0
        %v842 = vadd.f32 %v517, %v841
        %843 = vmatmul.f32.gmra.mxu0 %v632
        %v844 = vpop.f32.mrf.mxu0
        %v845 = vadd.f32 %v517, %v844
        %846 = vmatmul.f32.gmra.mxu0 %v635
        %v847 = vpop.f32.mrf.mxu0
        %v848 = vadd.f32 %v517, %v847
        %849 = vmatmul.f32.gmra.mxu0 %v638
        %v850 = vpop.f32.mrf.mxu0
        %v851 = vadd.f32 %v517, %v850
        %852 = vmatmul.f32.gmra.mxu0 %v641
        %v853 = vpop.f32.mrf.mxu0
        %v854 = vadd.f32 %v517, %v853
        %855 = vmatmul.f32.gmra.mxu0 %v644
        %v856 = vpop.f32.mrf.mxu0
        %v857 = vadd.f32 %v517, %v856
        %858 = vmatmul.f32.gmra.mxu0 %v647
        %v859 = vpop.f32.mrf.mxu0
        %v860 = vadd.f32 %v517, %v859
        %861 = vmatmul.f32.gmra.mxu0 %v650
        %v862 = vpop.f32.mrf.mxu0
        %v863 = vadd.f32 %v517, %v862
        %864 = vmatmul.f32.gmra.mxu0 %v653
        %v865 = vpop.f32.mrf.mxu0
        %v866 = vadd.f32 %v517, %v865
        %867 = vmatmul.f32.gmra.mxu0 %v656
        %v868 = vpop.f32.mrf.mxu0
        %v869 = vadd.f32 %v517, %v868
        %870 = vmatmul.f32.gmra.mxu0 %v659
        %v871 = vpop.f32.mrf.mxu0
        %v872 = vadd.f32 %v517, %v871
        %873 = vmatmul.f32.gmra.mxu0 %v662
        %v874 = vpop.f32.mrf.mxu0
        %v875 = vadd.f32 %v517, %v874
        %876 = vmatmul.f32.gmra.mxu0 %v665
        %v877 = vpop.f32.mrf.mxu0
        %v878 = vadd.f32 %v517, %v877
        %879 = vmatmul.f32.gmra.mxu0 %v668
        %v880 = vpop.f32.mrf.mxu0
        %v881 = vadd.f32 %v517, %v880
        %882 = vmatmul.f32.gmra.mxu0 %v671
        %v883 = vpop.f32.mrf.mxu0
        %v884 = vadd.f32 %v517, %v883
        %885 = vmatmul.f32.gmra.mxu0 %v674
        %v886 = vpop.f32.mrf.mxu0
        %v887 = vadd.f32 %v517, %v886
        %888 = vmatmul.f32.gmra.mxu0 %v677
        %v889 = vpop.f32.mrf.mxu0
        %v890 = vadd.f32 %v517, %v889
        %891 = vmatmul.f32.gmra.mxu0 %v680
        %v892 = vpop.f32.mrf.mxu0
        %v893 = vadd.f32 %v517, %v892
        %894 = vmatmul.f32.gmra.mxu0 %v683
        %v895 = vpop.f32.mrf.mxu0
        %v896 = vadd.f32 %v517, %v895
        %897 = vmatmul.f32.gmra.mxu0 %v686
        %v898 = vpop.f32.mrf.mxu0
        %v899 = vadd.f32 %v517, %v898
        %900 = vmatmul.f32.gmra.mxu0 %v689
        %v901 = vpop.f32.mrf.mxu0
        %v902 = vadd.f32 %v517, %v901
        %903 = vmatmul.f32.gmra.mxu0 %v692
        %v904 = vpop.f32.mrf.mxu0
        %v905 = vadd.f32 %v517, %v904
        %906 = vmatmul.f32.gmra.mxu0 %v695
        %v907 = vpop.f32.mrf.mxu0
        %v908 = vadd.f32 %v517, %v907
        %909 = vmatmul.f32.gmra.mxu0 %v698
        %v910 = vpop.f32.mrf.mxu0
        %v911 = vadd.f32 %v517, %v910
        %912 = vmatmul.f32.gmra.mxu0 %v701
        %v913 = vpop.f32.mrf.mxu0
        %v914 = vadd.f32 %v517, %v913
        %915 = vmatmul.f32.gmra.mxu0 %v704
        %v916 = vpop.f32.mrf.mxu0
        %v917 = vadd.f32 %v517, %v916
        %918 = vmatmul.f32.gmra.mxu0 %v707
        %v919 = vpop.f32.mrf.mxu0
        %v920 = vadd.f32 %v517, %v919
        %921 = vmatmul.f32.gmra.mxu0 %v710
        %v922 = vpop.f32.mrf.mxu0
        %v923 = vadd.f32 %v517, %v922
        %924 = vdwg.mxu0
        %v925 = vmax.f32 %v734, 0.0
        %v926 = vmax.f32 %v737, 0.0
        %v927 = vmax.f32 %v740, 0.0
        %v928 = vmax.f32 %v743, 0.0
        %v929 = vmax.f32 %v746, 0.0
        %v930 = vmax.f32 %v749, 0.0
        %v931 = vmax.f32 %v752, 0.0
        %v932 = vmax.f32 %v755, 0.0
        %v933 = vmax.f32 %v758, 0.0
        %v934 = vmax.f32 %v761, 0.0
        %v935 = vmax.f32 %v764, 0.0
        %v936 = vmax.f32 %v767, 0.0
        %v937 = vmax.f32 %v770, 0.0
        %v938 = vmax.f32 %v773, 0.0
        %v939 = vmax.f32 %v776, 0.0
        %v940 = vmax.f32 %v779, 0.0
        %v941 = vmax.f32 %v782, 0.0
        %v942 = vmax.f32 %v785, 0.0
        %v943 = vmax.f32 %v788, 0.0
        %v944 = vmax.f32 %v791, 0.0
        %v945 = vmax.f32 %v794, 0.0
        %v946 = vmax.f32 %v797, 0.0
        %v947 = vmax.f32 %v800, 0.0
        %v948 = vmax.f32 %v803, 0.0
        %v949 = vmax.f32 %v806, 0.0
        %v950 = vmax.f32 %v809, 0.0
        %v951 = vmax.f32 %v812, 0.0
        %v952 = vmax.f32 %v815, 0.0
        %v953 = vmax.f32 %v818, 0.0
        %v954 = vmax.f32 %v821, 0.0
        %v955 = vmax.f32 %v824, 0.0
        %v956 = vmax.f32 %v827, 0.0
        %v957 = vmax.f32 %v830, 0.0
        %v958 = vmax.f32 %v833, 0.0
        %v959 = vmax.f32 %v836, 0.0
        %v960 = vmax.f32 %v839, 0.0
        %v961 = vmax.f32 %v842, 0.0
        %v962 = vmax.f32 %v845, 0.0
        %v963 = vmax.f32 %v848, 0.0
        %v964 = vmax.f32 %v851, 0.0
        %v965 = vmax.f32 %v854, 0.0
        %v966 = vmax.f32 %v857, 0.0
        %v967 = vmax.f32 %v860, 0.0
        %v968 = vmax.f32 %v863, 0.0
        %v969 = vmax.f32 %v866, 0.0
        %v970 = vmax.f32 %v869, 0.0
        %v971 = vmax.f32 %v872, 0.0
        %v972 = vmax.f32 %v875, 0.0
        %v973 = vmax.f32 %v878, 0.0
        %v974 = vmax.f32 %v881, 0.0
        %v975 = vmax.f32 %v884, 0.0
        %v976 = vmax.f32 %v887, 0.0
        %v977 = vmax.f32 %v890, 0.0
        %v978 = vmax.f32 %v893, 0.0
        %v979 = vmax.f32 %v896, 0.0
        %v980 = vmax.f32 %v899, 0.0
        %v981 = vmax.f32 %v902, 0.0
        %v982 = vmax.f32 %v905, 0.0
        %v983 = vmax.f32 %v908, 0.0
        %v984 = vmax.f32 %v911, 0.0
        %v985 = vmax.f32 %v914, 0.0
        %v986 = vmax.f32 %v917, 0.0
        %v987 = vmax.f32 %v920, 0.0
        %v988 = vmax.f32 %v923, 0.0
        %v1053 = vrot.slane %v925, 7
        %v1054 = vrot.slane %v926, 7
        %v1055 = vrot.slane %v927, 7
        %v1056 = vrot.slane %v928, 7
        %v1057 = vrot.slane %v929, 7
        %v1058 = vrot.slane %v930, 7
        %v1059 = vrot.slane %v931, 7
        %v1060 = vrot.slane %v932, 7
        %v1061 = vrot.slane %v933, 7
        %v1062 = vrot.slane %v934, 7
        %v1063 = vrot.slane %v935, 7
        %v1064 = vrot.slane %v936, 7
        %v1065 = vrot.slane %v937, 7
        %v1066 = vrot.slane %v938, 7
        %v1067 = vrot.slane %v939, 7
        %v1068 = vrot.slane %v940, 7
        %v1069 = vrot.slane %v941, 7
        %v1070 = vrot.slane %v942, 7
        %v1071 = vrot.slane %v943, 7
        %v1072 = vrot.slane %v944, 7
        %v1073 = vrot.slane %v945, 7
        %v1074 = vrot.slane %v946, 7
        %v1075 = vrot.slane %v947, 7
        %v1076 = vrot.slane %v948, 7
        %v1077 = vrot.slane %v949, 7
        %v1078 = vrot.slane %v950, 7
        %v1079 = vrot.slane %v951, 7
        %v1080 = vrot.slane %v952, 7
        %v1081 = vrot.slane %v953, 7
        %v1082 = vrot.slane %v954, 7
        %v1083 = vrot.slane %v955, 7
        %v1084 = vrot.slane %v956, 7
        %v1085 = vrot.slane %v957, 7
        %v1086 = vrot.slane %v958, 7
        %v1087 = vrot.slane %v959, 7
        %v1088 = vrot.slane %v960, 7
        %v1089 = vrot.slane %v961, 7
        %v1090 = vrot.slane %v962, 7
        %v1091 = vrot.slane %v963, 7
        %v1092 = vrot.slane %v964, 7
        %v1093 = vrot.slane %v965, 7
        %v1094 = vrot.slane %v966, 7
        %v1095 = vrot.slane %v967, 7
        %v1096 = vrot.slane %v968, 7
        %v1097 = vrot.slane %v969, 7
        %v1098 = vrot.slane %v970, 7
        %v1099 = vrot.slane %v971, 7
        %v1100 = vrot.slane %v972, 7
        %v1101 = vrot.slane %v973, 7
        %v1102 = vrot.slane %v974, 7
        %v1103 = vrot.slane %v975, 7
        %v1104 = vrot.slane %v976, 7
        %v1105 = vrot.slane %v977, 7
        %v1106 = vrot.slane %v978, 7
        %v1107 = vrot.slane %v979, 7
        %v1108 = vrot.slane %v980, 7
        %v1109 = vrot.slane %v981, 7
        %v1110 = vrot.slane %v982, 7
        %v1111 = vrot.slane %v983, 7
        %v1112 = vrot.slane %v984, 7
        %v1113 = vrot.slane %v985, 7
        %v1114 = vrot.slane %v986, 7
        %v1115 = vrot.slane %v987, 7
        %v1116 = vrot.slane %v988, 7
        %vm1181 = vcmask 1040384
        %v1182 = vsel %vm1181, 0.0, %v1053
        %v1183 = vsel %vm1181, 0.0, %v1054
        %v1184 = vsel %vm1181, 0.0, %v1055
        %v1185 = vsel %vm1181, 0.0, %v1056
        %v1186 = vsel %vm1181, 0.0, %v1057
        %v1187 = vsel %vm1181, 0.0, %v1058
        %v1188 = vsel %vm1181, 0.0, %v1059
        %v1189 = vsel %vm1181, 0.0, %v1060
        %v1190 = vsel %vm1181, 0.0, %v1061
        %v1191 = vsel %vm1181, 0.0, %v1062
        %v1192 = vsel %vm1181, 0.0, %v1063
        %v1193 = vsel %vm1181, 0.0, %v1064
        %v1194 = vsel %vm1181, 0.0, %v1065
        %v1195 = vsel %vm1181, 0.0, %v1066
        %v1196 = vsel %vm1181, 0.0, %v1067
        %v1197 = vsel %vm1181, 0.0, %v1068
        %v1198 = vsel %vm1181, 0.0, %v1069
        %v1199 = vsel %vm1181, 0.0, %v1070
        %v1200 = vsel %vm1181, 0.0, %v1071
        %v1201 = vsel %vm1181, 0.0, %v1072
        %v1202 = vsel %vm1181, 0.0, %v1073
        %v1203 = vsel %vm1181, 0.0, %v1074
        %v1204 = vsel %vm1181, 0.0, %v1075
        %v1205 = vsel %vm1181, 0.0, %v1076
        %v1206 = vsel %vm1181, 0.0, %v1077
        %v1207 = vsel %vm1181, 0.0, %v1078
        %v1208 = vsel %vm1181, 0.0, %v1079
        %v1209 = vsel %vm1181, 0.0, %v1080
        %v1210 = vsel %vm1181, 0.0, %v1081
        %v1211 = vsel %vm1181, 0.0, %v1082
        %v1212 = vsel %vm1181, 0.0, %v1083
        %v1213 = vsel %vm1181, 0.0, %v1084
        %v1214 = vsel %vm1181, 0.0, %v1085
        %v1215 = vsel %vm1181, 0.0, %v1086
        %v1216 = vsel %vm1181, 0.0, %v1087
        %v1217 = vsel %vm1181, 0.0, %v1088
        %v1218 = vsel %vm1181, 0.0, %v1089
        %v1219 = vsel %vm1181, 0.0, %v1090
        %v1220 = vsel %vm1181, 0.0, %v1091
        %v1221 = vsel %vm1181, 0.0, %v1092
        %v1222 = vsel %vm1181, 0.0, %v1093
        %v1223 = vsel %vm1181, 0.0, %v1094
        %v1224 = vsel %vm1181, 0.0, %v1095
        %v1225 = vsel %vm1181, 0.0, %v1096
        %v1226 = vsel %vm1181, 0.0, %v1097
        %v1227 = vsel %vm1181, 0.0, %v1098
        %v1228 = vsel %vm1181, 0.0, %v1099
        %v1229 = vsel %vm1181, 0.0, %v1100
        %v1230 = vsel %vm1181, 0.0, %v1101
        %v1231 = vsel %vm1181, 0.0, %v1102
        %v1232 = vsel %vm1181, 0.0, %v1103
        %v1233 = vsel %vm1181, 0.0, %v1104
        %v1234 = vsel %vm1181, 0.0, %v1105
        %v1235 = vsel %vm1181, 0.0, %v1106
        %v1236 = vsel %vm1181, 0.0, %v1107
        %v1237 = vsel %vm1181, 0.0, %v1108
        %v1238 = vsel %vm1181, 0.0, %v1109
        %v1239 = vsel %vm1181, 0.0, %v1110
        %v1240 = vsel %vm1181, 0.0, %v1111
        %v1241 = vsel %vm1181, 0.0, %v1112
        %v1242 = vsel %vm1181, 0.0, %v1113
        %v1243 = vsel %vm1181, 0.0, %v1114
        %v1244 = vsel %vm1181, 0.0, %v1115
        %v1245 = vsel %vm1181, 0.0, %v1116
        %v1246 = vsel %vm1181, %v1053, 0.0
        %v1247 = vsel %vm1181, %v1054, 0.0
        %v1248 = vsel %vm1181, %v1055, 0.0
        %v1249 = vsel %vm1181, %v1056, 0.0
        %v1250 = vsel %vm1181, %v1057, 0.0
        %v1251 = vsel %vm1181, %v1058, 0.0
        %v1252 = vsel %vm1181, %v1059, 0.0
        %v1253 = vsel %vm1181, %v1060, 0.0
        %v1254 = vsel %vm1181, %v1061, 0.0
        %v1255 = vsel %vm1181, %v1062, 0.0
        %v1256 = vsel %vm1181, %v1063, 0.0
        %v1257 = vsel %vm1181, %v1064, 0.0
        %v1258 = vsel %vm1181, %v1065, 0.0
        %v1259 = vsel %vm1181, %v1066, 0.0
        %v1260 = vsel %vm1181, %v1067, 0.0
        %v1261 = vsel %vm1181, %v1068, 0.0
        %v1262 = vsel %vm1181, %v1069, 0.0
        %v1263 = vsel %vm1181, %v1070, 0.0
        %v1264 = vsel %vm1181, %v1071, 0.0
        %v1265 = vsel %vm1181, %v1072, 0.0
        %v1266 = vsel %vm1181, %v1073, 0.0
        %v1267 = vsel %vm1181, %v1074, 0.0
        %v1268 = vsel %vm1181, %v1075, 0.0
        %v1269 = vsel %vm1181, %v1076, 0.0
        %v1270 = vsel %vm1181, %v1077, 0.0
        %v1271 = vsel %vm1181, %v1078, 0.0
        %v1272 = vsel %vm1181, %v1079, 0.0
        %v1273 = vsel %vm1181, %v1080, 0.0
        %v1274 = vsel %vm1181, %v1081, 0.0
        %v1275 = vsel %vm1181, %v1082, 0.0
        %v1276 = vsel %vm1181, %v1083, 0.0
        %v1277 = vsel %vm1181, %v1084, 0.0
        %v1278 = vsel %vm1181, %v1085, 0.0
        %v1279 = vsel %vm1181, %v1086, 0.0
        %v1280 = vsel %vm1181, %v1087, 0.0
        %v1281 = vsel %vm1181, %v1088, 0.0
        %v1282 = vsel %vm1181, %v1089, 0.0
        %v1283 = vsel %vm1181, %v1090, 0.0
        %v1284 = vsel %vm1181, %v1091, 0.0
        %v1285 = vsel %vm1181, %v1092, 0.0
        %v1286 = vsel %vm1181, %v1093, 0.0
        %v1287 = vsel %vm1181, %v1094, 0.0
        %v1288 = vsel %vm1181, %v1095, 0.0
        %v1289 = vsel %vm1181, %v1096, 0.0
        %v1290 = vsel %vm1181, %v1097, 0.0
        %v1291 = vsel %vm1181, %v1098, 0.0
        %v1292 = vsel %vm1181, %v1099, 0.0
        %v1293 = vsel %vm1181, %v1100, 0.0
        %v1294 = vsel %vm1181, %v1101, 0.0
        %v1295 = vsel %vm1181, %v1102, 0.0
        %v1296 = vsel %vm1181, %v1103, 0.0
        %v1297 = vsel %vm1181, %v1104, 0.0
        %v1298 = vsel %vm1181, %v1105, 0.0
        %v1299 = vsel %vm1181, %v1106, 0.0
        %v1300 = vsel %vm1181, %v1107, 0.0
        %v1301 = vsel %vm1181, %v1108, 0.0
        %v1302 = vsel %vm1181, %v1109, 0.0
        %v1303 = vsel %vm1181, %v1110, 0.0
        %v1304 = vsel %vm1181, %v1111, 0.0
        %v1305 = vsel %vm1181, %v1112, 0.0
        %v1306 = vsel %vm1181, %v1113, 0.0
        %v1307 = vsel %vm1181, %v1114, 0.0
        %v1308 = vsel %vm1181, %v1115, 0.0
        %v1309 = vsel %vm1181, %v1116, 0.0
        %vm1438 = vcmask 1046528
        %v1439 = vrot.slane %v1182, 1
        %v1440 = vrot.slane %v1246, 1
        %v1441 = vsel %vm1438, %v1439, %v1440
        %v1442 = vrot.slane %v1183, 1
        %v1443 = vrot.slane %v1247, 1
        %v1444 = vsel %vm1438, %v1442, %v1443
        %v1445 = vrot.slane %v1184, 1
        %v1446 = vrot.slane %v1248, 1
        %v1447 = vsel %vm1438, %v1445, %v1446
        %v1448 = vrot.slane %v1185, 1
        %v1449 = vrot.slane %v1249, 1
        %v1450 = vsel %vm1438, %v1448, %v1449
        %v1451 = vrot.slane %v1186, 1
        %v1452 = vrot.slane %v1250, 1
        %v1453 = vsel %vm1438, %v1451, %v1452
        %v1454 = vrot.slane %v1187, 1
        %v1455 = vrot.slane %v1251, 1
        %v1456 = vsel %vm1438, %v1454, %v1455
        %v1457 = vrot.slane %v1188, 1
        %v1458 = vrot.slane %v1252, 1
        %v1459 = vsel %vm1438, %v1457, %v1458
        %v1460 = vrot.slane %v1189, 1
        %v1461 = vrot.slane %v1253, 1
        %v1462 = vsel %vm1438, %v1460, %v1461
        %v1463 = vrot.slane %v1190, 1
        %v1464 = vrot.slane %v1254, 1
        %v1465 = vsel %vm1438, %v1463, %v1464
        %v1466 = vrot.slane %v1191, 1
        %v1467 = vrot.slane %v1255, 1
        %v1468 = vsel %vm1438, %v1466, %v1467
        %v1469 = vrot.slane %v1192, 1
        %v1470 = vrot.slane %v1256, 1
        %v1471 = vsel %vm1438, %v1469, %v1470
        %v1472 = vrot.slane %v1193, 1
        %v1473 = vrot.slane %v1257, 1
        %v1474 = vsel %vm1438, %v1472, %v1473
        %v1475 = vrot.slane %v1194, 1
        %v1476 = vrot.slane %v1258, 1
        %v1477 = vsel %vm1438, %v1475, %v1476
        %v1478 = vrot.slane %v1195, 1
        %v1479 = vrot.slane %v1259, 1
        %v1480 = vsel %vm1438, %v1478, %v1479
        %v1481 = vrot.slane %v1196, 1
        %v1482 = vrot.slane %v1260, 1
        %v1483 = vsel %vm1438, %v1481, %v1482
        %v1484 = vrot.slane %v1197, 1
        %v1485 = vrot.slane %v1261, 1
        %v1486 = vsel %vm1438, %v1484, %v1485
        %v1487 = vrot.slane %v1198, 1
        %v1488 = vrot.slane %v1262, 1
        %v1489 = vsel %vm1438, %v1487, %v1488
        %v1490 = vrot.slane %v1199, 1
        %v1491 = vrot.slane %v1263, 1
        %v1492 = vsel %vm1438, %v1490, %v1491
        %v1493 = vrot.slane %v1200, 1
        %v1494 = vrot.slane %v1264, 1
        %v1495 = vsel %vm1438, %v1493, %v1494
        %v1496 = vrot.slane %v1201, 1
        %v1497 = vrot.slane %v1265, 1
        %v1498 = vsel %vm1438, %v1496, %v1497
        %v1499 = vrot.slane %v1202, 1
        %v1500 = vrot.slane %v1266, 1
        %v1501 = vsel %vm1438, %v1499, %v1500
        %v1502 = vrot.slane %v1203, 1
        %v1503 = vrot.slane %v1267, 1
        %v1504 = vsel %vm1438, %v1502, %v1503
        %v1505 = vrot.slane %v1204, 1
        %v1506 = vrot.slane %v1268, 1
        %v1507 = vsel %vm1438, %v1505, %v1506
        %v1508 = vrot.slane %v1205, 1
        %v1509 = vrot.slane %v1269, 1
        %v1510 = vsel %vm1438, %v1508, %v1509
        %v1511 = vrot.slane %v1206, 1
        %v1512 = vrot.slane %v1270, 1
        %v1513 = vsel %vm1438, %v1511, %v1512
        %v1514 = vrot.slane %v1207, 1
        %v1515 = vrot.slane %v1271, 1
        %v1516 = vsel %vm1438, %v1514, %v1515
        %v1517 = vrot.slane %v1208, 1
        %v1518 = vrot.slane %v1272, 1
        %v1519 = vsel %vm1438, %v1517, %v1518
        %v1520 = vrot.slane %v1209, 1
        %v1521 = vrot.slane %v1273, 1
        %v1522 = vsel %vm1438, %v1520, %v1521
        %v1523 = vrot.slane %v1210, 1
        %v1524 = vrot.slane %v1274, 1
        %v1525 = vsel %vm1438, %v1523, %v1524
        %v1526 = vrot.slane %v1211, 1
        %v1527 = vrot.slane %v1275, 1
        %v1528 = vsel %vm1438, %v1526, %v1527
        %v1529 = vrot.slane %v1212, 1
        %v1530 = vrot.slane %v1276, 1
        %v1531 = vsel %vm1438, %v1529, %v1530
        %v1532 = vrot.slane %v1213, 1
        %v1533 = vrot.slane %v1277, 1
        %v1534 = vsel %vm1438, %v1532, %v1533
        %v1535 = vrot.slane %v1214, 1
        %v1536 = vrot.slane %v1278, 1
        %v1537 = vsel %vm1438, %v1535, %v1536
        %v1538 = vrot.slane %v1215, 1
        %v1539 = vrot.slane %v1279, 1
        %v1540 = vsel %vm1438, %v1538, %v1539
        %v1541 = vrot.slane %v1216, 1
        %v1542 = vrot.slane %v1280, 1
        %v1543 = vsel %vm1438, %v1541, %v1542
        %v1544 = vrot.slane %v1217, 1
        %v1545 = vrot.slane %v1281, 1
        %v1546 = vsel %vm1438, %v1544, %v1545
        %v1547 = vrot.slane %v1218, 1
        %v1548 = vrot.slane %v1282, 1
        %v1549 = vsel %vm1438, %v1547, %v1548
        %v1550 = vrot.slane %v1219, 1
        %v1551 = vrot.slane %v1283, 1
        %v1552 = vsel %vm1438, %v1550, %v1551
        %v1553 = vrot.slane %v1220, 1
        %v1554 = vrot.slane %v1284, 1
        %v1555 = vsel %vm1438, %v1553, %v1554
        %v1556 = vrot.slane %v1221, 1
        %v1557 = vrot.slane %v1285, 1
        %v1558 = vsel %vm1438, %v1556, %v1557
        %v1559 = vrot.slane %v1222, 1
        %v1560 = vrot.slane %v1286, 1
        %v1561 = vsel %vm1438, %v1559, %v1560
        %v1562 = vrot.slane %v1223, 1
        %v1563 = vrot.slane %v1287, 1
        %v1564 = vsel %vm1438, %v1562, %v1563
        %v1565 = vrot.slane %v1224, 1
        %v1566 = vrot.slane %v1288, 1
        %v1567 = vsel %vm1438, %v1565, %v1566
        %v1568 = vrot.slane %v1225, 1
        %v1569 = vrot.slane %v1289, 1
        %v1570 = vsel %vm1438, %v1568, %v1569
        %v1571 = vrot.slane %v1226, 1
        %v1572 = vrot.slane %v1290, 1
        %v1573 = vsel %vm1438, %v1571, %v1572
        %v1574 = vrot.slane %v1227, 1
        %v1575 = vrot.slane %v1291, 1
        %v1576 = vsel %vm1438, %v1574, %v1575
        %v1577 = vrot.slane %v1228, 1
        %v1578 = vrot.slane %v1292, 1
        %v1579 = vsel %vm1438, %v1577, %v1578
        %v1580 = vrot.slane %v1229, 1
        %v1581 = vrot.slane %v1293, 1
        %v1582 = vsel %vm1438, %v1580, %v1581
        %v1583 = vrot.slane %v1230, 1
        %v1584 = vrot.slane %v1294, 1
        %v1585 = vsel %vm1438, %v1583, %v1584
        %v1586 = vrot.slane %v1231, 1
        %v1587 = vrot.slane %v1295, 1
        %v1588 = vsel %vm1438, %v1586, %v1587
        %v1589 = vrot.slane %v1232, 1
        %v1590 = vrot.slane %v1296, 1
        %v1591 = vsel %vm1438, %v1589, %v1590
        %v1592 = vrot.slane %v1233, 1
        %v1593 = vrot.slane %v1297, 1
        %v1594 = vsel %vm1438, %v1592, %v1593
        %v1595 = vrot.slane %v1234, 1
        %v1596 = vrot.slane %v1298, 1
        %v1597 = vsel %vm1438, %v1595, %v1596
        %v1598 = vrot.slane %v1235, 1
        %v1599 = vrot.slane %v1299, 1
        %v1600 = vsel %vm1438, %v1598, %v1599
        %v1601 = vrot.slane %v1236, 1
        %v1602 = vrot.slane %v1300, 1
        %v1603 = vsel %vm1438, %v1601, %v1602
        %v1604 = vrot.slane %v1237, 1
        %v1605 = vrot.slane %v1301, 1
        %v1606 = vsel %vm1438, %v1604, %v1605
        %v1607 = vrot.slane %v1238, 1
        %v1608 = vrot.slane %v1302, 1
        %v1609 = vsel %vm1438, %v1607, %v1608
        %v1610 = vrot.slane %v1239, 1
        %v1611 = vrot.slane %v1303, 1
        %v1612 = vsel %vm1438, %v1610, %v1611
        %v1613 = vrot.slane %v1240, 1
        %v1614 = vrot.slane %v1304, 1
        %v1615 = vsel %vm1438, %v1613, %v1614
        %v1616 = vrot.slane %v1241, 1
        %v1617 = vrot.slane %v1305, 1
        %v1618 = vsel %vm1438, %v1616, %v1617
        %v1619 = vrot.slane %v1242, 1
        %v1620 = vrot.slane %v1306, 1
        %v1621 = vsel %vm1438, %v1619, %v1620
        %v1622 = vrot.slane %v1243, 1
        %v1623 = vrot.slane %v1307, 1
        %v1624 = vsel %vm1438, %v1622, %v1623
        %v1625 = vrot.slane %v1244, 1
        %v1626 = vrot.slane %v1308, 1
        %v1627 = vsel %vm1438, %v1625, %v1626
        %v1628 = vrot.slane %v1245, 1
        %v1629 = vrot.slane %v1309, 1
        %v1630 = vsel %vm1438, %v1628, %v1629
        %1631 = vrot.lane.b32.xlu0 %v1441, 16
        %v1632 = vpop.permute.xlu0 %1631
        %1633 = vrot.lane.b32.xlu0 %v1444, 16
        %v1634 = vpop.permute.xlu0 %1633
        %1635 = vrot.lane.b32.xlu0 %v1447, 16
        %v1636 = vpop.permute.xlu0 %1635
        %1637 = vrot.lane.b32.xlu0 %v1450, 16
        %v1638 = vpop.permute.xlu0 %1637
        %1639 = vrot.lane.b32.xlu0 %v1453, 16
        %v1640 = vpop.permute.xlu0 %1639
        %1641 = vrot.lane.b32.xlu0 %v1456, 16
        %v1642 = vpop.permute.xlu0 %1641
        %1643 = vrot.lane.b32.xlu0 %v1459, 16
        %v1644 = vpop.permute.xlu0 %1643
        %1645 = vrot.lane.b32.xlu0 %v1462, 16
        %v1646 = vpop.permute.xlu0 %1645
        %1647 = vrot.lane.b32.xlu0 %v1465, 16
        %v1648 = vpop.permute.xlu0 %1647
        %1649 = vrot.lane.b32.xlu0 %v1468, 16
        %v1650 = vpop.permute.xlu0 %1649
        %1651 = vrot.lane.b32.xlu0 %v1471, 16
        %v1652 = vpop.permute.xlu0 %1651
        %1653 = vrot.lane.b32.xlu0 %v1474, 16
        %v1654 = vpop.permute.xlu0 %1653
        %1655 = vrot.lane.b32.xlu0 %v1477, 16
        %v1656 = vpop.permute.xlu0 %1655
        %1657 = vrot.lane.b32.xlu0 %v1480, 16
        %v1658 = vpop.permute.xlu0 %1657
        %1659 = vrot.lane.b32.xlu0 %v1483, 16
        %v1660 = vpop.permute.xlu0 %1659
        %1661 = vrot.lane.b32.xlu0 %v1486, 16
        %v1662 = vpop.permute.xlu0 %1661
        %1663 = vrot.lane.b32.xlu0 %v1489, 16
        %v1664 = vpop.permute.xlu0 %1663
        %1665 = vrot.lane.b32.xlu0 %v1492, 16
        %v1666 = vpop.permute.xlu0 %1665
        %1667 = vrot.lane.b32.xlu0 %v1495, 16
        %v1668 = vpop.permute.xlu0 %1667
        %1669 = vrot.lane.b32.xlu0 %v1498, 16
        %v1670 = vpop.permute.xlu0 %1669
        %1671 = vrot.lane.b32.xlu0 %v1501, 16
        %v1672 = vpop.permute.xlu0 %1671
        %1673 = vrot.lane.b32.xlu0 %v1504, 16
        %v1674 = vpop.permute.xlu0 %1673
        %1675 = vrot.lane.b32.xlu0 %v1507, 16
        %v1676 = vpop.permute.xlu0 %1675
        %1677 = vrot.lane.b32.xlu0 %v1510, 16
        %v1678 = vpop.permute.xlu0 %1677
        %1679 = vrot.lane.b32.xlu0 %v1513, 16
        %v1680 = vpop.permute.xlu0 %1679
        %1681 = vrot.lane.b32.xlu0 %v1516, 16
        %v1682 = vpop.permute.xlu0 %1681
        %1683 = vrot.lane.b32.xlu0 %v1519, 16
        %v1684 = vpop.permute.xlu0 %1683
        %1685 = vrot.lane.b32.xlu0 %v1522, 16
        %v1686 = vpop.permute.xlu0 %1685
        %1687 = vrot.lane.b32.xlu0 %v1525, 16
        %v1688 = vpop.permute.xlu0 %1687
        %1689 = vrot.lane.b32.xlu0 %v1528, 16
        %v1690 = vpop.permute.xlu0 %1689
        %1691 = vrot.lane.b32.xlu0 %v1531, 16
        %v1692 = vpop.permute.xlu0 %1691
        %1693 = vrot.lane.b32.xlu0 %v1534, 16
        %v1694 = vpop.permute.xlu0 %1693
        %1695 = vrot.lane.b32.xlu0 %v1537, 16
        %v1696 = vpop.permute.xlu0 %1695
        %1697 = vrot.lane.b32.xlu0 %v1540, 16
        %v1698 = vpop.permute.xlu0 %1697
        %1699 = vrot.lane.b32.xlu0 %v1543, 16
        %v1700 = vpop.permute.xlu0 %1699
        %1701 = vrot.lane.b32.xlu0 %v1546, 16
        %v1702 = vpop.permute.xlu0 %1701
        %1703 = vrot.lane.b32.xlu0 %v1549, 16
        %v1704 = vpop.permute.xlu0 %1703
        %1705 = vrot.lane.b32.xlu0 %v1552, 16
        %v1706 = vpop.permute.xlu0 %1705
        %1707 = vrot.lane.b32.xlu0 %v1555, 16
        %v1708 = vpop.permute.xlu0 %1707
        %1709 = vrot.lane.b32.xlu0 %v1558, 16
        %v1710 = vpop.permute.xlu0 %1709
        %1711 = vrot.lane.b32.xlu0 %v1561, 16
        %v1712 = vpop.permute.xlu0 %1711
        %1713 = vrot.lane.b32.xlu0 %v1564, 16
        %v1714 = vpop.permute.xlu0 %1713
        %1715 = vrot.lane.b32.xlu0 %v1567, 16
        %v1716 = vpop.permute.xlu0 %1715
        %1717 = vrot.lane.b32.xlu0 %v1570, 16
        %v1718 = vpop.permute.xlu0 %1717
        %1719 = vrot.lane.b32.xlu0 %v1573, 16
        %v1720 = vpop.permute.xlu0 %1719
        %1721 = vrot.lane.b32.xlu0 %v1576, 16
        %v1722 = vpop.permute.xlu0 %1721
        %1723 = vrot.lane.b32.xlu0 %v1579, 16
        %v1724 = vpop.permute.xlu0 %1723
        %1725 = vrot.lane.b32.xlu0 %v1582, 16
        %v1726 = vpop.permute.xlu0 %1725
        %1727 = vrot.lane.b32.xlu0 %v1585, 16
        %v1728 = vpop.permute.xlu0 %1727
        %1729 = vrot.lane.b32.xlu0 %v1588, 16
        %v1730 = vpop.permute.xlu0 %1729
        %1731 = vrot.lane.b32.xlu0 %v1591, 16
        %v1732 = vpop.permute.xlu0 %1731
        %1733 = vrot.lane.b32.xlu0 %v1594, 16
        %v1734 = vpop.permute.xlu0 %1733
        %1735 = vrot.lane.b32.xlu0 %v1597, 16
        %v1736 = vpop.permute.xlu0 %1735
        %1737 = vrot.lane.b32.xlu0 %v1600, 16
        %v1738 = vpop.permute.xlu0 %1737
        %1739 = vrot.lane.b32.xlu0 %v1603, 16
        %v1740 = vpop.permute.xlu0 %1739
        %1741 = vrot.lane.b32.xlu0 %v1606, 16
        %v1742 = vpop.permute.xlu0 %1741
        %1743 = vrot.lane.b32.xlu0 %v1609, 16
        %v1744 = vpop.permute.xlu0 %1743
        %1745 = vrot.lane.b32.xlu0 %v1612, 16
        %v1746 = vpop.permute.xlu0 %1745
        %1747 = vrot.lane.b32.xlu0 %v1615, 16
        %v1748 = vpop.permute.xlu0 %1747
        %1749 = vrot.lane.b32.xlu0 %v1618, 16
        %v1750 = vpop.permute.xlu0 %1749
        %1751 = vrot.lane.b32.xlu0 %v1621, 16
        %v1752 = vpop.permute.xlu0 %1751
        %1753 = vrot.lane.b32.xlu0 %v1624, 16
        %v1754 = vpop.permute.xlu0 %1753
        %1755 = vrot.lane.b32.xlu0 %v1627, 16
        %v1756 = vpop.permute.xlu0 %1755
        %1757 = vrot.lane.b32.xlu0 %v1630, 16
        %v1758 = vpop.permute.xlu0 %1757
        %vm1823 = vcmask 1045504
        %v1824 = vrot.slane %v1182, 2
        %v1825 = vrot.slane %v1246, 2
        %v1826 = vsel %vm1823, %v1824, %v1825
        %v1827 = vrot.slane %v1183, 2
        %v1828 = vrot.slane %v1247, 2
        %v1829 = vsel %vm1823, %v1827, %v1828
        %v1830 = vrot.slane %v1184, 2
        %v1831 = vrot.slane %v1248, 2
        %v1832 = vsel %vm1823, %v1830, %v1831
        %v1833 = vrot.slane %v1185, 2
        %v1834 = vrot.slane %v1249, 2
        %v1835 = vsel %vm1823, %v1833, %v1834
        %v1836 = vrot.slane %v1186, 2
        %v1837 = vrot.slane %v1250, 2
        %v1838 = vsel %vm1823, %v1836, %v1837
        %v1839 = vrot.slane %v1187, 2
        %v1840 = vrot.slane %v1251, 2
        %v1841 = vsel %vm1823, %v1839, %v1840
        %v1842 = vrot.slane %v1188, 2
        %v1843 = vrot.slane %v1252, 2
        %v1844 = vsel %vm1823, %v1842, %v1843
        %v1845 = vrot.slane %v1189, 2
        %v1846 = vrot.slane %v1253, 2
        %v1847 = vsel %vm1823, %v1845, %v1846
        %v1848 = vrot.slane %v1190, 2
        %v1849 = vrot.slane %v1254, 2
        %v1850 = vsel %vm1823, %v1848, %v1849
        %v1851 = vrot.slane %v1191, 2
        %v1852 = vrot.slane %v1255, 2
        %v1853 = vsel %vm1823, %v1851, %v1852
        %v1854 = vrot.slane %v1192, 2
        %v1855 = vrot.slane %v1256, 2
        %v1856 = vsel %vm1823, %v1854, %v1855
        %v1857 = vrot.slane %v1193, 2
        %v1858 = vrot.slane %v1257, 2
        %v1859 = vsel %vm1823, %v1857, %v1858
        %v1860 = vrot.slane %v1194, 2
        %v1861 = vrot.slane %v1258, 2
        %v1862 = vsel %vm1823, %v1860, %v1861
        %v1863 = vrot.slane %v1195, 2
        %v1864 = vrot.slane %v1259, 2
        %v1865 = vsel %vm1823, %v1863, %v1864
        %v1866 = vrot.slane %v1196, 2
        %v1867 = vrot.slane %v1260, 2
        %v1868 = vsel %vm1823, %v1866, %v1867
        %v1869 = vrot.slane %v1197, 2
        %v1870 = vrot.slane %v1261, 2
        %v1871 = vsel %vm1823, %v1869, %v1870
        %v1872 = vrot.slane %v1198, 2
        %v1873 = vrot.slane %v1262, 2
        %v1874 = vsel %vm1823, %v1872, %v1873
        %v1875 = vrot.slane %v1199, 2
        %v1876 = vrot.slane %v1263, 2
        %v1877 = vsel %vm1823, %v1875, %v1876
        %v1878 = vrot.slane %v1200, 2
        %v1879 = vrot.slane %v1264, 2
        %v1880 = vsel %vm1823, %v1878, %v1879
        %v1881 = vrot.slane %v1201, 2
        %v1882 = vrot.slane %v1265, 2
        %v1883 = vsel %vm1823, %v1881, %v1882
        %v1884 = vrot.slane %v1202, 2
        %v1885 = vrot.slane %v1266, 2
        %v1886 = vsel %vm1823, %v1884, %v1885
        %v1887 = vrot.slane %v1203, 2
        %v1888 = vrot.slane %v1267, 2
        %v1889 = vsel %vm1823, %v1887, %v1888
        %v1890 = vrot.slane %v1204, 2
        %v1891 = vrot.slane %v1268, 2
        %v1892 = vsel %vm1823, %v1890, %v1891
        %v1893 = vrot.slane %v1205, 2
        %v1894 = vrot.slane %v1269, 2
        %v1895 = vsel %vm1823, %v1893, %v1894
        %v1896 = vrot.slane %v1206, 2
        %v1897 = vrot.slane %v1270, 2
        %v1898 = vsel %vm1823, %v1896, %v1897
        %v1899 = vrot.slane %v1207, 2
        %v1900 = vrot.slane %v1271, 2
        %v1901 = vsel %vm1823, %v1899, %v1900
        %v1902 = vrot.slane %v1208, 2
        %v1903 = vrot.slane %v1272, 2
        %v1904 = vsel %vm1823, %v1902, %v1903
        %v1905 = vrot.slane %v1209, 2
        %v1906 = vrot.slane %v1273, 2
        %v1907 = vsel %vm1823, %v1905, %v1906
        %v1908 = vrot.slane %v1210, 2
        %v1909 = vrot.slane %v1274, 2
        %v1910 = vsel %vm1823, %v1908, %v1909
        %v1911 = vrot.slane %v1211, 2
        %v1912 = vrot.slane %v1275, 2
        %v1913 = vsel %vm1823, %v1911, %v1912
        %v1914 = vrot.slane %v1212, 2
        %v1915 = vrot.slane %v1276, 2
        %v1916 = vsel %vm1823, %v1914, %v1915
        %v1917 = vrot.slane %v1213, 2
        %v1918 = vrot.slane %v1277, 2
        %v1919 = vsel %vm1823, %v1917, %v1918
        %v1920 = vrot.slane %v1214, 2
        %v1921 = vrot.slane %v1278, 2
        %v1922 = vsel %vm1823, %v1920, %v1921
        %v1923 = vrot.slane %v1215, 2
        %v1924 = vrot.slane %v1279, 2
        %v1925 = vsel %vm1823, %v1923, %v1924
        %v1926 = vrot.slane %v1216, 2
        %v1927 = vrot.slane %v1280, 2
        %v1928 = vsel %vm1823, %v1926, %v1927
        %v1929 = vrot.slane %v1217, 2
        %v1930 = vrot.slane %v1281, 2
        %v1931 = vsel %vm1823, %v1929, %v1930
        %v1932 = vrot.slane %v1218, 2
        %v1933 = vrot.slane %v1282, 2
        %v1934 = vsel %vm1823, %v1932, %v1933
        %v1935 = vrot.slane %v1219, 2
        %v1936 = vrot.slane %v1283, 2
        %v1937 = vsel %vm1823, %v1935, %v1936
        %v1938 = vrot.slane %v1220, 2
        %v1939 = vrot.slane %v1284, 2
        %v1940 = vsel %vm1823, %v1938, %v1939
        %v1941 = vrot.slane %v1221, 2
        %v1942 = vrot.slane %v1285, 2
        %v1943 = vsel %vm1823, %v1941, %v1942
        %v1944 = vrot.slane %v1222, 2
        %v1945 = vrot.slane %v1286, 2
        %v1946 = vsel %vm1823, %v1944, %v1945
        %v1947 = vrot.slane %v1223, 2
        %v1948 = vrot.slane %v1287, 2
        %v1949 = vsel %vm1823, %v1947, %v1948
        %v1950 = vrot.slane %v1224, 2
        %v1951 = vrot.slane %v1288, 2
        %v1952 = vsel %vm1823, %v1950, %v1951
        %v1953 = vrot.slane %v1225, 2
        %v1954 = vrot.slane %v1289, 2
        %v1955 = vsel %vm1823, %v1953, %v1954
        %v1956 = vrot.slane %v1226, 2
        %v1957 = vrot.slane %v1290, 2
        %v1958 = vsel %vm1823, %v1956, %v1957
        %v1959 = vrot.slane %v1227, 2
        %v1960 = vrot.slane %v1291, 2
        %v1961 = vsel %vm1823, %v1959, %v1960
        %v1962 = vrot.slane %v1228, 2
        %v1963 = vrot.slane %v1292, 2
        %v1964 = vsel %vm1823, %v1962, %v1963
        %v1965 = vrot.slane %v1229, 2
        %v1966 = vrot.slane %v1293, 2
        %v1967 = vsel %vm1823, %v1965, %v1966
        %v1968 = vrot.slane %v1230, 2
        %v1969 = vrot.slane %v1294, 2
        %v1970 = vsel %vm1823, %v1968, %v1969
        %v1971 = vrot.slane %v1231, 2
        %v1972 = vrot.slane %v1295, 2
        %v1973 = vsel %vm1823, %v1971, %v1972
        %v1974 = vrot.slane %v1232, 2
        %v1975 = vrot.slane %v1296, 2
        %v1976 = vsel %vm1823, %v1974, %v1975
        %v1977 = vrot.slane %v1233, 2
        %v1978 = vrot.slane %v1297, 2
        %v1979 = vsel %vm1823, %v1977, %v1978
        %v1980 = vrot.slane %v1234, 2
        %v1981 = vrot.slane %v1298, 2
        %v1982 = vsel %vm1823, %v1980, %v1981
        %v1983 = vrot.slane %v1235, 2
        %v1984 = vrot.slane %v1299, 2
        %v1985 = vsel %vm1823, %v1983, %v1984
        %v1986 = vrot.slane %v1236, 2
        %v1987 = vrot.slane %v1300, 2
        %v1988 = vsel %vm1823, %v1986, %v1987
        %v1989 = vrot.slane %v1237, 2
        %v1990 = vrot.slane %v1301, 2
        %v1991 = vsel %vm1823, %v1989, %v1990
        %v1992 = vrot.slane %v1238, 2
        %v1993 = vrot.slane %v1302, 2
        %v1994 = vsel %vm1823, %v1992, %v1993
        %v1995 = vrot.slane %v1239, 2
        %v1996 = vrot.slane %v1303, 2
        %v1997 = vsel %vm1823, %v1995, %v1996
        %v1998 = vrot.slane %v1240, 2
        %v1999 = vrot.slane %v1304, 2
        %v2000 = vsel %vm1823, %v1998, %v1999
        %v2001 = vrot.slane %v1241, 2
        %v2002 = vrot.slane %v1305, 2
        %v2003 = vsel %vm1823, %v2001, %v2002
        %v2004 = vrot.slane %v1242, 2
        %v2005 = vrot.slane %v1306, 2
        %v2006 = vsel %vm1823, %v2004, %v2005
        %v2007 = vrot.slane %v1243, 2
        %v2008 = vrot.slane %v1307, 2
        %v2009 = vsel %vm1823, %v2007, %v2008
        %v2010 = vrot.slane %v1244, 2
        %v2011 = vrot.slane %v1308, 2
        %v2012 = vsel %vm1823, %v2010, %v2011
        %v2013 = vrot.slane %v1245, 2
        %v2014 = vrot.slane %v1309, 2
        %v2015 = vsel %vm1823, %v2013, %v2014
        %2016 = vrot.lane.b32.xlu0 %v1826, 32
        %v2017 = vpop.permute.xlu0 %2016
        %2018 = vrot.lane.b32.xlu0 %v1829, 32
        %v2019 = vpop.permute.xlu0 %2018
        %2020 = vrot.lane.b32.xlu0 %v1832, 32
        %v2021 = vpop.permute.xlu0 %2020
        %2022 = vrot.lane.b32.xlu0 %v1835, 32
        %v2023 = vpop.permute.xlu0 %2022
        %2024 = vrot.lane.b32.xlu0 %v1838, 32
        %v2025 = vpop.permute.xlu0 %2024
        %2026 = vrot.lane.b32.xlu0 %v1841, 32
        %v2027 = vpop.permute.xlu0 %2026
        %2028 = vrot.lane.b32.xlu0 %v1844, 32
        %v2029 = vpop.permute.xlu0 %2028
        %2030 = vrot.lane.b32.xlu0 %v1847, 32
        %v2031 = vpop.permute.xlu0 %2030
        %2032 = vrot.lane.b32.xlu0 %v1850, 32
        %v2033 = vpop.permute.xlu0 %2032
        %2034 = vrot.lane.b32.xlu0 %v1853, 32
        %v2035 = vpop.permute.xlu0 %2034
        %2036 = vrot.lane.b32.xlu0 %v1856, 32
        %v2037 = vpop.permute.xlu0 %2036
        %2038 = vrot.lane.b32.xlu0 %v1859, 32
        %v2039 = vpop.permute.xlu0 %2038
        %2040 = vrot.lane.b32.xlu0 %v1862, 32
        %v2041 = vpop.permute.xlu0 %2040
        %2042 = vrot.lane.b32.xlu0 %v1865, 32
        %v2043 = vpop.permute.xlu0 %2042
        %2044 = vrot.lane.b32.xlu0 %v1868, 32
        %v2045 = vpop.permute.xlu0 %2044
        %2046 = vrot.lane.b32.xlu0 %v1871, 32
        %v2047 = vpop.permute.xlu0 %2046
        %2048 = vrot.lane.b32.xlu0 %v1874, 32
        %v2049 = vpop.permute.xlu0 %2048
        %2050 = vrot.lane.b32.xlu0 %v1877, 32
        %v2051 = vpop.permute.xlu0 %2050
        %2052 = vrot.lane.b32.xlu0 %v1880, 32
        %v2053 = vpop.permute.xlu0 %2052
        %2054 = vrot.lane.b32.xlu0 %v1883, 32
        %v2055 = vpop.permute.xlu0 %2054
        %2056 = vrot.lane.b32.xlu0 %v1886, 32
        %v2057 = vpop.permute.xlu0 %2056
        %2058 = vrot.lane.b32.xlu0 %v1889, 32
        %v2059 = vpop.permute.xlu0 %2058
        %2060 = vrot.lane.b32.xlu0 %v1892, 32
        %v2061 = vpop.permute.xlu0 %2060
        %2062 = vrot.lane.b32.xlu0 %v1895, 32
        %v2063 = vpop.permute.xlu0 %2062
        %2064 = vrot.lane.b32.xlu0 %v1898, 32
        %v2065 = vpop.permute.xlu0 %2064
        %2066 = vrot.lane.b32.xlu0 %v1901, 32
        %v2067 = vpop.permute.xlu0 %2066
        %2068 = vrot.lane.b32.xlu0 %v1904, 32
        %v2069 = vpop.permute.xlu0 %2068
        %2070 = vrot.lane.b32.xlu0 %v1907, 32
        %v2071 = vpop.permute.xlu0 %2070
        %2072 = vrot.lane.b32.xlu0 %v1910, 32
        %v2073 = vpop.permute.xlu0 %2072
        %2074 = vrot.lane.b32.xlu0 %v1913, 32
        %v2075 = vpop.permute.xlu0 %2074
        %2076 = vrot.lane.b32.xlu0 %v1916, 32
        %v2077 = vpop.permute.xlu0 %2076
        %2078 = vrot.lane.b32.xlu0 %v1919, 32
        %v2079 = vpop.permute.xlu0 %2078
        %2080 = vrot.lane.b32.xlu0 %v1922, 32
        %v2081 = vpop.permute.xlu0 %2080
        %2082 = vrot.lane.b32.xlu0 %v1925, 32
        %v2083 = vpop.permute.xlu0 %2082
        %2084 = vrot.lane.b32.xlu0 %v1928, 32
        %v2085 = vpop.permute.xlu0 %2084
        %2086 = vrot.lane.b32.xlu0 %v1931, 32
        %v2087 = vpop.permute.xlu0 %2086
        %2088 = vrot.lane.b32.xlu0 %v1934, 32
        %v2089 = vpop.permute.xlu0 %2088
        %2090 = vrot.lane.b32.xlu0 %v1937, 32
        %v2091 = vpop.permute.xlu0 %2090
        %2092 = vrot.lane.b32.xlu0 %v1940, 32
        %v2093 = vpop.permute.xlu0 %2092
        %2094 = vrot.lane.b32.xlu0 %v1943, 32
        %v2095 = vpop.permute.xlu0 %2094
        %2096 = vrot.lane.b32.xlu0 %v1946, 32
        %v2097 = vpop.permute.xlu0 %2096
        %2098 = vrot.lane.b32.xlu0 %v1949, 32
        %v2099 = vpop.permute.xlu0 %2098
        %2100 = vrot.lane.b32.xlu0 %v1952, 32
        %v2101 = vpop.permute.xlu0 %2100
        %2102 = vrot.lane.b32.xlu0 %v1955, 32
        %v2103 = vpop.permute.xlu0 %2102
        %2104 = vrot.lane.b32.xlu0 %v1958, 32
        %v2105 = vpop.permute.xlu0 %2104
        %2106 = vrot.lane.b32.xlu0 %v1961, 32
        %v2107 = vpop.permute.xlu0 %2106
        %2108 = vrot.lane.b32.xlu0 %v1964, 32
        %v2109 = vpop.permute.xlu0 %2108
        %2110 = vrot.lane.b32.xlu0 %v1967, 32
        %v2111 = vpop.permute.xlu0 %2110
        %2112 = vrot.lane.b32.xlu0 %v1970, 32
        %v2113 = vpop.permute.xlu0 %2112
        %2114 = vrot.lane.b32.xlu0 %v1973, 32
        %v2115 = vpop.permute.xlu0 %2114
        %2116 = vrot.lane.b32.xlu0 %v1976, 32
        %v2117 = vpop.permute.xlu0 %2116
        %2118 = vrot.lane.b32.xlu0 %v1979, 32
        %v2119 = vpop.permute.xlu0 %2118
        %2120 = vrot.lane.b32.xlu0 %v1982, 32
        %v2121 = vpop.permute.xlu0 %2120
        %2122 = vrot.lane.b32.xlu0 %v1985, 32
        %v2123 = vpop.permute.xlu0 %2122
        %2124 = vrot.lane.b32.xlu0 %v1988, 32
        %v2125 = vpop.permute.xlu0 %2124
        %2126 = vrot.lane.b32.xlu0 %v1991, 32
        %v2127 = vpop.permute.xlu0 %2126
        %2128 = vrot.lane.b32.xlu0 %v1994, 32
        %v2129 = vpop.permute.xlu0 %2128
        %2130 = vrot.lane.b32.xlu0 %v1997, 32
        %v2131 = vpop.permute.xlu0 %2130
        %2132 = vrot.lane.b32.xlu0 %v2000, 32
        %v2133 = vpop.permute.xlu0 %2132
        %2134 = vrot.lane.b32.xlu0 %v2003, 32
        %v2135 = vpop.permute.xlu0 %2134
        %2136 = vrot.lane.b32.xlu0 %v2006, 32
        %v2137 = vpop.permute.xlu0 %2136
        %2138 = vrot.lane.b32.xlu0 %v2009, 32
        %v2139 = vpop.permute.xlu0 %2138
        %2140 = vrot.lane.b32.xlu0 %v2012, 32
        %v2141 = vpop.permute.xlu0 %2140
        %2142 = vrot.lane.b32.xlu0 %v2015, 32
        %v2143 = vpop.permute.xlu0 %2142
        %vm2208 = vcmask 130048
        %v2209 = vsel %vm2208, %v1182, %v1632
        %v2210 = vsel %vm2208, %v1183, %v1634
        %v2211 = vsel %vm2208, %v1184, %v1636
        %v2212 = vsel %vm2208, %v1185, %v1638
        %v2213 = vsel %vm2208, %v1186, %v1640
        %v2214 = vsel %vm2208, %v1187, %v1642
        %v2215 = vsel %vm2208, %v1188, %v1644
        %v2216 = vsel %vm2208, %v1189, %v1646
        %v2217 = vsel %vm2208, %v1190, %v1648
        %v2218 = vsel %vm2208, %v1191, %v1650
        %v2219 = vsel %vm2208, %v1192, %v1652
        %v2220 = vsel %vm2208, %v1193, %v1654
        %v2221 = vsel %vm2208, %v1194, %v1656
        %v2222 = vsel %vm2208, %v1195, %v1658
        %v2223 = vsel %vm2208, %v1196, %v1660
        %v2224 = vsel %vm2208, %v1197, %v1662
        %v2225 = vsel %vm2208, %v1198, %v1664
        %v2226 = vsel %vm2208, %v1199, %v1666
        %v2227 = vsel %vm2208, %v1200, %v1668
        %v2228 = vsel %vm2208, %v1201, %v1670
        %v2229 = vsel %vm2208, %v1202, %v1672
        %v2230 = vsel %vm2208, %v1203, %v1674
        %v2231 = vsel %vm2208, %v1204, %v1676
        %v2232 = vsel %vm2208, %v1205, %v1678
        %v2233 = vsel %vm2208, %v1206, %v1680
        %v2234 = vsel %vm2208, %v1207, %v1682
        %v2235 = vsel %vm2208, %v1208, %v1684
        %v2236 = vsel %vm2208, %v1209, %v1686
        %v2237 = vsel %vm2208, %v1210, %v1688
        %v2238 = vsel %vm2208, %v1211, %v1690
        %v2239 = vsel %vm2208, %v1212, %v1692
        %v2240 = vsel %vm2208, %v1213, %v1694
        %v2241 = vsel %vm2208, %v1214, %v1696
        %v2242 = vsel %vm2208, %v1215, %v1698
        %v2243 = vsel %vm2208, %v1216, %v1700
        %v2244 = vsel %vm2208, %v1217, %v1702
        %v2245 = vsel %vm2208, %v1218, %v1704
        %v2246 = vsel %vm2208, %v1219, %v1706
        %v2247 = vsel %vm2208, %v1220, %v1708
        %v2248 = vsel %vm2208, %v1221, %v1710
        %v2249 = vsel %vm2208, %v1222, %v1712
        %v2250 = vsel %vm2208, %v1223, %v1714
        %v2251 = vsel %vm2208, %v1224, %v1716
        %v2252 = vsel %vm2208, %v1225, %v1718
        %v2253 = vsel %vm2208, %v1226, %v1720
        %v2254 = vsel %vm2208, %v1227, %v1722
        %v2255 = vsel %vm2208, %v1228, %v1724
        %v2256 = vsel %vm2208, %v1229, %v1726
        %v2257 = vsel %vm2208, %v1230, %v1728
        %v2258 = vsel %vm2208, %v1231, %v1730
        %v2259 = vsel %vm2208, %v1232, %v1732
        %v2260 = vsel %vm2208, %v1233, %v1734
        %v2261 = vsel %vm2208, %v1234, %v1736
        %v2262 = vsel %vm2208, %v1235, %v1738
        %v2263 = vsel %vm2208, %v1236, %v1740
        %v2264 = vsel %vm2208, %v1237, %v1742
        %v2265 = vsel %vm2208, %v1238, %v1744
        %v2266 = vsel %vm2208, %v1239, %v1746
        %v2267 = vsel %vm2208, %v1240, %v1748
        %v2268 = vsel %vm2208, %v1241, %v1750
        %v2269 = vsel %vm2208, %v1242, %v1752
        %v2270 = vsel %vm2208, %v1243, %v1754
        %v2271 = vsel %vm2208, %v1244, %v1756
        %v2272 = vsel %vm2208, %v1245, %v1758
        %vm2273 = vcmask 261120
        %v2274 = vsel %vm2273, %v2209, %v2017
        %v2275 = vsel %vm2273, %v2210, %v2019
        %v2276 = vsel %vm2273, %v2211, %v2021
        %v2277 = vsel %vm2273, %v2212, %v2023
        %v2278 = vsel %vm2273, %v2213, %v2025
        %v2279 = vsel %vm2273, %v2214, %v2027
        %v2280 = vsel %vm2273, %v2215, %v2029
        %v2281 = vsel %vm2273, %v2216, %v2031
        %v2282 = vsel %vm2273, %v2217, %v2033
        %v2283 = vsel %vm2273, %v2218, %v2035
        %v2284 = vsel %vm2273, %v2219, %v2037
        %v2285 = vsel %vm2273, %v2220, %v2039
        %v2286 = vsel %vm2273, %v2221, %v2041
        %v2287 = vsel %vm2273, %v2222, %v2043
        %v2288 = vsel %vm2273, %v2223, %v2045
        %v2289 = vsel %vm2273, %v2224, %v2047
        %v2290 = vsel %vm2273, %v2225, %v2049
        %v2291 = vsel %vm2273, %v2226, %v2051
        %v2292 = vsel %vm2273, %v2227, %v2053
        %v2293 = vsel %vm2273, %v2228, %v2055
        %v2294 = vsel %vm2273, %v2229, %v2057
        %v2295 = vsel %vm2273, %v2230, %v2059
        %v2296 = vsel %vm2273, %v2231, %v2061
        %v2297 = vsel %vm2273, %v2232, %v2063
        %v2298 = vsel %vm2273, %v2233, %v2065
        %v2299 = vsel %vm2273, %v2234, %v2067
        %v2300 = vsel %vm2273, %v2235, %v2069
        %v2301 = vsel %vm2273, %v2236, %v2071
        %v2302 = vsel %vm2273, %v2237, %v2073
        %v2303 = vsel %vm2273, %v2238, %v2075
        %v2304 = vsel %vm2273, %v2239, %v2077
        %v2305 = vsel %vm2273, %v2240, %v2079
        %v2306 = vsel %vm2273, %v2241, %v2081
        %v2307 = vsel %vm2273, %v2242, %v2083
        %v2308 = vsel %vm2273, %v2243, %v2085
        %v2309 = vsel %vm2273, %v2244, %v2087
        %v2310 = vsel %vm2273, %v2245, %v2089
        %v2311 = vsel %vm2273, %v2246, %v2091
        %v2312 = vsel %vm2273, %v2247, %v2093
        %v2313 = vsel %vm2273, %v2248, %v2095
        %v2314 = vsel %vm2273, %v2249, %v2097
        %v2315 = vsel %vm2273, %v2250, %v2099
        %v2316 = vsel %vm2273, %v2251, %v2101
        %v2317 = vsel %vm2273, %v2252, %v2103
        %v2318 = vsel %vm2273, %v2253, %v2105
        %v2319 = vsel %vm2273, %v2254, %v2107
        %v2320 = vsel %vm2273, %v2255, %v2109
        %v2321 = vsel %vm2273, %v2256, %v2111
        %v2322 = vsel %vm2273, %v2257, %v2113
        %v2323 = vsel %vm2273, %v2258, %v2115
        %v2324 = vsel %vm2273, %v2259, %v2117
        %v2325 = vsel %vm2273, %v2260, %v2119
        %v2326 = vsel %vm2273, %v2261, %v2121
        %v2327 = vsel %vm2273, %v2262, %v2123
        %v2328 = vsel %vm2273, %v2263, %v2125
        %v2329 = vsel %vm2273, %v2264, %v2127
        %v2330 = vsel %vm2273, %v2265, %v2129
        %v2331 = vsel %vm2273, %v2266, %v2131
        %v2332 = vsel %vm2273, %v2267, %v2133
        %v2333 = vsel %vm2273, %v2268, %v2135
        %v2334 = vsel %vm2273, %v2269, %v2137
        %v2335 = vsel %vm2273, %v2270, %v2139
        %v2336 = vsel %vm2273, %v2271, %v2141
        %v2337 = vsel %vm2273, %v2272, %v2143
        %vm2338 = vcmask 392192
        %2339 = vst.msk [vmem:[#allocation2] sm:$0xff] %vm2338, 0.0
        %2340 = vst.msk [vmem:[#allocation2 + $0x8] sm:$0xff] %vm2338, 0.0
        %2341 = vst.msk [vmem:[#allocation2 + $0x10] sm:$0xff] %vm2338, 0.0
        %2342 = vst.msk [vmem:[#allocation2 + $0x18] sm:$0xff] %vm2338, 0.0
        %2343 = vst.msk [vmem:[#allocation2 + $0x20] sm:$0xff] %vm2338, 0.0
        %2344 = vst.msk [vmem:[#allocation2 + $0x28] sm:$0xff] %vm2338, 0.0
        %2345 = vst.msk [vmem:[#allocation2 + $0x30] sm:$0xff] %vm2338, 0.0
        %2346 = vst.msk [vmem:[#allocation2 + $0x38] sm:$0xff] %vm2338, 0.0
        %2347 = vst.msk [vmem:[#allocation2 + $0x40] sm:$0xff] %vm2338, 0.0
        %2348 = vst.msk [vmem:[#allocation2 + $0x48] sm:$0xff] %vm2338, 0.0
        %2349 = vst.msk [vmem:[#allocation2 + $0x50] sm:$0xff] %vm2338, 0.0
        %2350 = vst.msk [vmem:[#allocation2 + $0x58] sm:$0xff] %vm2338, 0.0
        %2351 = vst.msk [vmem:[#allocation2 + $0x60] sm:$0xff] %vm2338, 0.0
        %2352 = vst.msk [vmem:[#allocation2 + $0x68] sm:$0xff] %vm2338, 0.0
        %2353 = vst.msk [vmem:[#allocation2 + $0x70] sm:$0xff] %vm2338, 0.0
        %2354 = vst.msk [vmem:[#allocation2 + $0x78] sm:$0xff] %vm2338, 0.0
        %2355 = vst.msk [vmem:[#allocation2 + $0x80] sm:$0xff] %vm2338, 0.0
        %2356 = vst.msk [vmem:[#allocation2 + $0x88] sm:$0xff] %vm2338, 0.0
        %2357 = vst.msk [vmem:[#allocation2 + $0x90] sm:$0xff] %vm2338, 0.0
        %2358 = vst.msk [vmem:[#allocation2 + $0x98] sm:$0xff] %vm2338, 0.0
        %2359 = vst.msk [vmem:[#allocation2 + $0xa0] sm:$0xff] %vm2338, 0.0
        %2360 = vst.msk [vmem:[#allocation2 + $0xa8] sm:$0xff] %vm2338, 0.0
        %2361 = vst.msk [vmem:[#allocation2 + $0xb0] sm:$0xff] %vm2338, 0.0
        %2362 = vst.msk [vmem:[#allocation2 + $0xb8] sm:$0xff] %vm2338, 0.0
        %2363 = vst.msk [vmem:[#allocation2 + $0xc0] sm:$0xff] %vm2338, 0.0
        %2364 = vst.msk [vmem:[#allocation2 + $0xc8] sm:$0xff] %vm2338, 0.0
        %2365 = vst.msk [vmem:[#allocation2 + $0xd0] sm:$0xff] %vm2338, 0.0
        %2366 = vst.msk [vmem:[#allocation2 + $0xd8] sm:$0xff] %vm2338, 0.0
        %2367 = vst.msk [vmem:[#allocation2 + $0xe0] sm:$0xff] %vm2338, 0.0
        %2368 = vst.msk [vmem:[#allocation2 + $0xe8] sm:$0xff] %vm2338, 0.0
        %2369 = vst.msk [vmem:[#allocation2 + $0xf0] sm:$0xff] %vm2338, 0.0
        %2370 = vst.msk [vmem:[#allocation2 + $0xf8] sm:$0xff] %vm2338, 0.0
        %2371 = vst.msk [vmem:[#allocation2 + $0x100] sm:$0xff] %vm2338, 0.0
        %2372 = vst.msk [vmem:[#allocation2 + $0x108] sm:$0xff] %vm2338, 0.0
        %2373 = vst.msk [vmem:[#allocation2 + $0x110] sm:$0xff] %vm2338, 0.0
        %2374 = vst.msk [vmem:[#allocation2 + $0x118] sm:$0xff] %vm2338, 0.0
        %2375 = vst.msk [vmem:[#allocation2 + $0x120] sm:$0xff] %vm2338, 0.0
        %2376 = vst.msk [vmem:[#allocation2 + $0x128] sm:$0xff] %vm2338, 0.0
        %2377 = vst.msk [vmem:[#allocation2 + $0x130] sm:$0xff] %vm2338, 0.0
        %2378 = vst.msk [vmem:[#allocation2 + $0x138] sm:$0xff] %vm2338, 0.0
        %2379 = vst.msk [vmem:[#allocation2 + $0x140] sm:$0xff] %vm2338, 0.0
        %2380 = vst.msk [vmem:[#allocation2 + $0x148] sm:$0xff] %vm2338, 0.0
        %2381 = vst.msk [vmem:[#allocation2 + $0x150] sm:$0xff] %vm2338, 0.0
        %2382 = vst.msk [vmem:[#allocation2 + $0x158] sm:$0xff] %vm2338, 0.0
        %2383 = vst.msk [vmem:[#allocation2 + $0x160] sm:$0xff] %vm2338, 0.0
        %2384 = vst.msk [vmem:[#allocation2 + $0x168] sm:$0xff] %vm2338, 0.0
        %2385 = vst.msk [vmem:[#allocation2 + $0x170] sm:$0xff] %vm2338, 0.0
        %2386 = vst.msk [vmem:[#allocation2 + $0x178] sm:$0xff] %vm2338, 0.0
        %2387 = vst.msk [vmem:[#allocation2 + $0x180] sm:$0xff] %vm2338, 0.0
        %2388 = vst.msk [vmem:[#allocation2 + $0x188] sm:$0xff] %vm2338, 0.0
        %2389 = vst.msk [vmem:[#allocation2 + $0x190] sm:$0xff] %vm2338, 0.0
        %2390 = vst.msk [vmem:[#allocation2 + $0x198] sm:$0xff] %vm2338, 0.0
        %2391 = vst.msk [vmem:[#allocation2 + $0x1a0] sm:$0xff] %vm2338, 0.0
        %2392 = vst.msk [vmem:[#allocation2 + $0x1a8] sm:$0xff] %vm2338, 0.0
        %2393 = vst.msk [vmem:[#allocation2 + $0x1b0] sm:$0xff] %vm2338, 0.0
        %2394 = vst.msk [vmem:[#allocation2 + $0x1b8] sm:$0xff] %vm2338, 0.0
        %2395 = vst.msk [vmem:[#allocation2 + $0x1c0] sm:$0xff] %vm2338, 0.0
        %2396 = vst.msk [vmem:[#allocation2 + $0x1c8] sm:$0xff] %vm2338, 0.0
        %2397 = vst.msk [vmem:[#allocation2 + $0x1d0] sm:$0xff] %vm2338, 0.0
        %2398 = vst.msk [vmem:[#allocation2 + $0x1d8] sm:$0xff] %vm2338, 0.0
        %2399 = vst.msk [vmem:[#allocation2 + $0x1e0] sm:$0xff] %vm2338, 0.0
        %2400 = vst.msk [vmem:[#allocation2 + $0x1e8] sm:$0xff] %vm2338, 0.0
        %2401 = vst.msk [vmem:[#allocation2 + $0x1f0] sm:$0xff] %vm2338, 0.0
        %2402 = vst.msk [vmem:[#allocation2 + $0x1f8] sm:$0xff] %vm2338, 0.0
        %2403 = vst.msk [vmem:[#allocation2 + $0x200] sm:$0xff] %vm2338, 0.0
        %2404 = vst.msk [vmem:[#allocation2 + $0x208] sm:$0xff] %vm2338, 0.0
        %2405 = vst.msk [vmem:[#allocation2 + $0x210] sm:$0xff] %vm2338, 0.0
        %2406 = vst.msk [vmem:[#allocation2 + $0x218] sm:$0xff] %vm2338, 0.0
        %2407 = vst.msk [vmem:[#allocation2 + $0x220] sm:$0xff] %vm2338, 0.0
        %2408 = vst.msk [vmem:[#allocation2 + $0x228] sm:$0xff] %vm2338, 0.0
        %2409 = vst.msk [vmem:[#allocation2 + $0x230] sm:$0xff] %vm2338, 0.0
        %2410 = vst.msk [vmem:[#allocation2 + $0x238] sm:$0xff] %vm2338, 0.0
        %2411 = vst.msk [vmem:[#allocation2 + $0x240] sm:$0xff] %vm2338, 0.0
        %2412 = vst.msk [vmem:[#allocation2 + $0x248] sm:$0xff] %vm2338, 0.0
        %2413 = vst.msk [vmem:[#allocation2 + $0x250] sm:$0xff] %vm2338, 0.0
        %2414 = vst.msk [vmem:[#allocation2 + $0x258] sm:$0xff] %vm2338, 0.0
        %2415 = vst.msk [vmem:[#allocation2 + $0x260] sm:$0xff] %vm2338, 0.0
        %2416 = vst.msk [vmem:[#allocation2 + $0x268] sm:$0xff] %vm2338, 0.0
        %2417 = vst.msk [vmem:[#allocation2 + $0x270] sm:$0xff] %vm2338, 0.0
        %2418 = vst.msk [vmem:[#allocation2 + $0x278] sm:$0xff] %vm2338, 0.0
        %2419 = vst.msk [vmem:[#allocation2 + $0x280] sm:$0xff] %vm2338, 0.0
        %2420 = vst.msk [vmem:[#allocation2 + $0x288] sm:$0xff] %vm2338, 0.0
        %2421 = vst.msk [vmem:[#allocation2 + $0x290] sm:$0xff] %vm2338, 0.0
        %2422 = vst.msk [vmem:[#allocation2 + $0x298] sm:$0xff] %vm2338, 0.0
        %2423 = vst.msk [vmem:[#allocation2 + $0x2a0] sm:$0xff] %vm2338, 0.0
        %2424 = vst.msk [vmem:[#allocation2 + $0x2a8] sm:$0xff] %vm2338, 0.0
        %2425 = vst.msk [vmem:[#allocation2 + $0x2b0] sm:$0xff] %vm2338, 0.0
        %2426 = vst.msk [vmem:[#allocation2 + $0x2b8] sm:$0xff] %vm2338, 0.0
        %2427 = vst.msk [vmem:[#allocation2 + $0x2c0] sm:$0xff] %vm2338, 0.0
        %2428 = vst.msk [vmem:[#allocation2 + $0x2c8] sm:$0xff] %vm2338, 0.0
        %2429 = vst.msk [vmem:[#allocation2 + $0x2d0] sm:$0xff] %vm2338, 0.0
        %2430 = vst.msk [vmem:[#allocation2 + $0x2d8] sm:$0xff] %vm2338, 0.0
        %2431 = vst.msk [vmem:[#allocation2 + $0x2e0] sm:$0xff] %vm2338, 0.0
        %2432 = vst.msk [vmem:[#allocation2 + $0x2e8] sm:$0xff] %vm2338, 0.0
        %2433 = vst.msk [vmem:[#allocation2 + $0x2f0] sm:$0xff] %vm2338, 0.0
        %2434 = vst.msk [vmem:[#allocation2 + $0x2f8] sm:$0xff] %vm2338, 0.0
        %2435 = vst.msk [vmem:[#allocation2 + $0x300] sm:$0xff] %vm2338, 0.0
        %2436 = vst.msk [vmem:[#allocation2 + $0x308] sm:$0xff] %vm2338, 0.0
        %2437 = vst.msk [vmem:[#allocation2 + $0x310] sm:$0xff] %vm2338, 0.0
        %2438 = vst.msk [vmem:[#allocation2 + $0x318] sm:$0xff] %vm2338, 0.0
        %s2439 = scalar_lea.vmem [#allocation2], 88
        %2440 = vst.msk [vmem:[%s2439] sm:$0xff] %vm2338, %v2274
        %2441 = vst.msk [vmem:[%s2439 + $0x8] sm:$0xff] %vm2338, %v2275
        %2442 = vst.msk [vmem:[%s2439 + $0x10] sm:$0xff] %vm2338, %v2276
        %2443 = vst.msk [vmem:[%s2439 + $0x18] sm:$0xff] %vm2338, %v2277
        %2444 = vst.msk [vmem:[%s2439 + $0x20] sm:$0xff] %vm2338, %v2278
        %2445 = vst.msk [vmem:[%s2439 + $0x28] sm:$0xff] %vm2338, %v2279
        %2446 = vst.msk [vmem:[%s2439 + $0x30] sm:$0xff] %vm2338, %v2280
        %2447 = vst.msk [vmem:[%s2439 + $0x38] sm:$0xff] %vm2338, %v2281
        %2448 = vst.msk [vmem:[%s2439 + $0x50] sm:$0xff] %vm2338, %v2282
        %2449 = vst.msk [vmem:[%s2439 + $0x58] sm:$0xff] %vm2338, %v2283
        %2450 = vst.msk [vmem:[%s2439 + $0x60] sm:$0xff] %vm2338, %v2284
        %2451 = vst.msk [vmem:[%s2439 + $0x68] sm:$0xff] %vm2338, %v2285
        %2452 = vst.msk [vmem:[%s2439 + $0x70] sm:$0xff] %vm2338, %v2286
        %2453 = vst.msk [vmem:[%s2439 + $0x78] sm:$0xff] %vm2338, %v2287
        %2454 = vst.msk [vmem:[%s2439 + $0x80] sm:$0xff] %vm2338, %v2288
        %2455 = vst.msk [vmem:[%s2439 + $0x88] sm:$0xff] %vm2338, %v2289
        %2456 = vst.msk [vmem:[%s2439 + $0xa0] sm:$0xff] %vm2338, %v2290
        %2457 = vst.msk [vmem:[%s2439 + $0xa8] sm:$0xff] %vm2338, %v2291
        %2458 = vst.msk [vmem:[%s2439 + $0xb0] sm:$0xff] %vm2338, %v2292
        %2459 = vst.msk [vmem:[%s2439 + $0xb8] sm:$0xff] %vm2338, %v2293
        %2460 = vst.msk [vmem:[%s2439 + $0xc0] sm:$0xff] %vm2338, %v2294
        %2461 = vst.msk [vmem:[%s2439 + $0xc8] sm:$0xff] %vm2338, %v2295
        %2462 = vst.msk [vmem:[%s2439 + $0xd0] sm:$0xff] %vm2338, %v2296
        %2463 = vst.msk [vmem:[%s2439 + $0xd8] sm:$0xff] %vm2338, %v2297
        %2464 = vst.msk [vmem:[%s2439 + $0xf0] sm:$0xff] %vm2338, %v2298
        %2465 = vst.msk [vmem:[%s2439 + $0xf8] sm:$0xff] %vm2338, %v2299
        %2466 = vst.msk [vmem:[%s2439 + $0x100] sm:$0xff] %vm2338, %v2300
        %2467 = vst.msk [vmem:[%s2439 + $0x108] sm:$0xff] %vm2338, %v2301
        %2468 = vst.msk [vmem:[%s2439 + $0x110] sm:$0xff] %vm2338, %v2302
        %2469 = vst.msk [vmem:[%s2439 + $0x118] sm:$0xff] %vm2338, %v2303
        %2470 = vst.msk [vmem:[%s2439 + $0x120] sm:$0xff] %vm2338, %v2304
        %2471 = vst.msk [vmem:[%s2439 + $0x128] sm:$0xff] %vm2338, %v2305
        %2472 = vst.msk [vmem:[%s2439 + $0x140] sm:$0xff] %vm2338, %v2306
        %2473 = vst.msk [vmem:[%s2439 + $0x148] sm:$0xff] %vm2338, %v2307
        %2474 = vst.msk [vmem:[%s2439 + $0x150] sm:$0xff] %vm2338, %v2308
        %2475 = vst.msk [vmem:[%s2439 + $0x158] sm:$0xff] %vm2338, %v2309
        %2476 = vst.msk [vmem:[%s2439 + $0x160] sm:$0xff] %vm2338, %v2310
        %2477 = vst.msk [vmem:[%s2439 + $0x168] sm:$0xff] %vm2338, %v2311
        %2478 = vst.msk [vmem:[%s2439 + $0x170] sm:$0xff] %vm2338, %v2312
        %2479 = vst.msk [vmem:[%s2439 + $0x178] sm:$0xff] %vm2338, %v2313
        %2480 = vst.msk [vmem:[%s2439 + $0x190] sm:$0xff] %vm2338, %v2314
        %2481 = vst.msk [vmem:[%s2439 + $0x198] sm:$0xff] %vm2338, %v2315
        %2482 = vst.msk [vmem:[%s2439 + $0x1a0] sm:$0xff] %vm2338, %v2316
        %2483 = vst.msk [vmem:[%s2439 + $0x1a8] sm:$0xff] %vm2338, %v2317
        %2484 = vst.msk [vmem:[%s2439 + $0x1b0] sm:$0xff] %vm2338, %v2318
        %2485 = vst.msk [vmem:[%s2439 + $0x1b8] sm:$0xff] %vm2338, %v2319
        %2486 = vst.msk [vmem:[%s2439 + $0x1c0] sm:$0xff] %vm2338, %v2320
        %2487 = vst.msk [vmem:[%s2439 + $0x1c8] sm:$0xff] %vm2338, %v2321
        %2488 = vst.msk [vmem:[%s2439 + $0x1e0] sm:$0xff] %vm2338, %v2322
        %2489 = vst.msk [vmem:[%s2439 + $0x1e8] sm:$0xff] %vm2338, %v2323
        %2490 = vst.msk [vmem:[%s2439 + $0x1f0] sm:$0xff] %vm2338, %v2324
        %2491 = vst.msk [vmem:[%s2439 + $0x1f8] sm:$0xff] %vm2338, %v2325
        %2492 = vst.msk [vmem:[%s2439 + $0x200] sm:$0xff] %vm2338, %v2326
        %2493 = vst.msk [vmem:[%s2439 + $0x208] sm:$0xff] %vm2338, %v2327
        %2494 = vst.msk [vmem:[%s2439 + $0x210] sm:$0xff] %vm2338, %v2328
        %2495 = vst.msk [vmem:[%s2439 + $0x218] sm:$0xff] %vm2338, %v2329
        %2496 = vst.msk [vmem:[%s2439 + $0x230] sm:$0xff] %vm2338, %v2330
        %2497 = vst.msk [vmem:[%s2439 + $0x238] sm:$0xff] %vm2338, %v2331
        %2498 = vst.msk [vmem:[%s2439 + $0x240] sm:$0xff] %vm2338, %v2332
        %2499 = vst.msk [vmem:[%s2439 + $0x248] sm:$0xff] %vm2338, %v2333
        %2500 = vst.msk [vmem:[%s2439 + $0x250] sm:$0xff] %vm2338, %v2334
        %2501 = vst.msk [vmem:[%s2439 + $0x258] sm:$0xff] %vm2338, %v2335
        %2502 = vst.msk [vmem:[%s2439 + $0x260] sm:$0xff] %vm2338, %v2336
        %2503 = vst.msk [vmem:[%s2439 + $0x268] sm:$0xff] %vm2338, %v2337
        %v2504 = vld [vmem:[#allocation2] sm:$0xff]
        %v2505 = vld [vmem:[#allocation2 + $0x8] sm:$0xff]
        %v2506 = vld [vmem:[#allocation2 + $0x10] sm:$0xff]
        %v2507 = vld [vmem:[#allocation2 + $0x18] sm:$0xff]
        %v2508 = vld [vmem:[#allocation2 + $0x20] sm:$0xff]
        %v2509 = vld [vmem:[#allocation2 + $0x28] sm:$0xff]
        %v2510 = vld [vmem:[#allocation2 + $0x30] sm:$0xff]
        %v2511 = vld [vmem:[#allocation2 + $0x38] sm:$0xff]
        %v2512 = vld [vmem:[#allocation2 + $0x50] sm:$0xff]
        %v2513 = vld [vmem:[#allocation2 + $0x58] sm:$0xff]
        %v2514 = vld [vmem:[#allocation2 + $0x60] sm:$0xff]
        %v2515 = vld [vmem:[#allocation2 + $0x68] sm:$0xff]
        %v2516 = vld [vmem:[#allocation2 + $0x70] sm:$0xff]
        %v2517 = vld [vmem:[#allocation2 + $0x78] sm:$0xff]
        %v2518 = vld [vmem:[#allocation2 + $0x80] sm:$0xff]
        %v2519 = vld [vmem:[#allocation2 + $0x88] sm:$0xff]
        %v2520 = vld [vmem:[#allocation2 + $0xa0] sm:$0xff]
        %v2521 = vld [vmem:[#allocation2 + $0xa8] sm:$0xff]
        %v2522 = vld [vmem:[#allocation2 + $0xb0] sm:$0xff]
        %v2523 = vld [vmem:[#allocation2 + $0xb8] sm:$0xff]
        %v2524 = vld [vmem:[#allocation2 + $0xc0] sm:$0xff]
        %v2525 = vld [vmem:[#allocation2 + $0xc8] sm:$0xff]
        %v2526 = vld [vmem:[#allocation2 + $0xd0] sm:$0xff]
        %v2527 = vld [vmem:[#allocation2 + $0xd8] sm:$0xff]
        %v2528 = vld [vmem:[#allocation2 + $0xf0] sm:$0xff]
        %v2529 = vld [vmem:[#allocation2 + $0xf8] sm:$0xff]
        %v2530 = vld [vmem:[#allocation2 + $0x100] sm:$0xff]
        %v2531 = vld [vmem:[#allocation2 + $0x108] sm:$0xff]
        %v2532 = vld [vmem:[#allocation2 + $0x110] sm:$0xff]
        %v2533 = vld [vmem:[#allocation2 + $0x118] sm:$0xff]
        %v2534 = vld [vmem:[#allocation2 + $0x120] sm:$0xff]
        %v2535 = vld [vmem:[#allocation2 + $0x128] sm:$0xff]
        %v2536 = vld [vmem:[#allocation2 + $0x140] sm:$0xff]
        %v2537 = vld [vmem:[#allocation2 + $0x148] sm:$0xff]
        %v2538 = vld [vmem:[#allocation2 + $0x150] sm:$0xff]
        %v2539 = vld [vmem:[#allocation2 + $0x158] sm:$0xff]
        %v2540 = vld [vmem:[#allocation2 + $0x160] sm:$0xff]
        %v2541 = vld [vmem:[#allocation2 + $0x168] sm:$0xff]
        %v2542 = vld [vmem:[#allocation2 + $0x170] sm:$0xff]
        %v2543 = vld [vmem:[#allocation2 + $0x178] sm:$0xff]
        %v2544 = vld [vmem:[#allocation2 + $0x190] sm:$0xff]
        %v2545 = vld [vmem:[#allocation2 + $0x198] sm:$0xff]
        %v2546 = vld [vmem:[#allocation2 + $0x1a0] sm:$0xff]
        %v2547 = vld [vmem:[#allocation2 + $0x1a8] sm:$0xff]
        %v2548 = vld [vmem:[#allocation2 + $0x1b0] sm:$0xff]
        %v2549 = vld [vmem:[#allocation2 + $0x1b8] sm:$0xff]
        %v2550 = vld [vmem:[#allocation2 + $0x1c0] sm:$0xff]
        %v2551 = vld [vmem:[#allocation2 + $0x1c8] sm:$0xff]
        %v2552 = vld [vmem:[#allocation2 + $0x1e0] sm:$0xff]
        %v2553 = vld [vmem:[#allocation2 + $0x1e8] sm:$0xff]
        %v2554 = vld [vmem:[#allocation2 + $0x1f0] sm:$0xff]
        %v2555 = vld [vmem:[#allocation2 + $0x1f8] sm:$0xff]
        %v2556 = vld [vmem:[#allocation2 + $0x200] sm:$0xff]
        %v2557 = vld [vmem:[#allocation2 + $0x208] sm:$0xff]
        %v2558 = vld [vmem:[#allocation2 + $0x210] sm:$0xff]
        %v2559 = vld [vmem:[#allocation2 + $0x218] sm:$0xff]
        %v2560 = vld [vmem:[#allocation2 + $0x230] sm:$0xff]
        %v2561 = vld [vmem:[#allocation2 + $0x238] sm:$0xff]
        %v2562 = vld [vmem:[#allocation2 + $0x240] sm:$0xff]
        %v2563 = vld [vmem:[#allocation2 + $0x248] sm:$0xff]
        %v2564 = vld [vmem:[#allocation2 + $0x250] sm:$0xff]
        %v2565 = vld [vmem:[#allocation2 + $0x258] sm:$0xff]
        %v2566 = vld [vmem:[#allocation2 + $0x260] sm:$0xff]
        %v2567 = vld [vmem:[#allocation2 + $0x268] sm:$0xff]
        %v2568 = vld [vmem:[%s5] sm:$0xff]
        %v2569 = vld [vmem:[%s5 + $0x8] sm:$0xff]
        %v2570 = vld [vmem:[%s5 + $0x10] sm:$0xff]
        %v2571 = vld [vmem:[%s5 + $0x18] sm:$0xff]
        %v2572 = vld [vmem:[%s5 + $0x20] sm:$0xff]
        %v2573 = vld [vmem:[%s5 + $0x28] sm:$0xff]
        %s2574 = scalar_lea.vmem [#allocation2], 8
        %v2575 = vld [vmem:[%s2574] sm:$0xff]
        %v2576 = vld [vmem:[%s2574 + $0x8] sm:$0xff]
        %v2577 = vld [vmem:[%s2574 + $0x10] sm:$0xff]
        %v2578 = vld [vmem:[%s2574 + $0x18] sm:$0xff]
        %v2579 = vld [vmem:[%s2574 + $0x20] sm:$0xff]
        %v2580 = vld [vmem:[%s2574 + $0x28] sm:$0xff]
        %v2581 = vld [vmem:[%s2574 + $0x30] sm:$0xff]
        %v2582 = vld [vmem:[%s2574 + $0x38] sm:$0xff]
        %v2583 = vld [vmem:[%s2574 + $0x50] sm:$0xff]
        %v2584 = vld [vmem:[%s2574 + $0x58] sm:$0xff]
        %v2585 = vld [vmem:[%s2574 + $0x60] sm:$0xff]
        %v2586 = vld [vmem:[%s2574 + $0x68] sm:$0xff]
        %v2587 = vld [vmem:[%s2574 + $0x70] sm:$0xff]
        %v2588 = vld [vmem:[%s2574 + $0x78] sm:$0xff]
        %v2589 = vld [vmem:[%s2574 + $0x80] sm:$0xff]
        %v2590 = vld [vmem:[%s2574 + $0x88] sm:$0xff]
        %v2591 = vld [vmem:[%s2574 + $0xa0] sm:$0xff]
        %v2592 = vld [vmem:[%s2574 + $0xa8] sm:$0xff]
        %v2593 = vld [vmem:[%s2574 + $0xb0] sm:$0xff]
        %v2594 = vld [vmem:[%s2574 + $0xb8] sm:$0xff]
        %v2595 = vld [vmem:[%s2574 + $0xc0] sm:$0xff]
        %v2596 = vld [vmem:[%s2574 + $0xc8] sm:$0xff]
        %v2597 = vld [vmem:[%s2574 + $0xd0] sm:$0xff]
        %v2598 = vld [vmem:[%s2574 + $0xd8] sm:$0xff]
        %v2599 = vld [vmem:[%s2574 + $0xf0] sm:$0xff]
        %v2600 = vld [vmem:[%s2574 + $0xf8] sm:$0xff]
        %v2601 = vld [vmem:[%s2574 + $0x100] sm:$0xff]
        %v2602 = vld [vmem:[%s2574 + $0x108] sm:$0xff]
        %v2603 = vld [vmem:[%s2574 + $0x110] sm:$0xff]
        %v2604 = vld [vmem:[%s2574 + $0x118] sm:$0xff]
        %v2605 = vld [vmem:[%s2574 + $0x120] sm:$0xff]
        %v2606 = vld [vmem:[%s2574 + $0x128] sm:$0xff]
        %v2607 = vld [vmem:[%s2574 + $0x140] sm:$0xff]
        %v2608 = vld [vmem:[%s2574 + $0x148] sm:$0xff]
        %v2609 = vld [vmem:[%s2574 + $0x150] sm:$0xff]
        %v2610 = vld [vmem:[%s2574 + $0x158] sm:$0xff]
        %v2611 = vld [vmem:[%s2574 + $0x160] sm:$0xff]
        %v2612 = vld [vmem:[%s2574 + $0x168] sm:$0xff]
        %v2613 = vld [vmem:[%s2574 + $0x170] sm:$0xff]
        %v2614 = vld [vmem:[%s2574 + $0x178] sm:$0xff]
        %v2615 = vld [vmem:[%s2574 + $0x190] sm:$0xff]
        %v2616 = vld [vmem:[%s2574 + $0x198] sm:$0xff]
        %v2617 = vld [vmem:[%s2574 + $0x1a0] sm:$0xff]
        %v2618 = vld [vmem:[%s2574 + $0x1a8] sm:$0xff]
        %v2619 = vld [vmem:[%s2574 + $0x1b0] sm:$0xff]
        %v2620 = vld [vmem:[%s2574 + $0x1b8] sm:$0xff]
        %v2621 = vld [vmem:[%s2574 + $0x1c0] sm:$0xff]
        %v2622 = vld [vmem:[%s2574 + $0x1c8] sm:$0xff]
        %v2623 = vld [vmem:[%s2574 + $0x1e0] sm:$0xff]
        %v2624 = vld [vmem:[%s2574 + $0x1e8] sm:$0xff]
        %v2625 = vld [vmem:[%s2574 + $0x1f0] sm:$0xff]
        %v2626 = vld [vmem:[%s2574 + $0x1f8] sm:$0xff]
        %v2627 = vld [vmem:[%s2574 + $0x200] sm:$0xff]
        %v2628 = vld [vmem:[%s2574 + $0x208] sm:$0xff]
        %v2629 = vld [vmem:[%s2574 + $0x210] sm:$0xff]
        %v2630 = vld [vmem:[%s2574 + $0x218] sm:$0xff]
        %v2631 = vld [vmem:[%s2574 + $0x230] sm:$0xff]
        %v2632 = vld [vmem:[%s2574 + $0x238] sm:$0xff]
        %v2633 = vld [vmem:[%s2574 + $0x240] sm:$0xff]
        %v2634 = vld [vmem:[%s2574 + $0x248] sm:$0xff]
        %v2635 = vld [vmem:[%s2574 + $0x250] sm:$0xff]
        %v2636 = vld [vmem:[%s2574 + $0x258] sm:$0xff]
        %v2637 = vld [vmem:[%s2574 + $0x260] sm:$0xff]
        %v2638 = vld [vmem:[%s2574 + $0x268] sm:$0xff]
        %s2639 = scalar_lea.vmem %s5, 48
        %v2640 = vld [vmem:[%s2639] sm:$0xff]
        %v2641 = vld [vmem:[%s2639 + $0x8] sm:$0xff]
        %v2642 = vld [vmem:[%s2639 + $0x10] sm:$0xff]
        %v2643 = vld [vmem:[%s2639 + $0x18] sm:$0xff]
        %v2644 = vld [vmem:[%s2639 + $0x20] sm:$0xff]
        %v2645 = vld [vmem:[%s2639 + $0x28] sm:$0xff]
        %v2647 = vsel %vm2338, %v2575, 0
        %v2650 = vsel %vm2338, %v2576, 0
        %v2653 = vsel %vm2338, %v2577, 0
        %v2656 = vsel %vm2338, %v2578, 0
        %v2659 = vsel %vm2338, %v2579, 0
        %v2662 = vsel %vm2338, %v2580, 0
        %v2665 = vsel %vm2338, %v2581, 0
        %v2668 = vsel %vm2338, %v2582, 0
        %v2671 = vsel %vm2338, %v2583, 0
        %v2674 = vsel %vm2338, %v2584, 0
        %v2677 = vsel %vm2338, %v2585, 0
        %v2680 = vsel %vm2338, %v2586, 0
        %v2683 = vsel %vm2338, %v2587, 0
        %v2686 = vsel %vm2338, %v2588, 0
        %v2689 = vsel %vm2338, %v2589, 0
        %v2692 = vsel %vm2338, %v2590, 0
        %v2695 = vsel %vm2338, %v2591, 0
        %v2698 = vsel %vm2338, %v2592, 0
        %v2701 = vsel %vm2338, %v2593, 0
        %v2704 = vsel %vm2338, %v2594, 0
        %v2707 = vsel %vm2338, %v2595, 0
        %v2710 = vsel %vm2338, %v2596, 0
        %v2713 = vsel %vm2338, %v2597, 0
        %v2716 = vsel %vm2338, %v2598, 0
        %v2719 = vsel %vm2338, %v2599, 0
        %v2722 = vsel %vm2338, %v2600, 0
        %v2725 = vsel %vm2338, %v2601, 0
        %v2728 = vsel %vm2338, %v2602, 0
        %v2731 = vsel %vm2338, %v2603, 0
        %v2734 = vsel %vm2338, %v2604, 0
        %v2737 = vsel %vm2338, %v2605, 0
        %v2740 = vsel %vm2338, %v2606, 0
        %v2743 = vsel %vm2338, %v2607, 0
        %v2746 = vsel %vm2338, %v2608, 0
        %v2749 = vsel %vm2338, %v2609, 0
        %v2752 = vsel %vm2338, %v2610, 0
        %v2755 = vsel %vm2338, %v2611, 0
        %v2758 = vsel %vm2338, %v2612, 0
        %v2761 = vsel %vm2338, %v2613, 0
        %v2764 = vsel %vm2338, %v2614, 0
        %v2767 = vsel %vm2338, %v2615, 0
        %v2770 = vsel %vm2338, %v2616, 0
        %v2773 = vsel %vm2338, %v2617, 0
        %v2776 = vsel %vm2338, %v2618, 0
        %v2779 = vsel %vm2338, %v2619, 0
        %v2782 = vsel %vm2338, %v2620, 0
        %v2785 = vsel %vm2338, %v2621, 0
        %v2788 = vsel %vm2338, %v2622, 0
        %v2791 = vsel %vm2338, %v2623, 0
        %v2794 = vsel %vm2338, %v2624, 0
        %v2797 = vsel %vm2338, %v2625, 0
        %v2800 = vsel %vm2338, %v2626, 0
        %v2803 = vsel %vm2338, %v2627, 0
        %v2806 = vsel %vm2338, %v2628, 0
        %v2809 = vsel %vm2338, %v2629, 0
        %v2812 = vsel %vm2338, %v2630, 0
        %v2815 = vsel %vm2338, %v2631, 0
        %v2818 = vsel %vm2338, %v2632, 0
        %v2821 = vsel %vm2338, %v2633, 0
        %v2824 = vsel %vm2338, %v2634, 0
        %v2827 = vsel %vm2338, %v2635, 0
        %v2830 = vsel %vm2338, %v2636, 0
        %v2833 = vsel %vm2338, %v2637, 0
        %v2836 = vsel %vm2338, %v2638, 0
        %2838 = vmatpush.msra.mxu0 0.0
        %2839 = vmatpush.msra.mxu0 0.0
        %2840 = vmatpush.msra.mxu0 0.0
        %2841 = vmatpush.msra.mxu0 0.0
        %2842 = vmatpush.msra.mxu0 0.0
        %2843 = vmatpush.msra.mxu0 0.0
        %2844 = vmatpush.msra.mxu0 0.0
        %2845 = vmatpush.msra.mxu0 0.0
        %2846 = vmatpush.msra.mxu0 0.0
        %2847 = vmatpush.msra.mxu0 0.0
        %2848 = vmatpush.msra.mxu0 %v2645
        %2849 = vmatpush.msra.mxu0 %v2644
        %2850 = vmatpush.msra.mxu0 %v2643
        %2851 = vmatpush.msra.mxu0 %v2642
        %2852 = vmatpush.msra.mxu0 %v2641
        %2853 = vmatpush.msra.mxu0 %v2640
        %2854 = vmatmul.f32.gmra.mxu0 %v2647
        %v2855 = vpop.f32.mrf.mxu0
        %v2856 = vadd.f32 0.0, %v2855
        %2857 = vmatmul.f32.gmra.mxu0 %v2650
        %v2858 = vpop.f32.mrf.mxu0
        %v2859 = vadd.f32 0.0, %v2858
        %2860 = vmatmul.f32.gmra.mxu0 %v2653
        %v2861 = vpop.f32.mrf.mxu0
        %v2862 = vadd.f32 0.0, %v2861
        %2863 = vmatmul.f32.gmra.mxu0 %v2656
        %v2864 = vpop.f32.mrf.mxu0
        %v2865 = vadd.f32 0.0, %v2864
        %2866 = vmatmul.f32.gmra.mxu0 %v2659
        %v2867 = vpop.f32.mrf.mxu0
        %v2868 = vadd.f32 0.0, %v2867
        %2869 = vmatmul.f32.gmra.mxu0 %v2662
        %v2870 = vpop.f32.mrf.mxu0
        %v2871 = vadd.f32 0.0, %v2870
        %2872 = vmatmul.f32.gmra.mxu0 %v2665
        %v2873 = vpop.f32.mrf.mxu0
        %v2874 = vadd.f32 0.0, %v2873
        %2875 = vmatmul.f32.gmra.mxu0 %v2668
        %v2876 = vpop.f32.mrf.mxu0
        %v2877 = vadd.f32 0.0, %v2876
        %2878 = vmatmul.f32.gmra.mxu0 %v2671
        %v2879 = vpop.f32.mrf.mxu0
        %v2880 = vadd.f32 0.0, %v2879
        %2881 = vmatmul.f32.gmra.mxu0 %v2674
        %v2882 = vpop.f32.mrf.mxu0
        %v2883 = vadd.f32 0.0, %v2882
        %2884 = vmatmul.f32.gmra.mxu0 %v2677
        %v2885 = vpop.f32.mrf.mxu0
        %v2886 = vadd.f32 0.0, %v2885
        %2887 = vmatmul.f32.gmra.mxu0 %v2680
        %v2888 = vpop.f32.mrf.mxu0
        %v2889 = vadd.f32 0.0, %v2888
        %2890 = vmatmul.f32.gmra.mxu0 %v2683
        %v2891 = vpop.f32.mrf.mxu0
        %v2892 = vadd.f32 0.0, %v2891
        %2893 = vmatmul.f32.gmra.mxu0 %v2686
        %v2894 = vpop.f32.mrf.mxu0
        %v2895 = vadd.f32 0.0, %v2894
        %2896 = vmatmul.f32.gmra.mxu0 %v2689
        %v2897 = vpop.f32.mrf.mxu0
        %v2898 = vadd.f32 0.0, %v2897
        %2899 = vmatmul.f32.gmra.mxu0 %v2692
        %v2900 = vpop.f32.mrf.mxu0
        %v2901 = vadd.f32 0.0, %v2900
        %2902 = vmatmul.f32.gmra.mxu0 %v2695
        %v2903 = vpop.f32.mrf.mxu0
        %v2904 = vadd.f32 0.0, %v2903
        %2905 = vmatmul.f32.gmra.mxu0 %v2698
        %v2906 = vpop.f32.mrf.mxu0
        %v2907 = vadd.f32 0.0, %v2906
        %2908 = vmatmul.f32.gmra.mxu0 %v2701
        %v2909 = vpop.f32.mrf.mxu0
        %v2910 = vadd.f32 0.0, %v2909
        %2911 = vmatmul.f32.gmra.mxu0 %v2704
        %v2912 = vpop.f32.mrf.mxu0
        %v2913 = vadd.f32 0.0, %v2912
        %2914 = vmatmul.f32.gmra.mxu0 %v2707
        %v2915 = vpop.f32.mrf.mxu0
        %v2916 = vadd.f32 0.0, %v2915
        %2917 = vmatmul.f32.gmra.mxu0 %v2710
        %v2918 = vpop.f32.mrf.mxu0
        %v2919 = vadd.f32 0.0, %v2918
        %2920 = vmatmul.f32.gmra.mxu0 %v2713
        %v2921 = vpop.f32.mrf.mxu0
        %v2922 = vadd.f32 0.0, %v2921
        %2923 = vmatmul.f32.gmra.mxu0 %v2716
        %v2924 = vpop.f32.mrf.mxu0
        %v2925 = vadd.f32 0.0, %v2924
        %2926 = vmatmul.f32.gmra.mxu0 %v2719
        %v2927 = vpop.f32.mrf.mxu0
        %v2928 = vadd.f32 0.0, %v2927
        %2929 = vmatmul.f32.gmra.mxu0 %v2722
        %v2930 = vpop.f32.mrf.mxu0
        %v2931 = vadd.f32 0.0, %v2930
        %2932 = vmatmul.f32.gmra.mxu0 %v2725
        %v2933 = vpop.f32.mrf.mxu0
        %v2934 = vadd.f32 0.0, %v2933
        %2935 = vmatmul.f32.gmra.mxu0 %v2728
        %v2936 = vpop.f32.mrf.mxu0
        %v2937 = vadd.f32 0.0, %v2936
        %2938 = vmatmul.f32.gmra.mxu0 %v2731
        %v2939 = vpop.f32.mrf.mxu0
        %v2940 = vadd.f32 0.0, %v2939
        %2941 = vmatmul.f32.gmra.mxu0 %v2734
        %v2942 = vpop.f32.mrf.mxu0
        %v2943 = vadd.f32 0.0, %v2942
        %2944 = vmatmul.f32.gmra.mxu0 %v2737
        %v2945 = vpop.f32.mrf.mxu0
        %v2946 = vadd.f32 0.0, %v2945
        %2947 = vmatmul.f32.gmra.mxu0 %v2740
        %v2948 = vpop.f32.mrf.mxu0
        %v2949 = vadd.f32 0.0, %v2948
        %2950 = vmatmul.f32.gmra.mxu0 %v2743
        %v2951 = vpop.f32.mrf.mxu0
        %v2952 = vadd.f32 0.0, %v2951
        %2953 = vmatmul.f32.gmra.mxu0 %v2746
        %v2954 = vpop.f32.mrf.mxu0
        %v2955 = vadd.f32 0.0, %v2954
        %2956 = vmatmul.f32.gmra.mxu0 %v2749
        %v2957 = vpop.f32.mrf.mxu0
        %v2958 = vadd.f32 0.0, %v2957
        %2959 = vmatmul.f32.gmra.mxu0 %v2752
        %v2960 = vpop.f32.mrf.mxu0
        %v2961 = vadd.f32 0.0, %v2960
        %2962 = vmatmul.f32.gmra.mxu0 %v2755
        %v2963 = vpop.f32.mrf.mxu0
        %v2964 = vadd.f32 0.0, %v2963
        %2965 = vmatmul.f32.gmra.mxu0 %v2758
        %v2966 = vpop.f32.mrf.mxu0
        %v2967 = vadd.f32 0.0, %v2966
        %2968 = vmatmul.f32.gmra.mxu0 %v2761
        %v2969 = vpop.f32.mrf.mxu0
        %v2970 = vadd.f32 0.0, %v2969
        %2971 = vmatmul.f32.gmra.mxu0 %v2764
        %v2972 = vpop.f32.mrf.mxu0
        %v2973 = vadd.f32 0.0, %v2972
        %2974 = vmatmul.f32.gmra.mxu0 %v2767
        %v2975 = vpop.f32.mrf.mxu0
        %v2976 = vadd.f32 0.0, %v2975
        %2977 = vmatmul.f32.gmra.mxu0 %v2770
        %v2978 = vpop.f32.mrf.mxu0
        %v2979 = vadd.f32 0.0, %v2978
        %2980 = vmatmul.f32.gmra.mxu0 %v2773
        %v2981 = vpop.f32.mrf.mxu0
        %v2982 = vadd.f32 0.0, %v2981
        %2983 = vmatmul.f32.gmra.mxu0 %v2776
        %v2984 = vpop.f32.mrf.mxu0
        %v2985 = vadd.f32 0.0, %v2984
        %2986 = vmatmul.f32.gmra.mxu0 %v2779
        %v2987 = vpop.f32.mrf.mxu0
        %v2988 = vadd.f32 0.0, %v2987
        %2989 = vmatmul.f32.gmra.mxu0 %v2782
        %v2990 = vpop.f32.mrf.mxu0
        %v2991 = vadd.f32 0.0, %v2990
        %2992 = vmatmul.f32.gmra.mxu0 %v2785
        %v2993 = vpop.f32.mrf.mxu0
        %v2994 = vadd.f32 0.0, %v2993
        %2995 = vmatmul.f32.gmra.mxu0 %v2788
        %v2996 = vpop.f32.mrf.mxu0
        %v2997 = vadd.f32 0.0, %v2996
        %2998 = vmatmul.f32.gmra.mxu0 %v2791
        %v2999 = vpop.f32.mrf.mxu0
        %v3000 = vadd.f32 0.0, %v2999
        %3001 = vmatmul.f32.gmra.mxu0 %v2794
        %v3002 = vpop.f32.mrf.mxu0
        %v3003 = vadd.f32 0.0, %v3002
        %3004 = vmatmul.f32.gmra.mxu0 %v2797
        %v3005 = vpop.f32.mrf.mxu0
        %v3006 = vadd.f32 0.0, %v3005
        %3007 = vmatmul.f32.gmra.mxu0 %v2800
        %v3008 = vpop.f32.mrf.mxu0
        %v3009 = vadd.f32 0.0, %v3008
        %3010 = vmatmul.f32.gmra.mxu0 %v2803
        %v3011 = vpop.f32.mrf.mxu0
        %v3012 = vadd.f32 0.0, %v3011
        %3013 = vmatmul.f32.gmra.mxu0 %v2806
        %v3014 = vpop.f32.mrf.mxu0
        %v3015 = vadd.f32 0.0, %v3014
        %3016 = vmatmul.f32.gmra.mxu0 %v2809
        %v3017 = vpop.f32.mrf.mxu0
        %v3018 = vadd.f32 0.0, %v3017
        %3019 = vmatmul.f32.gmra.mxu0 %v2812
        %v3020 = vpop.f32.mrf.mxu0
        %v3021 = vadd.f32 0.0, %v3020
        %3022 = vmatmul.f32.gmra.mxu0 %v2815
        %v3023 = vpop.f32.mrf.mxu0
        %v3024 = vadd.f32 0.0, %v3023
        %3025 = vmatmul.f32.gmra.mxu0 %v2818
        %v3026 = vpop.f32.mrf.mxu0
        %v3027 = vadd.f32 0.0, %v3026
        %3028 = vmatmul.f32.gmra.mxu0 %v2821
        %v3029 = vpop.f32.mrf.mxu0
        %v3030 = vadd.f32 0.0, %v3029
        %3031 = vmatmul.f32.gmra.mxu0 %v2824
        %v3032 = vpop.f32.mrf.mxu0
        %v3033 = vadd.f32 0.0, %v3032
        %3034 = vmatmul.f32.gmra.mxu0 %v2827
        %v3035 = vpop.f32.mrf.mxu0
        %v3036 = vadd.f32 0.0, %v3035
        %3037 = vmatmul.f32.gmra.mxu0 %v2830
        %v3038 = vpop.f32.mrf.mxu0
        %v3039 = vadd.f32 0.0, %v3038
        %3040 = vmatmul.f32.gmra.mxu0 %v2833
        %v3041 = vpop.f32.mrf.mxu0
        %v3042 = vadd.f32 0.0, %v3041
        %3043 = vmatmul.f32.gmra.mxu0 %v2836
        %v3044 = vpop.f32.mrf.mxu0
        %v3045 = vadd.f32 0.0, %v3044
        %3046 = vdwg.mxu0
        %v3048 = vsel %vm2338, %v2504, 0
        %v3051 = vsel %vm2338, %v2505, 0
        %v3054 = vsel %vm2338, %v2506, 0
        %v3057 = vsel %vm2338, %v2507, 0
        %v3060 = vsel %vm2338, %v2508, 0
        %v3063 = vsel %vm2338, %v2509, 0
        %v3066 = vsel %vm2338, %v2510, 0
        %v3069 = vsel %vm2338, %v2511, 0
        %v3072 = vsel %vm2338, %v2512, 0
        %v3075 = vsel %vm2338, %v2513, 0
        %v3078 = vsel %vm2338, %v2514, 0
        %v3081 = vsel %vm2338, %v2515, 0
        %v3084 = vsel %vm2338, %v2516, 0
        %v3087 = vsel %vm2338, %v2517, 0
        %v3090 = vsel %vm2338, %v2518, 0
        %v3093 = vsel %vm2338, %v2519, 0
        %v3096 = vsel %vm2338, %v2520, 0
        %v3099 = vsel %vm2338, %v2521, 0
        %v3102 = vsel %vm2338, %v2522, 0
        %v3105 = vsel %vm2338, %v2523, 0
        %v3108 = vsel %vm2338, %v2524, 0
        %v3111 = vsel %vm2338, %v2525, 0
        %v3114 = vsel %vm2338, %v2526, 0
        %v3117 = vsel %vm2338, %v2527, 0
        %v3120 = vsel %vm2338, %v2528, 0
        %v3123 = vsel %vm2338, %v2529, 0
        %v3126 = vsel %vm2338, %v2530, 0
        %v3129 = vsel %vm2338, %v2531, 0
        %v3132 = vsel %vm2338, %v2532, 0
        %v3135 = vsel %vm2338, %v2533, 0
        %v3138 = vsel %vm2338, %v2534, 0
        %v3141 = vsel %vm2338, %v2535, 0
        %v3144 = vsel %vm2338, %v2536, 0
        %v3147 = vsel %vm2338, %v2537, 0
        %v3150 = vsel %vm2338, %v2538, 0
        %v3153 = vsel %vm2338, %v2539, 0
        %v3156 = vsel %vm2338, %v2540, 0
        %v3159 = vsel %vm2338, %v2541, 0
        %v3162 = vsel %vm2338, %v2542, 0
        %v3165 = vsel %vm2338, %v2543, 0
        %v3168 = vsel %vm2338, %v2544, 0
        %v3171 = vsel %vm2338, %v2545, 0
        %v3174 = vsel %vm2338, %v2546, 0
        %v3177 = vsel %vm2338, %v2547, 0
        %v3180 = vsel %vm2338, %v2548, 0
        %v3183 = vsel %vm2338, %v2549, 0
        %v3186 = vsel %vm2338, %v2550, 0
        %v3189 = vsel %vm2338, %v2551, 0
        %v3192 = vsel %vm2338, %v2552, 0
        %v3195 = vsel %vm2338, %v2553, 0
        %v3198 = vsel %vm2338, %v2554, 0
        %v3201 = vsel %vm2338, %v2555, 0
        %v3204 = vsel %vm2338, %v2556, 0
        %v3207 = vsel %vm2338, %v2557, 0
        %v3210 = vsel %vm2338, %v2558, 0
        %v3213 = vsel %vm2338, %v2559, 0
        %v3216 = vsel %vm2338, %v2560, 0
        %v3219 = vsel %vm2338, %v2561, 0
        %v3222 = vsel %vm2338, %v2562, 0
        %v3225 = vsel %vm2338, %v2563, 0
        %v3228 = vsel %vm2338, %v2564, 0
        %v3231 = vsel %vm2338, %v2565, 0
        %v3234 = vsel %vm2338, %v2566, 0
        %v3237 = vsel %vm2338, %v2567, 0
        %3239 = vmatpush.msra.mxu0 0.0
        %3240 = vmatpush.msra.mxu0 0.0
        %3241 = vmatpush.msra.mxu0 0.0
        %3242 = vmatpush.msra.mxu0 0.0
        %3243 = vmatpush.msra.mxu0 0.0
        %3244 = vmatpush.msra.mxu0 0.0
        %3245 = vmatpush.msra.mxu0 0.0
        %3246 = vmatpush.msra.mxu0 0.0
        %3247 = vmatpush.msra.mxu0 0.0
        %3248 = vmatpush.msra.mxu0 0.0
        %3249 = vmatpush.msra.mxu0 %v2573
        %3250 = vmatpush.msra.mxu0 %v2572
        %3251 = vmatpush.msra.mxu0 %v2571
        %3252 = vmatpush.msra.mxu0 %v2570
        %3253 = vmatpush.msra.mxu0 %v2569
        %3254 = vmatpush.msra.mxu0 %v2568
        %3255 = vmatmul.f32.gmra.mxu0 %v3048
        %v3256 = vpop.f32.mrf.mxu0
        %v3257 = vadd.f32 %v2856, %v3256
        %3258 = vmatmul.f32.gmra.mxu0 %v3051
        %v3259 = vpop.f32.mrf.mxu0
        %v3260 = vadd.f32 %v2859, %v3259
        %3261 = vmatmul.f32.gmra.mxu0 %v3054
        %v3262 = vpop.f32.mrf.mxu0
        %v3263 = vadd.f32 %v2862, %v3262
        %3264 = vmatmul.f32.gmra.mxu0 %v3057
        %v3265 = vpop.f32.mrf.mxu0
        %v3266 = vadd.f32 %v2865, %v3265
        %3267 = vmatmul.f32.gmra.mxu0 %v3060
        %v3268 = vpop.f32.mrf.mxu0
        %v3269 = vadd.f32 %v2868, %v3268
        %3270 = vmatmul.f32.gmra.mxu0 %v3063
        %v3271 = vpop.f32.mrf.mxu0
        %v3272 = vadd.f32 %v2871, %v3271
        %3273 = vmatmul.f32.gmra.mxu0 %v3066
        %v3274 = vpop.f32.mrf.mxu0
        %v3275 = vadd.f32 %v2874, %v3274
        %3276 = vmatmul.f32.gmra.mxu0 %v3069
        %v3277 = vpop.f32.mrf.mxu0
        %v3278 = vadd.f32 %v2877, %v3277
        %3279 = vmatmul.f32.gmra.mxu0 %v3072
        %v3280 = vpop.f32.mrf.mxu0
        %v3281 = vadd.f32 %v2880, %v3280
        %3282 = vmatmul.f32.gmra.mxu0 %v3075
        %v3283 = vpop.f32.mrf.mxu0
        %v3284 = vadd.f32 %v2883, %v3283
        %3285 = vmatmul.f32.gmra.mxu0 %v3078
        %v3286 = vpop.f32.mrf.mxu0
        %v3287 = vadd.f32 %v2886, %v3286
        %3288 = vmatmul.f32.gmra.mxu0 %v3081
        %v3289 = vpop.f32.mrf.mxu0
        %v3290 = vadd.f32 %v2889, %v3289
        %3291 = vmatmul.f32.gmra.mxu0 %v3084
        %v3292 = vpop.f32.mrf.mxu0
        %v3293 = vadd.f32 %v2892, %v3292
        %3294 = vmatmul.f32.gmra.mxu0 %v3087
        %v3295 = vpop.f32.mrf.mxu0
        %v3296 = vadd.f32 %v2895, %v3295
        %3297 = vmatmul.f32.gmra.mxu0 %v3090
        %v3298 = vpop.f32.mrf.mxu0
        %v3299 = vadd.f32 %v2898, %v3298
        %3300 = vmatmul.f32.gmra.mxu0 %v3093
        %v3301 = vpop.f32.mrf.mxu0
        %v3302 = vadd.f32 %v2901, %v3301
        %3303 = vmatmul.f32.gmra.mxu0 %v3096
        %v3304 = vpop.f32.mrf.mxu0
        %v3305 = vadd.f32 %v2904, %v3304
        %3306 = vmatmul.f32.gmra.mxu0 %v3099
        %v3307 = vpop.f32.mrf.mxu0
        %v3308 = vadd.f32 %v2907, %v3307
        %3309 = vmatmul.f32.gmra.mxu0 %v3102
        %v3310 = vpop.f32.mrf.mxu0
        %v3311 = vadd.f32 %v2910, %v3310
        %3312 = vmatmul.f32.gmra.mxu0 %v3105
        %v3313 = vpop.f32.mrf.mxu0
        %v3314 = vadd.f32 %v2913, %v3313
        %3315 = vmatmul.f32.gmra.mxu0 %v3108
        %v3316 = vpop.f32.mrf.mxu0
        %v3317 = vadd.f32 %v2916, %v3316
        %3318 = vmatmul.f32.gmra.mxu0 %v3111
        %v3319 = vpop.f32.mrf.mxu0
        %v3320 = vadd.f32 %v2919, %v3319
        %3321 = vmatmul.f32.gmra.mxu0 %v3114
        %v3322 = vpop.f32.mrf.mxu0
        %v3323 = vadd.f32 %v2922, %v3322
        %3324 = vmatmul.f32.gmra.mxu0 %v3117
        %v3325 = vpop.f32.mrf.mxu0
        %v3326 = vadd.f32 %v2925, %v3325
        %3327 = vmatmul.f32.gmra.mxu0 %v3120
        %v3328 = vpop.f32.mrf.mxu0
        %v3329 = vadd.f32 %v2928, %v3328
        %3330 = vmatmul.f32.gmra.mxu0 %v3123
        %v3331 = vpop.f32.mrf.mxu0
        %v3332 = vadd.f32 %v2931, %v3331
        %3333 = vmatmul.f32.gmra.mxu0 %v3126
        %v3334 = vpop.f32.mrf.mxu0
        %v3335 = vadd.f32 %v2934, %v3334
        %3336 = vmatmul.f32.gmra.mxu0 %v3129
        %v3337 = vpop.f32.mrf.mxu0
        %v3338 = vadd.f32 %v2937, %v3337
        %3339 = vmatmul.f32.gmra.mxu0 %v3132
        %v3340 = vpop.f32.mrf.mxu0
        %v3341 = vadd.f32 %v2940, %v3340
        %3342 = vmatmul.f32.gmra.mxu0 %v3135
        %v3343 = vpop.f32.mrf.mxu0
        %v3344 = vadd.f32 %v2943, %v3343
        %3345 = vmatmul.f32.gmra.mxu0 %v3138
        %v3346 = vpop.f32.mrf.mxu0
        %v3347 = vadd.f32 %v2946, %v3346
        %3348 = vmatmul.f32.gmra.mxu0 %v3141
        %v3349 = vpop.f32.mrf.mxu0
        %v3350 = vadd.f32 %v2949, %v3349
        %3351 = vmatmul.f32.gmra.mxu0 %v3144
        %v3352 = vpop.f32.mrf.mxu0
        %v3353 = vadd.f32 %v2952, %v3352
        %3354 = vmatmul.f32.gmra.mxu0 %v3147
        %v3355 = vpop.f32.mrf.mxu0
        %v3356 = vadd.f32 %v2955, %v3355
        %3357 = vmatmul.f32.gmra.mxu0 %v3150
        %v3358 = vpop.f32.mrf.mxu0
        %v3359 = vadd.f32 %v2958, %v3358
        %3360 = vmatmul.f32.gmra.mxu0 %v3153
        %v3361 = vpop.f32.mrf.mxu0
        %v3362 = vadd.f32 %v2961, %v3361
        %3363 = vmatmul.f32.gmra.mxu0 %v3156
        %v3364 = vpop.f32.mrf.mxu0
        %v3365 = vadd.f32 %v2964, %v3364
        %3366 = vmatmul.f32.gmra.mxu0 %v3159
        %v3367 = vpop.f32.mrf.mxu0
        %v3368 = vadd.f32 %v2967, %v3367
        %3369 = vmatmul.f32.gmra.mxu0 %v3162
        %v3370 = vpop.f32.mrf.mxu0
        %v3371 = vadd.f32 %v2970, %v3370
        %3372 = vmatmul.f32.gmra.mxu0 %v3165
        %v3373 = vpop.f32.mrf.mxu0
        %v3374 = vadd.f32 %v2973, %v3373
        %3375 = vmatmul.f32.gmra.mxu0 %v3168
        %v3376 = vpop.f32.mrf.mxu0
        %v3377 = vadd.f32 %v2976, %v3376
        %3378 = vmatmul.f32.gmra.mxu0 %v3171
        %v3379 = vpop.f32.mrf.mxu0
        %v3380 = vadd.f32 %v2979, %v3379
        %3381 = vmatmul.f32.gmra.mxu0 %v3174
        %v3382 = vpop.f32.mrf.mxu0
        %v3383 = vadd.f32 %v2982, %v3382
        %3384 = vmatmul.f32.gmra.mxu0 %v3177
        %v3385 = vpop.f32.mrf.mxu0
        %v3386 = vadd.f32 %v2985, %v3385
        %3387 = vmatmul.f32.gmra.mxu0 %v3180
        %v3388 = vpop.f32.mrf.mxu0
        %v3389 = vadd.f32 %v2988, %v3388
        %3390 = vmatmul.f32.gmra.mxu0 %v3183
        %v3391 = vpop.f32.mrf.mxu0
        %v3392 = vadd.f32 %v2991, %v3391
        %3393 = vmatmul.f32.gmra.mxu0 %v3186
        %v3394 = vpop.f32.mrf.mxu0
        %v3395 = vadd.f32 %v2994, %v3394
        %3396 = vmatmul.f32.gmra.mxu0 %v3189
        %v3397 = vpop.f32.mrf.mxu0
        %v3398 = vadd.f32 %v2997, %v3397
        %3399 = vmatmul.f32.gmra.mxu0 %v3192
        %v3400 = vpop.f32.mrf.mxu0
        %v3401 = vadd.f32 %v3000, %v3400
        %3402 = vmatmul.f32.gmra.mxu0 %v3195
        %v3403 = vpop.f32.mrf.mxu0
        %v3404 = vadd.f32 %v3003, %v3403
        %3405 = vmatmul.f32.gmra.mxu0 %v3198
        %v3406 = vpop.f32.mrf.mxu0
        %v3407 = vadd.f32 %v3006, %v3406
        %3408 = vmatmul.f32.gmra.mxu0 %v3201
        %v3409 = vpop.f32.mrf.mxu0
        %v3410 = vadd.f32 %v3009, %v3409
        %3411 = vmatmul.f32.gmra.mxu0 %v3204
        %v3412 = vpop.f32.mrf.mxu0
        %v3413 = vadd.f32 %v3012, %v3412
        %3414 = vmatmul.f32.gmra.mxu0 %v3207
        %v3415 = vpop.f32.mrf.mxu0
        %v3416 = vadd.f32 %v3015, %v3415
        %3417 = vmatmul.f32.gmra.mxu0 %v3210
        %v3418 = vpop.f32.mrf.mxu0
        %v3419 = vadd.f32 %v3018, %v3418
        %3420 = vmatmul.f32.gmra.mxu0 %v3213
        %v3421 = vpop.f32.mrf.mxu0
        %v3422 = vadd.f32 %v3021, %v3421
        %3423 = vmatmul.f32.gmra.mxu0 %v3216
        %v3424 = vpop.f32.mrf.mxu0
        %v3425 = vadd.f32 %v3024, %v3424
        %3426 = vmatmul.f32.gmra.mxu0 %v3219
        %v3427 = vpop.f32.mrf.mxu0
        %v3428 = vadd.f32 %v3027, %v3427
        %3429 = vmatmul.f32.gmra.mxu0 %v3222
        %v3430 = vpop.f32.mrf.mxu0
        %v3431 = vadd.f32 %v3030, %v3430
        %3432 = vmatmul.f32.gmra.mxu0 %v3225
        %v3433 = vpop.f32.mrf.mxu0
        %v3434 = vadd.f32 %v3033, %v3433
        %3435 = vmatmul.f32.gmra.mxu0 %v3228
        %v3436 = vpop.f32.mrf.mxu0
        %v3437 = vadd.f32 %v3036, %v3436
        %3438 = vmatmul.f32.gmra.mxu0 %v3231
        %v3439 = vpop.f32.mrf.mxu0
        %v3440 = vadd.f32 %v3039, %v3439
        %3441 = vmatmul.f32.gmra.mxu0 %v3234
        %v3442 = vpop.f32.mrf.mxu0
        %v3443 = vadd.f32 %v3042, %v3442
        %3444 = vmatmul.f32.gmra.mxu0 %v3237
        %v3445 = vpop.f32.mrf.mxu0
        %v3446 = vadd.f32 %v3045, %v3445
        %3447 = vdwg.mxu0
        %s3448 = scalar_lea.vmem [#allocation2], 16
        %v3449 = vld [vmem:[%s3448] sm:$0xff]
        %v3450 = vld [vmem:[%s3448 + $0x8] sm:$0xff]
        %v3451 = vld [vmem:[%s3448 + $0x10] sm:$0xff]
        %v3452 = vld [vmem:[%s3448 + $0x18] sm:$0xff]
        %v3453 = vld [vmem:[%s3448 + $0x20] sm:$0xff]
        %v3454 = vld [vmem:[%s3448 + $0x28] sm:$0xff]
        %v3455 = vld [vmem:[%s3448 + $0x30] sm:$0xff]
        %v3456 = vld [vmem:[%s3448 + $0x38] sm:$0xff]
        %v3457 = vld [vmem:[%s3448 + $0x50] sm:$0xff]
        %v3458 = vld [vmem:[%s3448 + $0x58] sm:$0xff]
        %v3459 = vld [vmem:[%s3448 + $0x60] sm:$0xff]
        %v3460 = vld [vmem:[%s3448 + $0x68] sm:$0xff]
        %v3461 = vld [vmem:[%s3448 + $0x70] sm:$0xff]
        %v3462 = vld [vmem:[%s3448 + $0x78] sm:$0xff]
        %v3463 = vld [vmem:[%s3448 + $0x80] sm:$0xff]
        %v3464 = vld [vmem:[%s3448 + $0x88] sm:$0xff]
        %v3465 = vld [vmem:[%s3448 + $0xa0] sm:$0xff]
        %v3466 = vld [vmem:[%s3448 + $0xa8] sm:$0xff]
        %v3467 = vld [vmem:[%s3448 + $0xb0] sm:$0xff]
        %v3468 = vld [vmem:[%s3448 + $0xb8] sm:$0xff]
        %v3469 = vld [vmem:[%s3448 + $0xc0] sm:$0xff]
        %v3470 = vld [vmem:[%s3448 + $0xc8] sm:$0xff]
        %v3471 = vld [vmem:[%s3448 + $0xd0] sm:$0xff]
        %v3472 = vld [vmem:[%s3448 + $0xd8] sm:$0xff]
        %v3473 = vld [vmem:[%s3448 + $0xf0] sm:$0xff]
        %v3474 = vld [vmem:[%s3448 + $0xf8] sm:$0xff]
        %v3475 = vld [vmem:[%s3448 + $0x100] sm:$0xff]
        %v3476 = vld [vmem:[%s3448 + $0x108] sm:$0xff]
        %v3477 = vld [vmem:[%s3448 + $0x110] sm:$0xff]
        %v3478 = vld [vmem:[%s3448 + $0x118] sm:$0xff]
        %v3479 = vld [vmem:[%s3448 + $0x120] sm:$0xff]
        %v3480 = vld [vmem:[%s3448 + $0x128] sm:$0xff]
        %v3481 = vld [vmem:[%s3448 + $0x140] sm:$0xff]
        %v3482 = vld [vmem:[%s3448 + $0x148] sm:$0xff]
        %v3483 = vld [vmem:[%s3448 + $0x150] sm:$0xff]
        %v3484 = vld [vmem:[%s3448 + $0x158] sm:$0xff]
        %v3485 = vld [vmem:[%s3448 + $0x160] sm:$0xff]
        %v3486 = vld [vmem:[%s3448 + $0x168] sm:$0xff]
        %v3487 = vld [vmem:[%s3448 + $0x170] sm:$0xff]
        %v3488 = vld [vmem:[%s3448 + $0x178] sm:$0xff]
        %v3489 = vld [vmem:[%s3448 + $0x190] sm:$0xff]
        %v3490 = vld [vmem:[%s3448 + $0x198] sm:$0xff]
        %v3491 = vld [vmem:[%s3448 + $0x1a0] sm:$0xff]
        %v3492 = vld [vmem:[%s3448 + $0x1a8] sm:$0xff]
        %v3493 = vld [vmem:[%s3448 + $0x1b0] sm:$0xff]
        %v3494 = vld [vmem:[%s3448 + $0x1b8] sm:$0xff]
        %v3495 = vld [vmem:[%s3448 + $0x1c0] sm:$0xff]
        %v3496 = vld [vmem:[%s3448 + $0x1c8] sm:$0xff]
        %v3497 = vld [vmem:[%s3448 + $0x1e0] sm:$0xff]
        %v3498 = vld [vmem:[%s3448 + $0x1e8] sm:$0xff]
        %v3499 = vld [vmem:[%s3448 + $0x1f0] sm:$0xff]
        %v3500 = vld [vmem:[%s3448 + $0x1f8] sm:$0xff]
        %v3501 = vld [vmem:[%s3448 + $0x200] sm:$0xff]
        %v3502 = vld [vmem:[%s3448 + $0x208] sm:$0xff]
        %v3503 = vld [vmem:[%s3448 + $0x210] sm:$0xff]
        %v3504 = vld [vmem:[%s3448 + $0x218] sm:$0xff]
        %v3505 = vld [vmem:[%s3448 + $0x230] sm:$0xff]
        %v3506 = vld [vmem:[%s3448 + $0x238] sm:$0xff]
        %v3507 = vld [vmem:[%s3448 + $0x240] sm:$0xff]
        %v3508 = vld [vmem:[%s3448 + $0x248] sm:$0xff]
        %v3509 = vld [vmem:[%s3448 + $0x250] sm:$0xff]
        %v3510 = vld [vmem:[%s3448 + $0x258] sm:$0xff]
        %v3511 = vld [vmem:[%s3448 + $0x260] sm:$0xff]
        %v3512 = vld [vmem:[%s3448 + $0x268] sm:$0xff]
        %s3513 = scalar_lea.vmem %s5, 96
        %v3514 = vld [vmem:[%s3513] sm:$0xff]
        %v3515 = vld [vmem:[%s3513 + $0x8] sm:$0xff]
        %v3516 = vld [vmem:[%s3513 + $0x10] sm:$0xff]
        %v3517 = vld [vmem:[%s3513 + $0x18] sm:$0xff]
        %v3518 = vld [vmem:[%s3513 + $0x20] sm:$0xff]
        %v3519 = vld [vmem:[%s3513 + $0x28] sm:$0xff]
        %v3521 = vsel %vm2338, %v3449, 0
        %v3524 = vsel %vm2338, %v3450, 0
        %v3527 = vsel %vm2338, %v3451, 0
        %v3530 = vsel %vm2338, %v3452, 0
        %v3533 = vsel %vm2338, %v3453, 0
        %v3536 = vsel %vm2338, %v3454, 0
        %v3539 = vsel %vm2338, %v3455, 0
        %v3542 = vsel %vm2338, %v3456, 0
        %v3545 = vsel %vm2338, %v3457, 0
        %v3548 = vsel %vm2338, %v3458, 0
        %v3551 = vsel %vm2338, %v3459, 0
        %v3554 = vsel %vm2338, %v3460, 0
        %v3557 = vsel %vm2338, %v3461, 0
        %v3560 = vsel %vm2338, %v3462, 0
        %v3563 = vsel %vm2338, %v3463, 0
        %v3566 = vsel %vm2338, %v3464, 0
        %v3569 = vsel %vm2338, %v3465, 0
        %v3572 = vsel %vm2338, %v3466, 0
        %v3575 = vsel %vm2338, %v3467, 0
        %v3578 = vsel %vm2338, %v3468, 0
        %v3581 = vsel %vm2338, %v3469, 0
        %v3584 = vsel %vm2338, %v3470, 0
        %v3587 = vsel %vm2338, %v3471, 0
        %v3590 = vsel %vm2338, %v3472, 0
        %v3593 = vsel %vm2338, %v3473, 0
        %v3596 = vsel %vm2338, %v3474, 0
        %v3599 = vsel %vm2338, %v3475, 0
        %v3602 = vsel %vm2338, %v3476, 0
        %v3605 = vsel %vm2338, %v3477, 0
        %v3608 = vsel %vm2338, %v3478, 0
        %v3611 = vsel %vm2338, %v3479, 0
        %v3614 = vsel %vm2338, %v3480, 0
        %v3617 = vsel %vm2338, %v3481, 0
        %v3620 = vsel %vm2338, %v3482, 0
        %v3623 = vsel %vm2338, %v3483, 0
        %v3626 = vsel %vm2338, %v3484, 0
        %v3629 = vsel %vm2338, %v3485, 0
        %v3632 = vsel %vm2338, %v3486, 0
        %v3635 = vsel %vm2338, %v3487, 0
        %v3638 = vsel %vm2338, %v3488, 0
        %v3641 = vsel %vm2338, %v3489, 0
        %v3644 = vsel %vm2338, %v3490, 0
        %v3647 = vsel %vm2338, %v3491, 0
        %v3650 = vsel %vm2338, %v3492, 0
        %v3653 = vsel %vm2338, %v3493, 0
        %v3656 = vsel %vm2338, %v3494, 0
        %v3659 = vsel %vm2338, %v3495, 0
        %v3662 = vsel %vm2338, %v3496, 0
        %v3665 = vsel %vm2338, %v3497, 0
        %v3668 = vsel %vm2338, %v3498, 0
        %v3671 = vsel %vm2338, %v3499, 0
        %v3674 = vsel %vm2338, %v3500, 0
        %v3677 = vsel %vm2338, %v3501, 0
        %v3680 = vsel %vm2338, %v3502, 0
        %v3683 = vsel %vm2338, %v3503, 0
        %v3686 = vsel %vm2338, %v3504, 0
        %v3689 = vsel %vm2338, %v3505, 0
        %v3692 = vsel %vm2338, %v3506, 0
        %v3695 = vsel %vm2338, %v3507, 0
        %v3698 = vsel %vm2338, %v3508, 0
        %v3701 = vsel %vm2338, %v3509, 0
        %v3704 = vsel %vm2338, %v3510, 0
        %v3707 = vsel %vm2338, %v3511, 0
        %v3710 = vsel %vm2338, %v3512, 0
        %3712 = vmatpush.msra.mxu0 0.0
        %3713 = vmatpush.msra.mxu0 0.0
        %3714 = vmatpush.msra.mxu0 0.0
        %3715 = vmatpush.msra.mxu0 0.0
        %3716 = vmatpush.msra.mxu0 0.0
        %3717 = vmatpush.msra.mxu0 0.0
        %3718 = vmatpush.msra.mxu0 0.0
        %3719 = vmatpush.msra.mxu0 0.0
        %3720 = vmatpush.msra.mxu0 0.0
        %3721 = vmatpush.msra.mxu0 0.0
        %3722 = vmatpush.msra.mxu0 %v3519
        %3723 = vmatpush.msra.mxu0 %v3518
        %3724 = vmatpush.msra.mxu0 %v3517
        %3725 = vmatpush.msra.mxu0 %v3516
        %3726 = vmatpush.msra.mxu0 %v3515
        %3727 = vmatpush.msra.mxu0 %v3514
        %3728 = vmatmul.f32.gmra.mxu0 %v3521
        %v3729 = vpop.f32.mrf.mxu0
        %v3730 = vadd.f32 0.0, %v3729
        %3731 = vmatmul.f32.gmra.mxu0 %v3524
        %v3732 = vpop.f32.mrf.mxu0
        %v3733 = vadd.f32 0.0, %v3732
        %3734 = vmatmul.f32.gmra.mxu0 %v3527
        %v3735 = vpop.f32.mrf.mxu0
        %v3736 = vadd.f32 0.0, %v3735
        %3737 = vmatmul.f32.gmra.mxu0 %v3530
        %v3738 = vpop.f32.mrf.mxu0
        %v3739 = vadd.f32 0.0, %v3738
        %3740 = vmatmul.f32.gmra.mxu0 %v3533
        %v3741 = vpop.f32.mrf.mxu0
        %v3742 = vadd.f32 0.0, %v3741
        %3743 = vmatmul.f32.gmra.mxu0 %v3536
        %v3744 = vpop.f32.mrf.mxu0
        %v3745 = vadd.f32 0.0, %v3744
        %3746 = vmatmul.f32.gmra.mxu0 %v3539
        %v3747 = vpop.f32.mrf.mxu0
        %v3748 = vadd.f32 0.0, %v3747
        %3749 = vmatmul.f32.gmra.mxu0 %v3542
        %v3750 = vpop.f32.mrf.mxu0
        %v3751 = vadd.f32 0.0, %v3750
        %3752 = vmatmul.f32.gmra.mxu0 %v3545
        %v3753 = vpop.f32.mrf.mxu0
        %v3754 = vadd.f32 0.0, %v3753
        %3755 = vmatmul.f32.gmra.mxu0 %v3548
        %v3756 = vpop.f32.mrf.mxu0
        %v3757 = vadd.f32 0.0, %v3756
        %3758 = vmatmul.f32.gmra.mxu0 %v3551
        %v3759 = vpop.f32.mrf.mxu0
        %v3760 = vadd.f32 0.0, %v3759
        %3761 = vmatmul.f32.gmra.mxu0 %v3554
        %v3762 = vpop.f32.mrf.mxu0
        %v3763 = vadd.f32 0.0, %v3762
        %3764 = vmatmul.f32.gmra.mxu0 %v3557
        %v3765 = vpop.f32.mrf.mxu0
        %v3766 = vadd.f32 0.0, %v3765
        %3767 = vmatmul.f32.gmra.mxu0 %v3560
        %v3768 = vpop.f32.mrf.mxu0
        %v3769 = vadd.f32 0.0, %v3768
        %3770 = vmatmul.f32.gmra.mxu0 %v3563
        %v3771 = vpop.f32.mrf.mxu0
        %v3772 = vadd.f32 0.0, %v3771
        %3773 = vmatmul.f32.gmra.mxu0 %v3566
        %v3774 = vpop.f32.mrf.mxu0
        %v3775 = vadd.f32 0.0, %v3774
        %3776 = vmatmul.f32.gmra.mxu0 %v3569
        %v3777 = vpop.f32.mrf.mxu0
        %v3778 = vadd.f32 0.0, %v3777
        %3779 = vmatmul.f32.gmra.mxu0 %v3572
        %v3780 = vpop.f32.mrf.mxu0
        %v3781 = vadd.f32 0.0, %v3780
        %3782 = vmatmul.f32.gmra.mxu0 %v3575
        %v3783 = vpop.f32.mrf.mxu0
        %v3784 = vadd.f32 0.0, %v3783
        %3785 = vmatmul.f32.gmra.mxu0 %v3578
        %v3786 = vpop.f32.mrf.mxu0
        %v3787 = vadd.f32 0.0, %v3786
        %3788 = vmatmul.f32.gmra.mxu0 %v3581
        %v3789 = vpop.f32.mrf.mxu0
        %v3790 = vadd.f32 0.0, %v3789
        %3791 = vmatmul.f32.gmra.mxu0 %v3584
        %v3792 = vpop.f32.mrf.mxu0
        %v3793 = vadd.f32 0.0, %v3792
        %3794 = vmatmul.f32.gmra.mxu0 %v3587
        %v3795 = vpop.f32.mrf.mxu0
        %v3796 = vadd.f32 0.0, %v3795
        %3797 = vmatmul.f32.gmra.mxu0 %v3590
        %v3798 = vpop.f32.mrf.mxu0
        %v3799 = vadd.f32 0.0, %v3798
        %3800 = vmatmul.f32.gmra.mxu0 %v3593
        %v3801 = vpop.f32.mrf.mxu0
        %v3802 = vadd.f32 0.0, %v3801
        %3803 = vmatmul.f32.gmra.mxu0 %v3596
        %v3804 = vpop.f32.mrf.mxu0
        %v3805 = vadd.f32 0.0, %v3804
        %3806 = vmatmul.f32.gmra.mxu0 %v3599
        %v3807 = vpop.f32.mrf.mxu0
        %v3808 = vadd.f32 0.0, %v3807
        %3809 = vmatmul.f32.gmra.mxu0 %v3602
        %v3810 = vpop.f32.mrf.mxu0
        %v3811 = vadd.f32 0.0, %v3810
        %3812 = vmatmul.f32.gmra.mxu0 %v3605
        %v3813 = vpop.f32.mrf.mxu0
        %v3814 = vadd.f32 0.0, %v3813
        %3815 = vmatmul.f32.gmra.mxu0 %v3608
        %v3816 = vpop.f32.mrf.mxu0
        %v3817 = vadd.f32 0.0, %v3816
        %3818 = vmatmul.f32.gmra.mxu0 %v3611
        %v3819 = vpop.f32.mrf.mxu0
        %v3820 = vadd.f32 0.0, %v3819
        %3821 = vmatmul.f32.gmra.mxu0 %v3614
        %v3822 = vpop.f32.mrf.mxu0
        %v3823 = vadd.f32 0.0, %v3822
        %3824 = vmatmul.f32.gmra.mxu0 %v3617
        %v3825 = vpop.f32.mrf.mxu0
        %v3826 = vadd.f32 0.0, %v3825
        %3827 = vmatmul.f32.gmra.mxu0 %v3620
        %v3828 = vpop.f32.mrf.mxu0
        %v3829 = vadd.f32 0.0, %v3828
        %3830 = vmatmul.f32.gmra.mxu0 %v3623
        %v3831 = vpop.f32.mrf.mxu0
        %v3832 = vadd.f32 0.0, %v3831
        %3833 = vmatmul.f32.gmra.mxu0 %v3626
        %v3834 = vpop.f32.mrf.mxu0
        %v3835 = vadd.f32 0.0, %v3834
        %3836 = vmatmul.f32.gmra.mxu0 %v3629
        %v3837 = vpop.f32.mrf.mxu0
        %v3838 = vadd.f32 0.0, %v3837
        %3839 = vmatmul.f32.gmra.mxu0 %v3632
        %v3840 = vpop.f32.mrf.mxu0
        %v3841 = vadd.f32 0.0, %v3840
        %3842 = vmatmul.f32.gmra.mxu0 %v3635
        %v3843 = vpop.f32.mrf.mxu0
        %v3844 = vadd.f32 0.0, %v3843
        %3845 = vmatmul.f32.gmra.mxu0 %v3638
        %v3846 = vpop.f32.mrf.mxu0
        %v3847 = vadd.f32 0.0, %v3846
        %3848 = vmatmul.f32.gmra.mxu0 %v3641
        %v3849 = vpop.f32.mrf.mxu0
        %v3850 = vadd.f32 0.0, %v3849
        %3851 = vmatmul.f32.gmra.mxu0 %v3644
        %v3852 = vpop.f32.mrf.mxu0
        %v3853 = vadd.f32 0.0, %v3852
        %3854 = vmatmul.f32.gmra.mxu0 %v3647
        %v3855 = vpop.f32.mrf.mxu0
        %v3856 = vadd.f32 0.0, %v3855
        %3857 = vmatmul.f32.gmra.mxu0 %v3650
        %v3858 = vpop.f32.mrf.mxu0
        %v3859 = vadd.f32 0.0, %v3858
        %3860 = vmatmul.f32.gmra.mxu0 %v3653
        %v3861 = vpop.f32.mrf.mxu0
        %v3862 = vadd.f32 0.0, %v3861
        %3863 = vmatmul.f32.gmra.mxu0 %v3656
        %v3864 = vpop.f32.mrf.mxu0
        %v3865 = vadd.f32 0.0, %v3864
        %3866 = vmatmul.f32.gmra.mxu0 %v3659
        %v3867 = vpop.f32.mrf.mxu0
        %v3868 = vadd.f32 0.0, %v3867
        %3869 = vmatmul.f32.gmra.mxu0 %v3662
        %v3870 = vpop.f32.mrf.mxu0
        %v3871 = vadd.f32 0.0, %v3870
        %3872 = vmatmul.f32.gmra.mxu0 %v3665
        %v3873 = vpop.f32.mrf.mxu0
        %v3874 = vadd.f32 0.0, %v3873
        %3875 = vmatmul.f32.gmra.mxu0 %v3668
        %v3876 = vpop.f32.mrf.mxu0
        %v3877 = vadd.f32 0.0, %v3876
        %3878 = vmatmul.f32.gmra.mxu0 %v3671
        %v3879 = vpop.f32.mrf.mxu0
        %v3880 = vadd.f32 0.0, %v3879
        %3881 = vmatmul.f32.gmra.mxu0 %v3674
        %v3882 = vpop.f32.mrf.mxu0
        %v3883 = vadd.f32 0.0, %v3882
        %3884 = vmatmul.f32.gmra.mxu0 %v3677
        %v3885 = vpop.f32.mrf.mxu0
        %v3886 = vadd.f32 0.0, %v3885
        %3887 = vmatmul.f32.gmra.mxu0 %v3680
        %v3888 = vpop.f32.mrf.mxu0
        %v3889 = vadd.f32 0.0, %v3888
        %3890 = vmatmul.f32.gmra.mxu0 %v3683
        %v3891 = vpop.f32.mrf.mxu0
        %v3892 = vadd.f32 0.0, %v3891
        %3893 = vmatmul.f32.gmra.mxu0 %v3686
        %v3894 = vpop.f32.mrf.mxu0
        %v3895 = vadd.f32 0.0, %v3894
        %3896 = vmatmul.f32.gmra.mxu0 %v3689
        %v3897 = vpop.f32.mrf.mxu0
        %v3898 = vadd.f32 0.0, %v3897
        %3899 = vmatmul.f32.gmra.mxu0 %v3692
        %v3900 = vpop.f32.mrf.mxu0
        %v3901 = vadd.f32 0.0, %v3900
        %3902 = vmatmul.f32.gmra.mxu0 %v3695
        %v3903 = vpop.f32.mrf.mxu0
        %v3904 = vadd.f32 0.0, %v3903
        %3905 = vmatmul.f32.gmra.mxu0 %v3698
        %v3906 = vpop.f32.mrf.mxu0
        %v3907 = vadd.f32 0.0, %v3906
        %3908 = vmatmul.f32.gmra.mxu0 %v3701
        %v3909 = vpop.f32.mrf.mxu0
        %v3910 = vadd.f32 0.0, %v3909
        %3911 = vmatmul.f32.gmra.mxu0 %v3704
        %v3912 = vpop.f32.mrf.mxu0
        %v3913 = vadd.f32 0.0, %v3912
        %3914 = vmatmul.f32.gmra.mxu0 %v3707
        %v3915 = vpop.f32.mrf.mxu0
        %v3916 = vadd.f32 0.0, %v3915
        %3917 = vmatmul.f32.gmra.mxu0 %v3710
        %v3918 = vpop.f32.mrf.mxu0
        %v3919 = vadd.f32 0.0, %v3918
        %3920 = vdwg.mxu0
        %v3921 = vadd.f32 %v3257, %v3730
        %v3922 = vadd.f32 %v3260, %v3733
        %v3923 = vadd.f32 %v3263, %v3736
        %v3924 = vadd.f32 %v3266, %v3739
        %v3925 = vadd.f32 %v3269, %v3742
        %v3926 = vadd.f32 %v3272, %v3745
        %v3927 = vadd.f32 %v3275, %v3748
        %v3928 = vadd.f32 %v3278, %v3751
        %v3929 = vadd.f32 %v3281, %v3754
        %v3930 = vadd.f32 %v3284, %v3757
        %v3931 = vadd.f32 %v3287, %v3760
        %v3932 = vadd.f32 %v3290, %v3763
        %v3933 = vadd.f32 %v3293, %v3766
        %v3934 = vadd.f32 %v3296, %v3769
        %v3935 = vadd.f32 %v3299, %v3772
        %v3936 = vadd.f32 %v3302, %v3775
        %v3937 = vadd.f32 %v3305, %v3778
        %v3938 = vadd.f32 %v3308, %v3781
        %v3939 = vadd.f32 %v3311, %v3784
        %v3940 = vadd.f32 %v3314, %v3787
        %v3941 = vadd.f32 %v3317, %v3790
        %v3942 = vadd.f32 %v3320, %v3793
        %v3943 = vadd.f32 %v3323, %v3796
        %v3944 = vadd.f32 %v3326, %v3799
        %v3945 = vadd.f32 %v3329, %v3802
        %v3946 = vadd.f32 %v3332, %v3805
        %v3947 = vadd.f32 %v3335, %v3808
        %v3948 = vadd.f32 %v3338, %v3811
        %v3949 = vadd.f32 %v3341, %v3814
        %v3950 = vadd.f32 %v3344, %v3817
        %v3951 = vadd.f32 %v3347, %v3820
        %v3952 = vadd.f32 %v3350, %v3823
        %v3953 = vadd.f32 %v3353, %v3826
        %v3954 = vadd.f32 %v3356, %v3829
        %v3955 = vadd.f32 %v3359, %v3832
        %v3956 = vadd.f32 %v3362, %v3835
        %v3957 = vadd.f32 %v3365, %v3838
        %v3958 = vadd.f32 %v3368, %v3841
        %v3959 = vadd.f32 %v3371, %v3844
        %v3960 = vadd.f32 %v3374, %v3847
        %v3961 = vadd.f32 %v3377, %v3850
        %v3962 = vadd.f32 %v3380, %v3853
        %v3963 = vadd.f32 %v3383, %v3856
        %v3964 = vadd.f32 %v3386, %v3859
        %v3965 = vadd.f32 %v3389, %v3862
        %v3966 = vadd.f32 %v3392, %v3865
        %v3967 = vadd.f32 %v3395, %v3868
        %v3968 = vadd.f32 %v3398, %v3871
        %v3969 = vadd.f32 %v3401, %v3874
        %v3970 = vadd.f32 %v3404, %v3877
        %v3971 = vadd.f32 %v3407, %v3880
        %v3972 = vadd.f32 %v3410, %v3883
        %v3973 = vadd.f32 %v3413, %v3886
        %v3974 = vadd.f32 %v3416, %v3889
        %v3975 = vadd.f32 %v3419, %v3892
        %v3976 = vadd.f32 %v3422, %v3895
        %v3977 = vadd.f32 %v3425, %v3898
        %v3978 = vadd.f32 %v3428, %v3901
        %v3979 = vadd.f32 %v3431, %v3904
        %v3980 = vadd.f32 %v3434, %v3907
        %v3981 = vadd.f32 %v3437, %v3910
        %v3982 = vadd.f32 %v3440, %v3913
        %v3983 = vadd.f32 %v3443, %v3916
        %v3984 = vadd.f32 %v3446, %v3919
        %s3985 = scalar_lea.vmem [#allocation2], 80
        %v3986 = vld [vmem:[%s3985] sm:$0xff]
        %v3987 = vld [vmem:[%s3985 + $0x8] sm:$0xff]
        %v3988 = vld [vmem:[%s3985 + $0x10] sm:$0xff]
        %v3989 = vld [vmem:[%s3985 + $0x18] sm:$0xff]
        %v3990 = vld [vmem:[%s3985 + $0x20] sm:$0xff]
        %v3991 = vld [vmem:[%s3985 + $0x28] sm:$0xff]
        %v3992 = vld [vmem:[%s3985 + $0x30] sm:$0xff]
        %v3993 = vld [vmem:[%s3985 + $0x38] sm:$0xff]
        %v3994 = vld [vmem:[%s3985 + $0x50] sm:$0xff]
        %v3995 = vld [vmem:[%s3985 + $0x58] sm:$0xff]
        %v3996 = vld [vmem:[%s3985 + $0x60] sm:$0xff]
        %v3997 = vld [vmem:[%s3985 + $0x68] sm:$0xff]
        %v3998 = vld [vmem:[%s3985 + $0x70] sm:$0xff]
        %v3999 = vld [vmem:[%s3985 + $0x78] sm:$0xff]
        %v4000 = vld [vmem:[%s3985 + $0x80] sm:$0xff]
        %v4001 = vld [vmem:[%s3985 + $0x88] sm:$0xff]
        %v4002 = vld [vmem:[%s3985 + $0xa0] sm:$0xff]
        %v4003 = vld [vmem:[%s3985 + $0xa8] sm:$0xff]
        %v4004 = vld [vmem:[%s3985 + $0xb0] sm:$0xff]
        %v4005 = vld [vmem:[%s3985 + $0xb8] sm:$0xff]
        %v4006 = vld [vmem:[%s3985 + $0xc0] sm:$0xff]
        %v4007 = vld [vmem:[%s3985 + $0xc8] sm:$0xff]
        %v4008 = vld [vmem:[%s3985 + $0xd0] sm:$0xff]
        %v4009 = vld [vmem:[%s3985 + $0xd8] sm:$0xff]
        %v4010 = vld [vmem:[%s3985 + $0xf0] sm:$0xff]
        %v4011 = vld [vmem:[%s3985 + $0xf8] sm:$0xff]
        %v4012 = vld [vmem:[%s3985 + $0x100] sm:$0xff]
        %v4013 = vld [vmem:[%s3985 + $0x108] sm:$0xff]
        %v4014 = vld [vmem:[%s3985 + $0x110] sm:$0xff]
        %v4015 = vld [vmem:[%s3985 + $0x118] sm:$0xff]
        %v4016 = vld [vmem:[%s3985 + $0x120] sm:$0xff]
        %v4017 = vld [vmem:[%s3985 + $0x128] sm:$0xff]
        %v4018 = vld [vmem:[%s3985 + $0x140] sm:$0xff]
        %v4019 = vld [vmem:[%s3985 + $0x148] sm:$0xff]
        %v4020 = vld [vmem:[%s3985 + $0x150] sm:$0xff]
        %v4021 = vld [vmem:[%s3985 + $0x158] sm:$0xff]
        %v4022 = vld [vmem:[%s3985 + $0x160] sm:$0xff]
        %v4023 = vld [vmem:[%s3985 + $0x168] sm:$0xff]
        %v4024 = vld [vmem:[%s3985 + $0x170] sm:$0xff]
        %v4025 = vld [vmem:[%s3985 + $0x178] sm:$0xff]
        %v4026 = vld [vmem:[%s3985 + $0x190] sm:$0xff]
        %v4027 = vld [vmem:[%s3985 + $0x198] sm:$0xff]
        %v4028 = vld [vmem:[%s3985 + $0x1a0] sm:$0xff]
        %v4029 = vld [vmem:[%s3985 + $0x1a8] sm:$0xff]
        %v4030 = vld [vmem:[%s3985 + $0x1b0] sm:$0xff]
        %v4031 = vld [vmem:[%s3985 + $0x1b8] sm:$0xff]
        %v4032 = vld [vmem:[%s3985 + $0x1c0] sm:$0xff]
        %v4033 = vld [vmem:[%s3985 + $0x1c8] sm:$0xff]
        %v4034 = vld [vmem:[%s3985 + $0x1e0] sm:$0xff]
        %v4035 = vld [vmem:[%s3985 + $0x1e8] sm:$0xff]
        %v4036 = vld [vmem:[%s3985 + $0x1f0] sm:$0xff]
        %v4037 = vld [vmem:[%s3985 + $0x1f8] sm:$0xff]
        %v4038 = vld [vmem:[%s3985 + $0x200] sm:$0xff]
        %v4039 = vld [vmem:[%s3985 + $0x208] sm:$0xff]
        %v4040 = vld [vmem:[%s3985 + $0x210] sm:$0xff]
        %v4041 = vld [vmem:[%s3985 + $0x218] sm:$0xff]
        %v4042 = vld [vmem:[%s3985 + $0x230] sm:$0xff]
        %v4043 = vld [vmem:[%s3985 + $0x238] sm:$0xff]
        %v4044 = vld [vmem:[%s3985 + $0x240] sm:$0xff]
        %v4045 = vld [vmem:[%s3985 + $0x248] sm:$0xff]
        %v4046 = vld [vmem:[%s3985 + $0x250] sm:$0xff]
        %v4047 = vld [vmem:[%s3985 + $0x258] sm:$0xff]
        %v4048 = vld [vmem:[%s3985 + $0x260] sm:$0xff]
        %v4049 = vld [vmem:[%s3985 + $0x268] sm:$0xff]
        %s4050 = scalar_lea.vmem %s5, 144
        %v4051 = vld [vmem:[%s4050] sm:$0xff]
        %v4052 = vld [vmem:[%s4050 + $0x8] sm:$0xff]
        %v4053 = vld [vmem:[%s4050 + $0x10] sm:$0xff]
        %v4054 = vld [vmem:[%s4050 + $0x18] sm:$0xff]
        %v4055 = vld [vmem:[%s4050 + $0x20] sm:$0xff]
        %v4056 = vld [vmem:[%s4050 + $0x28] sm:$0xff]
        %v4058 = vsel %vm2338, %v3986, 0
        %v4061 = vsel %vm2338, %v3987, 0
        %v4064 = vsel %vm2338, %v3988, 0
        %v4067 = vsel %vm2338, %v3989, 0
        %v4070 = vsel %vm2338, %v3990, 0
        %v4073 = vsel %vm2338, %v3991, 0
        %v4076 = vsel %vm2338, %v3992, 0
        %v4079 = vsel %vm2338, %v3993, 0
        %v4082 = vsel %vm2338, %v3994, 0
        %v4085 = vsel %vm2338, %v3995, 0
        %v4088 = vsel %vm2338, %v3996, 0
        %v4091 = vsel %vm2338, %v3997, 0
        %v4094 = vsel %vm2338, %v3998, 0
        %v4097 = vsel %vm2338, %v3999, 0
        %v4100 = vsel %vm2338, %v4000, 0
        %v4103 = vsel %vm2338, %v4001, 0
        %v4106 = vsel %vm2338, %v4002, 0
        %v4109 = vsel %vm2338, %v4003, 0
        %v4112 = vsel %vm2338, %v4004, 0
        %v4115 = vsel %vm2338, %v4005, 0
        %v4118 = vsel %vm2338, %v4006, 0
        %v4121 = vsel %vm2338, %v4007, 0
        %v4124 = vsel %vm2338, %v4008, 0
        %v4127 = vsel %vm2338, %v4009, 0
        %v4130 = vsel %vm2338, %v4010, 0
        %v4133 = vsel %vm2338, %v4011, 0
        %v4136 = vsel %vm2338, %v4012, 0
        %v4139 = vsel %vm2338, %v4013, 0
        %v4142 = vsel %vm2338, %v4014, 0
        %v4145 = vsel %vm2338, %v4015, 0
        %v4148 = vsel %vm2338, %v4016, 0
        %v4151 = vsel %vm2338, %v4017, 0
        %v4154 = vsel %vm2338, %v4018, 0
        %v4157 = vsel %vm2338, %v4019, 0
        %v4160 = vsel %vm2338, %v4020, 0
        %v4163 = vsel %vm2338, %v4021, 0
        %v4166 = vsel %vm2338, %v4022, 0
        %v4169 = vsel %vm2338, %v4023, 0
        %v4172 = vsel %vm2338, %v4024, 0
        %v4175 = vsel %vm2338, %v4025, 0
        %v4178 = vsel %vm2338, %v4026, 0
        %v4181 = vsel %vm2338, %v4027, 0
        %v4184 = vsel %vm2338, %v4028, 0
        %v4187 = vsel %vm2338, %v4029, 0
        %v4190 = vsel %vm2338, %v4030, 0
        %v4193 = vsel %vm2338, %v4031, 0
        %v4196 = vsel %vm2338, %v4032, 0
        %v4199 = vsel %vm2338, %v4033, 0
        %v4202 = vsel %vm2338, %v4034, 0
        %v4205 = vsel %vm2338, %v4035, 0
        %v4208 = vsel %vm2338, %v4036, 0
        %v4211 = vsel %vm2338, %v4037, 0
        %v4214 = vsel %vm2338, %v4038, 0
        %v4217 = vsel %vm2338, %v4039, 0
        %v4220 = vsel %vm2338, %v4040, 0
        %v4223 = vsel %vm2338, %v4041, 0
        %v4226 = vsel %vm2338, %v4042, 0
        %v4229 = vsel %vm2338, %v4043, 0
        %v4232 = vsel %vm2338, %v4044, 0
        %v4235 = vsel %vm2338, %v4045, 0
        %v4238 = vsel %vm2338, %v4046, 0
        %v4241 = vsel %vm2338, %v4047, 0
        %v4244 = vsel %vm2338, %v4048, 0
        %v4247 = vsel %vm2338, %v4049, 0
        %4249 = vmatpush.msra.mxu0 0.0
        %4250 = vmatpush.msra.mxu0 0.0
        %4251 = vmatpush.msra.mxu0 0.0
        %4252 = vmatpush.msra.mxu0 0.0
        %4253 = vmatpush.msra.mxu0 0.0
        %4254 = vmatpush.msra.mxu0 0.0
        %4255 = vmatpush.msra.mxu0 0.0
        %4256 = vmatpush.msra.mxu0 0.0
        %4257 = vmatpush.msra.mxu0 0.0
        %4258 = vmatpush.msra.mxu0 0.0
        %4259 = vmatpush.msra.mxu0 %v4056
        %4260 = vmatpush.msra.mxu0 %v4055
        %4261 = vmatpush.msra.mxu0 %v4054
        %4262 = vmatpush.msra.mxu0 %v4053
        %4263 = vmatpush.msra.mxu0 %v4052
        %4264 = vmatpush.msra.mxu0 %v4051
        %4265 = vmatmul.f32.gmra.mxu0 %v4058
        %v4266 = vpop.f32.mrf.mxu0
        %v4267 = vadd.f32 0.0, %v4266
        %4268 = vmatmul.f32.gmra.mxu0 %v4061
        %v4269 = vpop.f32.mrf.mxu0
        %v4270 = vadd.f32 0.0, %v4269
        %4271 = vmatmul.f32.gmra.mxu0 %v4064
        %v4272 = vpop.f32.mrf.mxu0
        %v4273 = vadd.f32 0.0, %v4272
        %4274 = vmatmul.f32.gmra.mxu0 %v4067
        %v4275 = vpop.f32.mrf.mxu0
        %v4276 = vadd.f32 0.0, %v4275
        %4277 = vmatmul.f32.gmra.mxu0 %v4070
        %v4278 = vpop.f32.mrf.mxu0
        %v4279 = vadd.f32 0.0, %v4278
        %4280 = vmatmul.f32.gmra.mxu0 %v4073
        %v4281 = vpop.f32.mrf.mxu0
        %v4282 = vadd.f32 0.0, %v4281
        %4283 = vmatmul.f32.gmra.mxu0 %v4076
        %v4284 = vpop.f32.mrf.mxu0
        %v4285 = vadd.f32 0.0, %v4284
        %4286 = vmatmul.f32.gmra.mxu0 %v4079
        %v4287 = vpop.f32.mrf.mxu0
        %v4288 = vadd.f32 0.0, %v4287
        %4289 = vmatmul.f32.gmra.mxu0 %v4082
        %v4290 = vpop.f32.mrf.mxu0
        %v4291 = vadd.f32 0.0, %v4290
        %4292 = vmatmul.f32.gmra.mxu0 %v4085
        %v4293 = vpop.f32.mrf.mxu0
        %v4294 = vadd.f32 0.0, %v4293
        %4295 = vmatmul.f32.gmra.mxu0 %v4088
        %v4296 = vpop.f32.mrf.mxu0
        %v4297 = vadd.f32 0.0, %v4296
        %4298 = vmatmul.f32.gmra.mxu0 %v4091
        %v4299 = vpop.f32.mrf.mxu0
        %v4300 = vadd.f32 0.0, %v4299
        %4301 = vmatmul.f32.gmra.mxu0 %v4094
        %v4302 = vpop.f32.mrf.mxu0
        %v4303 = vadd.f32 0.0, %v4302
        %4304 = vmatmul.f32.gmra.mxu0 %v4097
        %v4305 = vpop.f32.mrf.mxu0
        %v4306 = vadd.f32 0.0, %v4305
        %4307 = vmatmul.f32.gmra.mxu0 %v4100
        %v4308 = vpop.f32.mrf.mxu0
        %v4309 = vadd.f32 0.0, %v4308
        %4310 = vmatmul.f32.gmra.mxu0 %v4103
        %v4311 = vpop.f32.mrf.mxu0
        %v4312 = vadd.f32 0.0, %v4311
        %4313 = vmatmul.f32.gmra.mxu0 %v4106
        %v4314 = vpop.f32.mrf.mxu0
        %v4315 = vadd.f32 0.0, %v4314
        %4316 = vmatmul.f32.gmra.mxu0 %v4109
        %v4317 = vpop.f32.mrf.mxu0
        %v4318 = vadd.f32 0.0, %v4317
        %4319 = vmatmul.f32.gmra.mxu0 %v4112
        %v4320 = vpop.f32.mrf.mxu0
        %v4321 = vadd.f32 0.0, %v4320
        %4322 = vmatmul.f32.gmra.mxu0 %v4115
        %v4323 = vpop.f32.mrf.mxu0
        %v4324 = vadd.f32 0.0, %v4323
        %4325 = vmatmul.f32.gmra.mxu0 %v4118
        %v4326 = vpop.f32.mrf.mxu0
        %v4327 = vadd.f32 0.0, %v4326
        %4328 = vmatmul.f32.gmra.mxu0 %v4121
        %v4329 = vpop.f32.mrf.mxu0
        %v4330 = vadd.f32 0.0, %v4329
        %4331 = vmatmul.f32.gmra.mxu0 %v4124
        %v4332 = vpop.f32.mrf.mxu0
        %v4333 = vadd.f32 0.0, %v4332
        %4334 = vmatmul.f32.gmra.mxu0 %v4127
        %v4335 = vpop.f32.mrf.mxu0
        %v4336 = vadd.f32 0.0, %v4335
        %4337 = vmatmul.f32.gmra.mxu0 %v4130
        %v4338 = vpop.f32.mrf.mxu0
        %v4339 = vadd.f32 0.0, %v4338
        %4340 = vmatmul.f32.gmra.mxu0 %v4133
        %v4341 = vpop.f32.mrf.mxu0
        %v4342 = vadd.f32 0.0, %v4341
        %4343 = vmatmul.f32.gmra.mxu0 %v4136
        %v4344 = vpop.f32.mrf.mxu0
        %v4345 = vadd.f32 0.0, %v4344
        %4346 = vmatmul.f32.gmra.mxu0 %v4139
        %v4347 = vpop.f32.mrf.mxu0
        %v4348 = vadd.f32 0.0, %v4347
        %4349 = vmatmul.f32.gmra.mxu0 %v4142
        %v4350 = vpop.f32.mrf.mxu0
        %v4351 = vadd.f32 0.0, %v4350
        %4352 = vmatmul.f32.gmra.mxu0 %v4145
        %v4353 = vpop.f32.mrf.mxu0
        %v4354 = vadd.f32 0.0, %v4353
        %4355 = vmatmul.f32.gmra.mxu0 %v4148
        %v4356 = vpop.f32.mrf.mxu0
        %v4357 = vadd.f32 0.0, %v4356
        %4358 = vmatmul.f32.gmra.mxu0 %v4151
        %v4359 = vpop.f32.mrf.mxu0
        %v4360 = vadd.f32 0.0, %v4359
        %4361 = vmatmul.f32.gmra.mxu0 %v4154
        %v4362 = vpop.f32.mrf.mxu0
        %v4363 = vadd.f32 0.0, %v4362
        %4364 = vmatmul.f32.gmra.mxu0 %v4157
        %v4365 = vpop.f32.mrf.mxu0
        %v4366 = vadd.f32 0.0, %v4365
        %4367 = vmatmul.f32.gmra.mxu0 %v4160
        %v4368 = vpop.f32.mrf.mxu0
        %v4369 = vadd.f32 0.0, %v4368
        %4370 = vmatmul.f32.gmra.mxu0 %v4163
        %v4371 = vpop.f32.mrf.mxu0
        %v4372 = vadd.f32 0.0, %v4371
        %4373 = vmatmul.f32.gmra.mxu0 %v4166
        %v4374 = vpop.f32.mrf.mxu0
        %v4375 = vadd.f32 0.0, %v4374
        %4376 = vmatmul.f32.gmra.mxu0 %v4169
        %v4377 = vpop.f32.mrf.mxu0
        %v4378 = vadd.f32 0.0, %v4377
        %4379 = vmatmul.f32.gmra.mxu0 %v4172
        %v4380 = vpop.f32.mrf.mxu0
        %v4381 = vadd.f32 0.0, %v4380
        %4382 = vmatmul.f32.gmra.mxu0 %v4175
        %v4383 = vpop.f32.mrf.mxu0
        %v4384 = vadd.f32 0.0, %v4383
        %4385 = vmatmul.f32.gmra.mxu0 %v4178
        %v4386 = vpop.f32.mrf.mxu0
        %v4387 = vadd.f32 0.0, %v4386
        %4388 = vmatmul.f32.gmra.mxu0 %v4181
        %v4389 = vpop.f32.mrf.mxu0
        %v4390 = vadd.f32 0.0, %v4389
        %4391 = vmatmul.f32.gmra.mxu0 %v4184
        %v4392 = vpop.f32.mrf.mxu0
        %v4393 = vadd.f32 0.0, %v4392
        %4394 = vmatmul.f32.gmra.mxu0 %v4187
        %v4395 = vpop.f32.mrf.mxu0
        %v4396 = vadd.f32 0.0, %v4395
        %4397 = vmatmul.f32.gmra.mxu0 %v4190
        %v4398 = vpop.f32.mrf.mxu0
        %v4399 = vadd.f32 0.0, %v4398
        %4400 = vmatmul.f32.gmra.mxu0 %v4193
        %v4401 = vpop.f32.mrf.mxu0
        %v4402 = vadd.f32 0.0, %v4401
        %4403 = vmatmul.f32.gmra.mxu0 %v4196
        %v4404 = vpop.f32.mrf.mxu0
        %v4405 = vadd.f32 0.0, %v4404
        %4406 = vmatmul.f32.gmra.mxu0 %v4199
        %v4407 = vpop.f32.mrf.mxu0
        %v4408 = vadd.f32 0.0, %v4407
        %4409 = vmatmul.f32.gmra.mxu0 %v4202
        %v4410 = vpop.f32.mrf.mxu0
        %v4411 = vadd.f32 0.0, %v4410
        %4412 = vmatmul.f32.gmra.mxu0 %v4205
        %v4413 = vpop.f32.mrf.mxu0
        %v4414 = vadd.f32 0.0, %v4413
        %4415 = vmatmul.f32.gmra.mxu0 %v4208
        %v4416 = vpop.f32.mrf.mxu0
        %v4417 = vadd.f32 0.0, %v4416
        %4418 = vmatmul.f32.gmra.mxu0 %v4211
        %v4419 = vpop.f32.mrf.mxu0
        %v4420 = vadd.f32 0.0, %v4419
        %4421 = vmatmul.f32.gmra.mxu0 %v4214
        %v4422 = vpop.f32.mrf.mxu0
        %v4423 = vadd.f32 0.0, %v4422
        %4424 = vmatmul.f32.gmra.mxu0 %v4217
        %v4425 = vpop.f32.mrf.mxu0
        %v4426 = vadd.f32 0.0, %v4425
        %4427 = vmatmul.f32.gmra.mxu0 %v4220
        %v4428 = vpop.f32.mrf.mxu0
        %v4429 = vadd.f32 0.0, %v4428
        %4430 = vmatmul.f32.gmra.mxu0 %v4223
        %v4431 = vpop.f32.mrf.mxu0
        %v4432 = vadd.f32 0.0, %v4431
        %4433 = vmatmul.f32.gmra.mxu0 %v4226
        %v4434 = vpop.f32.mrf.mxu0
        %v4435 = vadd.f32 0.0, %v4434
        %4436 = vmatmul.f32.gmra.mxu0 %v4229
        %v4437 = vpop.f32.mrf.mxu0
        %v4438 = vadd.f32 0.0, %v4437
        %4439 = vmatmul.f32.gmra.mxu0 %v4232
        %v4440 = vpop.f32.mrf.mxu0
        %v4441 = vadd.f32 0.0, %v4440
        %4442 = vmatmul.f32.gmra.mxu0 %v4235
        %v4443 = vpop.f32.mrf.mxu0
        %v4444 = vadd.f32 0.0, %v4443
        %4445 = vmatmul.f32.gmra.mxu0 %v4238
        %v4446 = vpop.f32.mrf.mxu0
        %v4447 = vadd.f32 0.0, %v4446
        %4448 = vmatmul.f32.gmra.mxu0 %v4241
        %v4449 = vpop.f32.mrf.mxu0
        %v4450 = vadd.f32 0.0, %v4449
        %4451 = vmatmul.f32.gmra.mxu0 %v4244
        %v4452 = vpop.f32.mrf.mxu0
        %v4453 = vadd.f32 0.0, %v4452
        %4454 = vmatmul.f32.gmra.mxu0 %v4247
        %v4455 = vpop.f32.mrf.mxu0
        %v4456 = vadd.f32 0.0, %v4455
        %4457 = vdwg.mxu0
        %v4458 = vadd.f32 %v3921, %v4267
        %v4459 = vadd.f32 %v3922, %v4270
        %v4460 = vadd.f32 %v3923, %v4273
        %v4461 = vadd.f32 %v3924, %v4276
        %v4462 = vadd.f32 %v3925, %v4279
        %v4463 = vadd.f32 %v3926, %v4282
        %v4464 = vadd.f32 %v3927, %v4285
        %v4465 = vadd.f32 %v3928, %v4288
        %v4466 = vadd.f32 %v3929, %v4291
        %v4467 = vadd.f32 %v3930, %v4294
        %v4468 = vadd.f32 %v3931, %v4297
        %v4469 = vadd.f32 %v3932, %v4300
        %v4470 = vadd.f32 %v3933, %v4303
        %v4471 = vadd.f32 %v3934, %v4306
        %v4472 = vadd.f32 %v3935, %v4309
        %v4473 = vadd.f32 %v3936, %v4312
        %v4474 = vadd.f32 %v3937, %v4315
        %v4475 = vadd.f32 %v3938, %v4318
        %v4476 = vadd.f32 %v3939, %v4321
        %v4477 = vadd.f32 %v3940, %v4324
        %v4478 = vadd.f32 %v3941, %v4327
        %v4479 = vadd.f32 %v3942, %v4330
        %v4480 = vadd.f32 %v3943, %v4333
        %v4481 = vadd.f32 %v3944, %v4336
        %v4482 = vadd.f32 %v3945, %v4339
        %v4483 = vadd.f32 %v3946, %v4342
        %v4484 = vadd.f32 %v3947, %v4345
        %v4485 = vadd.f32 %v3948, %v4348
        %v4486 = vadd.f32 %v3949, %v4351
        %v4487 = vadd.f32 %v3950, %v4354
        %v4488 = vadd.f32 %v3951, %v4357
        %v4489 = vadd.f32 %v3952, %v4360
        %v4490 = vadd.f32 %v3953, %v4363
        %v4491 = vadd.f32 %v3954, %v4366
        %v4492 = vadd.f32 %v3955, %v4369
        %v4493 = vadd.f32 %v3956, %v4372
        %v4494 = vadd.f32 %v3957, %v4375
        %v4495 = vadd.f32 %v3958, %v4378
        %v4496 = vadd.f32 %v3959, %v4381
        %v4497 = vadd.f32 %v3960, %v4384
        %v4498 = vadd.f32 %v3961, %v4387
        %v4499 = vadd.f32 %v3962, %v4390
        %v4500 = vadd.f32 %v3963, %v4393
        %v4501 = vadd.f32 %v3964, %v4396
        %v4502 = vadd.f32 %v3965, %v4399
        %v4503 = vadd.f32 %v3966, %v4402
        %v4504 = vadd.f32 %v3967, %v4405
        %v4505 = vadd.f32 %v3968, %v4408
        %v4506 = vadd.f32 %v3969, %v4411
        %v4507 = vadd.f32 %v3970, %v4414
        %v4508 = vadd.f32 %v3971, %v4417
        %v4509 = vadd.f32 %v3972, %v4420
        %v4510 = vadd.f32 %v3973, %v4423
        %v4511 = vadd.f32 %v3974, %v4426
        %v4512 = vadd.f32 %v3975, %v4429
        %v4513 = vadd.f32 %v3976, %v4432
        %v4514 = vadd.f32 %v3977, %v4435
        %v4515 = vadd.f32 %v3978, %v4438
        %v4516 = vadd.f32 %v3979, %v4441
        %v4517 = vadd.f32 %v3980, %v4444
        %v4518 = vadd.f32 %v3981, %v4447
        %v4519 = vadd.f32 %v3982, %v4450
        %v4520 = vadd.f32 %v3983, %v4453
        %v4521 = vadd.f32 %v3984, %v4456
        %v4522 = vld [vmem:[%s2439] sm:$0xff]
        %v4523 = vld [vmem:[%s2439 + $0x8] sm:$0xff]
        %v4524 = vld [vmem:[%s2439 + $0x10] sm:$0xff]
        %v4525 = vld [vmem:[%s2439 + $0x18] sm:$0xff]
        %v4526 = vld [vmem:[%s2439 + $0x20] sm:$0xff]
        %v4527 = vld [vmem:[%s2439 + $0x28] sm:$0xff]
        %v4528 = vld [vmem:[%s2439 + $0x30] sm:$0xff]
        %v4529 = vld [vmem:[%s2439 + $0x38] sm:$0xff]
        %v4530 = vld [vmem:[%s2439 + $0x50] sm:$0xff]
        %v4531 = vld [vmem:[%s2439 + $0x58] sm:$0xff]
        %v4532 = vld [vmem:[%s2439 + $0x60] sm:$0xff]
        %v4533 = vld [vmem:[%s2439 + $0x68] sm:$0xff]
        %v4534 = vld [vmem:[%s2439 + $0x70] sm:$0xff]
        %v4535 = vld [vmem:[%s2439 + $0x78] sm:$0xff]
        %v4536 = vld [vmem:[%s2439 + $0x80] sm:$0xff]
        %v4537 = vld [vmem:[%s2439 + $0x88] sm:$0xff]
        %v4538 = vld [vmem:[%s2439 + $0xa0] sm:$0xff]
        %v4539 = vld [vmem:[%s2439 + $0xa8] sm:$0xff]
        %v4540 = vld [vmem:[%s2439 + $0xb0] sm:$0xff]
        %v4541 = vld [vmem:[%s2439 + $0xb8] sm:$0xff]
        %v4542 = vld [vmem:[%s2439 + $0xc0] sm:$0xff]
        %v4543 = vld [vmem:[%s2439 + $0xc8] sm:$0xff]
        %v4544 = vld [vmem:[%s2439 + $0xd0] sm:$0xff]
        %v4545 = vld [vmem:[%s2439 + $0xd8] sm:$0xff]
        %v4546 = vld [vmem:[%s2439 + $0xf0] sm:$0xff]
        %v4547 = vld [vmem:[%s2439 + $0xf8] sm:$0xff]
        %v4548 = vld [vmem:[%s2439 + $0x100] sm:$0xff]
        %v4549 = vld [vmem:[%s2439 + $0x108] sm:$0xff]
        %v4550 = vld [vmem:[%s2439 + $0x110] sm:$0xff]
        %v4551 = vld [vmem:[%s2439 + $0x118] sm:$0xff]
        %v4552 = vld [vmem:[%s2439 + $0x120] sm:$0xff]
        %v4553 = vld [vmem:[%s2439 + $0x128] sm:$0xff]
        %v4554 = vld [vmem:[%s2439 + $0x140] sm:$0xff]
        %v4555 = vld [vmem:[%s2439 + $0x148] sm:$0xff]
        %v4556 = vld [vmem:[%s2439 + $0x150] sm:$0xff]
        %v4557 = vld [vmem:[%s2439 + $0x158] sm:$0xff]
        %v4558 = vld [vmem:[%s2439 + $0x160] sm:$0xff]
        %v4559 = vld [vmem:[%s2439 + $0x168] sm:$0xff]
        %v4560 = vld [vmem:[%s2439 + $0x170] sm:$0xff]
        %v4561 = vld [vmem:[%s2439 + $0x178] sm:$0xff]
        %v4562 = vld [vmem:[%s2439 + $0x190] sm:$0xff]
        %v4563 = vld [vmem:[%s2439 + $0x198] sm:$0xff]
        %v4564 = vld [vmem:[%s2439 + $0x1a0] sm:$0xff]
        %v4565 = vld [vmem:[%s2439 + $0x1a8] sm:$0xff]
        %v4566 = vld [vmem:[%s2439 + $0x1b0] sm:$0xff]
        %v4567 = vld [vmem:[%s2439 + $0x1b8] sm:$0xff]
        %v4568 = vld [vmem:[%s2439 + $0x1c0] sm:$0xff]
        %v4569 = vld [vmem:[%s2439 + $0x1c8] sm:$0xff]
        %v4570 = vld [vmem:[%s2439 + $0x1e0] sm:$0xff]
        %v4571 = vld [vmem:[%s2439 + $0x1e8] sm:$0xff]
        %v4572 = vld [vmem:[%s2439 + $0x1f0] sm:$0xff]
        %v4573 = vld [vmem:[%s2439 + $0x1f8] sm:$0xff]
        %v4574 = vld [vmem:[%s2439 + $0x200] sm:$0xff]
        %v4575 = vld [vmem:[%s2439 + $0x208] sm:$0xff]
        %v4576 = vld [vmem:[%s2439 + $0x210] sm:$0xff]
        %v4577 = vld [vmem:[%s2439 + $0x218] sm:$0xff]
        %v4578 = vld [vmem:[%s2439 + $0x230] sm:$0xff]
        %v4579 = vld [vmem:[%s2439 + $0x238] sm:$0xff]
        %v4580 = vld [vmem:[%s2439 + $0x240] sm:$0xff]
        %v4581 = vld [vmem:[%s2439 + $0x248] sm:$0xff]
        %v4582 = vld [vmem:[%s2439 + $0x250] sm:$0xff]
        %v4583 = vld [vmem:[%s2439 + $0x258] sm:$0xff]
        %v4584 = vld [vmem:[%s2439 + $0x260] sm:$0xff]
        %v4585 = vld [vmem:[%s2439 + $0x268] sm:$0xff]
        %s4586 = scalar_lea.vmem %s5, 192
        %v4587 = vld [vmem:[%s4586] sm:$0xff]
        %v4588 = vld [vmem:[%s4586 + $0x8] sm:$0xff]
        %v4589 = vld [vmem:[%s4586 + $0x10] sm:$0xff]
        %v4590 = vld [vmem:[%s4586 + $0x18] sm:$0xff]
        %v4591 = vld [vmem:[%s4586 + $0x20] sm:$0xff]
        %v4592 = vld [vmem:[%s4586 + $0x28] sm:$0xff]
        %v4594 = vsel %vm2338, %v4522, 0
        %v4597 = vsel %vm2338, %v4523, 0
        %v4600 = vsel %vm2338, %v4524, 0
        %v4603 = vsel %vm2338, %v4525, 0
        %v4606 = vsel %vm2338, %v4526, 0
        %v4609 = vsel %vm2338, %v4527, 0
        %v4612 = vsel %vm2338, %v4528, 0
        %v4615 = vsel %vm2338, %v4529, 0
        %v4618 = vsel %vm2338, %v4530, 0
        %v4621 = vsel %vm2338, %v4531, 0
        %v4624 = vsel %vm2338, %v4532, 0
        %v4627 = vsel %vm2338, %v4533, 0
        %v4630 = vsel %vm2338, %v4534, 0
        %v4633 = vsel %vm2338, %v4535, 0
        %v4636 = vsel %vm2338, %v4536, 0
        %v4639 = vsel %vm2338, %v4537, 0
        %v4642 = vsel %vm2338, %v4538, 0
        %v4645 = vsel %vm2338, %v4539, 0
        %v4648 = vsel %vm2338, %v4540, 0
        %v4651 = vsel %vm2338, %v4541, 0
        %v4654 = vsel %vm2338, %v4542, 0
        %v4657 = vsel %vm2338, %v4543, 0
        %v4660 = vsel %vm2338, %v4544, 0
        %v4663 = vsel %vm2338, %v4545, 0
        %v4666 = vsel %vm2338, %v4546, 0
        %v4669 = vsel %vm2338, %v4547, 0
        %v4672 = vsel %vm2338, %v4548, 0
        %v4675 = vsel %vm2338, %v4549, 0
        %v4678 = vsel %vm2338, %v4550, 0
        %v4681 = vsel %vm2338, %v4551, 0
        %v4684 = vsel %vm2338, %v4552, 0
        %v4687 = vsel %vm2338, %v4553, 0
        %v4690 = vsel %vm2338, %v4554, 0
        %v4693 = vsel %vm2338, %v4555, 0
        %v4696 = vsel %vm2338, %v4556, 0
        %v4699 = vsel %vm2338, %v4557, 0
        %v4702 = vsel %vm2338, %v4558, 0
        %v4705 = vsel %vm2338, %v4559, 0
        %v4708 = vsel %vm2338, %v4560, 0
        %v4711 = vsel %vm2338, %v4561, 0
        %v4714 = vsel %vm2338, %v4562, 0
        %v4717 = vsel %vm2338, %v4563, 0
        %v4720 = vsel %vm2338, %v4564, 0
        %v4723 = vsel %vm2338, %v4565, 0
        %v4726 = vsel %vm2338, %v4566, 0
        %v4729 = vsel %vm2338, %v4567, 0
        %v4732 = vsel %vm2338, %v4568, 0
        %v4735 = vsel %vm2338, %v4569, 0
        %v4738 = vsel %vm2338, %v4570, 0
        %v4741 = vsel %vm2338, %v4571, 0
        %v4744 = vsel %vm2338, %v4572, 0
        %v4747 = vsel %vm2338, %v4573, 0
        %v4750 = vsel %vm2338, %v4574, 0
        %v4753 = vsel %vm2338, %v4575, 0
        %v4756 = vsel %vm2338, %v4576, 0
        %v4759 = vsel %vm2338, %v4577, 0
        %v4762 = vsel %vm2338, %v4578, 0
        %v4765 = vsel %vm2338, %v4579, 0
        %v4768 = vsel %vm2338, %v4580, 0
        %v4771 = vsel %vm2338, %v4581, 0
        %v4774 = vsel %vm2338, %v4582, 0
        %v4777 = vsel %vm2338, %v4583, 0
        %v4780 = vsel %vm2338, %v4584, 0
        %v4783 = vsel %vm2338, %v4585, 0
        %4785 = vmatpush.msra.mxu0 0.0
        %4786 = vmatpush.msra.mxu0 0.0
        %4787 = vmatpush.msra.mxu0 0.0
        %4788 = vmatpush.msra.mxu0 0.0
        %4789 = vmatpush.msra.mxu0 0.0
        %4790 = vmatpush.msra.mxu0 0.0
        %4791 = vmatpush.msra.mxu0 0.0
        %4792 = vmatpush.msra.mxu0 0.0
        %4793 = vmatpush.msra.mxu0 0.0
        %4794 = vmatpush.msra.mxu0 0.0
        %4795 = vmatpush.msra.mxu0 %v4592
        %4796 = vmatpush.msra.mxu0 %v4591
        %4797 = vmatpush.msra.mxu0 %v4590
        %4798 = vmatpush.msra.mxu0 %v4589
        %4799 = vmatpush.msra.mxu0 %v4588
        %4800 = vmatpush.msra.mxu0 %v4587
        %4801 = vmatmul.f32.gmra.mxu0 %v4594
        %v4802 = vpop.f32.mrf.mxu0
        %v4803 = vadd.f32 0.0, %v4802
        %4804 = vmatmul.f32.gmra.mxu0 %v4597
        %v4805 = vpop.f32.mrf.mxu0
        %v4806 = vadd.f32 0.0, %v4805
        %4807 = vmatmul.f32.gmra.mxu0 %v4600
        %v4808 = vpop.f32.mrf.mxu0
        %v4809 = vadd.f32 0.0, %v4808
        %4810 = vmatmul.f32.gmra.mxu0 %v4603
        %v4811 = vpop.f32.mrf.mxu0
        %v4812 = vadd.f32 0.0, %v4811
        %4813 = vmatmul.f32.gmra.mxu0 %v4606
        %v4814 = vpop.f32.mrf.mxu0
        %v4815 = vadd.f32 0.0, %v4814
        %4816 = vmatmul.f32.gmra.mxu0 %v4609
        %v4817 = vpop.f32.mrf.mxu0
        %v4818 = vadd.f32 0.0, %v4817
        %4819 = vmatmul.f32.gmra.mxu0 %v4612
        %v4820 = vpop.f32.mrf.mxu0
        %v4821 = vadd.f32 0.0, %v4820
        %4822 = vmatmul.f32.gmra.mxu0 %v4615
        %v4823 = vpop.f32.mrf.mxu0
        %v4824 = vadd.f32 0.0, %v4823
        %4825 = vmatmul.f32.gmra.mxu0 %v4618
        %v4826 = vpop.f32.mrf.mxu0
        %v4827 = vadd.f32 0.0, %v4826
        %4828 = vmatmul.f32.gmra.mxu0 %v4621
        %v4829 = vpop.f32.mrf.mxu0
        %v4830 = vadd.f32 0.0, %v4829
        %4831 = vmatmul.f32.gmra.mxu0 %v4624
        %v4832 = vpop.f32.mrf.mxu0
        %v4833 = vadd.f32 0.0, %v4832
        %4834 = vmatmul.f32.gmra.mxu0 %v4627
        %v4835 = vpop.f32.mrf.mxu0
        %v4836 = vadd.f32 0.0, %v4835
        %4837 = vmatmul.f32.gmra.mxu0 %v4630
        %v4838 = vpop.f32.mrf.mxu0
        %v4839 = vadd.f32 0.0, %v4838
        %4840 = vmatmul.f32.gmra.mxu0 %v4633
        %v4841 = vpop.f32.mrf.mxu0
        %v4842 = vadd.f32 0.0, %v4841
        %4843 = vmatmul.f32.gmra.mxu0 %v4636
        %v4844 = vpop.f32.mrf.mxu0
        %v4845 = vadd.f32 0.0, %v4844
        %4846 = vmatmul.f32.gmra.mxu0 %v4639
        %v4847 = vpop.f32.mrf.mxu0
        %v4848 = vadd.f32 0.0, %v4847
        %4849 = vmatmul.f32.gmra.mxu0 %v4642
        %v4850 = vpop.f32.mrf.mxu0
        %v4851 = vadd.f32 0.0, %v4850
        %4852 = vmatmul.f32.gmra.mxu0 %v4645
        %v4853 = vpop.f32.mrf.mxu0
        %v4854 = vadd.f32 0.0, %v4853
        %4855 = vmatmul.f32.gmra.mxu0 %v4648
        %v4856 = vpop.f32.mrf.mxu0
        %v4857 = vadd.f32 0.0, %v4856
        %4858 = vmatmul.f32.gmra.mxu0 %v4651
        %v4859 = vpop.f32.mrf.mxu0
        %v4860 = vadd.f32 0.0, %v4859
        %4861 = vmatmul.f32.gmra.mxu0 %v4654
        %v4862 = vpop.f32.mrf.mxu0
        %v4863 = vadd.f32 0.0, %v4862
        %4864 = vmatmul.f32.gmra.mxu0 %v4657
        %v4865 = vpop.f32.mrf.mxu0
        %v4866 = vadd.f32 0.0, %v4865
        %4867 = vmatmul.f32.gmra.mxu0 %v4660
        %v4868 = vpop.f32.mrf.mxu0
        %v4869 = vadd.f32 0.0, %v4868
        %4870 = vmatmul.f32.gmra.mxu0 %v4663
        %v4871 = vpop.f32.mrf.mxu0
        %v4872 = vadd.f32 0.0, %v4871
        %4873 = vmatmul.f32.gmra.mxu0 %v4666
        %v4874 = vpop.f32.mrf.mxu0
        %v4875 = vadd.f32 0.0, %v4874
        %4876 = vmatmul.f32.gmra.mxu0 %v4669
        %v4877 = vpop.f32.mrf.mxu0
        %v4878 = vadd.f32 0.0, %v4877
        %4879 = vmatmul.f32.gmra.mxu0 %v4672
        %v4880 = vpop.f32.mrf.mxu0
        %v4881 = vadd.f32 0.0, %v4880
        %4882 = vmatmul.f32.gmra.mxu0 %v4675
        %v4883 = vpop.f32.mrf.mxu0
        %v4884 = vadd.f32 0.0, %v4883
        %4885 = vmatmul.f32.gmra.mxu0 %v4678
        %v4886 = vpop.f32.mrf.mxu0
        %v4887 = vadd.f32 0.0, %v4886
        %4888 = vmatmul.f32.gmra.mxu0 %v4681
        %v4889 = vpop.f32.mrf.mxu0
        %v4890 = vadd.f32 0.0, %v4889
        %4891 = vmatmul.f32.gmra.mxu0 %v4684
        %v4892 = vpop.f32.mrf.mxu0
        %v4893 = vadd.f32 0.0, %v4892
        %4894 = vmatmul.f32.gmra.mxu0 %v4687
        %v4895 = vpop.f32.mrf.mxu0
        %v4896 = vadd.f32 0.0, %v4895
        %4897 = vmatmul.f32.gmra.mxu0 %v4690
        %v4898 = vpop.f32.mrf.mxu0
        %v4899 = vadd.f32 0.0, %v4898
        %4900 = vmatmul.f32.gmra.mxu0 %v4693
        %v4901 = vpop.f32.mrf.mxu0
        %v4902 = vadd.f32 0.0, %v4901
        %4903 = vmatmul.f32.gmra.mxu0 %v4696
        %v4904 = vpop.f32.mrf.mxu0
        %v4905 = vadd.f32 0.0, %v4904
        %4906 = vmatmul.f32.gmra.mxu0 %v4699
        %v4907 = vpop.f32.mrf.mxu0
        %v4908 = vadd.f32 0.0, %v4907
        %4909 = vmatmul.f32.gmra.mxu0 %v4702
        %v4910 = vpop.f32.mrf.mxu0
        %v4911 = vadd.f32 0.0, %v4910
        %4912 = vmatmul.f32.gmra.mxu0 %v4705
        %v4913 = vpop.f32.mrf.mxu0
        %v4914 = vadd.f32 0.0, %v4913
        %4915 = vmatmul.f32.gmra.mxu0 %v4708
        %v4916 = vpop.f32.mrf.mxu0
        %v4917 = vadd.f32 0.0, %v4916
        %4918 = vmatmul.f32.gmra.mxu0 %v4711
        %v4919 = vpop.f32.mrf.mxu0
        %v4920 = vadd.f32 0.0, %v4919
        %4921 = vmatmul.f32.gmra.mxu0 %v4714
        %v4922 = vpop.f32.mrf.mxu0
        %v4923 = vadd.f32 0.0, %v4922
        %4924 = vmatmul.f32.gmra.mxu0 %v4717
        %v4925 = vpop.f32.mrf.mxu0
        %v4926 = vadd.f32 0.0, %v4925
        %4927 = vmatmul.f32.gmra.mxu0 %v4720
        %v4928 = vpop.f32.mrf.mxu0
        %v4929 = vadd.f32 0.0, %v4928
        %4930 = vmatmul.f32.gmra.mxu0 %v4723
        %v4931 = vpop.f32.mrf.mxu0
        %v4932 = vadd.f32 0.0, %v4931
        %4933 = vmatmul.f32.gmra.mxu0 %v4726
        %v4934 = vpop.f32.mrf.mxu0
        %v4935 = vadd.f32 0.0, %v4934
        %4936 = vmatmul.f32.gmra.mxu0 %v4729
        %v4937 = vpop.f32.mrf.mxu0
        %v4938 = vadd.f32 0.0, %v4937
        %4939 = vmatmul.f32.gmra.mxu0 %v4732
        %v4940 = vpop.f32.mrf.mxu0
        %v4941 = vadd.f32 0.0, %v4940
        %4942 = vmatmul.f32.gmra.mxu0 %v4735
        %v4943 = vpop.f32.mrf.mxu0
        %v4944 = vadd.f32 0.0, %v4943
        %4945 = vmatmul.f32.gmra.mxu0 %v4738
        %v4946 = vpop.f32.mrf.mxu0
        %v4947 = vadd.f32 0.0, %v4946
        %4948 = vmatmul.f32.gmra.mxu0 %v4741
        %v4949 = vpop.f32.mrf.mxu0
        %v4950 = vadd.f32 0.0, %v4949
        %4951 = vmatmul.f32.gmra.mxu0 %v4744
        %v4952 = vpop.f32.mrf.mxu0
        %v4953 = vadd.f32 0.0, %v4952
        %4954 = vmatmul.f32.gmra.mxu0 %v4747
        %v4955 = vpop.f32.mrf.mxu0
        %v4956 = vadd.f32 0.0, %v4955
        %4957 = vmatmul.f32.gmra.mxu0 %v4750
        %v4958 = vpop.f32.mrf.mxu0
        %v4959 = vadd.f32 0.0, %v4958
        %4960 = vmatmul.f32.gmra.mxu0 %v4753
        %v4961 = vpop.f32.mrf.mxu0
        %v4962 = vadd.f32 0.0, %v4961
        %4963 = vmatmul.f32.gmra.mxu0 %v4756
        %v4964 = vpop.f32.mrf.mxu0
        %v4965 = vadd.f32 0.0, %v4964
        %4966 = vmatmul.f32.gmra.mxu0 %v4759
        %v4967 = vpop.f32.mrf.mxu0
        %v4968 = vadd.f32 0.0, %v4967
        %4969 = vmatmul.f32.gmra.mxu0 %v4762
        %v4970 = vpop.f32.mrf.mxu0
        %v4971 = vadd.f32 0.0, %v4970
        %4972 = vmatmul.f32.gmra.mxu0 %v4765
        %v4973 = vpop.f32.mrf.mxu0
        %v4974 = vadd.f32 0.0, %v4973
        %4975 = vmatmul.f32.gmra.mxu0 %v4768
        %v4976 = vpop.f32.mrf.mxu0
        %v4977 = vadd.f32 0.0, %v4976
        %4978 = vmatmul.f32.gmra.mxu0 %v4771
        %v4979 = vpop.f32.mrf.mxu0
        %v4980 = vadd.f32 0.0, %v4979
        %4981 = vmatmul.f32.gmra.mxu0 %v4774
        %v4982 = vpop.f32.mrf.mxu0
        %v4983 = vadd.f32 0.0, %v4982
        %4984 = vmatmul.f32.gmra.mxu0 %v4777
        %v4985 = vpop.f32.mrf.mxu0
        %v4986 = vadd.f32 0.0, %v4985
        %4987 = vmatmul.f32.gmra.mxu0 %v4780
        %v4988 = vpop.f32.mrf.mxu0
        %v4989 = vadd.f32 0.0, %v4988
        %4990 = vmatmul.f32.gmra.mxu0 %v4783
        %v4991 = vpop.f32.mrf.mxu0
        %v4992 = vadd.f32 0.0, %v4991
        %4993 = vdwg.mxu0
        %v4994 = vadd.f32 %v4458, %v4803
        %v4995 = vadd.f32 %v4459, %v4806
        %v4996 = vadd.f32 %v4460, %v4809
        %v4997 = vadd.f32 %v4461, %v4812
        %v4998 = vadd.f32 %v4462, %v4815
        %v4999 = vadd.f32 %v4463, %v4818
        %v5000 = vadd.f32 %v4464, %v4821
        %v5001 = vadd.f32 %v4465, %v4824
        %v5002 = vadd.f32 %v4466, %v4827
        %v5003 = vadd.f32 %v4467, %v4830
        %v5004 = vadd.f32 %v4468, %v4833
        %v5005 = vadd.f32 %v4469, %v4836
        %v5006 = vadd.f32 %v4470, %v4839
        %v5007 = vadd.f32 %v4471, %v4842
        %v5008 = vadd.f32 %v4472, %v4845
        %v5009 = vadd.f32 %v4473, %v4848
        %v5010 = vadd.f32 %v4474, %v4851
        %v5011 = vadd.f32 %v4475, %v4854
        %v5012 = vadd.f32 %v4476, %v4857
        %v5013 = vadd.f32 %v4477, %v4860
        %v5014 = vadd.f32 %v4478, %v4863
        %v5015 = vadd.f32 %v4479, %v4866
        %v5016 = vadd.f32 %v4480, %v4869
        %v5017 = vadd.f32 %v4481, %v4872
        %v5018 = vadd.f32 %v4482, %v4875
        %v5019 = vadd.f32 %v4483, %v4878
        %v5020 = vadd.f32 %v4484, %v4881
        %v5021 = vadd.f32 %v4485, %v4884
        %v5022 = vadd.f32 %v4486, %v4887
        %v5023 = vadd.f32 %v4487, %v4890
        %v5024 = vadd.f32 %v4488, %v4893
        %v5025 = vadd.f32 %v4489, %v4896
        %v5026 = vadd.f32 %v4490, %v4899
        %v5027 = vadd.f32 %v4491, %v4902
        %v5028 = vadd.f32 %v4492, %v4905
        %v5029 = vadd.f32 %v4493, %v4908
        %v5030 = vadd.f32 %v4494, %v4911
        %v5031 = vadd.f32 %v4495, %v4914
        %v5032 = vadd.f32 %v4496, %v4917
        %v5033 = vadd.f32 %v4497, %v4920
        %v5034 = vadd.f32 %v4498, %v4923
        %v5035 = vadd.f32 %v4499, %v4926
        %v5036 = vadd.f32 %v4500, %v4929
        %v5037 = vadd.f32 %v4501, %v4932
        %v5038 = vadd.f32 %v4502, %v4935
        %v5039 = vadd.f32 %v4503, %v4938
        %v5040 = vadd.f32 %v4504, %v4941
        %v5041 = vadd.f32 %v4505, %v4944
        %v5042 = vadd.f32 %v4506, %v4947
        %v5043 = vadd.f32 %v4507, %v4950
        %v5044 = vadd.f32 %v4508, %v4953
        %v5045 = vadd.f32 %v4509, %v4956
        %v5046 = vadd.f32 %v4510, %v4959
        %v5047 = vadd.f32 %v4511, %v4962
        %v5048 = vadd.f32 %v4512, %v4965
        %v5049 = vadd.f32 %v4513, %v4968
        %v5050 = vadd.f32 %v4514, %v4971
        %v5051 = vadd.f32 %v4515, %v4974
        %v5052 = vadd.f32 %v4516, %v4977
        %v5053 = vadd.f32 %v4517, %v4980
        %v5054 = vadd.f32 %v4518, %v4983
        %v5055 = vadd.f32 %v4519, %v4986
        %v5056 = vadd.f32 %v4520, %v4989
        %v5057 = vadd.f32 %v4521, %v4992
        %s5058 = scalar_lea.vmem [#allocation2], 96
        %v5059 = vld [vmem:[%s5058] sm:$0xff]
        %v5060 = vld [vmem:[%s5058 + $0x8] sm:$0xff]
        %v5061 = vld [vmem:[%s5058 + $0x10] sm:$0xff]
        %v5062 = vld [vmem:[%s5058 + $0x18] sm:$0xff]
        %v5063 = vld [vmem:[%s5058 + $0x20] sm:$0xff]
        %v5064 = vld [vmem:[%s5058 + $0x28] sm:$0xff]
        %v5065 = vld [vmem:[%s5058 + $0x30] sm:$0xff]
        %v5066 = vld [vmem:[%s5058 + $0x38] sm:$0xff]
        %v5067 = vld [vmem:[%s5058 + $0x50] sm:$0xff]
        %v5068 = vld [vmem:[%s5058 + $0x58] sm:$0xff]
        %v5069 = vld [vmem:[%s5058 + $0x60] sm:$0xff]
        %v5070 = vld [vmem:[%s5058 + $0x68] sm:$0xff]
        %v5071 = vld [vmem:[%s5058 + $0x70] sm:$0xff]
        %v5072 = vld [vmem:[%s5058 + $0x78] sm:$0xff]
        %v5073 = vld [vmem:[%s5058 + $0x80] sm:$0xff]
        %v5074 = vld [vmem:[%s5058 + $0x88] sm:$0xff]
        %v5075 = vld [vmem:[%s5058 + $0xa0] sm:$0xff]
        %v5076 = vld [vmem:[%s5058 + $0xa8] sm:$0xff]
        %v5077 = vld [vmem:[%s5058 + $0xb0] sm:$0xff]
        %v5078 = vld [vmem:[%s5058 + $0xb8] sm:$0xff]
        %v5079 = vld [vmem:[%s5058 + $0xc0] sm:$0xff]
        %v5080 = vld [vmem:[%s5058 + $0xc8] sm:$0xff]
        %v5081 = vld [vmem:[%s5058 + $0xd0] sm:$0xff]
        %v5082 = vld [vmem:[%s5058 + $0xd8] sm:$0xff]
        %v5083 = vld [vmem:[%s5058 + $0xf0] sm:$0xff]
        %v5084 = vld [vmem:[%s5058 + $0xf8] sm:$0xff]
        %v5085 = vld [vmem:[%s5058 + $0x100] sm:$0xff]
        %v5086 = vld [vmem:[%s5058 + $0x108] sm:$0xff]
        %v5087 = vld [vmem:[%s5058 + $0x110] sm:$0xff]
        %v5088 = vld [vmem:[%s5058 + $0x118] sm:$0xff]
        %v5089 = vld [vmem:[%s5058 + $0x120] sm:$0xff]
        %v5090 = vld [vmem:[%s5058 + $0x128] sm:$0xff]
        %v5091 = vld [vmem:[%s5058 + $0x140] sm:$0xff]
        %v5092 = vld [vmem:[%s5058 + $0x148] sm:$0xff]
        %v5093 = vld [vmem:[%s5058 + $0x150] sm:$0xff]
        %v5094 = vld [vmem:[%s5058 + $0x158] sm:$0xff]
        %v5095 = vld [vmem:[%s5058 + $0x160] sm:$0xff]
        %v5096 = vld [vmem:[%s5058 + $0x168] sm:$0xff]
        %v5097 = vld [vmem:[%s5058 + $0x170] sm:$0xff]
        %v5098 = vld [vmem:[%s5058 + $0x178] sm:$0xff]
        %v5099 = vld [vmem:[%s5058 + $0x190] sm:$0xff]
        %v5100 = vld [vmem:[%s5058 + $0x198] sm:$0xff]
        %v5101 = vld [vmem:[%s5058 + $0x1a0] sm:$0xff]
        %v5102 = vld [vmem:[%s5058 + $0x1a8] sm:$0xff]
        %v5103 = vld [vmem:[%s5058 + $0x1b0] sm:$0xff]
        %v5104 = vld [vmem:[%s5058 + $0x1b8] sm:$0xff]
        %v5105 = vld [vmem:[%s5058 + $0x1c0] sm:$0xff]
        %v5106 = vld [vmem:[%s5058 + $0x1c8] sm:$0xff]
        %v5107 = vld [vmem:[%s5058 + $0x1e0] sm:$0xff]
        %v5108 = vld [vmem:[%s5058 + $0x1e8] sm:$0xff]
        %v5109 = vld [vmem:[%s5058 + $0x1f0] sm:$0xff]
        %v5110 = vld [vmem:[%s5058 + $0x1f8] sm:$0xff]
        %v5111 = vld [vmem:[%s5058 + $0x200] sm:$0xff]
        %v5112 = vld [vmem:[%s5058 + $0x208] sm:$0xff]
        %v5113 = vld [vmem:[%s5058 + $0x210] sm:$0xff]
        %v5114 = vld [vmem:[%s5058 + $0x218] sm:$0xff]
        %v5115 = vld [vmem:[%s5058 + $0x230] sm:$0xff]
        %v5116 = vld [vmem:[%s5058 + $0x238] sm:$0xff]
        %v5117 = vld [vmem:[%s5058 + $0x240] sm:$0xff]
        %v5118 = vld [vmem:[%s5058 + $0x248] sm:$0xff]
        %v5119 = vld [vmem:[%s5058 + $0x250] sm:$0xff]
        %v5120 = vld [vmem:[%s5058 + $0x258] sm:$0xff]
        %v5121 = vld [vmem:[%s5058 + $0x260] sm:$0xff]
        %v5122 = vld [vmem:[%s5058 + $0x268] sm:$0xff]
        %s5123 = scalar_lea.vmem %s5, 240
        %v5124 = vld [vmem:[%s5123] sm:$0xff]
        %v5125 = vld [vmem:[%s5123 + $0x8] sm:$0xff]
        %v5126 = vld [vmem:[%s5123 + $0x10] sm:$0xff]
        %v5127 = vld [vmem:[%s5123 + $0x18] sm:$0xff]
        %v5128 = vld [vmem:[%s5123 + $0x20] sm:$0xff]
        %v5129 = vld [vmem:[%s5123 + $0x28] sm:$0xff]
        %v5131 = vsel %vm2338, %v5059, 0
        %v5134 = vsel %vm2338, %v5060, 0
        %v5137 = vsel %vm2338, %v5061, 0
        %v5140 = vsel %vm2338, %v5062, 0
        %v5143 = vsel %vm2338, %v5063, 0
        %v5146 = vsel %vm2338, %v5064, 0
        %v5149 = vsel %vm2338, %v5065, 0
        %v5152 = vsel %vm2338, %v5066, 0
        %v5155 = vsel %vm2338, %v5067, 0
        %v5158 = vsel %vm2338, %v5068, 0
        %v5161 = vsel %vm2338, %v5069, 0
        %v5164 = vsel %vm2338, %v5070, 0
        %v5167 = vsel %vm2338, %v5071, 0
        %v5170 = vsel %vm2338, %v5072, 0
        %v5173 = vsel %vm2338, %v5073, 0
        %v5176 = vsel %vm2338, %v5074, 0
        %v5179 = vsel %vm2338, %v5075, 0
        %v5182 = vsel %vm2338, %v5076, 0
        %v5185 = vsel %vm2338, %v5077, 0
        %v5188 = vsel %vm2338, %v5078, 0
        %v5191 = vsel %vm2338, %v5079, 0
        %v5194 = vsel %vm2338, %v5080, 0
        %v5197 = vsel %vm2338, %v5081, 0
        %v5200 = vsel %vm2338, %v5082, 0
        %v5203 = vsel %vm2338, %v5083, 0
        %v5206 = vsel %vm2338, %v5084, 0
        %v5209 = vsel %vm2338, %v5085, 0
        %v5212 = vsel %vm2338, %v5086, 0
        %v5215 = vsel %vm2338, %v5087, 0
        %v5218 = vsel %vm2338, %v5088, 0
        %v5221 = vsel %vm2338, %v5089, 0
        %v5224 = vsel %vm2338, %v5090, 0
        %v5227 = vsel %vm2338, %v5091, 0
        %v5230 = vsel %vm2338, %v5092, 0
        %v5233 = vsel %vm2338, %v5093, 0
        %v5236 = vsel %vm2338, %v5094, 0
        %v5239 = vsel %vm2338, %v5095, 0
        %v5242 = vsel %vm2338, %v5096, 0
        %v5245 = vsel %vm2338, %v5097, 0
        %v5248 = vsel %vm2338, %v5098, 0
        %v5251 = vsel %vm2338, %v5099, 0
        %v5254 = vsel %vm2338, %v5100, 0
        %v5257 = vsel %vm2338, %v5101, 0
        %v5260 = vsel %vm2338, %v5102, 0
        %v5263 = vsel %vm2338, %v5103, 0
        %v5266 = vsel %vm2338, %v5104, 0
        %v5269 = vsel %vm2338, %v5105, 0
        %v5272 = vsel %vm2338, %v5106, 0
        %v5275 = vsel %vm2338, %v5107, 0
        %v5278 = vsel %vm2338, %v5108, 0
        %v5281 = vsel %vm2338, %v5109, 0
        %v5284 = vsel %vm2338, %v5110, 0
        %v5287 = vsel %vm2338, %v5111, 0
        %v5290 = vsel %vm2338, %v5112, 0
        %v5293 = vsel %vm2338, %v5113, 0
        %v5296 = vsel %vm2338, %v5114, 0
        %v5299 = vsel %vm2338, %v5115, 0
        %v5302 = vsel %vm2338, %v5116, 0
        %v5305 = vsel %vm2338, %v5117, 0
        %v5308 = vsel %vm2338, %v5118, 0
        %v5311 = vsel %vm2338, %v5119, 0
        %v5314 = vsel %vm2338, %v5120, 0
        %v5317 = vsel %vm2338, %v5121, 0
        %v5320 = vsel %vm2338, %v5122, 0
        %5322 = vmatpush.msra.mxu0 0.0
        %5323 = vmatpush.msra.mxu0 0.0
        %5324 = vmatpush.msra.mxu0 0.0
        %5325 = vmatpush.msra.mxu0 0.0
        %5326 = vmatpush.msra.mxu0 0.0
        %5327 = vmatpush.msra.mxu0 0.0
        %5328 = vmatpush.msra.mxu0 0.0
        %5329 = vmatpush.msra.mxu0 0.0
        %5330 = vmatpush.msra.mxu0 0.0
        %5331 = vmatpush.msra.mxu0 0.0
        %5332 = vmatpush.msra.mxu0 %v5129
        %5333 = vmatpush.msra.mxu0 %v5128
        %5334 = vmatpush.msra.mxu0 %v5127
        %5335 = vmatpush.msra.mxu0 %v5126
        %5336 = vmatpush.msra.mxu0 %v5125
        %5337 = vmatpush.msra.mxu0 %v5124
        %5338 = vmatmul.f32.gmra.mxu0 %v5131
        %v5339 = vpop.f32.mrf.mxu0
        %v5340 = vadd.f32 0.0, %v5339
        %5341 = vmatmul.f32.gmra.mxu0 %v5134
        %v5342 = vpop.f32.mrf.mxu0
        %v5343 = vadd.f32 0.0, %v5342
        %5344 = vmatmul.f32.gmra.mxu0 %v5137
        %v5345 = vpop.f32.mrf.mxu0
        %v5346 = vadd.f32 0.0, %v5345
        %5347 = vmatmul.f32.gmra.mxu0 %v5140
        %v5348 = vpop.f32.mrf.mxu0
        %v5349 = vadd.f32 0.0, %v5348
        %5350 = vmatmul.f32.gmra.mxu0 %v5143
        %v5351 = vpop.f32.mrf.mxu0
        %v5352 = vadd.f32 0.0, %v5351
        %5353 = vmatmul.f32.gmra.mxu0 %v5146
        %v5354 = vpop.f32.mrf.mxu0
        %v5355 = vadd.f32 0.0, %v5354
        %5356 = vmatmul.f32.gmra.mxu0 %v5149
        %v5357 = vpop.f32.mrf.mxu0
        %v5358 = vadd.f32 0.0, %v5357
        %5359 = vmatmul.f32.gmra.mxu0 %v5152
        %v5360 = vpop.f32.mrf.mxu0
        %v5361 = vadd.f32 0.0, %v5360
        %5362 = vmatmul.f32.gmra.mxu0 %v5155
        %v5363 = vpop.f32.mrf.mxu0
        %v5364 = vadd.f32 0.0, %v5363
        %5365 = vmatmul.f32.gmra.mxu0 %v5158
        %v5366 = vpop.f32.mrf.mxu0
        %v5367 = vadd.f32 0.0, %v5366
        %5368 = vmatmul.f32.gmra.mxu0 %v5161
        %v5369 = vpop.f32.mrf.mxu0
        %v5370 = vadd.f32 0.0, %v5369
        %5371 = vmatmul.f32.gmra.mxu0 %v5164
        %v5372 = vpop.f32.mrf.mxu0
        %v5373 = vadd.f32 0.0, %v5372
        %5374 = vmatmul.f32.gmra.mxu0 %v5167
        %v5375 = vpop.f32.mrf.mxu0
        %v5376 = vadd.f32 0.0, %v5375
        %5377 = vmatmul.f32.gmra.mxu0 %v5170
        %v5378 = vpop.f32.mrf.mxu0
        %v5379 = vadd.f32 0.0, %v5378
        %5380 = vmatmul.f32.gmra.mxu0 %v5173
        %v5381 = vpop.f32.mrf.mxu0
        %v5382 = vadd.f32 0.0, %v5381
        %5383 = vmatmul.f32.gmra.mxu0 %v5176
        %v5384 = vpop.f32.mrf.mxu0
        %v5385 = vadd.f32 0.0, %v5384
        %5386 = vmatmul.f32.gmra.mxu0 %v5179
        %v5387 = vpop.f32.mrf.mxu0
        %v5388 = vadd.f32 0.0, %v5387
        %5389 = vmatmul.f32.gmra.mxu0 %v5182
        %v5390 = vpop.f32.mrf.mxu0
        %v5391 = vadd.f32 0.0, %v5390
        %5392 = vmatmul.f32.gmra.mxu0 %v5185
        %v5393 = vpop.f32.mrf.mxu0
        %v5394 = vadd.f32 0.0, %v5393
        %5395 = vmatmul.f32.gmra.mxu0 %v5188
        %v5396 = vpop.f32.mrf.mxu0
        %v5397 = vadd.f32 0.0, %v5396
        %5398 = vmatmul.f32.gmra.mxu0 %v5191
        %v5399 = vpop.f32.mrf.mxu0
        %v5400 = vadd.f32 0.0, %v5399
        %5401 = vmatmul.f32.gmra.mxu0 %v5194
        %v5402 = vpop.f32.mrf.mxu0
        %v5403 = vadd.f32 0.0, %v5402
        %5404 = vmatmul.f32.gmra.mxu0 %v5197
        %v5405 = vpop.f32.mrf.mxu0
        %v5406 = vadd.f32 0.0, %v5405
        %5407 = vmatmul.f32.gmra.mxu0 %v5200
        %v5408 = vpop.f32.mrf.mxu0
        %v5409 = vadd.f32 0.0, %v5408
        %5410 = vmatmul.f32.gmra.mxu0 %v5203
        %v5411 = vpop.f32.mrf.mxu0
        %v5412 = vadd.f32 0.0, %v5411
        %5413 = vmatmul.f32.gmra.mxu0 %v5206
        %v5414 = vpop.f32.mrf.mxu0
        %v5415 = vadd.f32 0.0, %v5414
        %5416 = vmatmul.f32.gmra.mxu0 %v5209
        %v5417 = vpop.f32.mrf.mxu0
        %v5418 = vadd.f32 0.0, %v5417
        %5419 = vmatmul.f32.gmra.mxu0 %v5212
        %v5420 = vpop.f32.mrf.mxu0
        %v5421 = vadd.f32 0.0, %v5420
        %5422 = vmatmul.f32.gmra.mxu0 %v5215
        %v5423 = vpop.f32.mrf.mxu0
        %v5424 = vadd.f32 0.0, %v5423
        %5425 = vmatmul.f32.gmra.mxu0 %v5218
        %v5426 = vpop.f32.mrf.mxu0
        %v5427 = vadd.f32 0.0, %v5426
        %5428 = vmatmul.f32.gmra.mxu0 %v5221
        %v5429 = vpop.f32.mrf.mxu0
        %v5430 = vadd.f32 0.0, %v5429
        %5431 = vmatmul.f32.gmra.mxu0 %v5224
        %v5432 = vpop.f32.mrf.mxu0
        %v5433 = vadd.f32 0.0, %v5432
        %5434 = vmatmul.f32.gmra.mxu0 %v5227
        %v5435 = vpop.f32.mrf.mxu0
        %v5436 = vadd.f32 0.0, %v5435
        %5437 = vmatmul.f32.gmra.mxu0 %v5230
        %v5438 = vpop.f32.mrf.mxu0
        %v5439 = vadd.f32 0.0, %v5438
        %5440 = vmatmul.f32.gmra.mxu0 %v5233
        %v5441 = vpop.f32.mrf.mxu0
        %v5442 = vadd.f32 0.0, %v5441
        %5443 = vmatmul.f32.gmra.mxu0 %v5236
        %v5444 = vpop.f32.mrf.mxu0
        %v5445 = vadd.f32 0.0, %v5444
        %5446 = vmatmul.f32.gmra.mxu0 %v5239
        %v5447 = vpop.f32.mrf.mxu0
        %v5448 = vadd.f32 0.0, %v5447
        %5449 = vmatmul.f32.gmra.mxu0 %v5242
        %v5450 = vpop.f32.mrf.mxu0
        %v5451 = vadd.f32 0.0, %v5450
        %5452 = vmatmul.f32.gmra.mxu0 %v5245
        %v5453 = vpop.f32.mrf.mxu0
        %v5454 = vadd.f32 0.0, %v5453
        %5455 = vmatmul.f32.gmra.mxu0 %v5248
        %v5456 = vpop.f32.mrf.mxu0
        %v5457 = vadd.f32 0.0, %v5456
        %5458 = vmatmul.f32.gmra.mxu0 %v5251
        %v5459 = vpop.f32.mrf.mxu0
        %v5460 = vadd.f32 0.0, %v5459
        %5461 = vmatmul.f32.gmra.mxu0 %v5254
        %v5462 = vpop.f32.mrf.mxu0
        %v5463 = vadd.f32 0.0, %v5462
        %5464 = vmatmul.f32.gmra.mxu0 %v5257
        %v5465 = vpop.f32.mrf.mxu0
        %v5466 = vadd.f32 0.0, %v5465
        %5467 = vmatmul.f32.gmra.mxu0 %v5260
        %v5468 = vpop.f32.mrf.mxu0
        %v5469 = vadd.f32 0.0, %v5468
        %5470 = vmatmul.f32.gmra.mxu0 %v5263
        %v5471 = vpop.f32.mrf.mxu0
        %v5472 = vadd.f32 0.0, %v5471
        %5473 = vmatmul.f32.gmra.mxu0 %v5266
        %v5474 = vpop.f32.mrf.mxu0
        %v5475 = vadd.f32 0.0, %v5474
        %5476 = vmatmul.f32.gmra.mxu0 %v5269
        %v5477 = vpop.f32.mrf.mxu0
        %v5478 = vadd.f32 0.0, %v5477
        %5479 = vmatmul.f32.gmra.mxu0 %v5272
        %v5480 = vpop.f32.mrf.mxu0
        %v5481 = vadd.f32 0.0, %v5480
        %5482 = vmatmul.f32.gmra.mxu0 %v5275
        %v5483 = vpop.f32.mrf.mxu0
        %v5484 = vadd.f32 0.0, %v5483
        %5485 = vmatmul.f32.gmra.mxu0 %v5278
        %v5486 = vpop.f32.mrf.mxu0
        %v5487 = vadd.f32 0.0, %v5486
        %5488 = vmatmul.f32.gmra.mxu0 %v5281
        %v5489 = vpop.f32.mrf.mxu0
        %v5490 = vadd.f32 0.0, %v5489
        %5491 = vmatmul.f32.gmra.mxu0 %v5284
        %v5492 = vpop.f32.mrf.mxu0
        %v5493 = vadd.f32 0.0, %v5492
        %5494 = vmatmul.f32.gmra.mxu0 %v5287
        %v5495 = vpop.f32.mrf.mxu0
        %v5496 = vadd.f32 0.0, %v5495
        %5497 = vmatmul.f32.gmra.mxu0 %v5290
        %v5498 = vpop.f32.mrf.mxu0
        %v5499 = vadd.f32 0.0, %v5498
        %5500 = vmatmul.f32.gmra.mxu0 %v5293
        %v5501 = vpop.f32.mrf.mxu0
        %v5502 = vadd.f32 0.0, %v5501
        %5503 = vmatmul.f32.gmra.mxu0 %v5296
        %v5504 = vpop.f32.mrf.mxu0
        %v5505 = vadd.f32 0.0, %v5504
        %5506 = vmatmul.f32.gmra.mxu0 %v5299
        %v5507 = vpop.f32.mrf.mxu0
        %v5508 = vadd.f32 0.0, %v5507
        %5509 = vmatmul.f32.gmra.mxu0 %v5302
        %v5510 = vpop.f32.mrf.mxu0
        %v5511 = vadd.f32 0.0, %v5510
        %5512 = vmatmul.f32.gmra.mxu0 %v5305
        %v5513 = vpop.f32.mrf.mxu0
        %v5514 = vadd.f32 0.0, %v5513
        %5515 = vmatmul.f32.gmra.mxu0 %v5308
        %v5516 = vpop.f32.mrf.mxu0
        %v5517 = vadd.f32 0.0, %v5516
        %5518 = vmatmul.f32.gmra.mxu0 %v5311
        %v5519 = vpop.f32.mrf.mxu0
        %v5520 = vadd.f32 0.0, %v5519
        %5521 = vmatmul.f32.gmra.mxu0 %v5314
        %v5522 = vpop.f32.mrf.mxu0
        %v5523 = vadd.f32 0.0, %v5522
        %5524 = vmatmul.f32.gmra.mxu0 %v5317
        %v5525 = vpop.f32.mrf.mxu0
        %v5526 = vadd.f32 0.0, %v5525
        %5527 = vmatmul.f32.gmra.mxu0 %v5320
        %v5528 = vpop.f32.mrf.mxu0
        %v5529 = vadd.f32 0.0, %v5528
        %5530 = vdwg.mxu0
        %v5531 = vadd.f32 %v4994, %v5340
        %v5532 = vadd.f32 %v4995, %v5343
        %v5533 = vadd.f32 %v4996, %v5346
        %v5534 = vadd.f32 %v4997, %v5349
        %v5535 = vadd.f32 %v4998, %v5352
        %v5536 = vadd.f32 %v4999, %v5355
        %v5537 = vadd.f32 %v5000, %v5358
        %v5538 = vadd.f32 %v5001, %v5361
        %v5539 = vadd.f32 %v5002, %v5364
        %v5540 = vadd.f32 %v5003, %v5367
        %v5541 = vadd.f32 %v5004, %v5370
        %v5542 = vadd.f32 %v5005, %v5373
        %v5543 = vadd.f32 %v5006, %v5376
        %v5544 = vadd.f32 %v5007, %v5379
        %v5545 = vadd.f32 %v5008, %v5382
        %v5546 = vadd.f32 %v5009, %v5385
        %v5547 = vadd.f32 %v5010, %v5388
        %v5548 = vadd.f32 %v5011, %v5391
        %v5549 = vadd.f32 %v5012, %v5394
        %v5550 = vadd.f32 %v5013, %v5397
        %v5551 = vadd.f32 %v5014, %v5400
        %v5552 = vadd.f32 %v5015, %v5403
        %v5553 = vadd.f32 %v5016, %v5406
        %v5554 = vadd.f32 %v5017, %v5409
        %v5555 = vadd.f32 %v5018, %v5412
        %v5556 = vadd.f32 %v5019, %v5415
        %v5557 = vadd.f32 %v5020, %v5418
        %v5558 = vadd.f32 %v5021, %v5421
        %v5559 = vadd.f32 %v5022, %v5424
        %v5560 = vadd.f32 %v5023, %v5427
        %v5561 = vadd.f32 %v5024, %v5430
        %v5562 = vadd.f32 %v5025, %v5433
        %v5563 = vadd.f32 %v5026, %v5436
        %v5564 = vadd.f32 %v5027, %v5439
        %v5565 = vadd.f32 %v5028, %v5442
        %v5566 = vadd.f32 %v5029, %v5445
        %v5567 = vadd.f32 %v5030, %v5448
        %v5568 = vadd.f32 %v5031, %v5451
        %v5569 = vadd.f32 %v5032, %v5454
        %v5570 = vadd.f32 %v5033, %v5457
        %v5571 = vadd.f32 %v5034, %v5460
        %v5572 = vadd.f32 %v5035, %v5463
        %v5573 = vadd.f32 %v5036, %v5466
        %v5574 = vadd.f32 %v5037, %v5469
        %v5575 = vadd.f32 %v5038, %v5472
        %v5576 = vadd.f32 %v5039, %v5475
        %v5577 = vadd.f32 %v5040, %v5478
        %v5578 = vadd.f32 %v5041, %v5481
        %v5579 = vadd.f32 %v5042, %v5484
        %v5580 = vadd.f32 %v5043, %v5487
        %v5581 = vadd.f32 %v5044, %v5490
        %v5582 = vadd.f32 %v5045, %v5493
        %v5583 = vadd.f32 %v5046, %v5496
        %v5584 = vadd.f32 %v5047, %v5499
        %v5585 = vadd.f32 %v5048, %v5502
        %v5586 = vadd.f32 %v5049, %v5505
        %v5587 = vadd.f32 %v5050, %v5508
        %v5588 = vadd.f32 %v5051, %v5511
        %v5589 = vadd.f32 %v5052, %v5514
        %v5590 = vadd.f32 %v5053, %v5517
        %v5591 = vadd.f32 %v5054, %v5520
        %v5592 = vadd.f32 %v5055, %v5523
        %v5593 = vadd.f32 %v5056, %v5526
        %v5594 = vadd.f32 %v5057, %v5529
        %s5595 = scalar_lea.vmem [#allocation2], 160
        %v5596 = vld [vmem:[%s5595] sm:$0xff]
        %v5597 = vld [vmem:[%s5595 + $0x8] sm:$0xff]
        %v5598 = vld [vmem:[%s5595 + $0x10] sm:$0xff]
        %v5599 = vld [vmem:[%s5595 + $0x18] sm:$0xff]
        %v5600 = vld [vmem:[%s5595 + $0x20] sm:$0xff]
        %v5601 = vld [vmem:[%s5595 + $0x28] sm:$0xff]
        %v5602 = vld [vmem:[%s5595 + $0x30] sm:$0xff]
        %v5603 = vld [vmem:[%s5595 + $0x38] sm:$0xff]
        %v5604 = vld [vmem:[%s5595 + $0x50] sm:$0xff]
        %v5605 = vld [vmem:[%s5595 + $0x58] sm:$0xff]
        %v5606 = vld [vmem:[%s5595 + $0x60] sm:$0xff]
        %v5607 = vld [vmem:[%s5595 + $0x68] sm:$0xff]
        %v5608 = vld [vmem:[%s5595 + $0x70] sm:$0xff]
        %v5609 = vld [vmem:[%s5595 + $0x78] sm:$0xff]
        %v5610 = vld [vmem:[%s5595 + $0x80] sm:$0xff]
        %v5611 = vld [vmem:[%s5595 + $0x88] sm:$0xff]
        %v5612 = vld [vmem:[%s5595 + $0xa0] sm:$0xff]
        %v5613 = vld [vmem:[%s5595 + $0xa8] sm:$0xff]
        %v5614 = vld [vmem:[%s5595 + $0xb0] sm:$0xff]
        %v5615 = vld [vmem:[%s5595 + $0xb8] sm:$0xff]
        %v5616 = vld [vmem:[%s5595 + $0xc0] sm:$0xff]
        %v5617 = vld [vmem:[%s5595 + $0xc8] sm:$0xff]
        %v5618 = vld [vmem:[%s5595 + $0xd0] sm:$0xff]
        %v5619 = vld [vmem:[%s5595 + $0xd8] sm:$0xff]
        %v5620 = vld [vmem:[%s5595 + $0xf0] sm:$0xff]
        %v5621 = vld [vmem:[%s5595 + $0xf8] sm:$0xff]
        %v5622 = vld [vmem:[%s5595 + $0x100] sm:$0xff]
        %v5623 = vld [vmem:[%s5595 + $0x108] sm:$0xff]
        %v5624 = vld [vmem:[%s5595 + $0x110] sm:$0xff]
        %v5625 = vld [vmem:[%s5595 + $0x118] sm:$0xff]
        %v5626 = vld [vmem:[%s5595 + $0x120] sm:$0xff]
        %v5627 = vld [vmem:[%s5595 + $0x128] sm:$0xff]
        %v5628 = vld [vmem:[%s5595 + $0x140] sm:$0xff]
        %v5629 = vld [vmem:[%s5595 + $0x148] sm:$0xff]
        %v5630 = vld [vmem:[%s5595 + $0x150] sm:$0xff]
        %v5631 = vld [vmem:[%s5595 + $0x158] sm:$0xff]
        %v5632 = vld [vmem:[%s5595 + $0x160] sm:$0xff]
        %v5633 = vld [vmem:[%s5595 + $0x168] sm:$0xff]
        %v5634 = vld [vmem:[%s5595 + $0x170] sm:$0xff]
        %v5635 = vld [vmem:[%s5595 + $0x178] sm:$0xff]
        %v5636 = vld [vmem:[%s5595 + $0x190] sm:$0xff]
        %v5637 = vld [vmem:[%s5595 + $0x198] sm:$0xff]
        %v5638 = vld [vmem:[%s5595 + $0x1a0] sm:$0xff]
        %v5639 = vld [vmem:[%s5595 + $0x1a8] sm:$0xff]
        %v5640 = vld [vmem:[%s5595 + $0x1b0] sm:$0xff]
        %v5641 = vld [vmem:[%s5595 + $0x1b8] sm:$0xff]
        %v5642 = vld [vmem:[%s5595 + $0x1c0] sm:$0xff]
        %v5643 = vld [vmem:[%s5595 + $0x1c8] sm:$0xff]
        %v5644 = vld [vmem:[%s5595 + $0x1e0] sm:$0xff]
        %v5645 = vld [vmem:[%s5595 + $0x1e8] sm:$0xff]
        %v5646 = vld [vmem:[%s5595 + $0x1f0] sm:$0xff]
        %v5647 = vld [vmem:[%s5595 + $0x1f8] sm:$0xff]
        %v5648 = vld [vmem:[%s5595 + $0x200] sm:$0xff]
        %v5649 = vld [vmem:[%s5595 + $0x208] sm:$0xff]
        %v5650 = vld [vmem:[%s5595 + $0x210] sm:$0xff]
        %v5651 = vld [vmem:[%s5595 + $0x218] sm:$0xff]
        %v5652 = vld [vmem:[%s5595 + $0x230] sm:$0xff]
        %v5653 = vld [vmem:[%s5595 + $0x238] sm:$0xff]
        %v5654 = vld [vmem:[%s5595 + $0x240] sm:$0xff]
        %v5655 = vld [vmem:[%s5595 + $0x248] sm:$0xff]
        %v5656 = vld [vmem:[%s5595 + $0x250] sm:$0xff]
        %v5657 = vld [vmem:[%s5595 + $0x258] sm:$0xff]
        %v5658 = vld [vmem:[%s5595 + $0x260] sm:$0xff]
        %v5659 = vld [vmem:[%s5595 + $0x268] sm:$0xff]
        %s5660 = scalar_lea.vmem %s5, 288
        %v5661 = vld [vmem:[%s5660] sm:$0xff]
        %v5662 = vld [vmem:[%s5660 + $0x8] sm:$0xff]
        %v5663 = vld [vmem:[%s5660 + $0x10] sm:$0xff]
        %v5664 = vld [vmem:[%s5660 + $0x18] sm:$0xff]
        %v5665 = vld [vmem:[%s5660 + $0x20] sm:$0xff]
        %v5666 = vld [vmem:[%s5660 + $0x28] sm:$0xff]
        %v5668 = vsel %vm2338, %v5596, 0
        %v5671 = vsel %vm2338, %v5597, 0
        %v5674 = vsel %vm2338, %v5598, 0
        %v5677 = vsel %vm2338, %v5599, 0
        %v5680 = vsel %vm2338, %v5600, 0
        %v5683 = vsel %vm2338, %v5601, 0
        %v5686 = vsel %vm2338, %v5602, 0
        %v5689 = vsel %vm2338, %v5603, 0
        %v5692 = vsel %vm2338, %v5604, 0
        %v5695 = vsel %vm2338, %v5605, 0
        %v5698 = vsel %vm2338, %v5606, 0
        %v5701 = vsel %vm2338, %v5607, 0
        %v5704 = vsel %vm2338, %v5608, 0
        %v5707 = vsel %vm2338, %v5609, 0
        %v5710 = vsel %vm2338, %v5610, 0
        %v5713 = vsel %vm2338, %v5611, 0
        %v5716 = vsel %vm2338, %v5612, 0
        %v5719 = vsel %vm2338, %v5613, 0
        %v5722 = vsel %vm2338, %v5614, 0
        %v5725 = vsel %vm2338, %v5615, 0
        %v5728 = vsel %vm2338, %v5616, 0
        %v5731 = vsel %vm2338, %v5617, 0
        %v5734 = vsel %vm2338, %v5618, 0
        %v5737 = vsel %vm2338, %v5619, 0
        %v5740 = vsel %vm2338, %v5620, 0
        %v5743 = vsel %vm2338, %v5621, 0
        %v5746 = vsel %vm2338, %v5622, 0
        %v5749 = vsel %vm2338, %v5623, 0
        %v5752 = vsel %vm2338, %v5624, 0
        %v5755 = vsel %vm2338, %v5625, 0
        %v5758 = vsel %vm2338, %v5626, 0
        %v5761 = vsel %vm2338, %v5627, 0
        %v5764 = vsel %vm2338, %v5628, 0
        %v5767 = vsel %vm2338, %v5629, 0
        %v5770 = vsel %vm2338, %v5630, 0
        %v5773 = vsel %vm2338, %v5631, 0
        %v5776 = vsel %vm2338, %v5632, 0
        %v5779 = vsel %vm2338, %v5633, 0
        %v5782 = vsel %vm2338, %v5634, 0
        %v5785 = vsel %vm2338, %v5635, 0
        %v5788 = vsel %vm2338, %v5636, 0
        %v5791 = vsel %vm2338, %v5637, 0
        %v5794 = vsel %vm2338, %v5638, 0
        %v5797 = vsel %vm2338, %v5639, 0
        %v5800 = vsel %vm2338, %v5640, 0
        %v5803 = vsel %vm2338, %v5641, 0
        %v5806 = vsel %vm2338, %v5642, 0
        %v5809 = vsel %vm2338, %v5643, 0
        %v5812 = vsel %vm2338, %v5644, 0
        %v5815 = vsel %vm2338, %v5645, 0
        %v5818 = vsel %vm2338, %v5646, 0
        %v5821 = vsel %vm2338, %v5647, 0
        %v5824 = vsel %vm2338, %v5648, 0
        %v5827 = vsel %vm2338, %v5649, 0
        %v5830 = vsel %vm2338, %v5650, 0
        %v5833 = vsel %vm2338, %v5651, 0
        %v5836 = vsel %vm2338, %v5652, 0
        %v5839 = vsel %vm2338, %v5653, 0
        %v5842 = vsel %vm2338, %v5654, 0
        %v5845 = vsel %vm2338, %v5655, 0
        %v5848 = vsel %vm2338, %v5656, 0
        %v5851 = vsel %vm2338, %v5657, 0
        %v5854 = vsel %vm2338, %v5658, 0
        %v5857 = vsel %vm2338, %v5659, 0
        %5859 = vmatpush.msra.mxu0 0.0
        %5860 = vmatpush.msra.mxu0 0.0
        %5861 = vmatpush.msra.mxu0 0.0
        %5862 = vmatpush.msra.mxu0 0.0
        %5863 = vmatpush.msra.mxu0 0.0
        %5864 = vmatpush.msra.mxu0 0.0
        %5865 = vmatpush.msra.mxu0 0.0
        %5866 = vmatpush.msra.mxu0 0.0
        %5867 = vmatpush.msra.mxu0 0.0
        %5868 = vmatpush.msra.mxu0 0.0
        %5869 = vmatpush.msra.mxu0 %v5666
        %5870 = vmatpush.msra.mxu0 %v5665
        %5871 = vmatpush.msra.mxu0 %v5664
        %5872 = vmatpush.msra.mxu0 %v5663
        %5873 = vmatpush.msra.mxu0 %v5662
        %5874 = vmatpush.msra.mxu0 %v5661
        %5875 = vmatmul.f32.gmra.mxu0 %v5668
        %v5876 = vpop.f32.mrf.mxu0
        %v5877 = vadd.f32 0.0, %v5876
        %5878 = vmatmul.f32.gmra.mxu0 %v5671
        %v5879 = vpop.f32.mrf.mxu0
        %v5880 = vadd.f32 0.0, %v5879
        %5881 = vmatmul.f32.gmra.mxu0 %v5674
        %v5882 = vpop.f32.mrf.mxu0
        %v5883 = vadd.f32 0.0, %v5882
        %5884 = vmatmul.f32.gmra.mxu0 %v5677
        %v5885 = vpop.f32.mrf.mxu0
        %v5886 = vadd.f32 0.0, %v5885
        %5887 = vmatmul.f32.gmra.mxu0 %v5680
        %v5888 = vpop.f32.mrf.mxu0
        %v5889 = vadd.f32 0.0, %v5888
        %5890 = vmatmul.f32.gmra.mxu0 %v5683
        %v5891 = vpop.f32.mrf.mxu0
        %v5892 = vadd.f32 0.0, %v5891
        %5893 = vmatmul.f32.gmra.mxu0 %v5686
        %v5894 = vpop.f32.mrf.mxu0
        %v5895 = vadd.f32 0.0, %v5894
        %5896 = vmatmul.f32.gmra.mxu0 %v5689
        %v5897 = vpop.f32.mrf.mxu0
        %v5898 = vadd.f32 0.0, %v5897
        %5899 = vmatmul.f32.gmra.mxu0 %v5692
        %v5900 = vpop.f32.mrf.mxu0
        %v5901 = vadd.f32 0.0, %v5900
        %5902 = vmatmul.f32.gmra.mxu0 %v5695
        %v5903 = vpop.f32.mrf.mxu0
        %v5904 = vadd.f32 0.0, %v5903
        %5905 = vmatmul.f32.gmra.mxu0 %v5698
        %v5906 = vpop.f32.mrf.mxu0
        %v5907 = vadd.f32 0.0, %v5906
        %5908 = vmatmul.f32.gmra.mxu0 %v5701
        %v5909 = vpop.f32.mrf.mxu0
        %v5910 = vadd.f32 0.0, %v5909
        %5911 = vmatmul.f32.gmra.mxu0 %v5704
        %v5912 = vpop.f32.mrf.mxu0
        %v5913 = vadd.f32 0.0, %v5912
        %5914 = vmatmul.f32.gmra.mxu0 %v5707
        %v5915 = vpop.f32.mrf.mxu0
        %v5916 = vadd.f32 0.0, %v5915
        %5917 = vmatmul.f32.gmra.mxu0 %v5710
        %v5918 = vpop.f32.mrf.mxu0
        %v5919 = vadd.f32 0.0, %v5918
        %5920 = vmatmul.f32.gmra.mxu0 %v5713
        %v5921 = vpop.f32.mrf.mxu0
        %v5922 = vadd.f32 0.0, %v5921
        %5923 = vmatmul.f32.gmra.mxu0 %v5716
        %v5924 = vpop.f32.mrf.mxu0
        %v5925 = vadd.f32 0.0, %v5924
        %5926 = vmatmul.f32.gmra.mxu0 %v5719
        %v5927 = vpop.f32.mrf.mxu0
        %v5928 = vadd.f32 0.0, %v5927
        %5929 = vmatmul.f32.gmra.mxu0 %v5722
        %v5930 = vpop.f32.mrf.mxu0
        %v5931 = vadd.f32 0.0, %v5930
        %5932 = vmatmul.f32.gmra.mxu0 %v5725
        %v5933 = vpop.f32.mrf.mxu0
        %v5934 = vadd.f32 0.0, %v5933
        %5935 = vmatmul.f32.gmra.mxu0 %v5728
        %v5936 = vpop.f32.mrf.mxu0
        %v5937 = vadd.f32 0.0, %v5936
        %5938 = vmatmul.f32.gmra.mxu0 %v5731
        %v5939 = vpop.f32.mrf.mxu0
        %v5940 = vadd.f32 0.0, %v5939
        %5941 = vmatmul.f32.gmra.mxu0 %v5734
        %v5942 = vpop.f32.mrf.mxu0
        %v5943 = vadd.f32 0.0, %v5942
        %5944 = vmatmul.f32.gmra.mxu0 %v5737
        %v5945 = vpop.f32.mrf.mxu0
        %v5946 = vadd.f32 0.0, %v5945
        %5947 = vmatmul.f32.gmra.mxu0 %v5740
        %v5948 = vpop.f32.mrf.mxu0
        %v5949 = vadd.f32 0.0, %v5948
        %5950 = vmatmul.f32.gmra.mxu0 %v5743
        %v5951 = vpop.f32.mrf.mxu0
        %v5952 = vadd.f32 0.0, %v5951
        %5953 = vmatmul.f32.gmra.mxu0 %v5746
        %v5954 = vpop.f32.mrf.mxu0
        %v5955 = vadd.f32 0.0, %v5954
        %5956 = vmatmul.f32.gmra.mxu0 %v5749
        %v5957 = vpop.f32.mrf.mxu0
        %v5958 = vadd.f32 0.0, %v5957
        %5959 = vmatmul.f32.gmra.mxu0 %v5752
        %v5960 = vpop.f32.mrf.mxu0
        %v5961 = vadd.f32 0.0, %v5960
        %5962 = vmatmul.f32.gmra.mxu0 %v5755
        %v5963 = vpop.f32.mrf.mxu0
        %v5964 = vadd.f32 0.0, %v5963
        %5965 = vmatmul.f32.gmra.mxu0 %v5758
        %v5966 = vpop.f32.mrf.mxu0
        %v5967 = vadd.f32 0.0, %v5966
        %5968 = vmatmul.f32.gmra.mxu0 %v5761
        %v5969 = vpop.f32.mrf.mxu0
        %v5970 = vadd.f32 0.0, %v5969
        %5971 = vmatmul.f32.gmra.mxu0 %v5764
        %v5972 = vpop.f32.mrf.mxu0
        %v5973 = vadd.f32 0.0, %v5972
        %5974 = vmatmul.f32.gmra.mxu0 %v5767
        %v5975 = vpop.f32.mrf.mxu0
        %v5976 = vadd.f32 0.0, %v5975
        %5977 = vmatmul.f32.gmra.mxu0 %v5770
        %v5978 = vpop.f32.mrf.mxu0
        %v5979 = vadd.f32 0.0, %v5978
        %5980 = vmatmul.f32.gmra.mxu0 %v5773
        %v5981 = vpop.f32.mrf.mxu0
        %v5982 = vadd.f32 0.0, %v5981
        %5983 = vmatmul.f32.gmra.mxu0 %v5776
        %v5984 = vpop.f32.mrf.mxu0
        %v5985 = vadd.f32 0.0, %v5984
        %5986 = vmatmul.f32.gmra.mxu0 %v5779
        %v5987 = vpop.f32.mrf.mxu0
        %v5988 = vadd.f32 0.0, %v5987
        %5989 = vmatmul.f32.gmra.mxu0 %v5782
        %v5990 = vpop.f32.mrf.mxu0
        %v5991 = vadd.f32 0.0, %v5990
        %5992 = vmatmul.f32.gmra.mxu0 %v5785
        %v5993 = vpop.f32.mrf.mxu0
        %v5994 = vadd.f32 0.0, %v5993
        %5995 = vmatmul.f32.gmra.mxu0 %v5788
        %v5996 = vpop.f32.mrf.mxu0
        %v5997 = vadd.f32 0.0, %v5996
        %5998 = vmatmul.f32.gmra.mxu0 %v5791
        %v5999 = vpop.f32.mrf.mxu0
        %v6000 = vadd.f32 0.0, %v5999
        %6001 = vmatmul.f32.gmra.mxu0 %v5794
        %v6002 = vpop.f32.mrf.mxu0
        %v6003 = vadd.f32 0.0, %v6002
        %6004 = vmatmul.f32.gmra.mxu0 %v5797
        %v6005 = vpop.f32.mrf.mxu0
        %v6006 = vadd.f32 0.0, %v6005
        %6007 = vmatmul.f32.gmra.mxu0 %v5800
        %v6008 = vpop.f32.mrf.mxu0
        %v6009 = vadd.f32 0.0, %v6008
        %6010 = vmatmul.f32.gmra.mxu0 %v5803
        %v6011 = vpop.f32.mrf.mxu0
        %v6012 = vadd.f32 0.0, %v6011
        %6013 = vmatmul.f32.gmra.mxu0 %v5806
        %v6014 = vpop.f32.mrf.mxu0
        %v6015 = vadd.f32 0.0, %v6014
        %6016 = vmatmul.f32.gmra.mxu0 %v5809
        %v6017 = vpop.f32.mrf.mxu0
        %v6018 = vadd.f32 0.0, %v6017
        %6019 = vmatmul.f32.gmra.mxu0 %v5812
        %v6020 = vpop.f32.mrf.mxu0
        %v6021 = vadd.f32 0.0, %v6020
        %6022 = vmatmul.f32.gmra.mxu0 %v5815
        %v6023 = vpop.f32.mrf.mxu0
        %v6024 = vadd.f32 0.0, %v6023
        %6025 = vmatmul.f32.gmra.mxu0 %v5818
        %v6026 = vpop.f32.mrf.mxu0
        %v6027 = vadd.f32 0.0, %v6026
        %6028 = vmatmul.f32.gmra.mxu0 %v5821
        %v6029 = vpop.f32.mrf.mxu0
        %v6030 = vadd.f32 0.0, %v6029
        %6031 = vmatmul.f32.gmra.mxu0 %v5824
        %v6032 = vpop.f32.mrf.mxu0
        %v6033 = vadd.f32 0.0, %v6032
        %6034 = vmatmul.f32.gmra.mxu0 %v5827
        %v6035 = vpop.f32.mrf.mxu0
        %v6036 = vadd.f32 0.0, %v6035
        %6037 = vmatmul.f32.gmra.mxu0 %v5830
        %v6038 = vpop.f32.mrf.mxu0
        %v6039 = vadd.f32 0.0, %v6038
        %6040 = vmatmul.f32.gmra.mxu0 %v5833
        %v6041 = vpop.f32.mrf.mxu0
        %v6042 = vadd.f32 0.0, %v6041
        %6043 = vmatmul.f32.gmra.mxu0 %v5836
        %v6044 = vpop.f32.mrf.mxu0
        %v6045 = vadd.f32 0.0, %v6044
        %6046 = vmatmul.f32.gmra.mxu0 %v5839
        %v6047 = vpop.f32.mrf.mxu0
        %v6048 = vadd.f32 0.0, %v6047
        %6049 = vmatmul.f32.gmra.mxu0 %v5842
        %v6050 = vpop.f32.mrf.mxu0
        %v6051 = vadd.f32 0.0, %v6050
        %6052 = vmatmul.f32.gmra.mxu0 %v5845
        %v6053 = vpop.f32.mrf.mxu0
        %v6054 = vadd.f32 0.0, %v6053
        %6055 = vmatmul.f32.gmra.mxu0 %v5848
        %v6056 = vpop.f32.mrf.mxu0
        %v6057 = vadd.f32 0.0, %v6056
        %6058 = vmatmul.f32.gmra.mxu0 %v5851
        %v6059 = vpop.f32.mrf.mxu0
        %v6060 = vadd.f32 0.0, %v6059
        %6061 = vmatmul.f32.gmra.mxu0 %v5854
        %v6062 = vpop.f32.mrf.mxu0
        %v6063 = vadd.f32 0.0, %v6062
        %6064 = vmatmul.f32.gmra.mxu0 %v5857
        %v6065 = vpop.f32.mrf.mxu0
        %v6066 = vadd.f32 0.0, %v6065
        %6067 = vdwg.mxu0
        %v6068 = vadd.f32 %v5531, %v5877
        %v6069 = vadd.f32 %v5532, %v5880
        %v6070 = vadd.f32 %v5533, %v5883
        %v6071 = vadd.f32 %v5534, %v5886
        %v6072 = vadd.f32 %v5535, %v5889
        %v6073 = vadd.f32 %v5536, %v5892
        %v6074 = vadd.f32 %v5537, %v5895
        %v6075 = vadd.f32 %v5538, %v5898
        %v6076 = vadd.f32 %v5539, %v5901
        %v6077 = vadd.f32 %v5540, %v5904
        %v6078 = vadd.f32 %v5541, %v5907
        %v6079 = vadd.f32 %v5542, %v5910
        %v6080 = vadd.f32 %v5543, %v5913
        %v6081 = vadd.f32 %v5544, %v5916
        %v6082 = vadd.f32 %v5545, %v5919
        %v6083 = vadd.f32 %v5546, %v5922
        %v6084 = vadd.f32 %v5547, %v5925
        %v6085 = vadd.f32 %v5548, %v5928
        %v6086 = vadd.f32 %v5549, %v5931
        %v6087 = vadd.f32 %v5550, %v5934
        %v6088 = vadd.f32 %v5551, %v5937
        %v6089 = vadd.f32 %v5552, %v5940
        %v6090 = vadd.f32 %v5553, %v5943
        %v6091 = vadd.f32 %v5554, %v5946
        %v6092 = vadd.f32 %v5555, %v5949
        %v6093 = vadd.f32 %v5556, %v5952
        %v6094 = vadd.f32 %v5557, %v5955
        %v6095 = vadd.f32 %v5558, %v5958
        %v6096 = vadd.f32 %v5559, %v5961
        %v6097 = vadd.f32 %v5560, %v5964
        %v6098 = vadd.f32 %v5561, %v5967
        %v6099 = vadd.f32 %v5562, %v5970
        %v6100 = vadd.f32 %v5563, %v5973
        %v6101 = vadd.f32 %v5564, %v5976
        %v6102 = vadd.f32 %v5565, %v5979
        %v6103 = vadd.f32 %v5566, %v5982
        %v6104 = vadd.f32 %v5567, %v5985
        %v6105 = vadd.f32 %v5568, %v5988
        %v6106 = vadd.f32 %v5569, %v5991
        %v6107 = vadd.f32 %v5570, %v5994
        %v6108 = vadd.f32 %v5571, %v5997
        %v6109 = vadd.f32 %v5572, %v6000
        %v6110 = vadd.f32 %v5573, %v6003
        %v6111 = vadd.f32 %v5574, %v6006
        %v6112 = vadd.f32 %v5575, %v6009
        %v6113 = vadd.f32 %v5576, %v6012
        %v6114 = vadd.f32 %v5577, %v6015
        %v6115 = vadd.f32 %v5578, %v6018
        %v6116 = vadd.f32 %v5579, %v6021
        %v6117 = vadd.f32 %v5580, %v6024
        %v6118 = vadd.f32 %v5581, %v6027
        %v6119 = vadd.f32 %v5582, %v6030
        %v6120 = vadd.f32 %v5583, %v6033
        %v6121 = vadd.f32 %v5584, %v6036
        %v6122 = vadd.f32 %v5585, %v6039
        %v6123 = vadd.f32 %v5586, %v6042
        %v6124 = vadd.f32 %v5587, %v6045
        %v6125 = vadd.f32 %v5588, %v6048
        %v6126 = vadd.f32 %v5589, %v6051
        %v6127 = vadd.f32 %v5590, %v6054
        %v6128 = vadd.f32 %v5591, %v6057
        %v6129 = vadd.f32 %v5592, %v6060
        %v6130 = vadd.f32 %v5593, %v6063
        %v6131 = vadd.f32 %v5594, %v6066
        %s6132 = scalar_lea.vmem [#allocation2], 168
        %v6133 = vld [vmem:[%s6132] sm:$0xff]
        %v6134 = vld [vmem:[%s6132 + $0x8] sm:$0xff]
        %v6135 = vld [vmem:[%s6132 + $0x10] sm:$0xff]
        %v6136 = vld [vmem:[%s6132 + $0x18] sm:$0xff]
        %v6137 = vld [vmem:[%s6132 + $0x20] sm:$0xff]
        %v6138 = vld [vmem:[%s6132 + $0x28] sm:$0xff]
        %v6139 = vld [vmem:[%s6132 + $0x30] sm:$0xff]
        %v6140 = vld [vmem:[%s6132 + $0x38] sm:$0xff]
        %v6141 = vld [vmem:[%s6132 + $0x50] sm:$0xff]
        %v6142 = vld [vmem:[%s6132 + $0x58] sm:$0xff]
        %v6143 = vld [vmem:[%s6132 + $0x60] sm:$0xff]
        %v6144 = vld [vmem:[%s6132 + $0x68] sm:$0xff]
        %v6145 = vld [vmem:[%s6132 + $0x70] sm:$0xff]
        %v6146 = vld [vmem:[%s6132 + $0x78] sm:$0xff]
        %v6147 = vld [vmem:[%s6132 + $0x80] sm:$0xff]
        %v6148 = vld [vmem:[%s6132 + $0x88] sm:$0xff]
        %v6149 = vld [vmem:[%s6132 + $0xa0] sm:$0xff]
        %v6150 = vld [vmem:[%s6132 + $0xa8] sm:$0xff]
        %v6151 = vld [vmem:[%s6132 + $0xb0] sm:$0xff]
        %v6152 = vld [vmem:[%s6132 + $0xb8] sm:$0xff]
        %v6153 = vld [vmem:[%s6132 + $0xc0] sm:$0xff]
        %v6154 = vld [vmem:[%s6132 + $0xc8] sm:$0xff]
        %v6155 = vld [vmem:[%s6132 + $0xd0] sm:$0xff]
        %v6156 = vld [vmem:[%s6132 + $0xd8] sm:$0xff]
        %v6157 = vld [vmem:[%s6132 + $0xf0] sm:$0xff]
        %v6158 = vld [vmem:[%s6132 + $0xf8] sm:$0xff]
        %v6159 = vld [vmem:[%s6132 + $0x100] sm:$0xff]
        %v6160 = vld [vmem:[%s6132 + $0x108] sm:$0xff]
        %v6161 = vld [vmem:[%s6132 + $0x110] sm:$0xff]
        %v6162 = vld [vmem:[%s6132 + $0x118] sm:$0xff]
        %v6163 = vld [vmem:[%s6132 + $0x120] sm:$0xff]
        %v6164 = vld [vmem:[%s6132 + $0x128] sm:$0xff]
        %v6165 = vld [vmem:[%s6132 + $0x140] sm:$0xff]
        %v6166 = vld [vmem:[%s6132 + $0x148] sm:$0xff]
        %v6167 = vld [vmem:[%s6132 + $0x150] sm:$0xff]
        %v6168 = vld [vmem:[%s6132 + $0x158] sm:$0xff]
        %v6169 = vld [vmem:[%s6132 + $0x160] sm:$0xff]
        %v6170 = vld [vmem:[%s6132 + $0x168] sm:$0xff]
        %v6171 = vld [vmem:[%s6132 + $0x170] sm:$0xff]
        %v6172 = vld [vmem:[%s6132 + $0x178] sm:$0xff]
        %v6173 = vld [vmem:[%s6132 + $0x190] sm:$0xff]
        %v6174 = vld [vmem:[%s6132 + $0x198] sm:$0xff]
        %v6175 = vld [vmem:[%s6132 + $0x1a0] sm:$0xff]
        %v6176 = vld [vmem:[%s6132 + $0x1a8] sm:$0xff]
        %v6177 = vld [vmem:[%s6132 + $0x1b0] sm:$0xff]
        %v6178 = vld [vmem:[%s6132 + $0x1b8] sm:$0xff]
        %v6179 = vld [vmem:[%s6132 + $0x1c0] sm:$0xff]
        %v6180 = vld [vmem:[%s6132 + $0x1c8] sm:$0xff]
        %v6181 = vld [vmem:[%s6132 + $0x1e0] sm:$0xff]
        %v6182 = vld [vmem:[%s6132 + $0x1e8] sm:$0xff]
        %v6183 = vld [vmem:[%s6132 + $0x1f0] sm:$0xff]
        %v6184 = vld [vmem:[%s6132 + $0x1f8] sm:$0xff]
        %v6185 = vld [vmem:[%s6132 + $0x200] sm:$0xff]
        %v6186 = vld [vmem:[%s6132 + $0x208] sm:$0xff]
        %v6187 = vld [vmem:[%s6132 + $0x210] sm:$0xff]
        %v6188 = vld [vmem:[%s6132 + $0x218] sm:$0xff]
        %v6189 = vld [vmem:[%s6132 + $0x230] sm:$0xff]
        %v6190 = vld [vmem:[%s6132 + $0x238] sm:$0xff]
        %v6191 = vld [vmem:[%s6132 + $0x240] sm:$0xff]
        %v6192 = vld [vmem:[%s6132 + $0x248] sm:$0xff]
        %v6193 = vld [vmem:[%s6132 + $0x250] sm:$0xff]
        %v6194 = vld [vmem:[%s6132 + $0x258] sm:$0xff]
        %v6195 = vld [vmem:[%s6132 + $0x260] sm:$0xff]
        %v6196 = vld [vmem:[%s6132 + $0x268] sm:$0xff]
        %s6197 = scalar_lea.vmem %s5, 336
        %v6198 = vld [vmem:[%s6197] sm:$0xff]
        %v6199 = vld [vmem:[%s6197 + $0x8] sm:$0xff]
        %v6200 = vld [vmem:[%s6197 + $0x10] sm:$0xff]
        %v6201 = vld [vmem:[%s6197 + $0x18] sm:$0xff]
        %v6202 = vld [vmem:[%s6197 + $0x20] sm:$0xff]
        %v6203 = vld [vmem:[%s6197 + $0x28] sm:$0xff]
        %v6205 = vsel %vm2338, %v6133, 0
        %v6208 = vsel %vm2338, %v6134, 0
        %v6211 = vsel %vm2338, %v6135, 0
        %v6214 = vsel %vm2338, %v6136, 0
        %v6217 = vsel %vm2338, %v6137, 0
        %v6220 = vsel %vm2338, %v6138, 0
        %v6223 = vsel %vm2338, %v6139, 0
        %v6226 = vsel %vm2338, %v6140, 0
        %v6229 = vsel %vm2338, %v6141, 0
        %v6232 = vsel %vm2338, %v6142, 0
        %v6235 = vsel %vm2338, %v6143, 0
        %v6238 = vsel %vm2338, %v6144, 0
        %v6241 = vsel %vm2338, %v6145, 0
        %v6244 = vsel %vm2338, %v6146, 0
        %v6247 = vsel %vm2338, %v6147, 0
        %v6250 = vsel %vm2338, %v6148, 0
        %v6253 = vsel %vm2338, %v6149, 0
        %v6256 = vsel %vm2338, %v6150, 0
        %v6259 = vsel %vm2338, %v6151, 0
        %v6262 = vsel %vm2338, %v6152, 0
        %v6265 = vsel %vm2338, %v6153, 0
        %v6268 = vsel %vm2338, %v6154, 0
        %v6271 = vsel %vm2338, %v6155, 0
        %v6274 = vsel %vm2338, %v6156, 0
        %v6277 = vsel %vm2338, %v6157, 0
        %v6280 = vsel %vm2338, %v6158, 0
        %v6283 = vsel %vm2338, %v6159, 0
        %v6286 = vsel %vm2338, %v6160, 0
        %v6289 = vsel %vm2338, %v6161, 0
        %v6292 = vsel %vm2338, %v6162, 0
        %v6295 = vsel %vm2338, %v6163, 0
        %v6298 = vsel %vm2338, %v6164, 0
        %v6301 = vsel %vm2338, %v6165, 0
        %v6304 = vsel %vm2338, %v6166, 0
        %v6307 = vsel %vm2338, %v6167, 0
        %v6310 = vsel %vm2338, %v6168, 0
        %v6313 = vsel %vm2338, %v6169, 0
        %v6316 = vsel %vm2338, %v6170, 0
        %v6319 = vsel %vm2338, %v6171, 0
        %v6322 = vsel %vm2338, %v6172, 0
        %v6325 = vsel %vm2338, %v6173, 0
        %v6328 = vsel %vm2338, %v6174, 0
        %v6331 = vsel %vm2338, %v6175, 0
        %v6334 = vsel %vm2338, %v6176, 0
        %v6337 = vsel %vm2338, %v6177, 0
        %v6340 = vsel %vm2338, %v6178, 0
        %v6343 = vsel %vm2338, %v6179, 0
        %v6346 = vsel %vm2338, %v6180, 0
        %v6349 = vsel %vm2338, %v6181, 0
        %v6352 = vsel %vm2338, %v6182, 0
        %v6355 = vsel %vm2338, %v6183, 0
        %v6358 = vsel %vm2338, %v6184, 0
        %v6361 = vsel %vm2338, %v6185, 0
        %v6364 = vsel %vm2338, %v6186, 0
        %v6367 = vsel %vm2338, %v6187, 0
        %v6370 = vsel %vm2338, %v6188, 0
        %v6373 = vsel %vm2338, %v6189, 0
        %v6376 = vsel %vm2338, %v6190, 0
        %v6379 = vsel %vm2338, %v6191, 0
        %v6382 = vsel %vm2338, %v6192, 0
        %v6385 = vsel %vm2338, %v6193, 0
        %v6388 = vsel %vm2338, %v6194, 0
        %v6391 = vsel %vm2338, %v6195, 0
        %v6394 = vsel %vm2338, %v6196, 0
        %6396 = vmatpush.msra.mxu0 0.0
        %6397 = vmatpush.msra.mxu0 0.0
        %6398 = vmatpush.msra.mxu0 0.0
        %6399 = vmatpush.msra.mxu0 0.0
        %6400 = vmatpush.msra.mxu0 0.0
        %6401 = vmatpush.msra.mxu0 0.0
        %6402 = vmatpush.msra.mxu0 0.0
        %6403 = vmatpush.msra.mxu0 0.0
        %6404 = vmatpush.msra.mxu0 0.0
        %6405 = vmatpush.msra.mxu0 0.0
        %6406 = vmatpush.msra.mxu0 %v6203
        %6407 = vmatpush.msra.mxu0 %v6202
        %6408 = vmatpush.msra.mxu0 %v6201
        %6409 = vmatpush.msra.mxu0 %v6200
        %6410 = vmatpush.msra.mxu0 %v6199
        %6411 = vmatpush.msra.mxu0 %v6198
        %6412 = vmatmul.f32.gmra.mxu0 %v6205
        %v6413 = vpop.f32.mrf.mxu0
        %v6414 = vadd.f32 0.0, %v6413
        %6415 = vmatmul.f32.gmra.mxu0 %v6208
        %v6416 = vpop.f32.mrf.mxu0
        %v6417 = vadd.f32 0.0, %v6416
        %6418 = vmatmul.f32.gmra.mxu0 %v6211
        %v6419 = vpop.f32.mrf.mxu0
        %v6420 = vadd.f32 0.0, %v6419
        %6421 = vmatmul.f32.gmra.mxu0 %v6214
        %v6422 = vpop.f32.mrf.mxu0
        %v6423 = vadd.f32 0.0, %v6422
        %6424 = vmatmul.f32.gmra.mxu0 %v6217
        %v6425 = vpop.f32.mrf.mxu0
        %v6426 = vadd.f32 0.0, %v6425
        %6427 = vmatmul.f32.gmra.mxu0 %v6220
        %v6428 = vpop.f32.mrf.mxu0
        %v6429 = vadd.f32 0.0, %v6428
        %6430 = vmatmul.f32.gmra.mxu0 %v6223
        %v6431 = vpop.f32.mrf.mxu0
        %v6432 = vadd.f32 0.0, %v6431
        %6433 = vmatmul.f32.gmra.mxu0 %v6226
        %v6434 = vpop.f32.mrf.mxu0
        %v6435 = vadd.f32 0.0, %v6434
        %6436 = vmatmul.f32.gmra.mxu0 %v6229
        %v6437 = vpop.f32.mrf.mxu0
        %v6438 = vadd.f32 0.0, %v6437
        %6439 = vmatmul.f32.gmra.mxu0 %v6232
        %v6440 = vpop.f32.mrf.mxu0
        %v6441 = vadd.f32 0.0, %v6440
        %6442 = vmatmul.f32.gmra.mxu0 %v6235
        %v6443 = vpop.f32.mrf.mxu0
        %v6444 = vadd.f32 0.0, %v6443
        %6445 = vmatmul.f32.gmra.mxu0 %v6238
        %v6446 = vpop.f32.mrf.mxu0
        %v6447 = vadd.f32 0.0, %v6446
        %6448 = vmatmul.f32.gmra.mxu0 %v6241
        %v6449 = vpop.f32.mrf.mxu0
        %v6450 = vadd.f32 0.0, %v6449
        %6451 = vmatmul.f32.gmra.mxu0 %v6244
        %v6452 = vpop.f32.mrf.mxu0
        %v6453 = vadd.f32 0.0, %v6452
        %6454 = vmatmul.f32.gmra.mxu0 %v6247
        %v6455 = vpop.f32.mrf.mxu0
        %v6456 = vadd.f32 0.0, %v6455
        %6457 = vmatmul.f32.gmra.mxu0 %v6250
        %v6458 = vpop.f32.mrf.mxu0
        %v6459 = vadd.f32 0.0, %v6458
        %6460 = vmatmul.f32.gmra.mxu0 %v6253
        %v6461 = vpop.f32.mrf.mxu0
        %v6462 = vadd.f32 0.0, %v6461
        %6463 = vmatmul.f32.gmra.mxu0 %v6256
        %v6464 = vpop.f32.mrf.mxu0
        %v6465 = vadd.f32 0.0, %v6464
        %6466 = vmatmul.f32.gmra.mxu0 %v6259
        %v6467 = vpop.f32.mrf.mxu0
        %v6468 = vadd.f32 0.0, %v6467
        %6469 = vmatmul.f32.gmra.mxu0 %v6262
        %v6470 = vpop.f32.mrf.mxu0
        %v6471 = vadd.f32 0.0, %v6470
        %6472 = vmatmul.f32.gmra.mxu0 %v6265
        %v6473 = vpop.f32.mrf.mxu0
        %v6474 = vadd.f32 0.0, %v6473
        %6475 = vmatmul.f32.gmra.mxu0 %v6268
        %v6476 = vpop.f32.mrf.mxu0
        %v6477 = vadd.f32 0.0, %v6476
        %6478 = vmatmul.f32.gmra.mxu0 %v6271
        %v6479 = vpop.f32.mrf.mxu0
        %v6480 = vadd.f32 0.0, %v6479
        %6481 = vmatmul.f32.gmra.mxu0 %v6274
        %v6482 = vpop.f32.mrf.mxu0
        %v6483 = vadd.f32 0.0, %v6482
        %6484 = vmatmul.f32.gmra.mxu0 %v6277
        %v6485 = vpop.f32.mrf.mxu0
        %v6486 = vadd.f32 0.0, %v6485
        %6487 = vmatmul.f32.gmra.mxu0 %v6280
        %v6488 = vpop.f32.mrf.mxu0
        %v6489 = vadd.f32 0.0, %v6488
        %6490 = vmatmul.f32.gmra.mxu0 %v6283
        %v6491 = vpop.f32.mrf.mxu0
        %v6492 = vadd.f32 0.0, %v6491
        %6493 = vmatmul.f32.gmra.mxu0 %v6286
        %v6494 = vpop.f32.mrf.mxu0
        %v6495 = vadd.f32 0.0, %v6494
        %6496 = vmatmul.f32.gmra.mxu0 %v6289
        %v6497 = vpop.f32.mrf.mxu0
        %v6498 = vadd.f32 0.0, %v6497
        %6499 = vmatmul.f32.gmra.mxu0 %v6292
        %v6500 = vpop.f32.mrf.mxu0
        %v6501 = vadd.f32 0.0, %v6500
        %6502 = vmatmul.f32.gmra.mxu0 %v6295
        %v6503 = vpop.f32.mrf.mxu0
        %v6504 = vadd.f32 0.0, %v6503
        %6505 = vmatmul.f32.gmra.mxu0 %v6298
        %v6506 = vpop.f32.mrf.mxu0
        %v6507 = vadd.f32 0.0, %v6506
        %6508 = vmatmul.f32.gmra.mxu0 %v6301
        %v6509 = vpop.f32.mrf.mxu0
        %v6510 = vadd.f32 0.0, %v6509
        %6511 = vmatmul.f32.gmra.mxu0 %v6304
        %v6512 = vpop.f32.mrf.mxu0
        %v6513 = vadd.f32 0.0, %v6512
        %6514 = vmatmul.f32.gmra.mxu0 %v6307
        %v6515 = vpop.f32.mrf.mxu0
        %v6516 = vadd.f32 0.0, %v6515
        %6517 = vmatmul.f32.gmra.mxu0 %v6310
        %v6518 = vpop.f32.mrf.mxu0
        %v6519 = vadd.f32 0.0, %v6518
        %6520 = vmatmul.f32.gmra.mxu0 %v6313
        %v6521 = vpop.f32.mrf.mxu0
        %v6522 = vadd.f32 0.0, %v6521
        %6523 = vmatmul.f32.gmra.mxu0 %v6316
        %v6524 = vpop.f32.mrf.mxu0
        %v6525 = vadd.f32 0.0, %v6524
        %6526 = vmatmul.f32.gmra.mxu0 %v6319
        %v6527 = vpop.f32.mrf.mxu0
        %v6528 = vadd.f32 0.0, %v6527
        %6529 = vmatmul.f32.gmra.mxu0 %v6322
        %v6530 = vpop.f32.mrf.mxu0
        %v6531 = vadd.f32 0.0, %v6530
        %6532 = vmatmul.f32.gmra.mxu0 %v6325
        %v6533 = vpop.f32.mrf.mxu0
        %v6534 = vadd.f32 0.0, %v6533
        %6535 = vmatmul.f32.gmra.mxu0 %v6328
        %v6536 = vpop.f32.mrf.mxu0
        %v6537 = vadd.f32 0.0, %v6536
        %6538 = vmatmul.f32.gmra.mxu0 %v6331
        %v6539 = vpop.f32.mrf.mxu0
        %v6540 = vadd.f32 0.0, %v6539
        %6541 = vmatmul.f32.gmra.mxu0 %v6334
        %v6542 = vpop.f32.mrf.mxu0
        %v6543 = vadd.f32 0.0, %v6542
        %6544 = vmatmul.f32.gmra.mxu0 %v6337
        %v6545 = vpop.f32.mrf.mxu0
        %v6546 = vadd.f32 0.0, %v6545
        %6547 = vmatmul.f32.gmra.mxu0 %v6340
        %v6548 = vpop.f32.mrf.mxu0
        %v6549 = vadd.f32 0.0, %v6548
        %6550 = vmatmul.f32.gmra.mxu0 %v6343
        %v6551 = vpop.f32.mrf.mxu0
        %v6552 = vadd.f32 0.0, %v6551
        %6553 = vmatmul.f32.gmra.mxu0 %v6346
        %v6554 = vpop.f32.mrf.mxu0
        %v6555 = vadd.f32 0.0, %v6554
        %6556 = vmatmul.f32.gmra.mxu0 %v6349
        %v6557 = vpop.f32.mrf.mxu0
        %v6558 = vadd.f32 0.0, %v6557
        %6559 = vmatmul.f32.gmra.mxu0 %v6352
        %v6560 = vpop.f32.mrf.mxu0
        %v6561 = vadd.f32 0.0, %v6560
        %6562 = vmatmul.f32.gmra.mxu0 %v6355
        %v6563 = vpop.f32.mrf.mxu0
        %v6564 = vadd.f32 0.0, %v6563
        %6565 = vmatmul.f32.gmra.mxu0 %v6358
        %v6566 = vpop.f32.mrf.mxu0
        %v6567 = vadd.f32 0.0, %v6566
        %6568 = vmatmul.f32.gmra.mxu0 %v6361
        %v6569 = vpop.f32.mrf.mxu0
        %v6570 = vadd.f32 0.0, %v6569
        %6571 = vmatmul.f32.gmra.mxu0 %v6364
        %v6572 = vpop.f32.mrf.mxu0
        %v6573 = vadd.f32 0.0, %v6572
        %6574 = vmatmul.f32.gmra.mxu0 %v6367
        %v6575 = vpop.f32.mrf.mxu0
        %v6576 = vadd.f32 0.0, %v6575
        %6577 = vmatmul.f32.gmra.mxu0 %v6370
        %v6578 = vpop.f32.mrf.mxu0
        %v6579 = vadd.f32 0.0, %v6578
        %6580 = vmatmul.f32.gmra.mxu0 %v6373
        %v6581 = vpop.f32.mrf.mxu0
        %v6582 = vadd.f32 0.0, %v6581
        %6583 = vmatmul.f32.gmra.mxu0 %v6376
        %v6584 = vpop.f32.mrf.mxu0
        %v6585 = vadd.f32 0.0, %v6584
        %6586 = vmatmul.f32.gmra.mxu0 %v6379
        %v6587 = vpop.f32.mrf.mxu0
        %v6588 = vadd.f32 0.0, %v6587
        %6589 = vmatmul.f32.gmra.mxu0 %v6382
        %v6590 = vpop.f32.mrf.mxu0
        %v6591 = vadd.f32 0.0, %v6590
        %6592 = vmatmul.f32.gmra.mxu0 %v6385
        %v6593 = vpop.f32.mrf.mxu0
        %v6594 = vadd.f32 0.0, %v6593
        %6595 = vmatmul.f32.gmra.mxu0 %v6388
        %v6596 = vpop.f32.mrf.mxu0
        %v6597 = vadd.f32 0.0, %v6596
        %6598 = vmatmul.f32.gmra.mxu0 %v6391
        %v6599 = vpop.f32.mrf.mxu0
        %v6600 = vadd.f32 0.0, %v6599
        %6601 = vmatmul.f32.gmra.mxu0 %v6394
        %v6602 = vpop.f32.mrf.mxu0
        %v6603 = vadd.f32 0.0, %v6602
        %6604 = vdwg.mxu0
        %v6605 = vadd.f32 %v6068, %v6414
        %v6606 = vadd.f32 %v6069, %v6417
        %v6607 = vadd.f32 %v6070, %v6420
        %v6608 = vadd.f32 %v6071, %v6423
        %v6609 = vadd.f32 %v6072, %v6426
        %v6610 = vadd.f32 %v6073, %v6429
        %v6611 = vadd.f32 %v6074, %v6432
        %v6612 = vadd.f32 %v6075, %v6435
        %v6613 = vadd.f32 %v6076, %v6438
        %v6614 = vadd.f32 %v6077, %v6441
        %v6615 = vadd.f32 %v6078, %v6444
        %v6616 = vadd.f32 %v6079, %v6447
        %v6617 = vadd.f32 %v6080, %v6450
        %v6618 = vadd.f32 %v6081, %v6453
        %v6619 = vadd.f32 %v6082, %v6456
        %v6620 = vadd.f32 %v6083, %v6459
        %v6621 = vadd.f32 %v6084, %v6462
        %v6622 = vadd.f32 %v6085, %v6465
        %v6623 = vadd.f32 %v6086, %v6468
        %v6624 = vadd.f32 %v6087, %v6471
        %v6625 = vadd.f32 %v6088, %v6474
        %v6626 = vadd.f32 %v6089, %v6477
        %v6627 = vadd.f32 %v6090, %v6480
        %v6628 = vadd.f32 %v6091, %v6483
        %v6629 = vadd.f32 %v6092, %v6486
        %v6630 = vadd.f32 %v6093, %v6489
        %v6631 = vadd.f32 %v6094, %v6492
        %v6632 = vadd.f32 %v6095, %v6495
        %v6633 = vadd.f32 %v6096, %v6498
        %v6634 = vadd.f32 %v6097, %v6501
        %v6635 = vadd.f32 %v6098, %v6504
        %v6636 = vadd.f32 %v6099, %v6507
        %v6637 = vadd.f32 %v6100, %v6510
        %v6638 = vadd.f32 %v6101, %v6513
        %v6639 = vadd.f32 %v6102, %v6516
        %v6640 = vadd.f32 %v6103, %v6519
        %v6641 = vadd.f32 %v6104, %v6522
        %v6642 = vadd.f32 %v6105, %v6525
        %v6643 = vadd.f32 %v6106, %v6528
        %v6644 = vadd.f32 %v6107, %v6531
        %v6645 = vadd.f32 %v6108, %v6534
        %v6646 = vadd.f32 %v6109, %v6537
        %v6647 = vadd.f32 %v6110, %v6540
        %v6648 = vadd.f32 %v6111, %v6543
        %v6649 = vadd.f32 %v6112, %v6546
        %v6650 = vadd.f32 %v6113, %v6549
        %v6651 = vadd.f32 %v6114, %v6552
        %v6652 = vadd.f32 %v6115, %v6555
        %v6653 = vadd.f32 %v6116, %v6558
        %v6654 = vadd.f32 %v6117, %v6561
        %v6655 = vadd.f32 %v6118, %v6564
        %v6656 = vadd.f32 %v6119, %v6567
        %v6657 = vadd.f32 %v6120, %v6570
        %v6658 = vadd.f32 %v6121, %v6573
        %v6659 = vadd.f32 %v6122, %v6576
        %v6660 = vadd.f32 %v6123, %v6579
        %v6661 = vadd.f32 %v6124, %v6582
        %v6662 = vadd.f32 %v6125, %v6585
        %v6663 = vadd.f32 %v6126, %v6588
        %v6664 = vadd.f32 %v6127, %v6591
        %v6665 = vadd.f32 %v6128, %v6594
        %v6666 = vadd.f32 %v6129, %v6597
        %v6667 = vadd.f32 %v6130, %v6600
        %v6668 = vadd.f32 %v6131, %v6603
        %s6669 = scalar_lea.vmem [#allocation2], 176
        %v6670 = vld [vmem:[%s6669] sm:$0xff]
        %v6671 = vld [vmem:[%s6669 + $0x8] sm:$0xff]
        %v6672 = vld [vmem:[%s6669 + $0x10] sm:$0xff]
        %v6673 = vld [vmem:[%s6669 + $0x18] sm:$0xff]
        %v6674 = vld [vmem:[%s6669 + $0x20] sm:$0xff]
        %v6675 = vld [vmem:[%s6669 + $0x28] sm:$0xff]
        %v6676 = vld [vmem:[%s6669 + $0x30] sm:$0xff]
        %v6677 = vld [vmem:[%s6669 + $0x38] sm:$0xff]
        %v6678 = vld [vmem:[%s6669 + $0x50] sm:$0xff]
        %v6679 = vld [vmem:[%s6669 + $0x58] sm:$0xff]
        %v6680 = vld [vmem:[%s6669 + $0x60] sm:$0xff]
        %v6681 = vld [vmem:[%s6669 + $0x68] sm:$0xff]
        %v6682 = vld [vmem:[%s6669 + $0x70] sm:$0xff]
        %v6683 = vld [vmem:[%s6669 + $0x78] sm:$0xff]
        %v6684 = vld [vmem:[%s6669 + $0x80] sm:$0xff]
        %v6685 = vld [vmem:[%s6669 + $0x88] sm:$0xff]
        %v6686 = vld [vmem:[%s6669 + $0xa0] sm:$0xff]
        %v6687 = vld [vmem:[%s6669 + $0xa8] sm:$0xff]
        %v6688 = vld [vmem:[%s6669 + $0xb0] sm:$0xff]
        %v6689 = vld [vmem:[%s6669 + $0xb8] sm:$0xff]
        %v6690 = vld [vmem:[%s6669 + $0xc0] sm:$0xff]
        %v6691 = vld [vmem:[%s6669 + $0xc8] sm:$0xff]
        %v6692 = vld [vmem:[%s6669 + $0xd0] sm:$0xff]
        %v6693 = vld [vmem:[%s6669 + $0xd8] sm:$0xff]
        %v6694 = vld [vmem:[%s6669 + $0xf0] sm:$0xff]
        %v6695 = vld [vmem:[%s6669 + $0xf8] sm:$0xff]
        %v6696 = vld [vmem:[%s6669 + $0x100] sm:$0xff]
        %v6697 = vld [vmem:[%s6669 + $0x108] sm:$0xff]
        %v6698 = vld [vmem:[%s6669 + $0x110] sm:$0xff]
        %v6699 = vld [vmem:[%s6669 + $0x118] sm:$0xff]
        %v6700 = vld [vmem:[%s6669 + $0x120] sm:$0xff]
        %v6701 = vld [vmem:[%s6669 + $0x128] sm:$0xff]
        %v6702 = vld [vmem:[%s6669 + $0x140] sm:$0xff]
        %v6703 = vld [vmem:[%s6669 + $0x148] sm:$0xff]
        %v6704 = vld [vmem:[%s6669 + $0x150] sm:$0xff]
        %v6705 = vld [vmem:[%s6669 + $0x158] sm:$0xff]
        %v6706 = vld [vmem:[%s6669 + $0x160] sm:$0xff]
        %v6707 = vld [vmem:[%s6669 + $0x168] sm:$0xff]
        %v6708 = vld [vmem:[%s6669 + $0x170] sm:$0xff]
        %v6709 = vld [vmem:[%s6669 + $0x178] sm:$0xff]
        %v6710 = vld [vmem:[%s6669 + $0x190] sm:$0xff]
        %v6711 = vld [vmem:[%s6669 + $0x198] sm:$0xff]
        %v6712 = vld [vmem:[%s6669 + $0x1a0] sm:$0xff]
        %v6713 = vld [vmem:[%s6669 + $0x1a8] sm:$0xff]
        %v6714 = vld [vmem:[%s6669 + $0x1b0] sm:$0xff]
        %v6715 = vld [vmem:[%s6669 + $0x1b8] sm:$0xff]
        %v6716 = vld [vmem:[%s6669 + $0x1c0] sm:$0xff]
        %v6717 = vld [vmem:[%s6669 + $0x1c8] sm:$0xff]
        %v6718 = vld [vmem:[%s6669 + $0x1e0] sm:$0xff]
        %v6719 = vld [vmem:[%s6669 + $0x1e8] sm:$0xff]
        %v6720 = vld [vmem:[%s6669 + $0x1f0] sm:$0xff]
        %v6721 = vld [vmem:[%s6669 + $0x1f8] sm:$0xff]
        %v6722 = vld [vmem:[%s6669 + $0x200] sm:$0xff]
        %v6723 = vld [vmem:[%s6669 + $0x208] sm:$0xff]
        %v6724 = vld [vmem:[%s6669 + $0x210] sm:$0xff]
        %v6725 = vld [vmem:[%s6669 + $0x218] sm:$0xff]
        %v6726 = vld [vmem:[%s6669 + $0x230] sm:$0xff]
        %v6727 = vld [vmem:[%s6669 + $0x238] sm:$0xff]
        %v6728 = vld [vmem:[%s6669 + $0x240] sm:$0xff]
        %v6729 = vld [vmem:[%s6669 + $0x248] sm:$0xff]
        %v6730 = vld [vmem:[%s6669 + $0x250] sm:$0xff]
        %v6731 = vld [vmem:[%s6669 + $0x258] sm:$0xff]
        %v6732 = vld [vmem:[%s6669 + $0x260] sm:$0xff]
        %v6733 = vld [vmem:[%s6669 + $0x268] sm:$0xff]
        %s6734 = scalar_lea.vmem %s5, 384
        %v6735 = vld [vmem:[%s6734] sm:$0xff]
        %v6736 = vld [vmem:[%s6734 + $0x8] sm:$0xff]
        %v6737 = vld [vmem:[%s6734 + $0x10] sm:$0xff]
        %v6738 = vld [vmem:[%s6734 + $0x18] sm:$0xff]
        %v6739 = vld [vmem:[%s6734 + $0x20] sm:$0xff]
        %v6740 = vld [vmem:[%s6734 + $0x28] sm:$0xff]
        %v6742 = vsel %vm2338, %v6670, 0
        %v6745 = vsel %vm2338, %v6671, 0
        %v6748 = vsel %vm2338, %v6672, 0
        %v6751 = vsel %vm2338, %v6673, 0
        %v6754 = vsel %vm2338, %v6674, 0
        %v6757 = vsel %vm2338, %v6675, 0
        %v6760 = vsel %vm2338, %v6676, 0
        %v6763 = vsel %vm2338, %v6677, 0
        %v6766 = vsel %vm2338, %v6678, 0
        %v6769 = vsel %vm2338, %v6679, 0
        %v6772 = vsel %vm2338, %v6680, 0
        %v6775 = vsel %vm2338, %v6681, 0
        %v6778 = vsel %vm2338, %v6682, 0
        %v6781 = vsel %vm2338, %v6683, 0
        %v6784 = vsel %vm2338, %v6684, 0
        %v6787 = vsel %vm2338, %v6685, 0
        %v6790 = vsel %vm2338, %v6686, 0
        %v6793 = vsel %vm2338, %v6687, 0
        %v6796 = vsel %vm2338, %v6688, 0
        %v6799 = vsel %vm2338, %v6689, 0
        %v6802 = vsel %vm2338, %v6690, 0
        %v6805 = vsel %vm2338, %v6691, 0
        %v6808 = vsel %vm2338, %v6692, 0
        %v6811 = vsel %vm2338, %v6693, 0
        %v6814 = vsel %vm2338, %v6694, 0
        %v6817 = vsel %vm2338, %v6695, 0
        %v6820 = vsel %vm2338, %v6696, 0
        %v6823 = vsel %vm2338, %v6697, 0
        %v6826 = vsel %vm2338, %v6698, 0
        %v6829 = vsel %vm2338, %v6699, 0
        %v6832 = vsel %vm2338, %v6700, 0
        %v6835 = vsel %vm2338, %v6701, 0
        %v6838 = vsel %vm2338, %v6702, 0
        %v6841 = vsel %vm2338, %v6703, 0
        %v6844 = vsel %vm2338, %v6704, 0
        %v6847 = vsel %vm2338, %v6705, 0
        %v6850 = vsel %vm2338, %v6706, 0
        %v6853 = vsel %vm2338, %v6707, 0
        %v6856 = vsel %vm2338, %v6708, 0
        %v6859 = vsel %vm2338, %v6709, 0
        %v6862 = vsel %vm2338, %v6710, 0
        %v6865 = vsel %vm2338, %v6711, 0
        %v6868 = vsel %vm2338, %v6712, 0
        %v6871 = vsel %vm2338, %v6713, 0
        %v6874 = vsel %vm2338, %v6714, 0
        %v6877 = vsel %vm2338, %v6715, 0
        %v6880 = vsel %vm2338, %v6716, 0
        %v6883 = vsel %vm2338, %v6717, 0
        %v6886 = vsel %vm2338, %v6718, 0
        %v6889 = vsel %vm2338, %v6719, 0
        %v6892 = vsel %vm2338, %v6720, 0
        %v6895 = vsel %vm2338, %v6721, 0
        %v6898 = vsel %vm2338, %v6722, 0
        %v6901 = vsel %vm2338, %v6723, 0
        %v6904 = vsel %vm2338, %v6724, 0
        %v6907 = vsel %vm2338, %v6725, 0
        %v6910 = vsel %vm2338, %v6726, 0
        %v6913 = vsel %vm2338, %v6727, 0
        %v6916 = vsel %vm2338, %v6728, 0
        %v6919 = vsel %vm2338, %v6729, 0
        %v6922 = vsel %vm2338, %v6730, 0
        %v6925 = vsel %vm2338, %v6731, 0
        %v6928 = vsel %vm2338, %v6732, 0
        %v6931 = vsel %vm2338, %v6733, 0
        %6933 = vmatpush.msra.mxu0 0.0
        %6934 = vmatpush.msra.mxu0 0.0
        %6935 = vmatpush.msra.mxu0 0.0
        %6936 = vmatpush.msra.mxu0 0.0
        %6937 = vmatpush.msra.mxu0 0.0
        %6938 = vmatpush.msra.mxu0 0.0
        %6939 = vmatpush.msra.mxu0 0.0
        %6940 = vmatpush.msra.mxu0 0.0
        %6941 = vmatpush.msra.mxu0 0.0
        %6942 = vmatpush.msra.mxu0 0.0
        %6943 = vmatpush.msra.mxu0 %v6740
        %6944 = vmatpush.msra.mxu0 %v6739
        %6945 = vmatpush.msra.mxu0 %v6738
        %6946 = vmatpush.msra.mxu0 %v6737
        %6947 = vmatpush.msra.mxu0 %v6736
        %6948 = vmatpush.msra.mxu0 %v6735
        %6949 = vmatmul.f32.gmra.mxu0 %v6742
        %v6950 = vpop.f32.mrf.mxu0
        %v6951 = vadd.f32 0.0, %v6950
        %6952 = vmatmul.f32.gmra.mxu0 %v6745
        %v6953 = vpop.f32.mrf.mxu0
        %v6954 = vadd.f32 0.0, %v6953
        %6955 = vmatmul.f32.gmra.mxu0 %v6748
        %v6956 = vpop.f32.mrf.mxu0
        %v6957 = vadd.f32 0.0, %v6956
        %6958 = vmatmul.f32.gmra.mxu0 %v6751
        %v6959 = vpop.f32.mrf.mxu0
        %v6960 = vadd.f32 0.0, %v6959
        %6961 = vmatmul.f32.gmra.mxu0 %v6754
        %v6962 = vpop.f32.mrf.mxu0
        %v6963 = vadd.f32 0.0, %v6962
        %6964 = vmatmul.f32.gmra.mxu0 %v6757
        %v6965 = vpop.f32.mrf.mxu0
        %v6966 = vadd.f32 0.0, %v6965
        %6967 = vmatmul.f32.gmra.mxu0 %v6760
        %v6968 = vpop.f32.mrf.mxu0
        %v6969 = vadd.f32 0.0, %v6968
        %6970 = vmatmul.f32.gmra.mxu0 %v6763
        %v6971 = vpop.f32.mrf.mxu0
        %v6972 = vadd.f32 0.0, %v6971
        %6973 = vmatmul.f32.gmra.mxu0 %v6766
        %v6974 = vpop.f32.mrf.mxu0
        %v6975 = vadd.f32 0.0, %v6974
        %6976 = vmatmul.f32.gmra.mxu0 %v6769
        %v6977 = vpop.f32.mrf.mxu0
        %v6978 = vadd.f32 0.0, %v6977
        %6979 = vmatmul.f32.gmra.mxu0 %v6772
        %v6980 = vpop.f32.mrf.mxu0
        %v6981 = vadd.f32 0.0, %v6980
        %6982 = vmatmul.f32.gmra.mxu0 %v6775
        %v6983 = vpop.f32.mrf.mxu0
        %v6984 = vadd.f32 0.0, %v6983
        %6985 = vmatmul.f32.gmra.mxu0 %v6778
        %v6986 = vpop.f32.mrf.mxu0
        %v6987 = vadd.f32 0.0, %v6986
        %6988 = vmatmul.f32.gmra.mxu0 %v6781
        %v6989 = vpop.f32.mrf.mxu0
        %v6990 = vadd.f32 0.0, %v6989
        %6991 = vmatmul.f32.gmra.mxu0 %v6784
        %v6992 = vpop.f32.mrf.mxu0
        %v6993 = vadd.f32 0.0, %v6992
        %6994 = vmatmul.f32.gmra.mxu0 %v6787
        %v6995 = vpop.f32.mrf.mxu0
        %v6996 = vadd.f32 0.0, %v6995
        %6997 = vmatmul.f32.gmra.mxu0 %v6790
        %v6998 = vpop.f32.mrf.mxu0
        %v6999 = vadd.f32 0.0, %v6998
        %7000 = vmatmul.f32.gmra.mxu0 %v6793
        %v7001 = vpop.f32.mrf.mxu0
        %v7002 = vadd.f32 0.0, %v7001
        %7003 = vmatmul.f32.gmra.mxu0 %v6796
        %v7004 = vpop.f32.mrf.mxu0
        %v7005 = vadd.f32 0.0, %v7004
        %7006 = vmatmul.f32.gmra.mxu0 %v6799
        %v7007 = vpop.f32.mrf.mxu0
        %v7008 = vadd.f32 0.0, %v7007
        %7009 = vmatmul.f32.gmra.mxu0 %v6802
        %v7010 = vpop.f32.mrf.mxu0
        %v7011 = vadd.f32 0.0, %v7010
        %7012 = vmatmul.f32.gmra.mxu0 %v6805
        %v7013 = vpop.f32.mrf.mxu0
        %v7014 = vadd.f32 0.0, %v7013
        %7015 = vmatmul.f32.gmra.mxu0 %v6808
        %v7016 = vpop.f32.mrf.mxu0
        %v7017 = vadd.f32 0.0, %v7016
        %7018 = vmatmul.f32.gmra.mxu0 %v6811
        %v7019 = vpop.f32.mrf.mxu0
        %v7020 = vadd.f32 0.0, %v7019
        %7021 = vmatmul.f32.gmra.mxu0 %v6814
        %v7022 = vpop.f32.mrf.mxu0
        %v7023 = vadd.f32 0.0, %v7022
        %7024 = vmatmul.f32.gmra.mxu0 %v6817
        %v7025 = vpop.f32.mrf.mxu0
        %v7026 = vadd.f32 0.0, %v7025
        %7027 = vmatmul.f32.gmra.mxu0 %v6820
        %v7028 = vpop.f32.mrf.mxu0
        %v7029 = vadd.f32 0.0, %v7028
        %7030 = vmatmul.f32.gmra.mxu0 %v6823
        %v7031 = vpop.f32.mrf.mxu0
        %v7032 = vadd.f32 0.0, %v7031
        %7033 = vmatmul.f32.gmra.mxu0 %v6826
        %v7034 = vpop.f32.mrf.mxu0
        %v7035 = vadd.f32 0.0, %v7034
        %7036 = vmatmul.f32.gmra.mxu0 %v6829
        %v7037 = vpop.f32.mrf.mxu0
        %v7038 = vadd.f32 0.0, %v7037
        %7039 = vmatmul.f32.gmra.mxu0 %v6832
        %v7040 = vpop.f32.mrf.mxu0
        %v7041 = vadd.f32 0.0, %v7040
        %7042 = vmatmul.f32.gmra.mxu0 %v6835
        %v7043 = vpop.f32.mrf.mxu0
        %v7044 = vadd.f32 0.0, %v7043
        %7045 = vmatmul.f32.gmra.mxu0 %v6838
        %v7046 = vpop.f32.mrf.mxu0
        %v7047 = vadd.f32 0.0, %v7046
        %7048 = vmatmul.f32.gmra.mxu0 %v6841
        %v7049 = vpop.f32.mrf.mxu0
        %v7050 = vadd.f32 0.0, %v7049
        %7051 = vmatmul.f32.gmra.mxu0 %v6844
        %v7052 = vpop.f32.mrf.mxu0
        %v7053 = vadd.f32 0.0, %v7052
        %7054 = vmatmul.f32.gmra.mxu0 %v6847
        %v7055 = vpop.f32.mrf.mxu0
        %v7056 = vadd.f32 0.0, %v7055
        %7057 = vmatmul.f32.gmra.mxu0 %v6850
        %v7058 = vpop.f32.mrf.mxu0
        %v7059 = vadd.f32 0.0, %v7058
        %7060 = vmatmul.f32.gmra.mxu0 %v6853
        %v7061 = vpop.f32.mrf.mxu0
        %v7062 = vadd.f32 0.0, %v7061
        %7063 = vmatmul.f32.gmra.mxu0 %v6856
        %v7064 = vpop.f32.mrf.mxu0
        %v7065 = vadd.f32 0.0, %v7064
        %7066 = vmatmul.f32.gmra.mxu0 %v6859
        %v7067 = vpop.f32.mrf.mxu0
        %v7068 = vadd.f32 0.0, %v7067
        %7069 = vmatmul.f32.gmra.mxu0 %v6862
        %v7070 = vpop.f32.mrf.mxu0
        %v7071 = vadd.f32 0.0, %v7070
        %7072 = vmatmul.f32.gmra.mxu0 %v6865
        %v7073 = vpop.f32.mrf.mxu0
        %v7074 = vadd.f32 0.0, %v7073
        %7075 = vmatmul.f32.gmra.mxu0 %v6868
        %v7076 = vpop.f32.mrf.mxu0
        %v7077 = vadd.f32 0.0, %v7076
        %7078 = vmatmul.f32.gmra.mxu0 %v6871
        %v7079 = vpop.f32.mrf.mxu0
        %v7080 = vadd.f32 0.0, %v7079
        %7081 = vmatmul.f32.gmra.mxu0 %v6874
        %v7082 = vpop.f32.mrf.mxu0
        %v7083 = vadd.f32 0.0, %v7082
        %7084 = vmatmul.f32.gmra.mxu0 %v6877
        %v7085 = vpop.f32.mrf.mxu0
        %v7086 = vadd.f32 0.0, %v7085
        %7087 = vmatmul.f32.gmra.mxu0 %v6880
        %v7088 = vpop.f32.mrf.mxu0
        %v7089 = vadd.f32 0.0, %v7088
        %7090 = vmatmul.f32.gmra.mxu0 %v6883
        %v7091 = vpop.f32.mrf.mxu0
        %v7092 = vadd.f32 0.0, %v7091
        %7093 = vmatmul.f32.gmra.mxu0 %v6886
        %v7094 = vpop.f32.mrf.mxu0
        %v7095 = vadd.f32 0.0, %v7094
        %7096 = vmatmul.f32.gmra.mxu0 %v6889
        %v7097 = vpop.f32.mrf.mxu0
        %v7098 = vadd.f32 0.0, %v7097
        %7099 = vmatmul.f32.gmra.mxu0 %v6892
        %v7100 = vpop.f32.mrf.mxu0
        %v7101 = vadd.f32 0.0, %v7100
        %7102 = vmatmul.f32.gmra.mxu0 %v6895
        %v7103 = vpop.f32.mrf.mxu0
        %v7104 = vadd.f32 0.0, %v7103
        %7105 = vmatmul.f32.gmra.mxu0 %v6898
        %v7106 = vpop.f32.mrf.mxu0
        %v7107 = vadd.f32 0.0, %v7106
        %7108 = vmatmul.f32.gmra.mxu0 %v6901
        %v7109 = vpop.f32.mrf.mxu0
        %v7110 = vadd.f32 0.0, %v7109
        %7111 = vmatmul.f32.gmra.mxu0 %v6904
        %v7112 = vpop.f32.mrf.mxu0
        %v7113 = vadd.f32 0.0, %v7112
        %7114 = vmatmul.f32.gmra.mxu0 %v6907
        %v7115 = vpop.f32.mrf.mxu0
        %v7116 = vadd.f32 0.0, %v7115
        %7117 = vmatmul.f32.gmra.mxu0 %v6910
        %v7118 = vpop.f32.mrf.mxu0
        %v7119 = vadd.f32 0.0, %v7118
        %7120 = vmatmul.f32.gmra.mxu0 %v6913
        %v7121 = vpop.f32.mrf.mxu0
        %v7122 = vadd.f32 0.0, %v7121
        %7123 = vmatmul.f32.gmra.mxu0 %v6916
        %v7124 = vpop.f32.mrf.mxu0
        %v7125 = vadd.f32 0.0, %v7124
        %7126 = vmatmul.f32.gmra.mxu0 %v6919
        %v7127 = vpop.f32.mrf.mxu0
        %v7128 = vadd.f32 0.0, %v7127
        %7129 = vmatmul.f32.gmra.mxu0 %v6922
        %v7130 = vpop.f32.mrf.mxu0
        %v7131 = vadd.f32 0.0, %v7130
        %7132 = vmatmul.f32.gmra.mxu0 %v6925
        %v7133 = vpop.f32.mrf.mxu0
        %v7134 = vadd.f32 0.0, %v7133
        %7135 = vmatmul.f32.gmra.mxu0 %v6928
        %v7136 = vpop.f32.mrf.mxu0
        %v7137 = vadd.f32 0.0, %v7136
        %7138 = vmatmul.f32.gmra.mxu0 %v6931
        %v7139 = vpop.f32.mrf.mxu0
        %v7140 = vadd.f32 0.0, %v7139
        %7141 = vdwg.mxu0
        %v7142 = vadd.f32 %v6605, %v6951
        %v7143 = vadd.f32 %v6606, %v6954
        %v7144 = vadd.f32 %v6607, %v6957
        %v7145 = vadd.f32 %v6608, %v6960
        %v7146 = vadd.f32 %v6609, %v6963
        %v7147 = vadd.f32 %v6610, %v6966
        %v7148 = vadd.f32 %v6611, %v6969
        %v7149 = vadd.f32 %v6612, %v6972
        %v7150 = vadd.f32 %v6613, %v6975
        %v7151 = vadd.f32 %v6614, %v6978
        %v7152 = vadd.f32 %v6615, %v6981
        %v7153 = vadd.f32 %v6616, %v6984
        %v7154 = vadd.f32 %v6617, %v6987
        %v7155 = vadd.f32 %v6618, %v6990
        %v7156 = vadd.f32 %v6619, %v6993
        %v7157 = vadd.f32 %v6620, %v6996
        %v7158 = vadd.f32 %v6621, %v6999
        %v7159 = vadd.f32 %v6622, %v7002
        %v7160 = vadd.f32 %v6623, %v7005
        %v7161 = vadd.f32 %v6624, %v7008
        %v7162 = vadd.f32 %v6625, %v7011
        %v7163 = vadd.f32 %v6626, %v7014
        %v7164 = vadd.f32 %v6627, %v7017
        %v7165 = vadd.f32 %v6628, %v7020
        %v7166 = vadd.f32 %v6629, %v7023
        %v7167 = vadd.f32 %v6630, %v7026
        %v7168 = vadd.f32 %v6631, %v7029
        %v7169 = vadd.f32 %v6632, %v7032
        %v7170 = vadd.f32 %v6633, %v7035
        %v7171 = vadd.f32 %v6634, %v7038
        %v7172 = vadd.f32 %v6635, %v7041
        %v7173 = vadd.f32 %v6636, %v7044
        %v7174 = vadd.f32 %v6637, %v7047
        %v7175 = vadd.f32 %v6638, %v7050
        %v7176 = vadd.f32 %v6639, %v7053
        %v7177 = vadd.f32 %v6640, %v7056
        %v7178 = vadd.f32 %v6641, %v7059
        %v7179 = vadd.f32 %v6642, %v7062
        %v7180 = vadd.f32 %v6643, %v7065
        %v7181 = vadd.f32 %v6644, %v7068
        %v7182 = vadd.f32 %v6645, %v7071
        %v7183 = vadd.f32 %v6646, %v7074
        %v7184 = vadd.f32 %v6647, %v7077
        %v7185 = vadd.f32 %v6648, %v7080
        %v7186 = vadd.f32 %v6649, %v7083
        %v7187 = vadd.f32 %v6650, %v7086
        %v7188 = vadd.f32 %v6651, %v7089
        %v7189 = vadd.f32 %v6652, %v7092
        %v7190 = vadd.f32 %v6653, %v7095
        %v7191 = vadd.f32 %v6654, %v7098
        %v7192 = vadd.f32 %v6655, %v7101
        %v7193 = vadd.f32 %v6656, %v7104
        %v7194 = vadd.f32 %v6657, %v7107
        %v7195 = vadd.f32 %v6658, %v7110
        %v7196 = vadd.f32 %v6659, %v7113
        %v7197 = vadd.f32 %v6660, %v7116
        %v7198 = vadd.f32 %v6661, %v7119
        %v7199 = vadd.f32 %v6662, %v7122
        %v7200 = vadd.f32 %v6663, %v7125
        %v7201 = vadd.f32 %v6664, %v7128
        %v7202 = vadd.f32 %v6665, %v7131
        %v7203 = vadd.f32 %v6666, %v7134
        %v7204 = vadd.f32 %v6667, %v7137
        %v7205 = vadd.f32 %v6668, %v7140
        %7270 = vrot.lane.b32.xlu0 %v7142, 4
        %v7271 = vpop.permute.xlu0 %7270
        %7272 = vrot.lane.b32.xlu0 %v7143, 4
        %v7273 = vpop.permute.xlu0 %7272
        %7274 = vrot.lane.b32.xlu0 %v7144, 4
        %v7275 = vpop.permute.xlu0 %7274
        %7276 = vrot.lane.b32.xlu0 %v7145, 4
        %v7277 = vpop.permute.xlu0 %7276
        %7278 = vrot.lane.b32.xlu0 %v7146, 4
        %v7279 = vpop.permute.xlu0 %7278
        %7280 = vrot.lane.b32.xlu0 %v7147, 4
        %v7281 = vpop.permute.xlu0 %7280
        %7282 = vrot.lane.b32.xlu0 %v7148, 4
        %v7283 = vpop.permute.xlu0 %7282
        %7284 = vrot.lane.b32.xlu0 %v7149, 4
        %v7285 = vpop.permute.xlu0 %7284
        %7286 = vrot.lane.b32.xlu0 %v7150, 4
        %v7287 = vpop.permute.xlu0 %7286
        %7288 = vrot.lane.b32.xlu0 %v7151, 4
        %v7289 = vpop.permute.xlu0 %7288
        %7290 = vrot.lane.b32.xlu0 %v7152, 4
        %v7291 = vpop.permute.xlu0 %7290
        %7292 = vrot.lane.b32.xlu0 %v7153, 4
        %v7293 = vpop.permute.xlu0 %7292
        %7294 = vrot.lane.b32.xlu0 %v7154, 4
        %v7295 = vpop.permute.xlu0 %7294
        %7296 = vrot.lane.b32.xlu0 %v7155, 4
        %v7297 = vpop.permute.xlu0 %7296
        %7298 = vrot.lane.b32.xlu0 %v7156, 4
        %v7299 = vpop.permute.xlu0 %7298
        %7300 = vrot.lane.b32.xlu0 %v7157, 4
        %v7301 = vpop.permute.xlu0 %7300
        %7302 = vrot.lane.b32.xlu0 %v7158, 4
        %v7303 = vpop.permute.xlu0 %7302
        %7304 = vrot.lane.b32.xlu0 %v7159, 4
        %v7305 = vpop.permute.xlu0 %7304
        %7306 = vrot.lane.b32.xlu0 %v7160, 4
        %v7307 = vpop.permute.xlu0 %7306
        %7308 = vrot.lane.b32.xlu0 %v7161, 4
        %v7309 = vpop.permute.xlu0 %7308
        %7310 = vrot.lane.b32.xlu0 %v7162, 4
        %v7311 = vpop.permute.xlu0 %7310
        %7312 = vrot.lane.b32.xlu0 %v7163, 4
        %v7313 = vpop.permute.xlu0 %7312
        %7314 = vrot.lane.b32.xlu0 %v7164, 4
        %v7315 = vpop.permute.xlu0 %7314
        %7316 = vrot.lane.b32.xlu0 %v7165, 4
        %v7317 = vpop.permute.xlu0 %7316
        %7318 = vrot.lane.b32.xlu0 %v7166, 4
        %v7319 = vpop.permute.xlu0 %7318
        %7320 = vrot.lane.b32.xlu0 %v7167, 4
        %v7321 = vpop.permute.xlu0 %7320
        %7322 = vrot.lane.b32.xlu0 %v7168, 4
        %v7323 = vpop.permute.xlu0 %7322
        %7324 = vrot.lane.b32.xlu0 %v7169, 4
        %v7325 = vpop.permute.xlu0 %7324
        %7326 = vrot.lane.b32.xlu0 %v7170, 4
        %v7327 = vpop.permute.xlu0 %7326
        %7328 = vrot.lane.b32.xlu0 %v7171, 4
        %v7329 = vpop.permute.xlu0 %7328
        %7330 = vrot.lane.b32.xlu0 %v7172, 4
        %v7331 = vpop.permute.xlu0 %7330
        %7332 = vrot.lane.b32.xlu0 %v7173, 4
        %v7333 = vpop.permute.xlu0 %7332
        %7334 = vrot.lane.b32.xlu0 %v7174, 4
        %v7335 = vpop.permute.xlu0 %7334
        %7336 = vrot.lane.b32.xlu0 %v7175, 4
        %v7337 = vpop.permute.xlu0 %7336
        %7338 = vrot.lane.b32.xlu0 %v7176, 4
        %v7339 = vpop.permute.xlu0 %7338
        %7340 = vrot.lane.b32.xlu0 %v7177, 4
        %v7341 = vpop.permute.xlu0 %7340
        %7342 = vrot.lane.b32.xlu0 %v7178, 4
        %v7343 = vpop.permute.xlu0 %7342
        %7344 = vrot.lane.b32.xlu0 %v7179, 4
        %v7345 = vpop.permute.xlu0 %7344
        %7346 = vrot.lane.b32.xlu0 %v7180, 4
        %v7347 = vpop.permute.xlu0 %7346
        %7348 = vrot.lane.b32.xlu0 %v7181, 4
        %v7349 = vpop.permute.xlu0 %7348
        %7350 = vrot.lane.b32.xlu0 %v7182, 4
        %v7351 = vpop.permute.xlu0 %7350
        %7352 = vrot.lane.b32.xlu0 %v7183, 4
        %v7353 = vpop.permute.xlu0 %7352
        %7354 = vrot.lane.b32.xlu0 %v7184, 4
        %v7355 = vpop.permute.xlu0 %7354
        %7356 = vrot.lane.b32.xlu0 %v7185, 4
        %v7357 = vpop.permute.xlu0 %7356
        %7358 = vrot.lane.b32.xlu0 %v7186, 4
        %v7359 = vpop.permute.xlu0 %7358
        %7360 = vrot.lane.b32.xlu0 %v7187, 4
        %v7361 = vpop.permute.xlu0 %7360
        %7362 = vrot.lane.b32.xlu0 %v7188, 4
        %v7363 = vpop.permute.xlu0 %7362
        %7364 = vrot.lane.b32.xlu0 %v7189, 4
        %v7365 = vpop.permute.xlu0 %7364
        %7366 = vrot.lane.b32.xlu0 %v7190, 4
        %v7367 = vpop.permute.xlu0 %7366
        %7368 = vrot.lane.b32.xlu0 %v7191, 4
        %v7369 = vpop.permute.xlu0 %7368
        %7370 = vrot.lane.b32.xlu0 %v7192, 4
        %v7371 = vpop.permute.xlu0 %7370
        %7372 = vrot.lane.b32.xlu0 %v7193, 4
        %v7373 = vpop.permute.xlu0 %7372
        %7374 = vrot.lane.b32.xlu0 %v7194, 4
        %v7375 = vpop.permute.xlu0 %7374
        %7376 = vrot.lane.b32.xlu0 %v7195, 4
        %v7377 = vpop.permute.xlu0 %7376
        %7378 = vrot.lane.b32.xlu0 %v7196, 4
        %v7379 = vpop.permute.xlu0 %7378
        %7380 = vrot.lane.b32.xlu0 %v7197, 4
        %v7381 = vpop.permute.xlu0 %7380
        %7382 = vrot.lane.b32.xlu0 %v7198, 4
        %v7383 = vpop.permute.xlu0 %7382
        %7384 = vrot.lane.b32.xlu0 %v7199, 4
        %v7385 = vpop.permute.xlu0 %7384
        %7386 = vrot.lane.b32.xlu0 %v7200, 4
        %v7387 = vpop.permute.xlu0 %7386
        %7388 = vrot.lane.b32.xlu0 %v7201, 4
        %v7389 = vpop.permute.xlu0 %7388
        %7390 = vrot.lane.b32.xlu0 %v7202, 4
        %v7391 = vpop.permute.xlu0 %7390
        %7392 = vrot.lane.b32.xlu0 %v7203, 4
        %v7393 = vpop.permute.xlu0 %7392
        %7394 = vrot.lane.b32.xlu0 %v7204, 4
        %v7395 = vpop.permute.xlu0 %7394
        %7396 = vrot.lane.b32.xlu0 %v7205, 4
        %v7397 = vpop.permute.xlu0 %7396
        %v7462 = vsel %vm519, %v250, %v7271
        %v7463 = vsel %vm519, %v251, %v7273
        %v7464 = vsel %vm519, %v252, %v7275
        %v7465 = vsel %vm519, %v253, %v7277
        %v7466 = vsel %vm519, %v254, %v7279
        %v7467 = vsel %vm519, %v255, %v7281
        %v7468 = vsel %vm519, %v256, %v7283
        %v7469 = vsel %vm519, %v257, %v7285
        %v7470 = vsel %vm519, %v258, %v7287
        %v7471 = vsel %vm519, %v259, %v7289
        %v7472 = vsel %vm519, %v260, %v7291
        %v7473 = vsel %vm519, %v261, %v7293
        %v7474 = vsel %vm519, %v262, %v7295
        %v7475 = vsel %vm519, %v263, %v7297
        %v7476 = vsel %vm519, %v264, %v7299
        %v7477 = vsel %vm519, %v265, %v7301
        %v7478 = vsel %vm519, %v266, %v7303
        %v7479 = vsel %vm519, %v267, %v7305
        %v7480 = vsel %vm519, %v268, %v7307
        %v7481 = vsel %vm519, %v269, %v7309
        %v7482 = vsel %vm519, %v270, %v7311
        %v7483 = vsel %vm519, %v271, %v7313
        %v7484 = vsel %vm519, %v272, %v7315
        %v7485 = vsel %vm519, %v273, %v7317
        %v7486 = vsel %vm519, %v274, %v7319
        %v7487 = vsel %vm519, %v275, %v7321
        %v7488 = vsel %vm519, %v276, %v7323
        %v7489 = vsel %vm519, %v277, %v7325
        %v7490 = vsel %vm519, %v278, %v7327
        %v7491 = vsel %vm519, %v279, %v7329
        %v7492 = vsel %vm519, %v280, %v7331
        %v7493 = vsel %vm519, %v281, %v7333
        %v7494 = vsel %vm519, %v282, %v7335
        %v7495 = vsel %vm519, %v283, %v7337
        %v7496 = vsel %vm519, %v284, %v7339
        %v7497 = vsel %vm519, %v285, %v7341
        %v7498 = vsel %vm519, %v286, %v7343
        %v7499 = vsel %vm519, %v287, %v7345
        %v7500 = vsel %vm519, %v288, %v7347
        %v7501 = vsel %vm519, %v289, %v7349
        %v7502 = vsel %vm519, %v290, %v7351
        %v7503 = vsel %vm519, %v291, %v7353
        %v7504 = vsel %vm519, %v292, %v7355
        %v7505 = vsel %vm519, %v293, %v7357
        %v7506 = vsel %vm519, %v294, %v7359
        %v7507 = vsel %vm519, %v295, %v7361
        %v7508 = vsel %vm519, %v296, %v7363
        %v7509 = vsel %vm519, %v297, %v7365
        %v7510 = vsel %vm519, %v298, %v7367
        %v7511 = vsel %vm519, %v299, %v7369
        %v7512 = vsel %vm519, %v300, %v7371
        %v7513 = vsel %vm519, %v301, %v7373
        %v7514 = vsel %vm519, %v302, %v7375
        %v7515 = vsel %vm519, %v303, %v7377
        %v7516 = vsel %vm519, %v304, %v7379
        %v7517 = vsel %vm519, %v305, %v7381
        %v7518 = vsel %vm519, %v306, %v7383
        %v7519 = vsel %vm519, %v307, %v7385
        %v7520 = vsel %vm519, %v308, %v7387
        %v7521 = vsel %vm519, %v309, %v7389
        %v7522 = vsel %vm519, %v310, %v7391
        %v7523 = vsel %vm519, %v311, %v7393
        %v7524 = vsel %vm519, %v312, %v7395
        %v7525 = vsel %vm519, %v313, %v7397
        %vm7526 = vcmask 64512
        %7527 = vst.msk [vmem:[%s244] sm:$0xff] %vm7526, %v7462
        %7528 = vst.msk [vmem:[%s244 + $0x8] sm:$0xff] %vm7526, %v7463
        %7529 = vst.msk [vmem:[%s244 + $0x10] sm:$0xff] %vm7526, %v7464
        %7530 = vst.msk [vmem:[%s244 + $0x18] sm:$0xff] %vm7526, %v7465
        %7531 = vst.msk [vmem:[%s244 + $0x20] sm:$0xff] %vm7526, %v7466
        %7532 = vst.msk [vmem:[%s244 + $0x28] sm:$0xff] %vm7526, %v7467
        %7533 = vst.msk [vmem:[%s244 + $0x30] sm:$0xff] %vm7526, %v7468
        %7534 = vst.msk [vmem:[%s244 + $0x38] sm:$0xff] %vm7526, %v7469
        %7535 = vst.msk [vmem:[%s244 + $0x40] sm:$0xff] %vm7526, %v7470
        %7536 = vst.msk [vmem:[%s244 + $0x48] sm:$0xff] %vm7526, %v7471
        %7537 = vst.msk [vmem:[%s244 + $0x50] sm:$0xff] %vm7526, %v7472
        %7538 = vst.msk [vmem:[%s244 + $0x58] sm:$0xff] %vm7526, %v7473
        %7539 = vst.msk [vmem:[%s244 + $0x60] sm:$0xff] %vm7526, %v7474
        %7540 = vst.msk [vmem:[%s244 + $0x68] sm:$0xff] %vm7526, %v7475
        %7541 = vst.msk [vmem:[%s244 + $0x70] sm:$0xff] %vm7526, %v7476
        %7542 = vst.msk [vmem:[%s244 + $0x78] sm:$0xff] %vm7526, %v7477
        %7543 = vst.msk [vmem:[%s244 + $0x80] sm:$0xff] %vm7526, %v7478
        %7544 = vst.msk [vmem:[%s244 + $0x88] sm:$0xff] %vm7526, %v7479
        %7545 = vst.msk [vmem:[%s244 + $0x90] sm:$0xff] %vm7526, %v7480
        %7546 = vst.msk [vmem:[%s244 + $0x98] sm:$0xff] %vm7526, %v7481
        %7547 = vst.msk [vmem:[%s244 + $0xa0] sm:$0xff] %vm7526, %v7482
        %7548 = vst.msk [vmem:[%s244 + $0xa8] sm:$0xff] %vm7526, %v7483
        %7549 = vst.msk [vmem:[%s244 + $0xb0] sm:$0xff] %vm7526, %v7484
        %7550 = vst.msk [vmem:[%s244 + $0xb8] sm:$0xff] %vm7526, %v7485
        %7551 = vst.msk [vmem:[%s244 + $0xc0] sm:$0xff] %vm7526, %v7486
        %7552 = vst.msk [vmem:[%s244 + $0xc8] sm:$0xff] %vm7526, %v7487
        %7553 = vst.msk [vmem:[%s244 + $0xd0] sm:$0xff] %vm7526, %v7488
        %7554 = vst.msk [vmem:[%s244 + $0xd8] sm:$0xff] %vm7526, %v7489
        %7555 = vst.msk [vmem:[%s244 + $0xe0] sm:$0xff] %vm7526, %v7490
        %7556 = vst.msk [vmem:[%s244 + $0xe8] sm:$0xff] %vm7526, %v7491
        %7557 = vst.msk [vmem:[%s244 + $0xf0] sm:$0xff] %vm7526, %v7492
        %7558 = vst.msk [vmem:[%s244 + $0xf8] sm:$0xff] %vm7526, %v7493
        %7559 = vst.msk [vmem:[%s244 + $0x100] sm:$0xff] %vm7526, %v7494
        %7560 = vst.msk [vmem:[%s244 + $0x108] sm:$0xff] %vm7526, %v7495
        %7561 = vst.msk [vmem:[%s244 + $0x110] sm:$0xff] %vm7526, %v7496
        %7562 = vst.msk [vmem:[%s244 + $0x118] sm:$0xff] %vm7526, %v7497
        %7563 = vst.msk [vmem:[%s244 + $0x120] sm:$0xff] %vm7526, %v7498
        %7564 = vst.msk [vmem:[%s244 + $0x128] sm:$0xff] %vm7526, %v7499
        %7565 = vst.msk [vmem:[%s244 + $0x130] sm:$0xff] %vm7526, %v7500
        %7566 = vst.msk [vmem:[%s244 + $0x138] sm:$0xff] %vm7526, %v7501
        %7567 = vst.msk [vmem:[%s244 + $0x140] sm:$0xff] %vm7526, %v7502
        %7568 = vst.msk [vmem:[%s244 + $0x148] sm:$0xff] %vm7526, %v7503
        %7569 = vst.msk [vmem:[%s244 + $0x150] sm:$0xff] %vm7526, %v7504
        %7570 = vst.msk [vmem:[%s244 + $0x158] sm:$0xff] %vm7526, %v7505
        %7571 = vst.msk [vmem:[%s244 + $0x160] sm:$0xff] %vm7526, %v7506
        %7572 = vst.msk [vmem:[%s244 + $0x168] sm:$0xff] %vm7526, %v7507
        %7573 = vst.msk [vmem:[%s244 + $0x170] sm:$0xff] %vm7526, %v7508
        %7574 = vst.msk [vmem:[%s244 + $0x178] sm:$0xff] %vm7526, %v7509
        %7575 = vst.msk [vmem:[%s244 + $0x180] sm:$0xff] %vm7526, %v7510
        %7576 = vst.msk [vmem:[%s244 + $0x188] sm:$0xff] %vm7526, %v7511
        %7577 = vst.msk [vmem:[%s244 + $0x190] sm:$0xff] %vm7526, %v7512
        %7578 = vst.msk [vmem:[%s244 + $0x198] sm:$0xff] %vm7526, %v7513
        %7579 = vst.msk [vmem:[%s244 + $0x1a0] sm:$0xff] %vm7526, %v7514
        %7580 = vst.msk [vmem:[%s244 + $0x1a8] sm:$0xff] %vm7526, %v7515
        %7581 = vst.msk [vmem:[%s244 + $0x1b0] sm:$0xff] %vm7526, %v7516
        %7582 = vst.msk [vmem:[%s244 + $0x1b8] sm:$0xff] %vm7526, %v7517
        %7583 = vst.msk [vmem:[%s244 + $0x1c0] sm:$0xff] %vm7526, %v7518
        %7584 = vst.msk [vmem:[%s244 + $0x1c8] sm:$0xff] %vm7526, %v7519
        %7585 = vst.msk [vmem:[%s244 + $0x1d0] sm:$0xff] %vm7526, %v7520
        %7586 = vst.msk [vmem:[%s244 + $0x1d8] sm:$0xff] %vm7526, %v7521
        %7587 = vst.msk [vmem:[%s244 + $0x1e0] sm:$0xff] %vm7526, %v7522
        %7588 = vst.msk [vmem:[%s244 + $0x1e8] sm:$0xff] %vm7526, %v7523
        %7589 = vst.msk [vmem:[%s244 + $0x1f0] sm:$0xff] %vm7526, %v7524
        %7590 = vst.msk [vmem:[%s244 + $0x1f8] sm:$0xff] %vm7526, %v7525
        %s7591 = sand.u32 %s159, 1
        %s7592 = scalar_lea.sflag [#allocation4], %s7591
        %s7593 = sand.u32 %s159, 1
        %s7594 = smul.addr %s7593, 512
        %s7595 = scalar_lea.vmem [#allocation3], %s7594
        // Predicated region
        $region45: #{tpu_custom_call.1} parent=43 // pred_check
          %p7596 = pneg %p169
        $region46: #{tpu_custom_call.1} parent=43 // pred_check_branch
          %7598 = sbr.rel (%p7596) target = $region48
        $region47: #{tpu_custom_call.1} parent=43 // pred_region
          %7600 = vsyncadd %s7592, 0
          %s7601 = smul.addr %s20, 64
          %s7602 = smul.addr %s7601, 8
          %s7603 = scalar_lea.hbm %s6, %s7602
          %s7604 = sshll.u32 %s7595, 4
          %s7605 = int_to_ptr.vmem [resolvable:$true] %s7604
          %s7606 = sshll.u32 %s7603, 4
          %s7607 = int_to_ptr.hbm [resolvable:$true] %s7606
          %7612 = dma.vmem_to_hbm [thread:$0]  %s7605, 8192, %s7607, %s7592, 128, 128, 8
        $region48: #{tpu_custom_call.1} parent=43 // pred_fallthru
          _
      $region44: #{tpu_custom_call.1} parent=5 // pred_fallthru
        _
      %p7613 = scmp.le.s32.totalorder 2, %s15
      // Predicated region
      $region49: #{tpu_custom_call.1} parent=5 // pred_check
        %p7614 = pneg %p7613
      $region50: #{tpu_custom_call.1} parent=5 // pred_check_branch
        %7616 = sbr.rel (%p7614) target = $region52
      $region51: #{tpu_custom_call.1} parent=5 // pred_region
        %s7617 = ssub.s32 %s15, 2
        // Predicated region
        $region53: #{tpu_custom_call.1} parent=51 // pred_check
          %p7618 = pneg %p175
        $region54: #{tpu_custom_call.1} parent=51 // pred_check_branch
          %7620 = sbr.rel (%p7618) target = $region56
        $region55: #{tpu_custom_call.1} parent=51 // pred_region
          %s7621 = sand.u32 %s160, 1
          %s7622 = scalar_lea.sflag [#allocation4], %s7621
          %s7623 = sand.u32 %s160, 1
          %s7624 = smul.addr %s7623, 512
          %s7625 = scalar_lea.vmem [#allocation3], %s7624
          %7627 = dma.done %s7622, 8192
        $region56: #{tpu_custom_call.1} parent=51 // pred_fallthru
          _
      $region52: #{tpu_custom_call.1} parent=5 // pred_fallthru
        _
    $region6: #{tpu_custom_call.1} parent=1 // loop_footer
      %s19 = sadd.s32 1, %s15
    $region7: #{tpu_custom_call.1} parent=1 // loop_footer_branch
      %14 = sbr.rel target = $region3
    $region8: #{tpu_custom_call.1} parent=1 // loop_exit
      _
    %7628 = vsyncpa [#allocation4], 1
    %s7629 = scalar_lea.sflag [#allocation4], 1
    %7630 = vsyncpa %s7629, 1

</llo_original>
